<compile_context>
chip_gen: v7x
topology: tpu7x:2x2x1
jax: 0.10.0
libtpu: 0.0.40
codegen_flags: <defaults>
</compile_context>

<pallas_src>
import jax
import jax.numpy as jnp
from jax import lax
from jax.experimental import pallas as pl
from jax.experimental.pallas import tpu as pltpu


def _make_bilstm_kernel(num_layers, T, H, n_bufs):
    H2, H4, H8 = 2 * H, 4 * H, 8 * H

    def kernel(*refs):
        x_ref = refs[0]                    # (T, TB)   f32
        wih0_ref = refs[1]                 # (8H, 1)   f32   layer-0 [fwd; bwd]
        b_ref = refs[2]                    # (L, 8H, 1) f32  folded biases
        k = 3
        wihr_ref = None
        if num_layers > 1:
            wihr_ref = refs[k]             # (L-1, 8H, 2H) bf16
            k += 1
        whh_ref = refs[k]                  # (L, 8H, 2H) bf16 block-diag(hh_f, hh_b)
        wout_ref = refs[k + 1]             # (n_class, 2H) bf16
        bout_ref = refs[k + 2]             # (n_class, 1) f32
        out_ref = refs[k + 3]              # (n_class, TB) f32
        gx_ref = refs[k + 4]               # (8H, T*TB) f32 : input proj + bias
        seq_bufs = refs[k + 5:]            # n_bufs x (2H, T*TB) bf16

        TB = out_ref.shape[1]

        def cell(gates, c_prev):
            i = jax.nn.sigmoid(gates[0:H, :])
            f = jax.nn.sigmoid(gates[H:2 * H, :])
            g = jnp.tanh(gates[2 * H:3 * H, :])
            o = jax.nn.sigmoid(gates[3 * H:4 * H, :])
            c = f * c_prev + i * g
            h = o * jnp.tanh(c)
            return h, c

        h_both = None
        for l in range(num_layers):
            read_buf = seq_bufs[(l - 1) % n_bufs] if l > 0 else None
            write_buf = seq_bufs[l % n_bufs] if l < num_layers - 1 else None
            b_l = b_ref[l]                                       # (8H, 1)

            # ---- hoisted input projection + folded bias (off critical path) ----
            if l == 0:
                w0 = wih0_ref[...]                               # (8H, 1)

                def init_gx(t, carry):
                    xt = x_ref[pl.ds(t, 1), :]                   # (1, TB)
                    col = pl.multiple_of(t * TB, 128)
                    gx_ref[:, pl.ds(col, TB)] = w0 * xt + b_l
                    return carry

                lax.fori_loop(0, T, init_gx, 0, unroll=(T <= 16))
            else:
                wih = wihr_ref[l - 1]                            # (8H, 2H) bf16
                gx_ref[...] = jnp.dot(
                    wih, read_buf[...],
                    preferred_element_type=jnp.float32) + b_l

            whh_bd = whh_ref[l]                                  # (8H, 2H) bf16

            def step(s, carry, whh_bd=whh_bd, write_buf=write_buf):
                hb2, cf, cb = carry                              # (2H,TB),(H,TB),(H,TB)
                col_f = pl.multiple_of(s * TB, 128)              # forward time = s
                col_b = pl.multiple_of((T - 1 - s) * TB, 128)    # backward time
                # One fused block-diagonal recurrence matmul per step.
                g_rec = jnp.dot(whh_bd, hb2.astype(jnp.bfloat16),
                                preferred_element_type=jnp.float32)   # (8H, TB)
                gates_f = g_rec[0:H4, :] + gx_ref[0:H4, pl.ds(col_f, TB)]
                gates_b = g_rec[H4:H8, :] + gx_ref[H4:H8, pl.ds(col_b, TB)]
                hf, cf = cell(gates_f, cf)
                hb, cb = cell(gates_b, cb)
                if write_buf is not None:
                    write_buf[0:H, pl.ds(col_f, TB)] = hf.astype(jnp.bfloat16)
                    write_buf[H:H2, pl.ds(col_b, TB)] = hb.astype(jnp.bfloat16)
                return jnp.concatenate([hf, hb], axis=0), cf, cb

            z = jnp.zeros((H, TB), jnp.float32)
            h_both, _, _ = lax.fori_loop(
                0, T, step, (jnp.zeros((H2, TB), jnp.float32), z, z),
                unroll=(T <= 16))

        # features = cat(forward_final, backward_final); Linear(2H -> n_class)
        out_ref[...] = (jnp.dot(wout_ref[...], h_both.astype(jnp.bfloat16),
                                preferred_element_type=jnp.float32)
                        + bout_ref[...])

    return kernel


def _pick_batch_tile(B, T, H, n_bufs, n_class, vmem_budget):
    """Largest lane-dense batch tile whose VMEM footprint fits the budget."""
    per_lane = (2 * T * 4                     # x block (double-buffered)
                + 2 * n_class * 4             # out block (double-buffered)
                + 8 * H * T * 4               # gx scratch (f32)
                + n_bufs * 2 * H * T * 2)     # inter-layer seq scratch (bf16)
    cap = max(128, (int(vmem_budget // per_lane) // 128) * 128)
    bp_min = pl.cdiv(B, 128) * 128
    tb = min(cap, 1024, bp_min)
    # Prefer >=2 grid steps (so the "parallel" batch axis can shard across the
    # two TensorCores on v7x) whenever halving the tile adds no padding.
    if bp_min >= 256 and tb >= bp_min:
        tb = max(128, ((bp_min // 2) // 128) * 128)
    return tb


def bilstm_forward(x, params, *, hidden_size, num_layers):
    """Pallas-TPU forward of the PyTorch BiLSTM module (eval semantics)."""
    H = hidden_size
    B, T = x.shape
    n_class = params["out_weight"].shape[0]
    n_bufs = 0 if num_layers == 1 else (1 if num_layers == 2 else 2)

    try:
        vmem_cap = int(pltpu.get_tpu_info().vmem_capacity_bytes)
    except Exception:
        vmem_cap = 64 * 1024 * 1024
    budget = int(vmem_cap * 0.6)              # headroom for weights/transients
    TB = _pick_batch_tile(B, T, H, n_bufs, n_class, budget)
    Bp = pl.cdiv(B, TB) * TB

    xt = jnp.transpose(x.astype(jnp.float32))                    # (T, B)
    if Bp != B:
        xt = jnp.pad(xt, ((0, 0), (0, Bp - B)))

    # ---- pack weights into a handful of stacked, MXU-ready arrays ----
    def fold_bias(l, suf):
        return params[f"bias_ih_l{l}{suf}"] + params[f"bias_hh_l{l}{suf}"]

    w_ih0 = jnp.concatenate(
        [params["weight_ih_l0"], params["weight_ih_l0_reverse"]],
        axis=0).astype(jnp.float32)                              # (8H, 1)
    biases = jnp.stack(
        [jnp.concatenate([fold_bias(l, ""), fold_bias(l, "_reverse")])
         for l in range(num_layers)], axis=0).astype(jnp.float32)[..., None]

    def blockdiag(l):
        wf = params[f"weight_hh_l{l}"]
        wb = params[f"weight_hh_l{l}_reverse"]
        z = jnp.zeros_like(wf)
        return jnp.concatenate(
            [jnp.concatenate([wf, z], axis=1),
             jnp.concatenate([z, wb], axis=1)], axis=0)          # (8H, 2H)

    w_hh_bd = jnp.stack([blockdiag(l) for l in range(num_layers)],
                        axis=0).astype(jnp.bfloat16)             # (L, 8H, 2H)

    weight_args = [w_ih0, biases]
    if num_layers > 1:
        w_ih_rest = jnp.stack(
            [jnp.concatenate([params[f"weight_ih_l{l}"],
                              params[f"weight_ih_l{l}_reverse"]], axis=0)
             for l in range(1, num_layers)],
            axis=0).astype(jnp.bfloat16)                         # (L-1, 8H, 2H)
        weight_args.append(w_ih_rest)
    weight_args.append(w_hh_bd)
    weight_args.append(params["out_weight"].astype(jnp.bfloat16))
    weight_args.append(params["out_bias"].reshape(n_class, 1).astype(jnp.float32))

    def resident_spec(a):
        zeros = (0,) * a.ndim
        return pl.BlockSpec(a.shape, lambda i, _z=zeros: _z)

    in_specs = [pl.BlockSpec((T, TB), lambda i: (0, i))]
    in_specs += [resident_spec(a) for a in weight_args]

    scratch_shapes = [pltpu.VMEM((8 * H, T * TB), jnp.float32)]
    scratch_shapes += [pltpu.VMEM((2 * H, T * TB), jnp.bfloat16)
                       for _ in range(n_bufs)]

    weight_bytes = sum(int(a.size) * a.dtype.itemsize for a in weight_args)
    est = (2 * T * TB * 4 + 2 * n_class * TB * 4 + 8 * H * T * TB * 4
           + n_bufs * 2 * H * T * TB * 2 + 2 * weight_bytes + (4 << 20))
    vmem_limit = int(min(vmem_cap - (4 << 20), max(2 * est, 32 << 20)))

    kernel = _make_bilstm_kernel(num_layers, T, H, n_bufs)

    out = pl.pallas_call(
        kernel,
        out_shape=jax.ShapeDtypeStruct((n_class, Bp), jnp.float32),
        grid_spec=pltpu.PrefetchScalarGridSpec(
            num_scalar_prefetch=0,
            grid=(Bp // TB,),
            in_specs=in_specs,
            out_specs=pl.BlockSpec((n_class, TB), lambda i: (0, i)),
            scratch_shapes=scratch_shapes),
        compiler_params=pltpu.CompilerParams(
            dimension_semantics=("parallel",),
            vmem_limit_bytes=vmem_limit),
    )(xt, *weight_args)

    return out[:, :B].T                                          # (B, n_class)


def bilstm_reference(x, params, *, hidden_size, num_layers):
    """Pure-JAX reference mirroring the PyTorch forward (eval mode)."""
    H = hidden_size
    B, T = x.shape
    HP = lax.Precision.HIGHEST

    layer_in = x.astype(jnp.float32)[:, :, None]                 # (B, T, 1)
    h_f = h_b = None
    for l in range(num_layers):
        dir_seq, finals = [], []
        for suf, reverse in (("", False), ("_reverse", True)):
            w_ih = params[f"weight_ih_l{l}{suf}"]
            w_hh = params[f"weight_hh_l{l}{suf}"]
            b = params[f"bias_ih_l{l}{suf}"] + params[f"bias_hh_l{l}{suf}"]
            h = jnp.zeros((B, H), jnp.float32)
            c = jnp.zeros((B, H), jnp.float32)
            hs = [None] * T
            order = range(T - 1, -1, -1) if reverse else range(T)
            for t in order:
                g_all = (jnp.dot(layer_in[:, t, :], w_ih.T, precision=HP)
                         + jnp.dot(h, w_hh.T, precision=HP) + b)
                i = jax.nn.sigmoid(g_all[:, 0:H])
                f = jax.nn.sigmoid(g_all[:, H:2 * H])
                g = jnp.tanh(g_all[:, 2 * H:3 * H])
                o = jax.nn.sigmoid(g_all[:, 3 * H:4 * H])
                c = f * c + i * g
                h = o * jnp.tanh(c)
                hs[t] = h
            dir_seq.append(jnp.stack(hs, axis=1))                # (B, T, H)
            finals.append(h)
        layer_in = jnp.concatenate(dir_seq, axis=-1)             # (B, T, 2H)
        h_f, h_b = finals
    features = jnp.concatenate([h_f, h_b], axis=1)               # (B, 2H)
    return (jnp.dot(features, params["out_weight"].T, precision=HP)
            + params["out_bias"])


if __name__ == "__main__":
    B, T, H, num_layers, n_class = 2, 8, 32, 2, 4

    keys = iter(jax.random.split(jax.random.PRNGKey(0), 32))
    params = {}
    for l in range(num_layers):
        in_dim = 1 if l == 0 else 2 * H
        for suf in ("", "_reverse"):
            params[f"weight_ih_l{l}{suf}"] = 0.3 * jax.random.normal(
                next(keys), (4 * H, in_dim), jnp.float32)
            params[f"weight_hh_l{l}{suf}"] = 0.3 * jax.random.normal(
                next(keys), (4 * H, H), jnp.float32)
            params[f"bias_ih_l{l}{suf}"] = 0.1 * jax.random.normal(
                next(keys), (4 * H,), jnp.float32)
            params[f"bias_hh_l{l}{suf}"] = 0.1 * jax.random.normal(
                next(keys), (4 * H,), jnp.float32)
    params["out_weight"] = 0.3 * jax.random.normal(
        next(keys), (n_class, 2 * H), jnp.float32)
    params["out_bias"] = 0.1 * jax.random.normal(
        next(keys), (n_class,), jnp.float32)

    x = jax.random.normal(next(keys), (B, T), jnp.float32)

    out = jax.block_until_ready(
        bilstm_forward(x, params, hidden_size=H, num_layers=num_layers))
    ref = bilstm_reference(x, params, hidden_size=H, num_layers=num_layers)

    # Tolerance loosened vs. the pure-f32 version: MXU operands are bf16 with
    # f32 accumulation (per performance review); errors stay well below 5e-2.
    max_err = float(jnp.max(jnp.abs(out - ref)))
    if out.shape != (B, n_class) or not bool(jnp.isfinite(max_err)) or max_err > 5e-2:
        raise AssertionError(f"mismatch: shape={out.shape}, max_err={max_err}")
    print("KERNEL_OK")
</pallas_src>

<mosaic_0001>
module attributes {stable_mosaic.version = 11 : i64} {
  func.func @kernel(%arg0: i32, %arg1: memref<8x128xf32, #tpu.memory_space<vmem>>, %arg2: memref<256x1xf32, #tpu.memory_space<vmem>>, %arg3: memref<2x256x1xf32, #tpu.memory_space<vmem>>, %arg4: memref<1x256x64xbf16, #tpu.memory_space<vmem>>, %arg5: memref<2x256x64xbf16, #tpu.memory_space<vmem>>, %arg6: memref<4x64xbf16, #tpu.memory_space<vmem>>, %arg7: memref<4x1xf32, #tpu.memory_space<vmem>>, %arg8: memref<4x128xf32, #tpu.memory_space<vmem>>, %arg9: memref<256x1024xf32, #tpu.memory_space<vmem>>, %arg10: memref<64x1024xbf16, #tpu.memory_space<vmem>>) attributes {dimension_semantics = [#tpu.dimension_semantics<parallel>], iteration_bounds = array<i64: 1>, scalar_prefetch = 0 : i64, scratch_operands = 2 : i64, tpu.core_type = #tpu.core_type<tc>, window_params = [{transform_indices = @transform_0, window_bounds = array<i64: 8, 128>}, {pipeline_mode = #tpu.pipeline_mode<synchronous>, transform_indices = @transform_1, window_bounds = array<i64: 256, 1>}, {pipeline_mode = #tpu.pipeline_mode<synchronous>, transform_indices = @transform_2, window_bounds = array<i64: 2, 256, 1>}, {pipeline_mode = #tpu.pipeline_mode<synchronous>, transform_indices = @transform_3, window_bounds = array<i64: 1, 256, 64>}, {pipeline_mode = #tpu.pipeline_mode<synchronous>, transform_indices = @transform_4, window_bounds = array<i64: 2, 256, 64>}, {pipeline_mode = #tpu.pipeline_mode<synchronous>, transform_indices = @transform_5, window_bounds = array<i64: 4, 64>}, {pipeline_mode = #tpu.pipeline_mode<synchronous>, transform_indices = @transform_6, window_bounds = array<i64: 4, 1>}, {transform_indices = @transform_7, window_bounds = array<i64: 4, 128>}]} {
    %c0 = arith.constant 0 : index
    %c0_0 = arith.constant 0 : index
    %c0_1 = arith.constant 0 : index
    %0 = vector.load %arg3[%c0, %c0_0, %c0_1] : memref<2x256x1xf32, #tpu.memory_space<vmem>>, vector<1x256x1xf32>
    %1 = vector.shape_cast %0 : vector<1x256x1xf32> to vector<256x1xf32>
    %c0_2 = arith.constant 0 : index
    %c0_3 = arith.constant 0 : index
    %2 = vector.load %arg2[%c0_2, %c0_3] : memref<256x1xf32, #tpu.memory_space<vmem>>, vector<256x1xf32>
    %c0_i32 = arith.constant 0 : i32
    %3 = arith.index_cast %c0_i32 : i32 to index
    %c0_4 = arith.constant 0 : index
    %4 = vector.load %arg1[%3, %c0_4] : memref<8x128xf32, #tpu.memory_space<vmem>>, vector<1x128xf32>
    %c128_i32 = arith.constant 128 : i32
    %5 = arith.muli %c0_i32, %c128_i32 : i32
    %6 = tpu.assume_multiple %5, 128 : i32
    %7 = vector.broadcast %2 : vector<256x1xf32> to vector<256x128xf32>
    %8 = vector.broadcast %4 : vector<1x128xf32> to vector<256x128xf32>
    %9 = arith.mulf %7, %8 : vector<256x128xf32>
    %10 = vector.broadcast %1 : vector<256x1xf32> to vector<256x128xf32>
    %11 = arith.addf %9, %10 : vector<256x128xf32>
    %c0_5 = arith.constant 0 : index
    %12 = arith.index_cast %6 : i32 to index
    %13 = vector.load %arg9[%c0_5, %12] : memref<256x1024xf32, #tpu.memory_space<vmem>>, vector<256x128xf32>
    tpu.vector_store %arg9[%c0_5, %12], %11 {strides = array<i32>} : memref<256x1024xf32, #tpu.memory_space<vmem>>, vector<256x128xf32>,
    %c1_i32 = arith.constant 1 : i32
    %14 = arith.index_cast %c1_i32 : i32 to index
    %c0_6 = arith.constant 0 : index
    %15 = vector.load %arg1[%14, %c0_6] : memref<8x128xf32, #tpu.memory_space<vmem>>, vector<1x128xf32>
    %c128_i32_7 = arith.constant 128 : i32
    %16 = arith.muli %c1_i32, %c128_i32_7 : i32
    %17 = tpu.assume_multiple %16, 128 : i32
    %18 = vector.broadcast %2 : vector<256x1xf32> to vector<256x128xf32>
    %19 = vector.broadcast %15 : vector<1x128xf32> to vector<256x128xf32>
    %20 = arith.mulf %18, %19 : vector<256x128xf32>
    %21 = vector.broadcast %1 : vector<256x1xf32> to vector<256x128xf32>
    %22 = arith.addf %20, %21 : vector<256x128xf32>
    %c0_8 = arith.constant 0 : index
    %23 = arith.index_cast %17 : i32 to index
    %24 = vector.load %arg9[%c0_8, %23] : memref<256x1024xf32, #tpu.memory_space<vmem>>, vector<256x128xf32>
    tpu.vector_store %arg9[%c0_8, %23], %22 {strides = array<i32>} : memref<256x1024xf32, #tpu.memory_space<vmem>>, vector<256x128xf32>,
    %c2_i32 = arith.constant 2 : i32
    %25 = arith.index_cast %c2_i32 : i32 to index
    %c0_9 = arith.constant 0 : index
    %26 = vector.load %arg1[%25, %c0_9] : memref<8x128xf32, #tpu.memory_space<vmem>>, vector<1x128xf32>
    %c128_i32_10 = arith.constant 128 : i32
    %27 = arith.muli %c2_i32, %c128_i32_10 : i32
    %28 = tpu.assume_multiple %27, 128 : i32
    %29 = vector.broadcast %2 : vector<256x1xf32> to vector<256x128xf32>
    %30 = vector.broadcast %26 : vector<1x128xf32> to vector<256x128xf32>
    %31 = arith.mulf %29, %30 : vector<256x128xf32>
    %32 = vector.broadcast %1 : vector<256x1xf32> to vector<256x128xf32>
    %33 = arith.addf %31, %32 : vector<256x128xf32>
    %c0_11 = arith.constant 0 : index
    %34 = arith.index_cast %28 : i32 to index
    %35 = vector.load %arg9[%c0_11, %34] : memref<256x1024xf32, #tpu.memory_space<vmem>>, vector<256x128xf32>
    tpu.vector_store %arg9[%c0_11, %34], %33 {strides = array<i32>} : memref<256x1024xf32, #tpu.memory_space<vmem>>, vector<256x128xf32>,
    %c3_i32 = arith.constant 3 : i32
    %36 = arith.index_cast %c3_i32 : i32 to index
    %c0_12 = arith.constant 0 : index
    %37 = vector.load %arg1[%36, %c0_12] : memref<8x128xf32, #tpu.memory_space<vmem>>, vector<1x128xf32>
    %c128_i32_13 = arith.constant 128 : i32
    %38 = arith.muli %c3_i32, %c128_i32_13 : i32
    %39 = tpu.assume_multiple %38, 128 : i32
    %40 = vector.broadcast %2 : vector<256x1xf32> to vector<256x128xf32>
    %41 = vector.broadcast %37 : vector<1x128xf32> to vector<256x128xf32>
    %42 = arith.mulf %40, %41 : vector<256x128xf32>
    %43 = vector.broadcast %1 : vector<256x1xf32> to vector<256x128xf32>
    %44 = arith.addf %42, %43 : vector<256x128xf32>
    %c0_14 = arith.constant 0 : index
    %45 = arith.index_cast %39 : i32 to index
    %46 = vector.load %arg9[%c0_14, %45] : memref<256x1024xf32, #tpu.memory_space<vmem>>, vector<256x128xf32>
    tpu.vector_store %arg9[%c0_14, %45], %44 {strides = array<i32>} : memref<256x1024xf32, #tpu.memory_space<vmem>>, vector<256x128xf32>,
    %c4_i32 = arith.constant 4 : i32
    %47 = arith.index_cast %c4_i32 : i32 to index
    %c0_15 = arith.constant 0 : index
    %48 = vector.load %arg1[%47, %c0_15] : memref<8x128xf32, #tpu.memory_space<vmem>>, vector<1x128xf32>
    %c128_i32_16 = arith.constant 128 : i32
    %49 = arith.muli %c4_i32, %c128_i32_16 : i32
    %50 = tpu.assume_multiple %49, 128 : i32
    %51 = vector.broadcast %2 : vector<256x1xf32> to vector<256x128xf32>
    %52 = vector.broadcast %48 : vector<1x128xf32> to vector<256x128xf32>
    %53 = arith.mulf %51, %52 : vector<256x128xf32>
    %54 = vector.broadcast %1 : vector<256x1xf32> to vector<256x128xf32>
    %55 = arith.addf %53, %54 : vector<256x128xf32>
    %c0_17 = arith.constant 0 : index
    %56 = arith.index_cast %50 : i32 to index
    %57 = vector.load %arg9[%c0_17, %56] : memref<256x1024xf32, #tpu.memory_space<vmem>>, vector<256x128xf32>
    tpu.vector_store %arg9[%c0_17, %56], %55 {strides = array<i32>} : memref<256x1024xf32, #tpu.memory_space<vmem>>, vector<256x128xf32>,
    %c5_i32 = arith.constant 5 : i32
    %58 = arith.index_cast %c5_i32 : i32 to index
    %c0_18 = arith.constant 0 : index
    %59 = vector.load %arg1[%58, %c0_18] : memref<8x128xf32, #tpu.memory_space<vmem>>, vector<1x128xf32>
    %c128_i32_19 = arith.constant 128 : i32
    %60 = arith.muli %c5_i32, %c128_i32_19 : i32
    %61 = tpu.assume_multiple %60, 128 : i32
    %62 = vector.broadcast %2 : vector<256x1xf32> to vector<256x128xf32>
    %63 = vector.broadcast %59 : vector<1x128xf32> to vector<256x128xf32>
    %64 = arith.mulf %62, %63 : vector<256x128xf32>
    %65 = vector.broadcast %1 : vector<256x1xf32> to vector<256x128xf32>
    %66 = arith.addf %64, %65 : vector<256x128xf32>
    %c0_20 = arith.constant 0 : index
    %67 = arith.index_cast %61 : i32 to index
    %68 = vector.load %arg9[%c0_20, %67] : memref<256x1024xf32, #tpu.memory_space<vmem>>, vector<256x128xf32>
    tpu.vector_store %arg9[%c0_20, %67], %66 {strides = array<i32>} : memref<256x1024xf32, #tpu.memory_space<vmem>>, vector<256x128xf32>,
    %c6_i32 = arith.constant 6 : i32
    %69 = arith.index_cast %c6_i32 : i32 to index
    %c0_21 = arith.constant 0 : index
    %70 = vector.load %arg1[%69, %c0_21] : memref<8x128xf32, #tpu.memory_space<vmem>>, vector<1x128xf32>
    %c128_i32_22 = arith.constant 128 : i32
    %71 = arith.muli %c6_i32, %c128_i32_22 : i32
    %72 = tpu.assume_multiple %71, 128 : i32
    %73 = vector.broadcast %2 : vector<256x1xf32> to vector<256x128xf32>
    %74 = vector.broadcast %70 : vector<1x128xf32> to vector<256x128xf32>
    %75 = arith.mulf %73, %74 : vector<256x128xf32>
    %76 = vector.broadcast %1 : vector<256x1xf32> to vector<256x128xf32>
    %77 = arith.addf %75, %76 : vector<256x128xf32>
    %c0_23 = arith.constant 0 : index
    %78 = arith.index_cast %72 : i32 to index
    %79 = vector.load %arg9[%c0_23, %78] : memref<256x1024xf32, #tpu.memory_space<vmem>>, vector<256x128xf32>
    tpu.vector_store %arg9[%c0_23, %78], %77 {strides = array<i32>} : memref<256x1024xf32, #tpu.memory_space<vmem>>, vector<256x128xf32>,
    %c7_i32 = arith.constant 7 : i32
    %80 = arith.index_cast %c7_i32 : i32 to index
    %c0_24 = arith.constant 0 : index
    %81 = vector.load %arg1[%80, %c0_24] : memref<8x128xf32, #tpu.memory_space<vmem>>, vector<1x128xf32>
    %c128_i32_25 = arith.constant 128 : i32
    %82 = arith.muli %c7_i32, %c128_i32_25 : i32
    %83 = tpu.assume_multiple %82, 128 : i32
    %84 = vector.broadcast %2 : vector<256x1xf32> to vector<256x128xf32>
    %85 = vector.broadcast %81 : vector<1x128xf32> to vector<256x128xf32>
    %86 = arith.mulf %84, %85 : vector<256x128xf32>
    %87 = vector.broadcast %1 : vector<256x1xf32> to vector<256x128xf32>
    %88 = arith.addf %86, %87 : vector<256x128xf32>
    %c0_26 = arith.constant 0 : index
    %89 = arith.index_cast %83 : i32 to index
    %90 = vector.load %arg9[%c0_26, %89] : memref<256x1024xf32, #tpu.memory_space<vmem>>, vector<256x128xf32>
    tpu.vector_store %arg9[%c0_26, %89], %88 {strides = array<i32>} : memref<256x1024xf32, #tpu.memory_space<vmem>>, vector<256x128xf32>,
    %c8_i32 = arith.constant 8 : i32
    %c0_27 = arith.constant 0 : index
    %c0_28 = arith.constant 0 : index
    %c0_29 = arith.constant 0 : index
    %91 = vector.load %arg5[%c0_27, %c0_28, %c0_29] : memref<2x256x64xbf16, #tpu.memory_space<vmem>>, vector<1x256x64xbf16>
    %92 = vector.shape_cast %91 : vector<1x256x64xbf16> to vector<256x64xbf16>
    %cst = arith.constant 0.000000e+00 : f32
    %93 = vector.broadcast %cst : f32 to vector<32x128xf32>
    %cst_30 = arith.constant 0.000000e+00 : f32
    %94 = vector.broadcast %cst_30 : f32 to vector<64x128xf32>
    %c0_i32_31 = arith.constant 0 : i32
    %c128_i32_32 = arith.constant 128 : i32
    %95 = arith.muli %c0_i32_31, %c128_i32_32 : i32
    %96 = tpu.assume_multiple %95, 128 : i32
    %c7_i32_33 = arith.constant 7 : i32
    %97 = arith.subi %c7_i32_33, %c0_i32_31 : i32
    %c128_i32_34 = arith.constant 128 : i32
    %98 = arith.muli %97, %c128_i32_34 : i32
    %99 = tpu.assume_multiple %98, 128 : i32
    %100 = arith.truncf %94 : vector<64x128xf32> to vector<64x128xbf16>
    %cst_35 = arith.constant dense<0.000000e+00> : vector<256x128xf32>
    %101 = tpu.matmul %92, %100, %cst_35 {dimension_numbers = #tpu.dot_dimension_numbers<[1], [0], [0], [1], [0, 0, 1, 1], [], []>} : vector<256x64xbf16>, vector<64x128xbf16>, vector<256x128xf32> -> vector<256x128xf32>
    %102 = vector.extract_strided_slice %101 {offsets = [0, 0], sizes = [128, 128], strides = [1, 1]} : vector<256x128xf32> to vector<128x128xf32>
    %c0_36 = arith.constant 0 : index
    %103 = arith.index_cast %96 : i32 to index
    %104 = vector.load %arg9[%c0_36, %103] : memref<256x1024xf32, #tpu.memory_space<vmem>>, vector<128x128xf32>
    %105 = arith.addf %102, %104 : vector<128x128xf32>
    %106 = vector.extract_strided_slice %101 {offsets = [128, 0], sizes = [128, 128], strides = [1, 1]} : vector<256x128xf32> to vector<128x128xf32>
    %c128 = arith.constant 128 : index
    %107 = arith.index_cast %99 : i32 to index
    %108 = vector.load %arg9[%c128, %107] : memref<256x1024xf32, #tpu.memory_space<vmem>>, vector<128x128xf32>
    %109 = arith.addf %106, %108 : vector<128x128xf32>
    %110 = vector.extract_strided_slice %105 {offsets = [0, 0], sizes = [32, 128], strides = [1, 1]} : vector<128x128xf32> to vector<32x128xf32>
    %111 = arith.negf %110 : vector<32x128xf32>
    %112 = math.exp %111 : vector<32x128xf32>
    %cst_37 = arith.constant 1.000000e+00 : f32
    %113 = vector.broadcast %cst_37 : f32 to vector<32x128xf32>
    %114 = arith.addf %113, %112 : vector<32x128xf32>
    %115 = arith.divf %113, %114 : vector<32x128xf32>
    %116 = vector.extract_strided_slice %105 {offsets = [32, 0], sizes = [32, 128], strides = [1, 1]} : vector<128x128xf32> to vector<32x128xf32>
    %117 = arith.negf %116 : vector<32x128xf32>
    %118 = math.exp %117 : vector<32x128xf32>
    %cst_38 = arith.constant 1.000000e+00 : f32
    %119 = vector.broadcast %cst_38 : f32 to vector<32x128xf32>
    %120 = arith.addf %119, %118 : vector<32x128xf32>
    %121 = arith.divf %119, %120 : vector<32x128xf32>
    %122 = vector.extract_strided_slice %105 {offsets = [64, 0], sizes = [32, 128], strides = [1, 1]} : vector<128x128xf32> to vector<32x128xf32>
    %123 = math.tanh %122 : vector<32x128xf32>
    %124 = vector.extract_strided_slice %105 {offsets = [96, 0], sizes = [32, 128], strides = [1, 1]} : vector<128x128xf32> to vector<32x128xf32>
    %125 = arith.negf %124 : vector<32x128xf32>
    %126 = math.exp %125 : vector<32x128xf32>
    %cst_39 = arith.constant 1.000000e+00 : f32
    %127 = vector.broadcast %cst_39 : f32 to vector<32x128xf32>
    %128 = arith.addf %127, %126 : vector<32x128xf32>
    %129 = arith.divf %127, %128 : vector<32x128xf32>
    %130 = arith.mulf %121, %93 : vector<32x128xf32>
    %131 = arith.mulf %115, %123 : vector<32x128xf32>
    %132 = arith.addf %130, %131 : vector<32x128xf32>
    %133 = math.tanh %132 : vector<32x128xf32>
    %134 = arith.mulf %129, %133 : vector<32x128xf32>
    %135 = vector.extract_strided_slice %109 {offsets = [0, 0], sizes = [32, 128], strides = [1, 1]} : vector<128x128xf32> to vector<32x128xf32>
    %136 = arith.negf %135 : vector<32x128xf32>
    %137 = math.exp %136 : vector<32x128xf32>
    %cst_40 = arith.constant 1.000000e+00 : f32
    %138 = vector.broadcast %cst_40 : f32 to vector<32x128xf32>
    %139 = arith.addf %138, %137 : vector<32x128xf32>
    %140 = arith.divf %138, %139 : vector<32x128xf32>
    %141 = vector.extract_strided_slice %109 {offsets = [32, 0], sizes = [32, 128], strides = [1, 1]} : vector<128x128xf32> to vector<32x128xf32>
    %142 = arith.negf %141 : vector<32x128xf32>
    %143 = math.exp %142 : vector<32x128xf32>
    %cst_41 = arith.constant 1.000000e+00 : f32
    %144 = vector.broadcast %cst_41 : f32 to vector<32x128xf32>
    %145 = arith.addf %144, %143 : vector<32x128xf32>
    %146 = arith.divf %144, %145 : vector<32x128xf32>
    %147 = vector.extract_strided_slice %109 {offsets = [64, 0], sizes = [32, 128], strides = [1, 1]} : vector<128x128xf32> to vector<32x128xf32>
    %148 = math.tanh %147 : vector<32x128xf32>
    %149 = vector.extract_strided_slice %109 {offsets = [96, 0], sizes = [32, 128], strides = [1, 1]} : vector<128x128xf32> to vector<32x128xf32>
    %150 = arith.negf %149 : vector<32x128xf32>
    %151 = math.exp %150 : vector<32x128xf32>
    %cst_42 = arith.constant 1.000000e+00 : f32
    %152 = vector.broadcast %cst_42 : f32 to vector<32x128xf32>
    %153 = arith.addf %152, %151 : vector<32x128xf32>
    %154 = arith.divf %152, %153 : vector<32x128xf32>
    %155 = arith.mulf %146, %93 : vector<32x128xf32>
    %156 = arith.mulf %140, %148 : vector<32x128xf32>
    %157 = arith.addf %155, %156 : vector<32x128xf32>
    %158 = math.tanh %157 : vector<32x128xf32>
    %159 = arith.mulf %154, %158 : vector<32x128xf32>
    %160 = arith.truncf %134 : vector<32x128xf32> to vector<32x128xbf16>
    %c0_43 = arith.constant 0 : index
    %161 = arith.index_cast %96 : i32 to index
    %162 = vector.load %arg10[%c0_43, %161] : memref<64x1024xbf16, #tpu.memory_space<vmem>>, vector<32x128xbf16>
    tpu.vector_store %arg10[%c0_43, %161], %160 {strides = array<i32>} : memref<64x1024xbf16, #tpu.memory_space<vmem>>, vector<32x128xbf16>,
    %163 = arith.truncf %159 : vector<32x128xf32> to vector<32x128xbf16>
    %c32 = arith.constant 32 : index
    %164 = arith.index_cast %99 : i32 to index
    %165 = vector.load %arg10[%c32, %164] : memref<64x1024xbf16, #tpu.memory_space<vmem>>, vector<32x128xbf16>
    tpu.vector_store %arg10[%c32, %164], %163 {strides = array<i32>} : memref<64x1024xbf16, #tpu.memory_space<vmem>>, vector<32x128xbf16>,
    %166 = tpu.concatenate %134, %159 in 0 : vector<32x128xf32>, vector<32x128xf32> -> vector<64x128xf32>
    %c1_i32_44 = arith.constant 1 : i32
    %c128_i32_45 = arith.constant 128 : i32
    %167 = arith.muli %c1_i32_44, %c128_i32_45 : i32
    %168 = tpu.assume_multiple %167, 128 : i32
    %c7_i32_46 = arith.constant 7 : i32
    %169 = arith.subi %c7_i32_46, %c1_i32_44 : i32
    %c128_i32_47 = arith.constant 128 : i32
    %170 = arith.muli %169, %c128_i32_47 : i32
    %171 = tpu.assume_multiple %170, 128 : i32
    %172 = arith.truncf %166 : vector<64x128xf32> to vector<64x128xbf16>
    %cst_48 = arith.constant dense<0.000000e+00> : vector<256x128xf32>
    %173 = tpu.matmul %92, %172, %cst_48 {dimension_numbers = #tpu.dot_dimension_numbers<[1], [0], [0], [1], [0, 0, 1, 1], [], []>} : vector<256x64xbf16>, vector<64x128xbf16>, vector<256x128xf32> -> vector<256x128xf32>
    %174 = vector.extract_strided_slice %173 {offsets = [0, 0], sizes = [128, 128], strides = [1, 1]} : vector<256x128xf32> to vector<128x128xf32>
    %c0_49 = arith.constant 0 : index
    %175 = arith.index_cast %168 : i32 to index
    %176 = vector.load %arg9[%c0_49, %175] : memref<256x1024xf32, #tpu.memory_space<vmem>>, vector<128x128xf32>
    %177 = arith.addf %174, %176 : vector<128x128xf32>
    %178 = vector.extract_strided_slice %173 {offsets = [128, 0], sizes = [128, 128], strides = [1, 1]} : vector<256x128xf32> to vector<128x128xf32>
    %c128_50 = arith.constant 128 : index
    %179 = arith.index_cast %171 : i32 to index
    %180 = vector.load %arg9[%c128_50, %179] : memref<256x1024xf32, #tpu.memory_space<vmem>>, vector<128x128xf32>
    %181 = arith.addf %178, %180 : vector<128x128xf32>
    %182 = vector.extract_strided_slice %177 {offsets = [0, 0], sizes = [32, 128], strides = [1, 1]} : vector<128x128xf32> to vector<32x128xf32>
    %183 = arith.negf %182 : vector<32x128xf32>
    %184 = math.exp %183 : vector<32x128xf32>
    %cst_51 = arith.constant 1.000000e+00 : f32
    %185 = vector.broadcast %cst_51 : f32 to vector<32x128xf32>
    %186 = arith.addf %185, %184 : vector<32x128xf32>
    %187 = arith.divf %185, %186 : vector<32x128xf32>
    %188 = vector.extract_strided_slice %177 {offsets = [32, 0], sizes = [32, 128], strides = [1, 1]} : vector<128x128xf32> to vector<32x128xf32>
    %189 = arith.negf %188 : vector<32x128xf32>
    %190 = math.exp %189 : vector<32x128xf32>
    %cst_52 = arith.constant 1.000000e+00 : f32
    %191 = vector.broadcast %cst_52 : f32 to vector<32x128xf32>
    %192 = arith.addf %191, %190 : vector<32x128xf32>
    %193 = arith.divf %191, %192 : vector<32x128xf32>
    %194 = vector.extract_strided_slice %177 {offsets = [64, 0], sizes = [32, 128], strides = [1, 1]} : vector<128x128xf32> to vector<32x128xf32>
    %195 = math.tanh %194 : vector<32x128xf32>
    %196 = vector.extract_strided_slice %177 {offsets = [96, 0], sizes = [32, 128], strides = [1, 1]} : vector<128x128xf32> to vector<32x128xf32>
    %197 = arith.negf %196 : vector<32x128xf32>
    %198 = math.exp %197 : vector<32x128xf32>
    %cst_53 = arith.constant 1.000000e+00 : f32
    %199 = vector.broadcast %cst_53 : f32 to vector<32x128xf32>
    %200 = arith.addf %199, %198 : vector<32x128xf32>
    %201 = arith.divf %199, %200 : vector<32x128xf32>
    %202 = arith.mulf %193, %132 : vector<32x128xf32>
    %203 = arith.mulf %187, %195 : vector<32x128xf32>
    %204 = arith.addf %202, %203 : vector<32x128xf32>
    %205 = math.tanh %204 : vector<32x128xf32>
    %206 = arith.mulf %201, %205 : vector<32x128xf32>
    %207 = vector.extract_strided_slice %181 {offsets = [0, 0], sizes = [32, 128], strides = [1, 1]} : vector<128x128xf32> to vector<32x128xf32>
    %208 = arith.negf %207 : vector<32x128xf32>
    %209 = math.exp %208 : vector<32x128xf32>
    %cst_54 = arith.constant 1.000000e+00 : f32
    %210 = vector.broadcast %cst_54 : f32 to vector<32x128xf32>
    %211 = arith.addf %210, %209 : vector<32x128xf32>
    %212 = arith.divf %210, %211 : vector<32x128xf32>
    %213 = vector.extract_strided_slice %181 {offsets = [32, 0], sizes = [32, 128], strides = [1, 1]} : vector<128x128xf32> to vector<32x128xf32>
    %214 = arith.negf %213 : vector<32x128xf32>
    %215 = math.exp %214 : vector<32x128xf32>
    %cst_55 = arith.constant 1.000000e+00 : f32
    %216 = vector.broadcast %cst_55 : f32 to vector<32x128xf32>
    %217 = arith.addf %216, %215 : vector<32x128xf32>
    %218 = arith.divf %216, %217 : vector<32x128xf32>
    %219 = vector.extract_strided_slice %181 {offsets = [64, 0], sizes = [32, 128], strides = [1, 1]} : vector<128x128xf32> to vector<32x128xf32>
    %220 = math.tanh %219 : vector<32x128xf32>
    %221 = vector.extract_strided_slice %181 {offsets = [96, 0], sizes = [32, 128], strides = [1, 1]} : vector<128x128xf32> to vector<32x128xf32>
    %222 = arith.negf %221 : vector<32x128xf32>
    %223 = math.exp %222 : vector<32x128xf32>
    %cst_56 = arith.constant 1.000000e+00 : f32
    %224 = vector.broadcast %cst_56 : f32 to vector<32x128xf32>
    %225 = arith.addf %224, %223 : vector<32x128xf32>
    %226 = arith.divf %224, %225 : vector<32x128xf32>
    %227 = arith.mulf %218, %157 : vector<32x128xf32>
    %228 = arith.mulf %212, %220 : vector<32x128xf32>
    %229 = arith.addf %227, %228 : vector<32x128xf32>
    %230 = math.tanh %229 : vector<32x128xf32>
    %231 = arith.mulf %226, %230 : vector<32x128xf32>
    %232 = arith.truncf %206 : vector<32x128xf32> to vector<32x128xbf16>
    %c0_57 = arith.constant 0 : index
    %233 = arith.index_cast %168 : i32 to index
    %234 = vector.load %arg10[%c0_57, %233] : memref<64x1024xbf16, #tpu.memory_space<vmem>>, vector<32x128xbf16>
    tpu.vector_store %arg10[%c0_57, %233], %232 {strides = array<i32>} : memref<64x1024xbf16, #tpu.memory_space<vmem>>, vector<32x128xbf16>,
    %235 = arith.truncf %231 : vector<32x128xf32> to vector<32x128xbf16>
    %c32_58 = arith.constant 32 : index
    %236 = arith.index_cast %171 : i32 to index
    %237 = vector.load %arg10[%c32_58, %236] : memref<64x1024xbf16, #tpu.memory_space<vmem>>, vector<32x128xbf16>
    tpu.vector_store %arg10[%c32_58, %236], %235 {strides = array<i32>} : memref<64x1024xbf16, #tpu.memory_space<vmem>>, vector<32x128xbf16>,
    %238 = tpu.concatenate %206, %231 in 0 : vector<32x128xf32>, vector<32x128xf32> -> vector<64x128xf32>
    %c2_i32_59 = arith.constant 2 : i32
    %c128_i32_60 = arith.constant 128 : i32
    %239 = arith.muli %c2_i32_59, %c128_i32_60 : i32
    %240 = tpu.assume_multiple %239, 128 : i32
    %c7_i32_61 = arith.constant 7 : i32
    %241 = arith.subi %c7_i32_61, %c2_i32_59 : i32
    %c128_i32_62 = arith.constant 128 : i32
    %242 = arith.muli %241, %c128_i32_62 : i32
    %243 = tpu.assume_multiple %242, 128 : i32
    %244 = arith.truncf %238 : vector<64x128xf32> to vector<64x128xbf16>
    %cst_63 = arith.constant dense<0.000000e+00> : vector<256x128xf32>
    %245 = tpu.matmul %92, %244, %cst_63 {dimension_numbers = #tpu.dot_dimension_numbers<[1], [0], [0], [1], [0, 0, 1, 1], [], []>} : vector<256x64xbf16>, vector<64x128xbf16>, vector<256x128xf32> -> vector<256x128xf32>
    %246 = vector.extract_strided_slice %245 {offsets = [0, 0], sizes = [128, 128], strides = [1, 1]} : vector<256x128xf32> to vector<128x128xf32>
    %c0_64 = arith.constant 0 : index
    %247 = arith.index_cast %240 : i32 to index
    %248 = vector.load %arg9[%c0_64, %247] : memref<256x1024xf32, #tpu.memory_space<vmem>>, vector<128x128xf32>
    %249 = arith.addf %246, %248 : vector<128x128xf32>
    %250 = vector.extract_strided_slice %245 {offsets = [128, 0], sizes = [128, 128], strides = [1, 1]} : vector<256x128xf32> to vector<128x128xf32>
    %c128_65 = arith.constant 128 : index
    %251 = arith.index_cast %243 : i32 to index
    %252 = vector.load %arg9[%c128_65, %251] : memref<256x1024xf32, #tpu.memory_space<vmem>>, vector<128x128xf32>
    %253 = arith.addf %250, %252 : vector<128x128xf32>
    %254 = vector.extract_strided_slice %249 {offsets = [0, 0], sizes = [32, 128], strides = [1, 1]} : vector<128x128xf32> to vector<32x128xf32>
    %255 = arith.negf %254 : vector<32x128xf32>
    %256 = math.exp %255 : vector<32x128xf32>
    %cst_66 = arith.constant 1.000000e+00 : f32
    %257 = vector.broadcast %cst_66 : f32 to vector<32x128xf32>
    %258 = arith.addf %257, %256 : vector<32x128xf32>
    %259 = arith.divf %257, %258 : vector<32x128xf32>
    %260 = vector.extract_strided_slice %249 {offsets = [32, 0], sizes = [32, 128], strides = [1, 1]} : vector<128x128xf32> to vector<32x128xf32>
    %261 = arith.negf %260 : vector<32x128xf32>
    %262 = math.exp %261 : vector<32x128xf32>
    %cst_67 = arith.constant 1.000000e+00 : f32
    %263 = vector.broadcast %cst_67 : f32 to vector<32x128xf32>
    %264 = arith.addf %263, %262 : vector<32x128xf32>
    %265 = arith.divf %263, %264 : vector<32x128xf32>
    %266 = vector.extract_strided_slice %249 {offsets = [64, 0], sizes = [32, 128], strides = [1, 1]} : vector<128x128xf32> to vector<32x128xf32>
    %267 = math.tanh %266 : vector<32x128xf32>
    %268 = vector.extract_strided_slice %249 {offsets = [96, 0], sizes = [32, 128], strides = [1, 1]} : vector<128x128xf32> to vector<32x128xf32>
    %269 = arith.negf %268 : vector<32x128xf32>
    %270 = math.exp %269 : vector<32x128xf32>
    %cst_68 = arith.constant 1.000000e+00 : f32
    %271 = vector.broadcast %cst_68 : f32 to vector<32x128xf32>
    %272 = arith.addf %271, %270 : vector<32x128xf32>
    %273 = arith.divf %271, %272 : vector<32x128xf32>
    %274 = arith.mulf %265, %204 : vector<32x128xf32>
    %275 = arith.mulf %259, %267 : vector<32x128xf32>
    %276 = arith.addf %274, %275 : vector<32x128xf32>
    %277 = math.tanh %276 : vector<32x128xf32>
    %278 = arith.mulf %273, %277 : vector<32x128xf32>
    %279 = vector.extract_strided_slice %253 {offsets = [0, 0], sizes = [32, 128], strides = [1, 1]} : vector<128x128xf32> to vector<32x128xf32>
    %280 = arith.negf %279 : vector<32x128xf32>
    %281 = math.exp %280 : vector<32x128xf32>
    %cst_69 = arith.constant 1.000000e+00 : f32
    %282 = vector.broadcast %cst_69 : f32 to vector<32x128xf32>
    %283 = arith.addf %282, %281 : vector<32x128xf32>
    %284 = arith.divf %282, %283 : vector<32x128xf32>
    %285 = vector.extract_strided_slice %253 {offsets = [32, 0], sizes = [32, 128], strides = [1, 1]} : vector<128x128xf32> to vector<32x128xf32>
    %286 = arith.negf %285 : vector<32x128xf32>
    %287 = math.exp %286 : vector<32x128xf32>
    %cst_70 = arith.constant 1.000000e+00 : f32
    %288 = vector.broadcast %cst_70 : f32 to vector<32x128xf32>
    %289 = arith.addf %288, %287 : vector<32x128xf32>
    %290 = arith.divf %288, %289 : vector<32x128xf32>
    %291 = vector.extract_strided_slice %253 {offsets = [64, 0], sizes = [32, 128], strides = [1, 1]} : vector<128x128xf32> to vector<32x128xf32>
    %292 = math.tanh %291 : vector<32x128xf32>
    %293 = vector.extract_strided_slice %253 {offsets = [96, 0], sizes = [32, 128], strides = [1, 1]} : vector<128x128xf32> to vector<32x128xf32>
    %294 = arith.negf %293 : vector<32x128xf32>
    %295 = math.exp %294 : vector<32x128xf32>
    %cst_71 = arith.constant 1.000000e+00 : f32
    %296 = vector.broadcast %cst_71 : f32 to vector<32x128xf32>
    %297 = arith.addf %296, %295 : vector<32x128xf32>
    %298 = arith.divf %296, %297 : vector<32x128xf32>
    %299 = arith.mulf %290, %229 : vector<32x128xf32>
    %300 = arith.mulf %284, %292 : vector<32x128xf32>
    %301 = arith.addf %299, %300 : vector<32x128xf32>
    %302 = math.tanh %301 : vector<32x128xf32>
    %303 = arith.mulf %298, %302 : vector<32x128xf32>
    %304 = arith.truncf %278 : vector<32x128xf32> to vector<32x128xbf16>
    %c0_72 = arith.constant 0 : index
    %305 = arith.index_cast %240 : i32 to index
    %306 = vector.load %arg10[%c0_72, %305] : memref<64x1024xbf16, #tpu.memory_space<vmem>>, vector<32x128xbf16>
    tpu.vector_store %arg10[%c0_72, %305], %304 {strides = array<i32>} : memref<64x1024xbf16, #tpu.memory_space<vmem>>, vector<32x128xbf16>,
    %307 = arith.truncf %303 : vector<32x128xf32> to vector<32x128xbf16>
    %c32_73 = arith.constant 32 : index
    %308 = arith.index_cast %243 : i32 to index
    %309 = vector.load %arg10[%c32_73, %308] : memref<64x1024xbf16, #tpu.memory_space<vmem>>, vector<32x128xbf16>
    tpu.vector_store %arg10[%c32_73, %308], %307 {strides = array<i32>} : memref<64x1024xbf16, #tpu.memory_space<vmem>>, vector<32x128xbf16>,
    %310 = tpu.concatenate %278, %303 in 0 : vector<32x128xf32>, vector<32x128xf32> -> vector<64x128xf32>
    %c3_i32_74 = arith.constant 3 : i32
    %c128_i32_75 = arith.constant 128 : i32
    %311 = arith.muli %c3_i32_74, %c128_i32_75 : i32
    %312 = tpu.assume_multiple %311, 128 : i32
    %c7_i32_76 = arith.constant 7 : i32
    %313 = arith.subi %c7_i32_76, %c3_i32_74 : i32
    %c128_i32_77 = arith.constant 128 : i32
    %314 = arith.muli %313, %c128_i32_77 : i32
    %315 = tpu.assume_multiple %314, 128 : i32
    %316 = arith.truncf %310 : vector<64x128xf32> to vector<64x128xbf16>
    %cst_78 = arith.constant dense<0.000000e+00> : vector<256x128xf32>
    %317 = tpu.matmul %92, %316, %cst_78 {dimension_numbers = #tpu.dot_dimension_numbers<[1], [0], [0], [1], [0, 0, 1, 1], [], []>} : vector<256x64xbf16>, vector<64x128xbf16>, vector<256x128xf32> -> vector<256x128xf32>
    %318 = vector.extract_strided_slice %317 {offsets = [0, 0], sizes = [128, 128], strides = [1, 1]} : vector<256x128xf32> to vector<128x128xf32>
    %c0_79 = arith.constant 0 : index
    %319 = arith.index_cast %312 : i32 to index
    %320 = vector.load %arg9[%c0_79, %319] : memref<256x1024xf32, #tpu.memory_space<vmem>>, vector<128x128xf32>
    %321 = arith.addf %318, %320 : vector<128x128xf32>
    %322 = vector.extract_strided_slice %317 {offsets = [128, 0], sizes = [128, 128], strides = [1, 1]} : vector<256x128xf32> to vector<128x128xf32>
    %c128_80 = arith.constant 128 : index
    %323 = arith.index_cast %315 : i32 to index
    %324 = vector.load %arg9[%c128_80, %323] : memref<256x1024xf32, #tpu.memory_space<vmem>>, vector<128x128xf32>
    %325 = arith.addf %322, %324 : vector<128x128xf32>
    %326 = vector.extract_strided_slice %321 {offsets = [0, 0], sizes = [32, 128], strides = [1, 1]} : vector<128x128xf32> to vector<32x128xf32>
    %327 = arith.negf %326 : vector<32x128xf32>
    %328 = math.exp %327 : vector<32x128xf32>
    %cst_81 = arith.constant 1.000000e+00 : f32
    %329 = vector.broadcast %cst_81 : f32 to vector<32x128xf32>
    %330 = arith.addf %329, %328 : vector<32x128xf32>
    %331 = arith.divf %329, %330 : vector<32x128xf32>
    %332 = vector.extract_strided_slice %321 {offsets = [32, 0], sizes = [32, 128], strides = [1, 1]} : vector<128x128xf32> to vector<32x128xf32>
    %333 = arith.negf %332 : vector<32x128xf32>
    %334 = math.exp %333 : vector<32x128xf32>
    %cst_82 = arith.constant 1.000000e+00 : f32
    %335 = vector.broadcast %cst_82 : f32 to vector<32x128xf32>
    %336 = arith.addf %335, %334 : vector<32x128xf32>
    %337 = arith.divf %335, %336 : vector<32x128xf32>
    %338 = vector.extract_strided_slice %321 {offsets = [64, 0], sizes = [32, 128], strides = [1, 1]} : vector<128x128xf32> to vector<32x128xf32>
    %339 = math.tanh %338 : vector<32x128xf32>
    %340 = vector.extract_strided_slice %321 {offsets = [96, 0], sizes = [32, 128], strides = [1, 1]} : vector<128x128xf32> to vector<32x128xf32>
    %341 = arith.negf %340 : vector<32x128xf32>
    %342 = math.exp %341 : vector<32x128xf32>
    %cst_83 = arith.constant 1.000000e+00 : f32
    %343 = vector.broadcast %cst_83 : f32 to vector<32x128xf32>
    %344 = arith.addf %343, %342 : vector<32x128xf32>
    %345 = arith.divf %343, %344 : vector<32x128xf32>
    %346 = arith.mulf %337, %276 : vector<32x128xf32>
    %347 = arith.mulf %331, %339 : vector<32x128xf32>
    %348 = arith.addf %346, %347 : vector<32x128xf32>
    %349 = math.tanh %348 : vector<32x128xf32>
    %350 = arith.mulf %345, %349 : vector<32x128xf32>
    %351 = vector.extract_strided_slice %325 {offsets = [0, 0], sizes = [32, 128], strides = [1, 1]} : vector<128x128xf32> to vector<32x128xf32>
    %352 = arith.negf %351 : vector<32x128xf32>
    %353 = math.exp %352 : vector<32x128xf32>
    %cst_84 = arith.constant 1.000000e+00 : f32
    %354 = vector.broadcast %cst_84 : f32 to vector<32x128xf32>
    %355 = arith.addf %354, %353 : vector<32x128xf32>
    %356 = arith.divf %354, %355 : vector<32x128xf32>
    %357 = vector.extract_strided_slice %325 {offsets = [32, 0], sizes = [32, 128], strides = [1, 1]} : vector<128x128xf32> to vector<32x128xf32>
    %358 = arith.negf %357 : vector<32x128xf32>
    %359 = math.exp %358 : vector<32x128xf32>
    %cst_85 = arith.constant 1.000000e+00 : f32
    %360 = vector.broadcast %cst_85 : f32 to vector<32x128xf32>
    %361 = arith.addf %360, %359 : vector<32x128xf32>
    %362 = arith.divf %360, %361 : vector<32x128xf32>
    %363 = vector.extract_strided_slice %325 {offsets = [64, 0], sizes = [32, 128], strides = [1, 1]} : vector<128x128xf32> to vector<32x128xf32>
    %364 = math.tanh %363 : vector<32x128xf32>
    %365 = vector.extract_strided_slice %325 {offsets = [96, 0], sizes = [32, 128], strides = [1, 1]} : vector<128x128xf32> to vector<32x128xf32>
    %366 = arith.negf %365 : vector<32x128xf32>
    %367 = math.exp %366 : vector<32x128xf32>
    %cst_86 = arith.constant 1.000000e+00 : f32
    %368 = vector.broadcast %cst_86 : f32 to vector<32x128xf32>
    %369 = arith.addf %368, %367 : vector<32x128xf32>
    %370 = arith.divf %368, %369 : vector<32x128xf32>
    %371 = arith.mulf %362, %301 : vector<32x128xf32>
    %372 = arith.mulf %356, %364 : vector<32x128xf32>
    %373 = arith.addf %371, %372 : vector<32x128xf32>
    %374 = math.tanh %373 : vector<32x128xf32>
    %375 = arith.mulf %370, %374 : vector<32x128xf32>
    %376 = arith.truncf %350 : vector<32x128xf32> to vector<32x128xbf16>
    %c0_87 = arith.constant 0 : index
    %377 = arith.index_cast %312 : i32 to index
    %378 = vector.load %arg10[%c0_87, %377] : memref<64x1024xbf16, #tpu.memory_space<vmem>>, vector<32x128xbf16>
    tpu.vector_store %arg10[%c0_87, %377], %376 {strides = array<i32>} : memref<64x1024xbf16, #tpu.memory_space<vmem>>, vector<32x128xbf16>,
    %379 = arith.truncf %375 : vector<32x128xf32> to vector<32x128xbf16>
    %c32_88 = arith.constant 32 : index
    %380 = arith.index_cast %315 : i32 to index
    %381 = vector.load %arg10[%c32_88, %380] : memref<64x1024xbf16, #tpu.memory_space<vmem>>, vector<32x128xbf16>
    tpu.vector_store %arg10[%c32_88, %380], %379 {strides = array<i32>} : memref<64x1024xbf16, #tpu.memory_space<vmem>>, vector<32x128xbf16>,
    %382 = tpu.concatenate %350, %375 in 0 : vector<32x128xf32>, vector<32x128xf32> -> vector<64x128xf32>
    %c4_i32_89 = arith.constant 4 : i32
    %c128_i32_90 = arith.constant 128 : i32
    %383 = arith.muli %c4_i32_89, %c128_i32_90 : i32
    %384 = tpu.assume_multiple %383, 128 : i32
    %c7_i32_91 = arith.constant 7 : i32
    %385 = arith.subi %c7_i32_91, %c4_i32_89 : i32
    %c128_i32_92 = arith.constant 128 : i32
    %386 = arith.muli %385, %c128_i32_92 : i32
    %387 = tpu.assume_multiple %386, 128 : i32
    %388 = arith.truncf %382 : vector<64x128xf32> to vector<64x128xbf16>
    %cst_93 = arith.constant dense<0.000000e+00> : vector<256x128xf32>
    %389 = tpu.matmul %92, %388, %cst_93 {dimension_numbers = #tpu.dot_dimension_numbers<[1], [0], [0], [1], [0, 0, 1, 1], [], []>} : vector<256x64xbf16>, vector<64x128xbf16>, vector<256x128xf32> -> vector<256x128xf32>
    %390 = vector.extract_strided_slice %389 {offsets = [0, 0], sizes = [128, 128], strides = [1, 1]} : vector<256x128xf32> to vector<128x128xf32>
    %c0_94 = arith.constant 0 : index
    %391 = arith.index_cast %384 : i32 to index
    %392 = vector.load %arg9[%c0_94, %391] : memref<256x1024xf32, #tpu.memory_space<vmem>>, vector<128x128xf32>
    %393 = arith.addf %390, %392 : vector<128x128xf32>
    %394 = vector.extract_strided_slice %389 {offsets = [128, 0], sizes = [128, 128], strides = [1, 1]} : vector<256x128xf32> to vector<128x128xf32>
    %c128_95 = arith.constant 128 : index
    %395 = arith.index_cast %387 : i32 to index
    %396 = vector.load %arg9[%c128_95, %395] : memref<256x1024xf32, #tpu.memory_space<vmem>>, vector<128x128xf32>
    %397 = arith.addf %394, %396 : vector<128x128xf32>
    %398 = vector.extract_strided_slice %393 {offsets = [0, 0], sizes = [32, 128], strides = [1, 1]} : vector<128x128xf32> to vector<32x128xf32>
    %399 = arith.negf %398 : vector<32x128xf32>
    %400 = math.exp %399 : vector<32x128xf32>
    %cst_96 = arith.constant 1.000000e+00 : f32
    %401 = vector.broadcast %cst_96 : f32 to vector<32x128xf32>
    %402 = arith.addf %401, %400 : vector<32x128xf32>
    %403 = arith.divf %401, %402 : vector<32x128xf32>
    %404 = vector.extract_strided_slice %393 {offsets = [32, 0], sizes = [32, 128], strides = [1, 1]} : vector<128x128xf32> to vector<32x128xf32>
    %405 = arith.negf %404 : vector<32x128xf32>
    %406 = math.exp %405 : vector<32x128xf32>
    %cst_97 = arith.constant 1.000000e+00 : f32
    %407 = vector.broadcast %cst_97 : f32 to vector<32x128xf32>
    %408 = arith.addf %407, %406 : vector<32x128xf32>
    %409 = arith.divf %407, %408 : vector<32x128xf32>
    %410 = vector.extract_strided_slice %393 {offsets = [64, 0], sizes = [32, 128], strides = [1, 1]} : vector<128x128xf32> to vector<32x128xf32>
    %411 = math.tanh %410 : vector<32x128xf32>
    %412 = vector.extract_strided_slice %393 {offsets = [96, 0], sizes = [32, 128], strides = [1, 1]} : vector<128x128xf32> to vector<32x128xf32>
    %413 = arith.negf %412 : vector<32x128xf32>
    %414 = math.exp %413 : vector<32x128xf32>
    %cst_98 = arith.constant 1.000000e+00 : f32
    %415 = vector.broadcast %cst_98 : f32 to vector<32x128xf32>
    %416 = arith.addf %415, %414 : vector<32x128xf32>
    %417 = arith.divf %415, %416 : vector<32x128xf32>
    %418 = arith.mulf %409, %348 : vector<32x128xf32>
    %419 = arith.mulf %403, %411 : vector<32x128xf32>
    %420 = arith.addf %418, %419 : vector<32x128xf32>
    %421 = math.tanh %420 : vector<32x128xf32>
    %422 = arith.mulf %417, %421 : vector<32x128xf32>
    %423 = vector.extract_strided_slice %397 {offsets = [0, 0], sizes = [32, 128], strides = [1, 1]} : vector<128x128xf32> to vector<32x128xf32>
    %424 = arith.negf %423 : vector<32x128xf32>
    %425 = math.exp %424 : vector<32x128xf32>
    %cst_99 = arith.constant 1.000000e+00 : f32
    %426 = vector.broadcast %cst_99 : f32 to vector<32x128xf32>
    %427 = arith.addf %426, %425 : vector<32x128xf32>
    %428 = arith.divf %426, %427 : vector<32x128xf32>
    %429 = vector.extract_strided_slice %397 {offsets = [32, 0], sizes = [32, 128], strides = [1, 1]} : vector<128x128xf32> to vector<32x128xf32>
    %430 = arith.negf %429 : vector<32x128xf32>
    %431 = math.exp %430 : vector<32x128xf32>
    %cst_100 = arith.constant 1.000000e+00 : f32
    %432 = vector.broadcast %cst_100 : f32 to vector<32x128xf32>
    %433 = arith.addf %432, %431 : vector<32x128xf32>
    %434 = arith.divf %432, %433 : vector<32x128xf32>
    %435 = vector.extract_strided_slice %397 {offsets = [64, 0], sizes = [32, 128], strides = [1, 1]} : vector<128x128xf32> to vector<32x128xf32>
    %436 = math.tanh %435 : vector<32x128xf32>
    %437 = vector.extract_strided_slice %397 {offsets = [96, 0], sizes = [32, 128], strides = [1, 1]} : vector<128x128xf32> to vector<32x128xf32>
    %438 = arith.negf %437 : vector<32x128xf32>
    %439 = math.exp %438 : vector<32x128xf32>
    %cst_101 = arith.constant 1.000000e+00 : f32
    %440 = vector.broadcast %cst_101 : f32 to vector<32x128xf32>
    %441 = arith.addf %440, %439 : vector<32x128xf32>
    %442 = arith.divf %440, %441 : vector<32x128xf32>
    %443 = arith.mulf %434, %373 : vector<32x128xf32>
    %444 = arith.mulf %428, %436 : vector<32x128xf32>
    %445 = arith.addf %443, %444 : vector<32x128xf32>
    %446 = math.tanh %445 : vector<32x128xf32>
    %447 = arith.mulf %442, %446 : vector<32x128xf32>
    %448 = arith.truncf %422 : vector<32x128xf32> to vector<32x128xbf16>
    %c0_102 = arith.constant 0 : index
    %449 = arith.index_cast %384 : i32 to index
    %450 = vector.load %arg10[%c0_102, %449] : memref<64x1024xbf16, #tpu.memory_space<vmem>>, vector<32x128xbf16>
    tpu.vector_store %arg10[%c0_102, %449], %448 {strides = array<i32>} : memref<64x1024xbf16, #tpu.memory_space<vmem>>, vector<32x128xbf16>,
    %451 = arith.truncf %447 : vector<32x128xf32> to vector<32x128xbf16>
    %c32_103 = arith.constant 32 : index
    %452 = arith.index_cast %387 : i32 to index
    %453 = vector.load %arg10[%c32_103, %452] : memref<64x1024xbf16, #tpu.memory_space<vmem>>, vector<32x128xbf16>
    tpu.vector_store %arg10[%c32_103, %452], %451 {strides = array<i32>} : memref<64x1024xbf16, #tpu.memory_space<vmem>>, vector<32x128xbf16>,
    %454 = tpu.concatenate %422, %447 in 0 : vector<32x128xf32>, vector<32x128xf32> -> vector<64x128xf32>
    %c5_i32_104 = arith.constant 5 : i32
    %c128_i32_105 = arith.constant 128 : i32
    %455 = arith.muli %c5_i32_104, %c128_i32_105 : i32
    %456 = tpu.assume_multiple %455, 128 : i32
    %c7_i32_106 = arith.constant 7 : i32
    %457 = arith.subi %c7_i32_106, %c5_i32_104 : i32
    %c128_i32_107 = arith.constant 128 : i32
    %458 = arith.muli %457, %c128_i32_107 : i32
    %459 = tpu.assume_multiple %458, 128 : i32
    %460 = arith.truncf %454 : vector<64x128xf32> to vector<64x128xbf16>
    %cst_108 = arith.constant dense<0.000000e+00> : vector<256x128xf32>
    %461 = tpu.matmul %92, %460, %cst_108 {dimension_numbers = #tpu.dot_dimension_numbers<[1], [0], [0], [1], [0, 0, 1, 1], [], []>} : vector<256x64xbf16>, vector<64x128xbf16>, vector<256x128xf32> -> vector<256x128xf32>
    %462 = vector.extract_strided_slice %461 {offsets = [0, 0], sizes = [128, 128], strides = [1, 1]} : vector<256x128xf32> to vector<128x128xf32>
    %c0_109 = arith.constant 0 : index
    %463 = arith.index_cast %456 : i32 to index
    %464 = vector.load %arg9[%c0_109, %463] : memref<256x1024xf32, #tpu.memory_space<vmem>>, vector<128x128xf32>
    %465 = arith.addf %462, %464 : vector<128x128xf32>
    %466 = vector.extract_strided_slice %461 {offsets = [128, 0], sizes = [128, 128], strides = [1, 1]} : vector<256x128xf32> to vector<128x128xf32>
    %c128_110 = arith.constant 128 : index
    %467 = arith.index_cast %459 : i32 to index
    %468 = vector.load %arg9[%c128_110, %467] : memref<256x1024xf32, #tpu.memory_space<vmem>>, vector<128x128xf32>
    %469 = arith.addf %466, %468 : vector<128x128xf32>
    %470 = vector.extract_strided_slice %465 {offsets = [0, 0], sizes = [32, 128], strides = [1, 1]} : vector<128x128xf32> to vector<32x128xf32>
    %471 = arith.negf %470 : vector<32x128xf32>
    %472 = math.exp %471 : vector<32x128xf32>
    %cst_111 = arith.constant 1.000000e+00 : f32
    %473 = vector.broadcast %cst_111 : f32 to vector<32x128xf32>
    %474 = arith.addf %473, %472 : vector<32x128xf32>
    %475 = arith.divf %473, %474 : vector<32x128xf32>
    %476 = vector.extract_strided_slice %465 {offsets = [32, 0], sizes = [32, 128], strides = [1, 1]} : vector<128x128xf32> to vector<32x128xf32>
    %477 = arith.negf %476 : vector<32x128xf32>
    %478 = math.exp %477 : vector<32x128xf32>
    %cst_112 = arith.constant 1.000000e+00 : f32
    %479 = vector.broadcast %cst_112 : f32 to vector<32x128xf32>
    %480 = arith.addf %479, %478 : vector<32x128xf32>
    %481 = arith.divf %479, %480 : vector<32x128xf32>
    %482 = vector.extract_strided_slice %465 {offsets = [64, 0], sizes = [32, 128], strides = [1, 1]} : vector<128x128xf32> to vector<32x128xf32>
    %483 = math.tanh %482 : vector<32x128xf32>
    %484 = vector.extract_strided_slice %465 {offsets = [96, 0], sizes = [32, 128], strides = [1, 1]} : vector<128x128xf32> to vector<32x128xf32>
    %485 = arith.negf %484 : vector<32x128xf32>
    %486 = math.exp %485 : vector<32x128xf32>
    %cst_113 = arith.constant 1.000000e+00 : f32
    %487 = vector.broadcast %cst_113 : f32 to vector<32x128xf32>
    %488 = arith.addf %487, %486 : vector<32x128xf32>
    %489 = arith.divf %487, %488 : vector<32x128xf32>
    %490 = arith.mulf %481, %420 : vector<32x128xf32>
    %491 = arith.mulf %475, %483 : vector<32x128xf32>
    %492 = arith.addf %490, %491 : vector<32x128xf32>
    %493 = math.tanh %492 : vector<32x128xf32>
    %494 = arith.mulf %489, %493 : vector<32x128xf32>
    %495 = vector.extract_strided_slice %469 {offsets = [0, 0], sizes = [32, 128], strides = [1, 1]} : vector<128x128xf32> to vector<32x128xf32>
    %496 = arith.negf %495 : vector<32x128xf32>
    %497 = math.exp %496 : vector<32x128xf32>
    %cst_114 = arith.constant 1.000000e+00 : f32
    %498 = vector.broadcast %cst_114 : f32 to vector<32x128xf32>
    %499 = arith.addf %498, %497 : vector<32x128xf32>
    %500 = arith.divf %498, %499 : vector<32x128xf32>
    %501 = vector.extract_strided_slice %469 {offsets = [32, 0], sizes = [32, 128], strides = [1, 1]} : vector<128x128xf32> to vector<32x128xf32>
    %502 = arith.negf %501 : vector<32x128xf32>
    %503 = math.exp %502 : vector<32x128xf32>
    %cst_115 = arith.constant 1.000000e+00 : f32
    %504 = vector.broadcast %cst_115 : f32 to vector<32x128xf32>
    %505 = arith.addf %504, %503 : vector<32x128xf32>
    %506 = arith.divf %504, %505 : vector<32x128xf32>
    %507 = vector.extract_strided_slice %469 {offsets = [64, 0], sizes = [32, 128], strides = [1, 1]} : vector<128x128xf32> to vector<32x128xf32>
    %508 = math.tanh %507 : vector<32x128xf32>
    %509 = vector.extract_strided_slice %469 {offsets = [96, 0], sizes = [32, 128], strides = [1, 1]} : vector<128x128xf32> to vector<32x128xf32>
    %510 = arith.negf %509 : vector<32x128xf32>
    %511 = math.exp %510 : vector<32x128xf32>
    %cst_116 = arith.constant 1.000000e+00 : f32
    %512 = vector.broadcast %cst_116 : f32 to vector<32x128xf32>
    %513 = arith.addf %512, %511 : vector<32x128xf32>
    %514 = arith.divf %512, %513 : vector<32x128xf32>
    %515 = arith.mulf %506, %445 : vector<32x128xf32>
    %516 = arith.mulf %500, %508 : vector<32x128xf32>
    %517 = arith.addf %515, %516 : vector<32x128xf32>
    %518 = math.tanh %517 : vector<32x128xf32>
    %519 = arith.mulf %514, %518 : vector<32x128xf32>
    %520 = arith.truncf %494 : vector<32x128xf32> to vector<32x128xbf16>
    %c0_117 = arith.constant 0 : index
    %521 = arith.index_cast %456 : i32 to index
    %522 = vector.load %arg10[%c0_117, %521] : memref<64x1024xbf16, #tpu.memory_space<vmem>>, vector<32x128xbf16>
    tpu.vector_store %arg10[%c0_117, %521], %520 {strides = array<i32>} : memref<64x1024xbf16, #tpu.memory_space<vmem>>, vector<32x128xbf16>,
    %523 = arith.truncf %519 : vector<32x128xf32> to vector<32x128xbf16>
    %c32_118 = arith.constant 32 : index
    %524 = arith.index_cast %459 : i32 to index
    %525 = vector.load %arg10[%c32_118, %524] : memref<64x1024xbf16, #tpu.memory_space<vmem>>, vector<32x128xbf16>
    tpu.vector_store %arg10[%c32_118, %524], %523 {strides = array<i32>} : memref<64x1024xbf16, #tpu.memory_space<vmem>>, vector<32x128xbf16>,
    %526 = tpu.concatenate %494, %519 in 0 : vector<32x128xf32>, vector<32x128xf32> -> vector<64x128xf32>
    %c6_i32_119 = arith.constant 6 : i32
    %c128_i32_120 = arith.constant 128 : i32
    %527 = arith.muli %c6_i32_119, %c128_i32_120 : i32
    %528 = tpu.assume_multiple %527, 128 : i32
    %c7_i32_121 = arith.constant 7 : i32
    %529 = arith.subi %c7_i32_121, %c6_i32_119 : i32
    %c128_i32_122 = arith.constant 128 : i32
    %530 = arith.muli %529, %c128_i32_122 : i32
    %531 = tpu.assume_multiple %530, 128 : i32
    %532 = arith.truncf %526 : vector<64x128xf32> to vector<64x128xbf16>
    %cst_123 = arith.constant dense<0.000000e+00> : vector<256x128xf32>
    %533 = tpu.matmul %92, %532, %cst_123 {dimension_numbers = #tpu.dot_dimension_numbers<[1], [0], [0], [1], [0, 0, 1, 1], [], []>} : vector<256x64xbf16>, vector<64x128xbf16>, vector<256x128xf32> -> vector<256x128xf32>
    %534 = vector.extract_strided_slice %533 {offsets = [0, 0], sizes = [128, 128], strides = [1, 1]} : vector<256x128xf32> to vector<128x128xf32>
    %c0_124 = arith.constant 0 : index
    %535 = arith.index_cast %528 : i32 to index
    %536 = vector.load %arg9[%c0_124, %535] : memref<256x1024xf32, #tpu.memory_space<vmem>>, vector<128x128xf32>
    %537 = arith.addf %534, %536 : vector<128x128xf32>
    %538 = vector.extract_strided_slice %533 {offsets = [128, 0], sizes = [128, 128], strides = [1, 1]} : vector<256x128xf32> to vector<128x128xf32>
    %c128_125 = arith.constant 128 : index
    %539 = arith.index_cast %531 : i32 to index
    %540 = vector.load %arg9[%c128_125, %539] : memref<256x1024xf32, #tpu.memory_space<vmem>>, vector<128x128xf32>
    %541 = arith.addf %538, %540 : vector<128x128xf32>
    %542 = vector.extract_strided_slice %537 {offsets = [0, 0], sizes = [32, 128], strides = [1, 1]} : vector<128x128xf32> to vector<32x128xf32>
    %543 = arith.negf %542 : vector<32x128xf32>
    %544 = math.exp %543 : vector<32x128xf32>
    %cst_126 = arith.constant 1.000000e+00 : f32
    %545 = vector.broadcast %cst_126 : f32 to vector<32x128xf32>
    %546 = arith.addf %545, %544 : vector<32x128xf32>
    %547 = arith.divf %545, %546 : vector<32x128xf32>
    %548 = vector.extract_strided_slice %537 {offsets = [32, 0], sizes = [32, 128], strides = [1, 1]} : vector<128x128xf32> to vector<32x128xf32>
    %549 = arith.negf %548 : vector<32x128xf32>
    %550 = math.exp %549 : vector<32x128xf32>
    %cst_127 = arith.constant 1.000000e+00 : f32
    %551 = vector.broadcast %cst_127 : f32 to vector<32x128xf32>
    %552 = arith.addf %551, %550 : vector<32x128xf32>
    %553 = arith.divf %551, %552 : vector<32x128xf32>
    %554 = vector.extract_strided_slice %537 {offsets = [64, 0], sizes = [32, 128], strides = [1, 1]} : vector<128x128xf32> to vector<32x128xf32>
    %555 = math.tanh %554 : vector<32x128xf32>
    %556 = vector.extract_strided_slice %537 {offsets = [96, 0], sizes = [32, 128], strides = [1, 1]} : vector<128x128xf32> to vector<32x128xf32>
    %557 = arith.negf %556 : vector<32x128xf32>
    %558 = math.exp %557 : vector<32x128xf32>
    %cst_128 = arith.constant 1.000000e+00 : f32
    %559 = vector.broadcast %cst_128 : f32 to vector<32x128xf32>
    %560 = arith.addf %559, %558 : vector<32x128xf32>
    %561 = arith.divf %559, %560 : vector<32x128xf32>
    %562 = arith.mulf %553, %492 : vector<32x128xf32>
    %563 = arith.mulf %547, %555 : vector<32x128xf32>
    %564 = arith.addf %562, %563 : vector<32x128xf32>
    %565 = math.tanh %564 : vector<32x128xf32>
    %566 = arith.mulf %561, %565 : vector<32x128xf32>
    %567 = vector.extract_strided_slice %541 {offsets = [0, 0], sizes = [32, 128], strides = [1, 1]} : vector<128x128xf32> to vector<32x128xf32>
    %568 = arith.negf %567 : vector<32x128xf32>
    %569 = math.exp %568 : vector<32x128xf32>
    %cst_129 = arith.constant 1.000000e+00 : f32
    %570 = vector.broadcast %cst_129 : f32 to vector<32x128xf32>
    %571 = arith.addf %570, %569 : vector<32x128xf32>
    %572 = arith.divf %570, %571 : vector<32x128xf32>
    %573 = vector.extract_strided_slice %541 {offsets = [32, 0], sizes = [32, 128], strides = [1, 1]} : vector<128x128xf32> to vector<32x128xf32>
    %574 = arith.negf %573 : vector<32x128xf32>
    %575 = math.exp %574 : vector<32x128xf32>
    %cst_130 = arith.constant 1.000000e+00 : f32
    %576 = vector.broadcast %cst_130 : f32 to vector<32x128xf32>
    %577 = arith.addf %576, %575 : vector<32x128xf32>
    %578 = arith.divf %576, %577 : vector<32x128xf32>
    %579 = vector.extract_strided_slice %541 {offsets = [64, 0], sizes = [32, 128], strides = [1, 1]} : vector<128x128xf32> to vector<32x128xf32>
    %580 = math.tanh %579 : vector<32x128xf32>
    %581 = vector.extract_strided_slice %541 {offsets = [96, 0], sizes = [32, 128], strides = [1, 1]} : vector<128x128xf32> to vector<32x128xf32>
    %582 = arith.negf %581 : vector<32x128xf32>
    %583 = math.exp %582 : vector<32x128xf32>
    %cst_131 = arith.constant 1.000000e+00 : f32
    %584 = vector.broadcast %cst_131 : f32 to vector<32x128xf32>
    %585 = arith.addf %584, %583 : vector<32x128xf32>
    %586 = arith.divf %584, %585 : vector<32x128xf32>
    %587 = arith.mulf %578, %517 : vector<32x128xf32>
    %588 = arith.mulf %572, %580 : vector<32x128xf32>
    %589 = arith.addf %587, %588 : vector<32x128xf32>
    %590 = math.tanh %589 : vector<32x128xf32>
    %591 = arith.mulf %586, %590 : vector<32x128xf32>
    %592 = arith.truncf %566 : vector<32x128xf32> to vector<32x128xbf16>
    %c0_132 = arith.constant 0 : index
    %593 = arith.index_cast %528 : i32 to index
    %594 = vector.load %arg10[%c0_132, %593] : memref<64x1024xbf16, #tpu.memory_space<vmem>>, vector<32x128xbf16>
    tpu.vector_store %arg10[%c0_132, %593], %592 {strides = array<i32>} : memref<64x1024xbf16, #tpu.memory_space<vmem>>, vector<32x128xbf16>,
    %595 = arith.truncf %591 : vector<32x128xf32> to vector<32x128xbf16>
    %c32_133 = arith.constant 32 : index
    %596 = arith.index_cast %531 : i32 to index
    %597 = vector.load %arg10[%c32_133, %596] : memref<64x1024xbf16, #tpu.memory_space<vmem>>, vector<32x128xbf16>
    tpu.vector_store %arg10[%c32_133, %596], %595 {strides = array<i32>} : memref<64x1024xbf16, #tpu.memory_space<vmem>>, vector<32x128xbf16>,
    %598 = tpu.concatenate %566, %591 in 0 : vector<32x128xf32>, vector<32x128xf32> -> vector<64x128xf32>
    %c7_i32_134 = arith.constant 7 : i32
    %c128_i32_135 = arith.constant 128 : i32
    %599 = arith.muli %c7_i32_134, %c128_i32_135 : i32
    %600 = tpu.assume_multiple %599, 128 : i32
    %c7_i32_136 = arith.constant 7 : i32
    %601 = arith.subi %c7_i32_136, %c7_i32_134 : i32
    %c128_i32_137 = arith.constant 128 : i32
    %602 = arith.muli %601, %c128_i32_137 : i32
    %603 = tpu.assume_multiple %602, 128 : i32
    %604 = arith.truncf %598 : vector<64x128xf32> to vector<64x128xbf16>
    %cst_138 = arith.constant dense<0.000000e+00> : vector<256x128xf32>
    %605 = tpu.matmul %92, %604, %cst_138 {dimension_numbers = #tpu.dot_dimension_numbers<[1], [0], [0], [1], [0, 0, 1, 1], [], []>} : vector<256x64xbf16>, vector<64x128xbf16>, vector<256x128xf32> -> vector<256x128xf32>
    %606 = vector.extract_strided_slice %605 {offsets = [0, 0], sizes = [128, 128], strides = [1, 1]} : vector<256x128xf32> to vector<128x128xf32>
    %c0_139 = arith.constant 0 : index
    %607 = arith.index_cast %600 : i32 to index
    %608 = vector.load %arg9[%c0_139, %607] : memref<256x1024xf32, #tpu.memory_space<vmem>>, vector<128x128xf32>
    %609 = arith.addf %606, %608 : vector<128x128xf32>
    %610 = vector.extract_strided_slice %605 {offsets = [128, 0], sizes = [128, 128], strides = [1, 1]} : vector<256x128xf32> to vector<128x128xf32>
    %c128_140 = arith.constant 128 : index
    %611 = arith.index_cast %603 : i32 to index
    %612 = vector.load %arg9[%c128_140, %611] : memref<256x1024xf32, #tpu.memory_space<vmem>>, vector<128x128xf32>
    %613 = arith.addf %610, %612 : vector<128x128xf32>
    %614 = vector.extract_strided_slice %609 {offsets = [0, 0], sizes = [32, 128], strides = [1, 1]} : vector<128x128xf32> to vector<32x128xf32>
    %615 = arith.negf %614 : vector<32x128xf32>
    %616 = math.exp %615 : vector<32x128xf32>
    %cst_141 = arith.constant 1.000000e+00 : f32
    %617 = vector.broadcast %cst_141 : f32 to vector<32x128xf32>
    %618 = arith.addf %617, %616 : vector<32x128xf32>
    %619 = arith.divf %617, %618 : vector<32x128xf32>
    %620 = vector.extract_strided_slice %609 {offsets = [32, 0], sizes = [32, 128], strides = [1, 1]} : vector<128x128xf32> to vector<32x128xf32>
    %621 = arith.negf %620 : vector<32x128xf32>
    %622 = math.exp %621 : vector<32x128xf32>
    %cst_142 = arith.constant 1.000000e+00 : f32
    %623 = vector.broadcast %cst_142 : f32 to vector<32x128xf32>
    %624 = arith.addf %623, %622 : vector<32x128xf32>
    %625 = arith.divf %623, %624 : vector<32x128xf32>
    %626 = vector.extract_strided_slice %609 {offsets = [64, 0], sizes = [32, 128], strides = [1, 1]} : vector<128x128xf32> to vector<32x128xf32>
    %627 = math.tanh %626 : vector<32x128xf32>
    %628 = vector.extract_strided_slice %609 {offsets = [96, 0], sizes = [32, 128], strides = [1, 1]} : vector<128x128xf32> to vector<32x128xf32>
    %629 = arith.negf %628 : vector<32x128xf32>
    %630 = math.exp %629 : vector<32x128xf32>
    %cst_143 = arith.constant 1.000000e+00 : f32
    %631 = vector.broadcast %cst_143 : f32 to vector<32x128xf32>
    %632 = arith.addf %631, %630 : vector<32x128xf32>
    %633 = arith.divf %631, %632 : vector<32x128xf32>
    %634 = arith.mulf %625, %564 : vector<32x128xf32>
    %635 = arith.mulf %619, %627 : vector<32x128xf32>
    %636 = arith.addf %634, %635 : vector<32x128xf32>
    %637 = math.tanh %636 : vector<32x128xf32>
    %638 = arith.mulf %633, %637 : vector<32x128xf32>
    %639 = vector.extract_strided_slice %613 {offsets = [0, 0], sizes = [32, 128], strides = [1, 1]} : vector<128x128xf32> to vector<32x128xf32>
    %640 = arith.negf %639 : vector<32x128xf32>
    %641 = math.exp %640 : vector<32x128xf32>
    %cst_144 = arith.constant 1.000000e+00 : f32
    %642 = vector.broadcast %cst_144 : f32 to vector<32x128xf32>
    %643 = arith.addf %642, %641 : vector<32x128xf32>
    %644 = arith.divf %642, %643 : vector<32x128xf32>
    %645 = vector.extract_strided_slice %613 {offsets = [32, 0], sizes = [32, 128], strides = [1, 1]} : vector<128x128xf32> to vector<32x128xf32>
    %646 = arith.negf %645 : vector<32x128xf32>
    %647 = math.exp %646 : vector<32x128xf32>
    %cst_145 = arith.constant 1.000000e+00 : f32
    %648 = vector.broadcast %cst_145 : f32 to vector<32x128xf32>
    %649 = arith.addf %648, %647 : vector<32x128xf32>
    %650 = arith.divf %648, %649 : vector<32x128xf32>
    %651 = vector.extract_strided_slice %613 {offsets = [64, 0], sizes = [32, 128], strides = [1, 1]} : vector<128x128xf32> to vector<32x128xf32>
    %652 = math.tanh %651 : vector<32x128xf32>
    %653 = vector.extract_strided_slice %613 {offsets = [96, 0], sizes = [32, 128], strides = [1, 1]} : vector<128x128xf32> to vector<32x128xf32>
    %654 = arith.negf %653 : vector<32x128xf32>
    %655 = math.exp %654 : vector<32x128xf32>
    %cst_146 = arith.constant 1.000000e+00 : f32
    %656 = vector.broadcast %cst_146 : f32 to vector<32x128xf32>
    %657 = arith.addf %656, %655 : vector<32x128xf32>
    %658 = arith.divf %656, %657 : vector<32x128xf32>
    %659 = arith.mulf %650, %589 : vector<32x128xf32>
    %660 = arith.mulf %644, %652 : vector<32x128xf32>
    %661 = arith.addf %659, %660 : vector<32x128xf32>
    %662 = math.tanh %661 : vector<32x128xf32>
    %663 = arith.mulf %658, %662 : vector<32x128xf32>
    %664 = arith.truncf %638 : vector<32x128xf32> to vector<32x128xbf16>
    %c0_147 = arith.constant 0 : index
    %665 = arith.index_cast %600 : i32 to index
    %666 = vector.load %arg10[%c0_147, %665] : memref<64x1024xbf16, #tpu.memory_space<vmem>>, vector<32x128xbf16>
    tpu.vector_store %arg10[%c0_147, %665], %664 {strides = array<i32>} : memref<64x1024xbf16, #tpu.memory_space<vmem>>, vector<32x128xbf16>,
    %667 = arith.truncf %663 : vector<32x128xf32> to vector<32x128xbf16>
    %c32_148 = arith.constant 32 : index
    %668 = arith.index_cast %603 : i32 to index
    %669 = vector.load %arg10[%c32_148, %668] : memref<64x1024xbf16, #tpu.memory_space<vmem>>, vector<32x128xbf16>
    tpu.vector_store %arg10[%c32_148, %668], %667 {strides = array<i32>} : memref<64x1024xbf16, #tpu.memory_space<vmem>>, vector<32x128xbf16>,
    %670 = tpu.concatenate %638, %663 in 0 : vector<32x128xf32>, vector<32x128xf32> -> vector<64x128xf32>
    %c8_i32_149 = arith.constant 8 : i32
    %c1 = arith.constant 1 : index
    %c0_150 = arith.constant 0 : index
    %c0_151 = arith.constant 0 : index
    %671 = vector.load %arg3[%c1, %c0_150, %c0_151] : memref<2x256x1xf32, #tpu.memory_space<vmem>>, vector<1x256x1xf32>
    %672 = vector.shape_cast %671 : vector<1x256x1xf32> to vector<256x1xf32>
    %c0_152 = arith.constant 0 : index
    %c0_153 = arith.constant 0 : index
    %c0_154 = arith.constant 0 : index
    %673 = vector.load %arg4[%c0_152, %c0_153, %c0_154] : memref<1x256x64xbf16, #tpu.memory_space<vmem>>, vector<1x256x64xbf16>
    %674 = vector.shape_cast %673 : vector<1x256x64xbf16> to vector<256x64xbf16>
    %c0_155 = arith.constant 0 : index
    %c0_156 = arith.constant 0 : index
    %675 = vector.load %arg10[%c0_155, %c0_156] : memref<64x1024xbf16, #tpu.memory_space<vmem>>, vector<64x1024xbf16>
    %cst_157 = arith.constant dense<0.000000e+00> : vector<256x1024xf32>
    %676 = tpu.matmul %674, %675, %cst_157 {dimension_numbers = #tpu.dot_dimension_numbers<[1], [0], [0], [1], [0, 0, 1, 1], [], []>} : vector<256x64xbf16>, vector<64x1024xbf16>, vector<256x1024xf32> -> vector<256x1024xf32>
    %677 = vector.broadcast %672 : vector<256x1xf32> to vector<256x1024xf32>
    %678 = arith.addf %676, %677 : vector<256x1024xf32>
    %c0_158 = arith.constant 0 : index
    %c0_159 = arith.constant 0 : index
    %679 = vector.load %arg9[%c0_158, %c0_159] : memref<256x1024xf32, #tpu.memory_space<vmem>>, vector<256x1024xf32>
    tpu.vector_store %arg9[%c0_158, %c0_159], %678 {strides = array<i32>} : memref<256x1024xf32, #tpu.memory_space<vmem>>, vector<256x1024xf32>,
    %c1_160 = arith.constant 1 : index
    %c0_161 = arith.constant 0 : index
    %c0_162 = arith.constant 0 : index
    %680 = vector.load %arg5[%c1_160, %c0_161, %c0_162] : memref<2x256x64xbf16, #tpu.memory_space<vmem>>, vector<1x256x64xbf16>
    %681 = vector.shape_cast %680 : vector<1x256x64xbf16> to vector<256x64xbf16>
    %cst_163 = arith.constant 0.000000e+00 : f32
    %682 = vector.broadcast %cst_163 : f32 to vector<32x128xf32>
    %cst_164 = arith.constant 0.000000e+00 : f32
    %683 = vector.broadcast %cst_164 : f32 to vector<64x128xf32>
    %c0_i32_165 = arith.constant 0 : i32
    %c128_i32_166 = arith.constant 128 : i32
    %684 = arith.muli %c0_i32_165, %c128_i32_166 : i32
    %685 = tpu.assume_multiple %684, 128 : i32
    %c7_i32_167 = arith.constant 7 : i32
    %686 = arith.subi %c7_i32_167, %c0_i32_165 : i32
    %c128_i32_168 = arith.constant 128 : i32
    %687 = arith.muli %686, %c128_i32_168 : i32
    %688 = tpu.assume_multiple %687, 128 : i32
    %689 = arith.truncf %683 : vector<64x128xf32> to vector<64x128xbf16>
    %cst_169 = arith.constant dense<0.000000e+00> : vector<256x128xf32>
    %690 = tpu.matmul %681, %689, %cst_169 {dimension_numbers = #tpu.dot_dimension_numbers<[1], [0], [0], [1], [0, 0, 1, 1], [], []>} : vector<256x64xbf16>, vector<64x128xbf16>, vector<256x128xf32> -> vector<256x128xf32>
    %691 = vector.extract_strided_slice %690 {offsets = [0, 0], sizes = [128, 128], strides = [1, 1]} : vector<256x128xf32> to vector<128x128xf32>
    %c0_170 = arith.constant 0 : index
    %692 = arith.index_cast %685 : i32 to index
    %693 = vector.load %arg9[%c0_170, %692] : memref<256x1024xf32, #tpu.memory_space<vmem>>, vector<128x128xf32>
    %694 = arith.addf %691, %693 : vector<128x128xf32>
    %695 = vector.extract_strided_slice %690 {offsets = [128, 0], sizes = [128, 128], strides = [1, 1]} : vector<256x128xf32> to vector<128x128xf32>
    %c128_171 = arith.constant 128 : index
    %696 = arith.index_cast %688 : i32 to index
    %697 = vector.load %arg9[%c128_171, %696] : memref<256x1024xf32, #tpu.memory_space<vmem>>, vector<128x128xf32>
    %698 = arith.addf %695, %697 : vector<128x128xf32>
    %699 = vector.extract_strided_slice %694 {offsets = [0, 0], sizes = [32, 128], strides = [1, 1]} : vector<128x128xf32> to vector<32x128xf32>
    %700 = arith.negf %699 : vector<32x128xf32>
    %701 = math.exp %700 : vector<32x128xf32>
    %cst_172 = arith.constant 1.000000e+00 : f32
    %702 = vector.broadcast %cst_172 : f32 to vector<32x128xf32>
    %703 = arith.addf %702, %701 : vector<32x128xf32>
    %704 = arith.divf %702, %703 : vector<32x128xf32>
    %705 = vector.extract_strided_slice %694 {offsets = [32, 0], sizes = [32, 128], strides = [1, 1]} : vector<128x128xf32> to vector<32x128xf32>
    %706 = arith.negf %705 : vector<32x128xf32>
    %707 = math.exp %706 : vector<32x128xf32>
    %cst_173 = arith.constant 1.000000e+00 : f32
    %708 = vector.broadcast %cst_173 : f32 to vector<32x128xf32>
    %709 = arith.addf %708, %707 : vector<32x128xf32>
    %710 = arith.divf %708, %709 : vector<32x128xf32>
    %711 = vector.extract_strided_slice %694 {offsets = [64, 0], sizes = [32, 128], strides = [1, 1]} : vector<128x128xf32> to vector<32x128xf32>
    %712 = math.tanh %711 : vector<32x128xf32>
    %713 = vector.extract_strided_slice %694 {offsets = [96, 0], sizes = [32, 128], strides = [1, 1]} : vector<128x128xf32> to vector<32x128xf32>
    %714 = arith.negf %713 : vector<32x128xf32>
    %715 = math.exp %714 : vector<32x128xf32>
    %cst_174 = arith.constant 1.000000e+00 : f32
    %716 = vector.broadcast %cst_174 : f32 to vector<32x128xf32>
    %717 = arith.addf %716, %715 : vector<32x128xf32>
    %718 = arith.divf %716, %717 : vector<32x128xf32>
    %719 = arith.mulf %710, %682 : vector<32x128xf32>
    %720 = arith.mulf %704, %712 : vector<32x128xf32>
    %721 = arith.addf %719, %720 : vector<32x128xf32>
    %722 = math.tanh %721 : vector<32x128xf32>
    %723 = arith.mulf %718, %722 : vector<32x128xf32>
    %724 = vector.extract_strided_slice %698 {offsets = [0, 0], sizes = [32, 128], strides = [1, 1]} : vector<128x128xf32> to vector<32x128xf32>
    %725 = arith.negf %724 : vector<32x128xf32>
    %726 = math.exp %725 : vector<32x128xf32>
    %cst_175 = arith.constant 1.000000e+00 : f32
    %727 = vector.broadcast %cst_175 : f32 to vector<32x128xf32>
    %728 = arith.addf %727, %726 : vector<32x128xf32>
    %729 = arith.divf %727, %728 : vector<32x128xf32>
    %730 = vector.extract_strided_slice %698 {offsets = [32, 0], sizes = [32, 128], strides = [1, 1]} : vector<128x128xf32> to vector<32x128xf32>
    %731 = arith.negf %730 : vector<32x128xf32>
    %732 = math.exp %731 : vector<32x128xf32>
    %cst_176 = arith.constant 1.000000e+00 : f32
    %733 = vector.broadcast %cst_176 : f32 to vector<32x128xf32>
    %734 = arith.addf %733, %732 : vector<32x128xf32>
    %735 = arith.divf %733, %734 : vector<32x128xf32>
    %736 = vector.extract_strided_slice %698 {offsets = [64, 0], sizes = [32, 128], strides = [1, 1]} : vector<128x128xf32> to vector<32x128xf32>
    %737 = math.tanh %736 : vector<32x128xf32>
    %738 = vector.extract_strided_slice %698 {offsets = [96, 0], sizes = [32, 128], strides = [1, 1]} : vector<128x128xf32> to vector<32x128xf32>
    %739 = arith.negf %738 : vector<32x128xf32>
    %740 = math.exp %739 : vector<32x128xf32>
    %cst_177 = arith.constant 1.000000e+00 : f32
    %741 = vector.broadcast %cst_177 : f32 to vector<32x128xf32>
    %742 = arith.addf %741, %740 : vector<32x128xf32>
    %743 = arith.divf %741, %742 : vector<32x128xf32>
    %744 = arith.mulf %735, %682 : vector<32x128xf32>
    %745 = arith.mulf %729, %737 : vector<32x128xf32>
    %746 = arith.addf %744, %745 : vector<32x128xf32>
    %747 = math.tanh %746 : vector<32x128xf32>
    %748 = arith.mulf %743, %747 : vector<32x128xf32>
    %749 = tpu.concatenate %723, %748 in 0 : vector<32x128xf32>, vector<32x128xf32> -> vector<64x128xf32>
    %c1_i32_178 = arith.constant 1 : i32
    %c128_i32_179 = arith.constant 128 : i32
    %750 = arith.muli %c1_i32_178, %c128_i32_179 : i32
    %751 = tpu.assume_multiple %750, 128 : i32
    %c7_i32_180 = arith.constant 7 : i32
    %752 = arith.subi %c7_i32_180, %c1_i32_178 : i32
    %c128_i32_181 = arith.constant 128 : i32
    %753 = arith.muli %752, %c128_i32_181 : i32
    %754 = tpu.assume_multiple %753, 128 : i32
    %755 = arith.truncf %749 : vector<64x128xf32> to vector<64x128xbf16>
    %cst_182 = arith.constant dense<0.000000e+00> : vector<256x128xf32>
    %756 = tpu.matmul %681, %755, %cst_182 {dimension_numbers = #tpu.dot_dimension_numbers<[1], [0], [0], [1], [0, 0, 1, 1], [], []>} : vector<256x64xbf16>, vector<64x128xbf16>, vector<256x128xf32> -> vector<256x128xf32>
    %757 = vector.extract_strided_slice %756 {offsets = [0, 0], sizes = [128, 128], strides = [1, 1]} : vector<256x128xf32> to vector<128x128xf32>
    %c0_183 = arith.constant 0 : index
    %758 = arith.index_cast %751 : i32 to index
    %759 = vector.load %arg9[%c0_183, %758] : memref<256x1024xf32, #tpu.memory_space<vmem>>, vector<128x128xf32>
    %760 = arith.addf %757, %759 : vector<128x128xf32>
    %761 = vector.extract_strided_slice %756 {offsets = [128, 0], sizes = [128, 128], strides = [1, 1]} : vector<256x128xf32> to vector<128x128xf32>
    %c128_184 = arith.constant 128 : index
    %762 = arith.index_cast %754 : i32 to index
    %763 = vector.load %arg9[%c128_184, %762] : memref<256x1024xf32, #tpu.memory_space<vmem>>, vector<128x128xf32>
    %764 = arith.addf %761, %763 : vector<128x128xf32>
    %765 = vector.extract_strided_slice %760 {offsets = [0, 0], sizes = [32, 128], strides = [1, 1]} : vector<128x128xf32> to vector<32x128xf32>
    %766 = arith.negf %765 : vector<32x128xf32>
    %767 = math.exp %766 : vector<32x128xf32>
    %cst_185 = arith.constant 1.000000e+00 : f32
    %768 = vector.broadcast %cst_185 : f32 to vector<32x128xf32>
    %769 = arith.addf %768, %767 : vector<32x128xf32>
    %770 = arith.divf %768, %769 : vector<32x128xf32>
    %771 = vector.extract_strided_slice %760 {offsets = [32, 0], sizes = [32, 128], strides = [1, 1]} : vector<128x128xf32> to vector<32x128xf32>
    %772 = arith.negf %771 : vector<32x128xf32>
    %773 = math.exp %772 : vector<32x128xf32>
    %cst_186 = arith.constant 1.000000e+00 : f32
    %774 = vector.broadcast %cst_186 : f32 to vector<32x128xf32>
    %775 = arith.addf %774, %773 : vector<32x128xf32>
    %776 = arith.divf %774, %775 : vector<32x128xf32>
    %777 = vector.extract_strided_slice %760 {offsets = [64, 0], sizes = [32, 128], strides = [1, 1]} : vector<128x128xf32> to vector<32x128xf32>
    %778 = math.tanh %777 : vector<32x128xf32>
    %779 = vector.extract_strided_slice %760 {offsets = [96, 0], sizes = [32, 128], strides = [1, 1]} : vector<128x128xf32> to vector<32x128xf32>
    %780 = arith.negf %779 : vector<32x128xf32>
    %781 = math.exp %780 : vector<32x128xf32>
    %cst_187 = arith.constant 1.000000e+00 : f32
    %782 = vector.broadcast %cst_187 : f32 to vector<32x128xf32>
    %783 = arith.addf %782, %781 : vector<32x128xf32>
    %784 = arith.divf %782, %783 : vector<32x128xf32>
    %785 = arith.mulf %776, %721 : vector<32x128xf32>
    %786 = arith.mulf %770, %778 : vector<32x128xf32>
    %787 = arith.addf %785, %786 : vector<32x128xf32>
    %788 = math.tanh %787 : vector<32x128xf32>
    %789 = arith.mulf %784, %788 : vector<32x128xf32>
    %790 = vector.extract_strided_slice %764 {offsets = [0, 0], sizes = [32, 128], strides = [1, 1]} : vector<128x128xf32> to vector<32x128xf32>
    %791 = arith.negf %790 : vector<32x128xf32>
    %792 = math.exp %791 : vector<32x128xf32>
    %cst_188 = arith.constant 1.000000e+00 : f32
    %793 = vector.broadcast %cst_188 : f32 to vector<32x128xf32>
    %794 = arith.addf %793, %792 : vector<32x128xf32>
    %795 = arith.divf %793, %794 : vector<32x128xf32>
    %796 = vector.extract_strided_slice %764 {offsets = [32, 0], sizes = [32, 128], strides = [1, 1]} : vector<128x128xf32> to vector<32x128xf32>
    %797 = arith.negf %796 : vector<32x128xf32>
    %798 = math.exp %797 : vector<32x128xf32>
    %cst_189 = arith.constant 1.000000e+00 : f32
    %799 = vector.broadcast %cst_189 : f32 to vector<32x128xf32>
    %800 = arith.addf %799, %798 : vector<32x128xf32>
    %801 = arith.divf %799, %800 : vector<32x128xf32>
    %802 = vector.extract_strided_slice %764 {offsets = [64, 0], sizes = [32, 128], strides = [1, 1]} : vector<128x128xf32> to vector<32x128xf32>
    %803 = math.tanh %802 : vector<32x128xf32>
    %804 = vector.extract_strided_slice %764 {offsets = [96, 0], sizes = [32, 128], strides = [1, 1]} : vector<128x128xf32> to vector<32x128xf32>
    %805 = arith.negf %804 : vector<32x128xf32>
    %806 = math.exp %805 : vector<32x128xf32>
    %cst_190 = arith.constant 1.000000e+00 : f32
    %807 = vector.broadcast %cst_190 : f32 to vector<32x128xf32>
    %808 = arith.addf %807, %806 : vector<32x128xf32>
    %809 = arith.divf %807, %808 : vector<32x128xf32>
    %810 = arith.mulf %801, %746 : vector<32x128xf32>
    %811 = arith.mulf %795, %803 : vector<32x128xf32>
    %812 = arith.addf %810, %811 : vector<32x128xf32>
    %813 = math.tanh %812 : vector<32x128xf32>
    %814 = arith.mulf %809, %813 : vector<32x128xf32>
    %815 = tpu.concatenate %789, %814 in 0 : vector<32x128xf32>, vector<32x128xf32> -> vector<64x128xf32>
    %c2_i32_191 = arith.constant 2 : i32
    %c128_i32_192 = arith.constant 128 : i32
    %816 = arith.muli %c2_i32_191, %c128_i32_192 : i32
    %817 = tpu.assume_multiple %816, 128 : i32
    %c7_i32_193 = arith.constant 7 : i32
    %818 = arith.subi %c7_i32_193, %c2_i32_191 : i32
    %c128_i32_194 = arith.constant 128 : i32
    %819 = arith.muli %818, %c128_i32_194 : i32
    %820 = tpu.assume_multiple %819, 128 : i32
    %821 = arith.truncf %815 : vector<64x128xf32> to vector<64x128xbf16>
    %cst_195 = arith.constant dense<0.000000e+00> : vector<256x128xf32>
    %822 = tpu.matmul %681, %821, %cst_195 {dimension_numbers = #tpu.dot_dimension_numbers<[1], [0], [0], [1], [0, 0, 1, 1], [], []>} : vector<256x64xbf16>, vector<64x128xbf16>, vector<256x128xf32> -> vector<256x128xf32>
    %823 = vector.extract_strided_slice %822 {offsets = [0, 0], sizes = [128, 128], strides = [1, 1]} : vector<256x128xf32> to vector<128x128xf32>
    %c0_196 = arith.constant 0 : index
    %824 = arith.index_cast %817 : i32 to index
    %825 = vector.load %arg9[%c0_196, %824] : memref<256x1024xf32, #tpu.memory_space<vmem>>, vector<128x128xf32>
    %826 = arith.addf %823, %825 : vector<128x128xf32>
    %827 = vector.extract_strided_slice %822 {offsets = [128, 0], sizes = [128, 128], strides = [1, 1]} : vector<256x128xf32> to vector<128x128xf32>
    %c128_197 = arith.constant 128 : index
    %828 = arith.index_cast %820 : i32 to index
    %829 = vector.load %arg9[%c128_197, %828] : memref<256x1024xf32, #tpu.memory_space<vmem>>, vector<128x128xf32>
    %830 = arith.addf %827, %829 : vector<128x128xf32>
    %831 = vector.extract_strided_slice %826 {offsets = [0, 0], sizes = [32, 128], strides = [1, 1]} : vector<128x128xf32> to vector<32x128xf32>
    %832 = arith.negf %831 : vector<32x128xf32>
    %833 = math.exp %832 : vector<32x128xf32>
    %cst_198 = arith.constant 1.000000e+00 : f32
    %834 = vector.broadcast %cst_198 : f32 to vector<32x128xf32>
    %835 = arith.addf %834, %833 : vector<32x128xf32>
    %836 = arith.divf %834, %835 : vector<32x128xf32>
    %837 = vector.extract_strided_slice %826 {offsets = [32, 0], sizes = [32, 128], strides = [1, 1]} : vector<128x128xf32> to vector<32x128xf32>
    %838 = arith.negf %837 : vector<32x128xf32>
    %839 = math.exp %838 : vector<32x128xf32>
    %cst_199 = arith.constant 1.000000e+00 : f32
    %840 = vector.broadcast %cst_199 : f32 to vector<32x128xf32>
    %841 = arith.addf %840, %839 : vector<32x128xf32>
    %842 = arith.divf %840, %841 : vector<32x128xf32>
    %843 = vector.extract_strided_slice %826 {offsets = [64, 0], sizes = [32, 128], strides = [1, 1]} : vector<128x128xf32> to vector<32x128xf32>
    %844 = math.tanh %843 : vector<32x128xf32>
    %845 = vector.extract_strided_slice %826 {offsets = [96, 0], sizes = [32, 128], strides = [1, 1]} : vector<128x128xf32> to vector<32x128xf32>
    %846 = arith.negf %845 : vector<32x128xf32>
    %847 = math.exp %846 : vector<32x128xf32>
    %cst_200 = arith.constant 1.000000e+00 : f32
    %848 = vector.broadcast %cst_200 : f32 to vector<32x128xf32>
    %849 = arith.addf %848, %847 : vector<32x128xf32>
    %850 = arith.divf %848, %849 : vector<32x128xf32>
    %851 = arith.mulf %842, %787 : vector<32x128xf32>
    %852 = arith.mulf %836, %844 : vector<32x128xf32>
    %853 = arith.addf %851, %852 : vector<32x128xf32>
    %854 = math.tanh %853 : vector<32x128xf32>
    %855 = arith.mulf %850, %854 : vector<32x128xf32>
    %856 = vector.extract_strided_slice %830 {offsets = [0, 0], sizes = [32, 128], strides = [1, 1]} : vector<128x128xf32> to vector<32x128xf32>
    %857 = arith.negf %856 : vector<32x128xf32>
    %858 = math.exp %857 : vector<32x128xf32>
    %cst_201 = arith.constant 1.000000e+00 : f32
    %859 = vector.broadcast %cst_201 : f32 to vector<32x128xf32>
    %860 = arith.addf %859, %858 : vector<32x128xf32>
    %861 = arith.divf %859, %860 : vector<32x128xf32>
    %862 = vector.extract_strided_slice %830 {offsets = [32, 0], sizes = [32, 128], strides = [1, 1]} : vector<128x128xf32> to vector<32x128xf32>
    %863 = arith.negf %862 : vector<32x128xf32>
    %864 = math.exp %863 : vector<32x128xf32>
    %cst_202 = arith.constant 1.000000e+00 : f32
    %865 = vector.broadcast %cst_202 : f32 to vector<32x128xf32>
    %866 = arith.addf %865, %864 : vector<32x128xf32>
    %867 = arith.divf %865, %866 : vector<32x128xf32>
    %868 = vector.extract_strided_slice %830 {offsets = [64, 0], sizes = [32, 128], strides = [1, 1]} : vector<128x128xf32> to vector<32x128xf32>
    %869 = math.tanh %868 : vector<32x128xf32>
    %870 = vector.extract_strided_slice %830 {offsets = [96, 0], sizes = [32, 128], strides = [1, 1]} : vector<128x128xf32> to vector<32x128xf32>
    %871 = arith.negf %870 : vector<32x128xf32>
    %872 = math.exp %871 : vector<32x128xf32>
    %cst_203 = arith.constant 1.000000e+00 : f32
    %873 = vector.broadcast %cst_203 : f32 to vector<32x128xf32>
    %874 = arith.addf %873, %872 : vector<32x128xf32>
    %875 = arith.divf %873, %874 : vector<32x128xf32>
    %876 = arith.mulf %867, %812 : vector<32x128xf32>
    %877 = arith.mulf %861, %869 : vector<32x128xf32>
    %878 = arith.addf %876, %877 : vector<32x128xf32>
    %879 = math.tanh %878 : vector<32x128xf32>
    %880 = arith.mulf %875, %879 : vector<32x128xf32>
    %881 = tpu.concatenate %855, %880 in 0 : vector<32x128xf32>, vector<32x128xf32> -> vector<64x128xf32>
    %c3_i32_204 = arith.constant 3 : i32
    %c128_i32_205 = arith.constant 128 : i32
    %882 = arith.muli %c3_i32_204, %c128_i32_205 : i32
    %883 = tpu.assume_multiple %882, 128 : i32
    %c7_i32_206 = arith.constant 7 : i32
    %884 = arith.subi %c7_i32_206, %c3_i32_204 : i32
    %c128_i32_207 = arith.constant 128 : i32
    %885 = arith.muli %884, %c128_i32_207 : i32
    %886 = tpu.assume_multiple %885, 128 : i32
    %887 = arith.truncf %881 : vector<64x128xf32> to vector<64x128xbf16>
    %cst_208 = arith.constant dense<0.000000e+00> : vector<256x128xf32>
    %888 = tpu.matmul %681, %887, %cst_208 {dimension_numbers = #tpu.dot_dimension_numbers<[1], [0], [0], [1], [0, 0, 1, 1], [], []>} : vector<256x64xbf16>, vector<64x128xbf16>, vector<256x128xf32> -> vector<256x128xf32>
    %889 = vector.extract_strided_slice %888 {offsets = [0, 0], sizes = [128, 128], strides = [1, 1]} : vector<256x128xf32> to vector<128x128xf32>
    %c0_209 = arith.constant 0 : index
    %890 = arith.index_cast %883 : i32 to index
    %891 = vector.load %arg9[%c0_209, %890] : memref<256x1024xf32, #tpu.memory_space<vmem>>, vector<128x128xf32>
    %892 = arith.addf %889, %891 : vector<128x128xf32>
    %893 = vector.extract_strided_slice %888 {offsets = [128, 0], sizes = [128, 128], strides = [1, 1]} : vector<256x128xf32> to vector<128x128xf32>
    %c128_210 = arith.constant 128 : index
    %894 = arith.index_cast %886 : i32 to index
    %895 = vector.load %arg9[%c128_210, %894] : memref<256x1024xf32, #tpu.memory_space<vmem>>, vector<128x128xf32>
    %896 = arith.addf %893, %895 : vector<128x128xf32>
    %897 = vector.extract_strided_slice %892 {offsets = [0, 0], sizes = [32, 128], strides = [1, 1]} : vector<128x128xf32> to vector<32x128xf32>
    %898 = arith.negf %897 : vector<32x128xf32>
    %899 = math.exp %898 : vector<32x128xf32>
    %cst_211 = arith.constant 1.000000e+00 : f32
    %900 = vector.broadcast %cst_211 : f32 to vector<32x128xf32>
    %901 = arith.addf %900, %899 : vector<32x128xf32>
    %902 = arith.divf %900, %901 : vector<32x128xf32>
    %903 = vector.extract_strided_slice %892 {offsets = [32, 0], sizes = [32, 128], strides = [1, 1]} : vector<128x128xf32> to vector<32x128xf32>
    %904 = arith.negf %903 : vector<32x128xf32>
    %905 = math.exp %904 : vector<32x128xf32>
    %cst_212 = arith.constant 1.000000e+00 : f32
    %906 = vector.broadcast %cst_212 : f32 to vector<32x128xf32>
    %907 = arith.addf %906, %905 : vector<32x128xf32>
    %908 = arith.divf %906, %907 : vector<32x128xf32>
    %909 = vector.extract_strided_slice %892 {offsets = [64, 0], sizes = [32, 128], strides = [1, 1]} : vector<128x128xf32> to vector<32x128xf32>
    %910 = math.tanh %909 : vector<32x128xf32>
    %911 = vector.extract_strided_slice %892 {offsets = [96, 0], sizes = [32, 128], strides = [1, 1]} : vector<128x128xf32> to vector<32x128xf32>
    %912 = arith.negf %911 : vector<32x128xf32>
    %913 = math.exp %912 : vector<32x128xf32>
    %cst_213 = arith.constant 1.000000e+00 : f32
    %914 = vector.broadcast %cst_213 : f32 to vector<32x128xf32>
    %915 = arith.addf %914, %913 : vector<32x128xf32>
    %916 = arith.divf %914, %915 : vector<32x128xf32>
    %917 = arith.mulf %908, %853 : vector<32x128xf32>
    %918 = arith.mulf %902, %910 : vector<32x128xf32>
    %919 = arith.addf %917, %918 : vector<32x128xf32>
    %920 = math.tanh %919 : vector<32x128xf32>
    %921 = arith.mulf %916, %920 : vector<32x128xf32>
    %922 = vector.extract_strided_slice %896 {offsets = [0, 0], sizes = [32, 128], strides = [1, 1]} : vector<128x128xf32> to vector<32x128xf32>
    %923 = arith.negf %922 : vector<32x128xf32>
    %924 = math.exp %923 : vector<32x128xf32>
    %cst_214 = arith.constant 1.000000e+00 : f32
    %925 = vector.broadcast %cst_214 : f32 to vector<32x128xf32>
    %926 = arith.addf %925, %924 : vector<32x128xf32>
    %927 = arith.divf %925, %926 : vector<32x128xf32>
    %928 = vector.extract_strided_slice %896 {offsets = [32, 0], sizes = [32, 128], strides = [1, 1]} : vector<128x128xf32> to vector<32x128xf32>
    %929 = arith.negf %928 : vector<32x128xf32>
    %930 = math.exp %929 : vector<32x128xf32>
    %cst_215 = arith.constant 1.000000e+00 : f32
    %931 = vector.broadcast %cst_215 : f32 to vector<32x128xf32>
    %932 = arith.addf %931, %930 : vector<32x128xf32>
    %933 = arith.divf %931, %932 : vector<32x128xf32>
    %934 = vector.extract_strided_slice %896 {offsets = [64, 0], sizes = [32, 128], strides = [1, 1]} : vector<128x128xf32> to vector<32x128xf32>
    %935 = math.tanh %934 : vector<32x128xf32>
    %936 = vector.extract_strided_slice %896 {offsets = [96, 0], sizes = [32, 128], strides = [1, 1]} : vector<128x128xf32> to vector<32x128xf32>
    %937 = arith.negf %936 : vector<32x128xf32>
    %938 = math.exp %937 : vector<32x128xf32>
    %cst_216 = arith.constant 1.000000e+00 : f32
    %939 = vector.broadcast %cst_216 : f32 to vector<32x128xf32>
    %940 = arith.addf %939, %938 : vector<32x128xf32>
    %941 = arith.divf %939, %940 : vector<32x128xf32>
    %942 = arith.mulf %933, %878 : vector<32x128xf32>
    %943 = arith.mulf %927, %935 : vector<32x128xf32>
    %944 = arith.addf %942, %943 : vector<32x128xf32>
    %945 = math.tanh %944 : vector<32x128xf32>
    %946 = arith.mulf %941, %945 : vector<32x128xf32>
    %947 = tpu.concatenate %921, %946 in 0 : vector<32x128xf32>, vector<32x128xf32> -> vector<64x128xf32>
    %c4_i32_217 = arith.constant 4 : i32
    %c128_i32_218 = arith.constant 128 : i32
    %948 = arith.muli %c4_i32_217, %c128_i32_218 : i32
    %949 = tpu.assume_multiple %948, 128 : i32
    %c7_i32_219 = arith.constant 7 : i32
    %950 = arith.subi %c7_i32_219, %c4_i32_217 : i32
    %c128_i32_220 = arith.constant 128 : i32
    %951 = arith.muli %950, %c128_i32_220 : i32
    %952 = tpu.assume_multiple %951, 128 : i32
    %953 = arith.truncf %947 : vector<64x128xf32> to vector<64x128xbf16>
    %cst_221 = arith.constant dense<0.000000e+00> : vector<256x128xf32>
    %954 = tpu.matmul %681, %953, %cst_221 {dimension_numbers = #tpu.dot_dimension_numbers<[1], [0], [0], [1], [0, 0, 1, 1], [], []>} : vector<256x64xbf16>, vector<64x128xbf16>, vector<256x128xf32> -> vector<256x128xf32>
    %955 = vector.extract_strided_slice %954 {offsets = [0, 0], sizes = [128, 128], strides = [1, 1]} : vector<256x128xf32> to vector<128x128xf32>
    %c0_222 = arith.constant 0 : index
    %956 = arith.index_cast %949 : i32 to index
    %957 = vector.load %arg9[%c0_222, %956] : memref<256x1024xf32, #tpu.memory_space<vmem>>, vector<128x128xf32>
    %958 = arith.addf %955, %957 : vector<128x128xf32>
    %959 = vector.extract_strided_slice %954 {offsets = [128, 0], sizes = [128, 128], strides = [1, 1]} : vector<256x128xf32> to vector<128x128xf32>
    %c128_223 = arith.constant 128 : index
    %960 = arith.index_cast %952 : i32 to index
    %961 = vector.load %arg9[%c128_223, %960] : memref<256x1024xf32, #tpu.memory_space<vmem>>, vector<128x128xf32>
    %962 = arith.addf %959, %961 : vector<128x128xf32>
    %963 = vector.extract_strided_slice %958 {offsets = [0, 0], sizes = [32, 128], strides = [1, 1]} : vector<128x128xf32> to vector<32x128xf32>
    %964 = arith.negf %963 : vector<32x128xf32>
    %965 = math.exp %964 : vector<32x128xf32>
    %cst_224 = arith.constant 1.000000e+00 : f32
    %966 = vector.broadcast %cst_224 : f32 to vector<32x128xf32>
    %967 = arith.addf %966, %965 : vector<32x128xf32>
    %968 = arith.divf %966, %967 : vector<32x128xf32>
    %969 = vector.extract_strided_slice %958 {offsets = [32, 0], sizes = [32, 128], strides = [1, 1]} : vector<128x128xf32> to vector<32x128xf32>
    %970 = arith.negf %969 : vector<32x128xf32>
    %971 = math.exp %970 : vector<32x128xf32>
    %cst_225 = arith.constant 1.000000e+00 : f32
    %972 = vector.broadcast %cst_225 : f32 to vector<32x128xf32>
    %973 = arith.addf %972, %971 : vector<32x128xf32>
    %974 = arith.divf %972, %973 : vector<32x128xf32>
    %975 = vector.extract_strided_slice %958 {offsets = [64, 0], sizes = [32, 128], strides = [1, 1]} : vector<128x128xf32> to vector<32x128xf32>
    %976 = math.tanh %975 : vector<32x128xf32>
    %977 = vector.extract_strided_slice %958 {offsets = [96, 0], sizes = [32, 128], strides = [1, 1]} : vector<128x128xf32> to vector<32x128xf32>
    %978 = arith.negf %977 : vector<32x128xf32>
    %979 = math.exp %978 : vector<32x128xf32>
    %cst_226 = arith.constant 1.000000e+00 : f32
    %980 = vector.broadcast %cst_226 : f32 to vector<32x128xf32>
    %981 = arith.addf %980, %979 : vector<32x128xf32>
    %982 = arith.divf %980, %981 : vector<32x128xf32>
    %983 = arith.mulf %974, %919 : vector<32x128xf32>
    %984 = arith.mulf %968, %976 : vector<32x128xf32>
    %985 = arith.addf %983, %984 : vector<32x128xf32>
    %986 = math.tanh %985 : vector<32x128xf32>
    %987 = arith.mulf %982, %986 : vector<32x128xf32>
    %988 = vector.extract_strided_slice %962 {offsets = [0, 0], sizes = [32, 128], strides = [1, 1]} : vector<128x128xf32> to vector<32x128xf32>
    %989 = arith.negf %988 : vector<32x128xf32>
    %990 = math.exp %989 : vector<32x128xf32>
    %cst_227 = arith.constant 1.000000e+00 : f32
    %991 = vector.broadcast %cst_227 : f32 to vector<32x128xf32>
    %992 = arith.addf %991, %990 : vector<32x128xf32>
    %993 = arith.divf %991, %992 : vector<32x128xf32>
    %994 = vector.extract_strided_slice %962 {offsets = [32, 0], sizes = [32, 128], strides = [1, 1]} : vector<128x128xf32> to vector<32x128xf32>
    %995 = arith.negf %994 : vector<32x128xf32>
    %996 = math.exp %995 : vector<32x128xf32>
    %cst_228 = arith.constant 1.000000e+00 : f32
    %997 = vector.broadcast %cst_228 : f32 to vector<32x128xf32>
    %998 = arith.addf %997, %996 : vector<32x128xf32>
    %999 = arith.divf %997, %998 : vector<32x128xf32>
    %1000 = vector.extract_strided_slice %962 {offsets = [64, 0], sizes = [32, 128], strides = [1, 1]} : vector<128x128xf32> to vector<32x128xf32>
    %1001 = math.tanh %1000 : vector<32x128xf32>
    %1002 = vector.extract_strided_slice %962 {offsets = [96, 0], sizes = [32, 128], strides = [1, 1]} : vector<128x128xf32> to vector<32x128xf32>
    %1003 = arith.negf %1002 : vector<32x128xf32>
    %1004 = math.exp %1003 : vector<32x128xf32>
    %cst_229 = arith.constant 1.000000e+00 : f32
    %1005 = vector.broadcast %cst_229 : f32 to vector<32x128xf32>
    %1006 = arith.addf %1005, %1004 : vector<32x128xf32>
    %1007 = arith.divf %1005, %1006 : vector<32x128xf32>
    %1008 = arith.mulf %999, %944 : vector<32x128xf32>
    %1009 = arith.mulf %993, %1001 : vector<32x128xf32>
    %1010 = arith.addf %1008, %1009 : vector<32x128xf32>
    %1011 = math.tanh %1010 : vector<32x128xf32>
    %1012 = arith.mulf %1007, %1011 : vector<32x128xf32>
    %1013 = tpu.concatenate %987, %1012 in 0 : vector<32x128xf32>, vector<32x128xf32> -> vector<64x128xf32>
    %c5_i32_230 = arith.constant 5 : i32
    %c128_i32_231 = arith.constant 128 : i32
    %1014 = arith.muli %c5_i32_230, %c128_i32_231 : i32
    %1015 = tpu.assume_multiple %1014, 128 : i32
    %c7_i32_232 = arith.constant 7 : i32
    %1016 = arith.subi %c7_i32_232, %c5_i32_230 : i32
    %c128_i32_233 = arith.constant 128 : i32
    %1017 = arith.muli %1016, %c128_i32_233 : i32
    %1018 = tpu.assume_multiple %1017, 128 : i32
    %1019 = arith.truncf %1013 : vector<64x128xf32> to vector<64x128xbf16>
    %cst_234 = arith.constant dense<0.000000e+00> : vector<256x128xf32>
    %1020 = tpu.matmul %681, %1019, %cst_234 {dimension_numbers = #tpu.dot_dimension_numbers<[1], [0], [0], [1], [0, 0, 1, 1], [], []>} : vector<256x64xbf16>, vector<64x128xbf16>, vector<256x128xf32> -> vector<256x128xf32>
    %1021 = vector.extract_strided_slice %1020 {offsets = [0, 0], sizes = [128, 128], strides = [1, 1]} : vector<256x128xf32> to vector<128x128xf32>
    %c0_235 = arith.constant 0 : index
    %1022 = arith.index_cast %1015 : i32 to index
    %1023 = vector.load %arg9[%c0_235, %1022] : memref<256x1024xf32, #tpu.memory_space<vmem>>, vector<128x128xf32>
    %1024 = arith.addf %1021, %1023 : vector<128x128xf32>
    %1025 = vector.extract_strided_slice %1020 {offsets = [128, 0], sizes = [128, 128], strides = [1, 1]} : vector<256x128xf32> to vector<128x128xf32>
    %c128_236 = arith.constant 128 : index
    %1026 = arith.index_cast %1018 : i32 to index
    %1027 = vector.load %arg9[%c128_236, %1026] : memref<256x1024xf32, #tpu.memory_space<vmem>>, vector<128x128xf32>
    %1028 = arith.addf %1025, %1027 : vector<128x128xf32>
    %1029 = vector.extract_strided_slice %1024 {offsets = [0, 0], sizes = [32, 128], strides = [1, 1]} : vector<128x128xf32> to vector<32x128xf32>
    %1030 = arith.negf %1029 : vector<32x128xf32>
    %1031 = math.exp %1030 : vector<32x128xf32>
    %cst_237 = arith.constant 1.000000e+00 : f32
    %1032 = vector.broadcast %cst_237 : f32 to vector<32x128xf32>
    %1033 = arith.addf %1032, %1031 : vector<32x128xf32>
    %1034 = arith.divf %1032, %1033 : vector<32x128xf32>
    %1035 = vector.extract_strided_slice %1024 {offsets = [32, 0], sizes = [32, 128], strides = [1, 1]} : vector<128x128xf32> to vector<32x128xf32>
    %1036 = arith.negf %1035 : vector<32x128xf32>
    %1037 = math.exp %1036 : vector<32x128xf32>
    %cst_238 = arith.constant 1.000000e+00 : f32
    %1038 = vector.broadcast %cst_238 : f32 to vector<32x128xf32>
    %1039 = arith.addf %1038, %1037 : vector<32x128xf32>
    %1040 = arith.divf %1038, %1039 : vector<32x128xf32>
    %1041 = vector.extract_strided_slice %1024 {offsets = [64, 0], sizes = [32, 128], strides = [1, 1]} : vector<128x128xf32> to vector<32x128xf32>
    %1042 = math.tanh %1041 : vector<32x128xf32>
    %1043 = vector.extract_strided_slice %1024 {offsets = [96, 0], sizes = [32, 128], strides = [1, 1]} : vector<128x128xf32> to vector<32x128xf32>
    %1044 = arith.negf %1043 : vector<32x128xf32>
    %1045 = math.exp %1044 : vector<32x128xf32>
    %cst_239 = arith.constant 1.000000e+00 : f32
    %1046 = vector.broadcast %cst_239 : f32 to vector<32x128xf32>
    %1047 = arith.addf %1046, %1045 : vector<32x128xf32>
    %1048 = arith.divf %1046, %1047 : vector<32x128xf32>
    %1049 = arith.mulf %1040, %985 : vector<32x128xf32>
    %1050 = arith.mulf %1034, %1042 : vector<32x128xf32>
    %1051 = arith.addf %1049, %1050 : vector<32x128xf32>
    %1052 = math.tanh %1051 : vector<32x128xf32>
    %1053 = arith.mulf %1048, %1052 : vector<32x128xf32>
    %1054 = vector.extract_strided_slice %1028 {offsets = [0, 0], sizes = [32, 128], strides = [1, 1]} : vector<128x128xf32> to vector<32x128xf32>
    %1055 = arith.negf %1054 : vector<32x128xf32>
    %1056 = math.exp %1055 : vector<32x128xf32>
    %cst_240 = arith.constant 1.000000e+00 : f32
    %1057 = vector.broadcast %cst_240 : f32 to vector<32x128xf32>
    %1058 = arith.addf %1057, %1056 : vector<32x128xf32>
    %1059 = arith.divf %1057, %1058 : vector<32x128xf32>
    %1060 = vector.extract_strided_slice %1028 {offsets = [32, 0], sizes = [32, 128], strides = [1, 1]} : vector<128x128xf32> to vector<32x128xf32>
    %1061 = arith.negf %1060 : vector<32x128xf32>
    %1062 = math.exp %1061 : vector<32x128xf32>
    %cst_241 = arith.constant 1.000000e+00 : f32
    %1063 = vector.broadcast %cst_241 : f32 to vector<32x128xf32>
    %1064 = arith.addf %1063, %1062 : vector<32x128xf32>
    %1065 = arith.divf %1063, %1064 : vector<32x128xf32>
    %1066 = vector.extract_strided_slice %1028 {offsets = [64, 0], sizes = [32, 128], strides = [1, 1]} : vector<128x128xf32> to vector<32x128xf32>
    %1067 = math.tanh %1066 : vector<32x128xf32>
    %1068 = vector.extract_strided_slice %1028 {offsets = [96, 0], sizes = [32, 128], strides = [1, 1]} : vector<128x128xf32> to vector<32x128xf32>
    %1069 = arith.negf %1068 : vector<32x128xf32>
    %1070 = math.exp %1069 : vector<32x128xf32>
    %cst_242 = arith.constant 1.000000e+00 : f32
    %1071 = vector.broadcast %cst_242 : f32 to vector<32x128xf32>
    %1072 = arith.addf %1071, %1070 : vector<32x128xf32>
    %1073 = arith.divf %1071, %1072 : vector<32x128xf32>
    %1074 = arith.mulf %1065, %1010 : vector<32x128xf32>
    %1075 = arith.mulf %1059, %1067 : vector<32x128xf32>
    %1076 = arith.addf %1074, %1075 : vector<32x128xf32>
    %1077 = math.tanh %1076 : vector<32x128xf32>
    %1078 = arith.mulf %1073, %1077 : vector<32x128xf32>
    %1079 = tpu.concatenate %1053, %1078 in 0 : vector<32x128xf32>, vector<32x128xf32> -> vector<64x128xf32>
    %c6_i32_243 = arith.constant 6 : i32
    %c128_i32_244 = arith.constant 128 : i32
    %1080 = arith.muli %c6_i32_243, %c128_i32_244 : i32
    %1081 = tpu.assume_multiple %1080, 128 : i32
    %c7_i32_245 = arith.constant 7 : i32
    %1082 = arith.subi %c7_i32_245, %c6_i32_243 : i32
    %c128_i32_246 = arith.constant 128 : i32
    %1083 = arith.muli %1082, %c128_i32_246 : i32
    %1084 = tpu.assume_multiple %1083, 128 : i32
    %1085 = arith.truncf %1079 : vector<64x128xf32> to vector<64x128xbf16>
    %cst_247 = arith.constant dense<0.000000e+00> : vector<256x128xf32>
    %1086 = tpu.matmul %681, %1085, %cst_247 {dimension_numbers = #tpu.dot_dimension_numbers<[1], [0], [0], [1], [0, 0, 1, 1], [], []>} : vector<256x64xbf16>, vector<64x128xbf16>, vector<256x128xf32> -> vector<256x128xf32>
    %1087 = vector.extract_strided_slice %1086 {offsets = [0, 0], sizes = [128, 128], strides = [1, 1]} : vector<256x128xf32> to vector<128x128xf32>
    %c0_248 = arith.constant 0 : index
    %1088 = arith.index_cast %1081 : i32 to index
    %1089 = vector.load %arg9[%c0_248, %1088] : memref<256x1024xf32, #tpu.memory_space<vmem>>, vector<128x128xf32>
    %1090 = arith.addf %1087, %1089 : vector<128x128xf32>
    %1091 = vector.extract_strided_slice %1086 {offsets = [128, 0], sizes = [128, 128], strides = [1, 1]} : vector<256x128xf32> to vector<128x128xf32>
    %c128_249 = arith.constant 128 : index
    %1092 = arith.index_cast %1084 : i32 to index
    %1093 = vector.load %arg9[%c128_249, %1092] : memref<256x1024xf32, #tpu.memory_space<vmem>>, vector<128x128xf32>
    %1094 = arith.addf %1091, %1093 : vector<128x128xf32>
    %1095 = vector.extract_strided_slice %1090 {offsets = [0, 0], sizes = [32, 128], strides = [1, 1]} : vector<128x128xf32> to vector<32x128xf32>
    %1096 = arith.negf %1095 : vector<32x128xf32>
    %1097 = math.exp %1096 : vector<32x128xf32>
    %cst_250 = arith.constant 1.000000e+00 : f32
    %1098 = vector.broadcast %cst_250 : f32 to vector<32x128xf32>
    %1099 = arith.addf %1098, %1097 : vector<32x128xf32>
    %1100 = arith.divf %1098, %1099 : vector<32x128xf32>
    %1101 = vector.extract_strided_slice %1090 {offsets = [32, 0], sizes = [32, 128], strides = [1, 1]} : vector<128x128xf32> to vector<32x128xf32>
    %1102 = arith.negf %1101 : vector<32x128xf32>
    %1103 = math.exp %1102 : vector<32x128xf32>
    %cst_251 = arith.constant 1.000000e+00 : f32
    %1104 = vector.broadcast %cst_251 : f32 to vector<32x128xf32>
    %1105 = arith.addf %1104, %1103 : vector<32x128xf32>
    %1106 = arith.divf %1104, %1105 : vector<32x128xf32>
    %1107 = vector.extract_strided_slice %1090 {offsets = [64, 0], sizes = [32, 128], strides = [1, 1]} : vector<128x128xf32> to vector<32x128xf32>
    %1108 = math.tanh %1107 : vector<32x128xf32>
    %1109 = vector.extract_strided_slice %1090 {offsets = [96, 0], sizes = [32, 128], strides = [1, 1]} : vector<128x128xf32> to vector<32x128xf32>
    %1110 = arith.negf %1109 : vector<32x128xf32>
    %1111 = math.exp %1110 : vector<32x128xf32>
    %cst_252 = arith.constant 1.000000e+00 : f32
    %1112 = vector.broadcast %cst_252 : f32 to vector<32x128xf32>
    %1113 = arith.addf %1112, %1111 : vector<32x128xf32>
    %1114 = arith.divf %1112, %1113 : vector<32x128xf32>
    %1115 = arith.mulf %1106, %1051 : vector<32x128xf32>
    %1116 = arith.mulf %1100, %1108 : vector<32x128xf32>
    %1117 = arith.addf %1115, %1116 : vector<32x128xf32>
    %1118 = math.tanh %1117 : vector<32x128xf32>
    %1119 = arith.mulf %1114, %1118 : vector<32x128xf32>
    %1120 = vector.extract_strided_slice %1094 {offsets = [0, 0], sizes = [32, 128], strides = [1, 1]} : vector<128x128xf32> to vector<32x128xf32>
    %1121 = arith.negf %1120 : vector<32x128xf32>
    %1122 = math.exp %1121 : vector<32x128xf32>
    %cst_253 = arith.constant 1.000000e+00 : f32
    %1123 = vector.broadcast %cst_253 : f32 to vector<32x128xf32>
    %1124 = arith.addf %1123, %1122 : vector<32x128xf32>
    %1125 = arith.divf %1123, %1124 : vector<32x128xf32>
    %1126 = vector.extract_strided_slice %1094 {offsets = [32, 0], sizes = [32, 128], strides = [1, 1]} : vector<128x128xf32> to vector<32x128xf32>
    %1127 = arith.negf %1126 : vector<32x128xf32>
    %1128 = math.exp %1127 : vector<32x128xf32>
    %cst_254 = arith.constant 1.000000e+00 : f32
    %1129 = vector.broadcast %cst_254 : f32 to vector<32x128xf32>
    %1130 = arith.addf %1129, %1128 : vector<32x128xf32>
    %1131 = arith.divf %1129, %1130 : vector<32x128xf32>
    %1132 = vector.extract_strided_slice %1094 {offsets = [64, 0], sizes = [32, 128], strides = [1, 1]} : vector<128x128xf32> to vector<32x128xf32>
    %1133 = math.tanh %1132 : vector<32x128xf32>
    %1134 = vector.extract_strided_slice %1094 {offsets = [96, 0], sizes = [32, 128], strides = [1, 1]} : vector<128x128xf32> to vector<32x128xf32>
    %1135 = arith.negf %1134 : vector<32x128xf32>
    %1136 = math.exp %1135 : vector<32x128xf32>
    %cst_255 = arith.constant 1.000000e+00 : f32
    %1137 = vector.broadcast %cst_255 : f32 to vector<32x128xf32>
    %1138 = arith.addf %1137, %1136 : vector<32x128xf32>
    %1139 = arith.divf %1137, %1138 : vector<32x128xf32>
    %1140 = arith.mulf %1131, %1076 : vector<32x128xf32>
    %1141 = arith.mulf %1125, %1133 : vector<32x128xf32>
    %1142 = arith.addf %1140, %1141 : vector<32x128xf32>
    %1143 = math.tanh %1142 : vector<32x128xf32>
    %1144 = arith.mulf %1139, %1143 : vector<32x128xf32>
    %1145 = tpu.concatenate %1119, %1144 in 0 : vector<32x128xf32>, vector<32x128xf32> -> vector<64x128xf32>
    %c7_i32_256 = arith.constant 7 : i32
    %c128_i32_257 = arith.constant 128 : i32
    %1146 = arith.muli %c7_i32_256, %c128_i32_257 : i32
    %1147 = tpu.assume_multiple %1146, 128 : i32
    %c7_i32_258 = arith.constant 7 : i32
    %1148 = arith.subi %c7_i32_258, %c7_i32_256 : i32
    %c128_i32_259 = arith.constant 128 : i32
    %1149 = arith.muli %1148, %c128_i32_259 : i32
    %1150 = tpu.assume_multiple %1149, 128 : i32
    %1151 = arith.truncf %1145 : vector<64x128xf32> to vector<64x128xbf16>
    %cst_260 = arith.constant dense<0.000000e+00> : vector<256x128xf32>
    %1152 = tpu.matmul %681, %1151, %cst_260 {dimension_numbers = #tpu.dot_dimension_numbers<[1], [0], [0], [1], [0, 0, 1, 1], [], []>} : vector<256x64xbf16>, vector<64x128xbf16>, vector<256x128xf32> -> vector<256x128xf32>
    %1153 = vector.extract_strided_slice %1152 {offsets = [0, 0], sizes = [128, 128], strides = [1, 1]} : vector<256x128xf32> to vector<128x128xf32>
    %c0_261 = arith.constant 0 : index
    %1154 = arith.index_cast %1147 : i32 to index
    %1155 = vector.load %arg9[%c0_261, %1154] : memref<256x1024xf32, #tpu.memory_space<vmem>>, vector<128x128xf32>
    %1156 = arith.addf %1153, %1155 : vector<128x128xf32>
    %1157 = vector.extract_strided_slice %1152 {offsets = [128, 0], sizes = [128, 128], strides = [1, 1]} : vector<256x128xf32> to vector<128x128xf32>
    %c128_262 = arith.constant 128 : index
    %1158 = arith.index_cast %1150 : i32 to index
    %1159 = vector.load %arg9[%c128_262, %1158] : memref<256x1024xf32, #tpu.memory_space<vmem>>, vector<128x128xf32>
    %1160 = arith.addf %1157, %1159 : vector<128x128xf32>
    %1161 = vector.extract_strided_slice %1156 {offsets = [0, 0], sizes = [32, 128], strides = [1, 1]} : vector<128x128xf32> to vector<32x128xf32>
    %1162 = arith.negf %1161 : vector<32x128xf32>
    %1163 = math.exp %1162 : vector<32x128xf32>
    %cst_263 = arith.constant 1.000000e+00 : f32
    %1164 = vector.broadcast %cst_263 : f32 to vector<32x128xf32>
    %1165 = arith.addf %1164, %1163 : vector<32x128xf32>
    %1166 = arith.divf %1164, %1165 : vector<32x128xf32>
    %1167 = vector.extract_strided_slice %1156 {offsets = [32, 0], sizes = [32, 128], strides = [1, 1]} : vector<128x128xf32> to vector<32x128xf32>
    %1168 = arith.negf %1167 : vector<32x128xf32>
    %1169 = math.exp %1168 : vector<32x128xf32>
    %cst_264 = arith.constant 1.000000e+00 : f32
    %1170 = vector.broadcast %cst_264 : f32 to vector<32x128xf32>
    %1171 = arith.addf %1170, %1169 : vector<32x128xf32>
    %1172 = arith.divf %1170, %1171 : vector<32x128xf32>
    %1173 = vector.extract_strided_slice %1156 {offsets = [64, 0], sizes = [32, 128], strides = [1, 1]} : vector<128x128xf32> to vector<32x128xf32>
    %1174 = math.tanh %1173 : vector<32x128xf32>
    %1175 = vector.extract_strided_slice %1156 {offsets = [96, 0], sizes = [32, 128], strides = [1, 1]} : vector<128x128xf32> to vector<32x128xf32>
    %1176 = arith.negf %1175 : vector<32x128xf32>
    %1177 = math.exp %1176 : vector<32x128xf32>
    %cst_265 = arith.constant 1.000000e+00 : f32
    %1178 = vector.broadcast %cst_265 : f32 to vector<32x128xf32>
    %1179 = arith.addf %1178, %1177 : vector<32x128xf32>
    %1180 = arith.divf %1178, %1179 : vector<32x128xf32>
    %1181 = arith.mulf %1172, %1117 : vector<32x128xf32>
    %1182 = arith.mulf %1166, %1174 : vector<32x128xf32>
    %1183 = arith.addf %1181, %1182 : vector<32x128xf32>
    %1184 = math.tanh %1183 : vector<32x128xf32>
    %1185 = arith.mulf %1180, %1184 : vector<32x128xf32>
    %1186 = vector.extract_strided_slice %1160 {offsets = [0, 0], sizes = [32, 128], strides = [1, 1]} : vector<128x128xf32> to vector<32x128xf32>
    %1187 = arith.negf %1186 : vector<32x128xf32>
    %1188 = math.exp %1187 : vector<32x128xf32>
    %cst_266 = arith.constant 1.000000e+00 : f32
    %1189 = vector.broadcast %cst_266 : f32 to vector<32x128xf32>
    %1190 = arith.addf %1189, %1188 : vector<32x128xf32>
    %1191 = arith.divf %1189, %1190 : vector<32x128xf32>
    %1192 = vector.extract_strided_slice %1160 {offsets = [32, 0], sizes = [32, 128], strides = [1, 1]} : vector<128x128xf32> to vector<32x128xf32>
    %1193 = arith.negf %1192 : vector<32x128xf32>
    %1194 = math.exp %1193 : vector<32x128xf32>
    %cst_267 = arith.constant 1.000000e+00 : f32
    %1195 = vector.broadcast %cst_267 : f32 to vector<32x128xf32>
    %1196 = arith.addf %1195, %1194 : vector<32x128xf32>
    %1197 = arith.divf %1195, %1196 : vector<32x128xf32>
    %1198 = vector.extract_strided_slice %1160 {offsets = [64, 0], sizes = [32, 128], strides = [1, 1]} : vector<128x128xf32> to vector<32x128xf32>
    %1199 = math.tanh %1198 : vector<32x128xf32>
    %1200 = vector.extract_strided_slice %1160 {offsets = [96, 0], sizes = [32, 128], strides = [1, 1]} : vector<128x128xf32> to vector<32x128xf32>
    %1201 = arith.negf %1200 : vector<32x128xf32>
    %1202 = math.exp %1201 : vector<32x128xf32>
    %cst_268 = arith.constant 1.000000e+00 : f32
    %1203 = vector.broadcast %cst_268 : f32 to vector<32x128xf32>
    %1204 = arith.addf %1203, %1202 : vector<32x128xf32>
    %1205 = arith.divf %1203, %1204 : vector<32x128xf32>
    %1206 = arith.mulf %1197, %1142 : vector<32x128xf32>
    %1207 = arith.mulf %1191, %1199 : vector<32x128xf32>
    %1208 = arith.addf %1206, %1207 : vector<32x128xf32>
    %1209 = math.tanh %1208 : vector<32x128xf32>
    %1210 = arith.mulf %1205, %1209 : vector<32x128xf32>
    %1211 = tpu.concatenate %1185, %1210 in 0 : vector<32x128xf32>, vector<32x128xf32> -> vector<64x128xf32>
    %c8_i32_269 = arith.constant 8 : i32
    %c0_270 = arith.constant 0 : index
    %c0_271 = arith.constant 0 : index
    %1212 = vector.load %arg6[%c0_270, %c0_271] : memref<4x64xbf16, #tpu.memory_space<vmem>>, vector<4x64xbf16>
    %1213 = arith.truncf %1211 : vector<64x128xf32> to vector<64x128xbf16>
    %cst_272 = arith.constant dense<0.000000e+00> : vector<4x128xf32>
    %1214 = tpu.matmul %1212, %1213, %cst_272 {dimension_numbers = #tpu.dot_dimension_numbers<[1], [0], [0], [1], [0, 0, 1, 1], [], []>} : vector<4x64xbf16>, vector<64x128xbf16>, vector<4x128xf32> -> vector<4x128xf32>
    %c0_273 = arith.constant 0 : index
    %c0_274 = arith.constant 0 : index
    %1215 = vector.load %arg7[%c0_273, %c0_274] : memref<4x1xf32, #tpu.memory_space<vmem>>, vector<4x1xf32>
    %1216 = vector.broadcast %1215 : vector<4x1xf32> to vector<4x128xf32>
    %1217 = arith.addf %1214, %1216 : vector<4x128xf32>
    %c0_275 = arith.constant 0 : index
    %c0_276 = arith.constant 0 : index
    %1218 = vector.load %arg8[%c0_275, %c0_276] : memref<4x128xf32, #tpu.memory_space<vmem>>, vector<4x128xf32>
    tpu.vector_store %arg8[%c0_275, %c0_276], %1217 {strides = array<i32>} : memref<4x128xf32, #tpu.memory_space<vmem>>, vector<4x128xf32>,
    return
  }
  func.func @transform_0(%arg0: i32) -> (i32, i32) {
    %c0_i32 = arith.constant 0 : i32
    %c0_i32_0 = arith.constant 0 : i32
    return %c0_i32, %arg0 : i32, i32
  }
  func.func @transform_1(%arg0: i32) -> (i32, i32) {
    %c0_i32 = arith.constant 0 : i32
    %c0_i32_0 = arith.constant 0 : i32
    %c0_i32_1 = arith.constant 0 : i32
    return %c0_i32, %c0_i32_0 : i32, i32
  }
  func.func @transform_2(%arg0: i32) -> (i32, i32, i32) {
    %c0_i32 = arith.constant 0 : i32
    %c0_i32_0 = arith.constant 0 : i32
    %c0_i32_1 = arith.constant 0 : i32
    %c0_i32_2 = arith.constant 0 : i32
    return %c0_i32, %c0_i32_0, %c0_i32_1 : i32, i32, i32
  }
  func.func @transform_3(%arg0: i32) -> (i32, i32, i32) {
    %c0_i32 = arith.constant 0 : i32
    %c0_i32_0 = arith.constant 0 : i32
    %c0_i32_1 = arith.constant 0 : i32
    %c0_i32_2 = arith.constant 0 : i32
    return %c0_i32, %c0_i32_0, %c0_i32_1 : i32, i32, i32
  }
  func.func @transform_4(%arg0: i32) -> (i32, i32, i32) {
    %c0_i32 = arith.constant 0 : i32
    %c0_i32_0 = arith.constant 0 : i32
    %c0_i32_1 = arith.constant 0 : i32
    %c0_i32_2 = arith.constant 0 : i32
    return %c0_i32, %c0_i32_0, %c0_i32_1 : i32, i32, i32
  }
  func.func @transform_5(%arg0: i32) -> (i32, i32) {
    %c0_i32 = arith.constant 0 : i32
    %c0_i32_0 = arith.constant 0 : i32
    %c0_i32_1 = arith.constant 0 : i32
    return %c0_i32, %c0_i32_0 : i32, i32
  }
  func.func @transform_6(%arg0: i32) -> (i32, i32) {
    %c0_i32 = arith.constant 0 : i32
    %c0_i32_0 = arith.constant 0 : i32
    %c0_i32_1 = arith.constant 0 : i32
    return %c0_i32, %c0_i32_0 : i32, i32
  }
  func.func @transform_7(%arg0: i32) -> (i32, i32) {
    %c0_i32 = arith.constant 0 : i32
    %c0_i32_0 = arith.constant 0 : i32
    return %c0_i32, %arg0 : i32, i32
  }
}

</mosaic_0001>

<llo_original>
// kernel: tpu_custom_call.1
$region0: #{tpu_custom_call.1}
  #allocation0 [shape = 'u32[]', space=smem, size = 0x4, offset = 0x4, fixed_abs, tag = 'smem constant byte address 0x4 - core index']
  #allocation1 [shape = 'u32[144,128]{1,0:T(1,128)}', space=vmem, size = 0x12000, scoped, tag = 'internal scratch']
  #allocation2 [shape = 'f32[256,1024]{1,0:T(8,128)}', space=vmem, size = 0x100000, scoped, tag = 'scratch operand']
  #allocation3 [shape = 'bf16[64,1024]{1,0:T(16,128)(2,1)}', space=vmem, size = 0x20000, scoped, tag = 'scratch operand']
  %s0 = inlined_call_operand.vmem [shape: f32[8,128], index: 0, kind: input, shape index: {}]
  %s1 = inlined_call_operand.vmem [shape: f32[256,1], index: 1, kind: input, shape index: {}]
  %s2 = inlined_call_operand.vmem [shape: f32[2,256,1], index: 2, kind: input, shape index: {}]
  %s3 = inlined_call_operand.vmem [shape: bf16[1,256,64], index: 3, kind: input, shape index: {}]
  %s4 = inlined_call_operand.vmem [shape: bf16[2,256,64], index: 4, kind: input, shape index: {}]
  %s5 = inlined_call_operand.vmem [shape: bf16[4,64], index: 5, kind: input, shape index: {}]
  %s6 = inlined_call_operand.vmem [shape: f32[4,1], index: 6, kind: input, shape index: {}]
  %s7 = inlined_call_operand.hbm [shape: f32[4,128], index: 7, kind: output, shape index: {}]
  %s8 = sld [smem:[#allocation0]]
  $region38: #{tpu_custom_call.1} parent=0
    _
  %s10 = ssub.s32 1, %s8
  %s11 = scalar_select 0, %s10, %s8
  $region1: #{tpu_custom_call.1} parent=0
    #allocation4 [shape = 'u8[2048]{0}', space=vmem, size = 0x800, scoped, tag = 'output window, operand 0, single buffered']
    #allocation5 [shape = 's32[1]{0}', space=sflag, size = 0x4, scoped, tag = 'scoped memory for tpu_custom_call.1']
    %12 = vsyncpa [#allocation5], 0
    // Predicated region
    $region2: #{tpu_custom_call.1} parent=1 // pred_check
      _
    $region3: #{tpu_custom_call.1} parent=1 // pred_check_branch
      %14 = sbr.rel (0) target = $region5
    $region4: #{tpu_custom_call.1} parent=1 // pred_region
      _
    $region5: #{tpu_custom_call.1} parent=1 // pred_fallthru
      _
    // Predicated region
    $region6: #{tpu_custom_call.1} parent=1 // pred_check
      _
    $region7: #{tpu_custom_call.1} parent=1 // pred_check_branch
      %16 = sbr.rel (0) target = $region9
    $region8: #{tpu_custom_call.1} parent=1 // pred_region
      _
    $region9: #{tpu_custom_call.1} parent=1 // pred_fallthru
      _
    // Predicated region
    $region10: #{tpu_custom_call.1} parent=1 // pred_check
      _
    $region11: #{tpu_custom_call.1} parent=1 // pred_check_branch
      %18 = sbr.rel (0) target = $region13
    $region12: #{tpu_custom_call.1} parent=1 // pred_region
      _
    $region13: #{tpu_custom_call.1} parent=1 // pred_fallthru
      _
    // Predicated region
    $region14: #{tpu_custom_call.1} parent=1 // pred_check
      _
    $region15: #{tpu_custom_call.1} parent=1 // pred_check_branch
      %20 = sbr.rel (0) target = $region17
    $region16: #{tpu_custom_call.1} parent=1 // pred_region
      _
    $region17: #{tpu_custom_call.1} parent=1 // pred_fallthru
      _
    // Predicated region
    $region18: #{tpu_custom_call.1} parent=1 // pred_check
      _
    $region19: #{tpu_custom_call.1} parent=1 // pred_check_branch
      %22 = sbr.rel (0) target = $region21
    $region20: #{tpu_custom_call.1} parent=1 // pred_region
      _
    $region21: #{tpu_custom_call.1} parent=1 // pred_fallthru
      _
    // Predicated region
    $region22: #{tpu_custom_call.1} parent=1 // pred_check
      _
    $region23: #{tpu_custom_call.1} parent=1 // pred_check_branch
      %24 = sbr.rel (0) target = $region25
    $region24: #{tpu_custom_call.1} parent=1 // pred_region
      _
    $region25: #{tpu_custom_call.1} parent=1 // pred_fallthru
      _
    // Predicated region
    $region26: #{tpu_custom_call.1} parent=1 // pred_check
      _
    $region27: #{tpu_custom_call.1} parent=1 // pred_check_branch
      %26 = sbr.rel (0) target = $region29
    $region28: #{tpu_custom_call.1} parent=1 // pred_region
      _
    $region29: #{tpu_custom_call.1} parent=1 // pred_fallthru
      _
    %v28 = vld [vmem:[%s2] sm:$0xff]
    %v29 = vld [vmem:[%s2 + $0x8] sm:$0xff]
    %v30 = vld [vmem:[%s2 + $0x10] sm:$0xff]
    %v31 = vld [vmem:[%s2 + $0x18] sm:$0xff]
    %v32 = vld [vmem:[%s2 + $0x20] sm:$0xff]
    %v33 = vld [vmem:[%s2 + $0x28] sm:$0xff]
    %v34 = vld [vmem:[%s2 + $0x30] sm:$0xff]
    %v35 = vld [vmem:[%s2 + $0x38] sm:$0xff]
    %v36 = vld [vmem:[%s2 + $0x40] sm:$0xff]
    %v37 = vld [vmem:[%s2 + $0x48] sm:$0xff]
    %v38 = vld [vmem:[%s2 + $0x50] sm:$0xff]
    %v39 = vld [vmem:[%s2 + $0x58] sm:$0xff]
    %v40 = vld [vmem:[%s2 + $0x60] sm:$0xff]
    %v41 = vld [vmem:[%s2 + $0x68] sm:$0xff]
    %v42 = vld [vmem:[%s2 + $0x70] sm:$0xff]
    %v43 = vld [vmem:[%s2 + $0x78] sm:$0xff]
    %v44 = vld [vmem:[%s2 + $0x80] sm:$0xff]
    %v45 = vld [vmem:[%s2 + $0x88] sm:$0xff]
    %v46 = vld [vmem:[%s2 + $0x90] sm:$0xff]
    %v47 = vld [vmem:[%s2 + $0x98] sm:$0xff]
    %v48 = vld [vmem:[%s2 + $0xa0] sm:$0xff]
    %v49 = vld [vmem:[%s2 + $0xa8] sm:$0xff]
    %v50 = vld [vmem:[%s2 + $0xb0] sm:$0xff]
    %v51 = vld [vmem:[%s2 + $0xb8] sm:$0xff]
    %v52 = vld [vmem:[%s2 + $0xc0] sm:$0xff]
    %v53 = vld [vmem:[%s2 + $0xc8] sm:$0xff]
    %v54 = vld [vmem:[%s2 + $0xd0] sm:$0xff]
    %v55 = vld [vmem:[%s2 + $0xd8] sm:$0xff]
    %v56 = vld [vmem:[%s2 + $0xe0] sm:$0xff]
    %v57 = vld [vmem:[%s2 + $0xe8] sm:$0xff]
    %v58 = vld [vmem:[%s2 + $0xf0] sm:$0xff]
    %v59 = vld [vmem:[%s2 + $0xf8] sm:$0xff]
    %v60 = vld [vmem:[%s1] sm:$0xff]
    %v61 = vld [vmem:[%s1 + $0x8] sm:$0xff]
    %v62 = vld [vmem:[%s1 + $0x10] sm:$0xff]
    %v63 = vld [vmem:[%s1 + $0x18] sm:$0xff]
    %v64 = vld [vmem:[%s1 + $0x20] sm:$0xff]
    %v65 = vld [vmem:[%s1 + $0x28] sm:$0xff]
    %v66 = vld [vmem:[%s1 + $0x30] sm:$0xff]
    %v67 = vld [vmem:[%s1 + $0x38] sm:$0xff]
    %v68 = vld [vmem:[%s1 + $0x40] sm:$0xff]
    %v69 = vld [vmem:[%s1 + $0x48] sm:$0xff]
    %v70 = vld [vmem:[%s1 + $0x50] sm:$0xff]
    %v71 = vld [vmem:[%s1 + $0x58] sm:$0xff]
    %v72 = vld [vmem:[%s1 + $0x60] sm:$0xff]
    %v73 = vld [vmem:[%s1 + $0x68] sm:$0xff]
    %v74 = vld [vmem:[%s1 + $0x70] sm:$0xff]
    %v75 = vld [vmem:[%s1 + $0x78] sm:$0xff]
    %v76 = vld [vmem:[%s1 + $0x80] sm:$0xff]
    %v77 = vld [vmem:[%s1 + $0x88] sm:$0xff]
    %v78 = vld [vmem:[%s1 + $0x90] sm:$0xff]
    %v79 = vld [vmem:[%s1 + $0x98] sm:$0xff]
    %v80 = vld [vmem:[%s1 + $0xa0] sm:$0xff]
    %v81 = vld [vmem:[%s1 + $0xa8] sm:$0xff]
    %v82 = vld [vmem:[%s1 + $0xb0] sm:$0xff]
    %v83 = vld [vmem:[%s1 + $0xb8] sm:$0xff]
    %v84 = vld [vmem:[%s1 + $0xc0] sm:$0xff]
    %v85 = vld [vmem:[%s1 + $0xc8] sm:$0xff]
    %v86 = vld [vmem:[%s1 + $0xd0] sm:$0xff]
    %v87 = vld [vmem:[%s1 + $0xd8] sm:$0xff]
    %v88 = vld [vmem:[%s1 + $0xe0] sm:$0xff]
    %v89 = vld [vmem:[%s1 + $0xe8] sm:$0xff]
    %v90 = vld [vmem:[%s1 + $0xf0] sm:$0xff]
    %v91 = vld [vmem:[%s1 + $0xf8] sm:$0xff]
    %v92 = vld [vmem:[%s0] sm:$0x1]
    %94 = vset.pattern.permute.xlu0 0
    %95 = vperm.xlu0 %94, %v60
    %v96 = vpop.permute.xlu0 %95
    %99 = vset.pattern.permute.xlu0 0
    %100 = vperm.xlu0 %99, %v61
    %v101 = vpop.permute.xlu0 %100
    %104 = vset.pattern.permute.xlu0 0
    %105 = vperm.xlu0 %104, %v62
    %v106 = vpop.permute.xlu0 %105
    %109 = vset.pattern.permute.xlu0 0
    %110 = vperm.xlu0 %109, %v63
    %v111 = vpop.permute.xlu0 %110
    %114 = vset.pattern.permute.xlu0 0
    %115 = vperm.xlu0 %114, %v64
    %v116 = vpop.permute.xlu0 %115
    %119 = vset.pattern.permute.xlu0 0
    %120 = vperm.xlu0 %119, %v65
    %v121 = vpop.permute.xlu0 %120
    %124 = vset.pattern.permute.xlu0 0
    %125 = vperm.xlu0 %124, %v66
    %v126 = vpop.permute.xlu0 %125
    %129 = vset.pattern.permute.xlu0 0
    %130 = vperm.xlu0 %129, %v67
    %v131 = vpop.permute.xlu0 %130
    %134 = vset.pattern.permute.xlu0 0
    %135 = vperm.xlu0 %134, %v68
    %v136 = vpop.permute.xlu0 %135
    %139 = vset.pattern.permute.xlu0 0
    %140 = vperm.xlu0 %139, %v69
    %v141 = vpop.permute.xlu0 %140
    %144 = vset.pattern.permute.xlu0 0
    %145 = vperm.xlu0 %144, %v70
    %v146 = vpop.permute.xlu0 %145
    %149 = vset.pattern.permute.xlu0 0
    %150 = vperm.xlu0 %149, %v71
    %v151 = vpop.permute.xlu0 %150
    %154 = vset.pattern.permute.xlu0 0
    %155 = vperm.xlu0 %154, %v72
    %v156 = vpop.permute.xlu0 %155
    %159 = vset.pattern.permute.xlu0 0
    %160 = vperm.xlu0 %159, %v73
    %v161 = vpop.permute.xlu0 %160
    %164 = vset.pattern.permute.xlu0 0
    %165 = vperm.xlu0 %164, %v74
    %v166 = vpop.permute.xlu0 %165
    %169 = vset.pattern.permute.xlu0 0
    %170 = vperm.xlu0 %169, %v75
    %v171 = vpop.permute.xlu0 %170
    %174 = vset.pattern.permute.xlu0 0
    %175 = vperm.xlu0 %174, %v76
    %v176 = vpop.permute.xlu0 %175
    %179 = vset.pattern.permute.xlu0 0
    %180 = vperm.xlu0 %179, %v77
    %v181 = vpop.permute.xlu0 %180
    %184 = vset.pattern.permute.xlu0 0
    %185 = vperm.xlu0 %184, %v78
    %v186 = vpop.permute.xlu0 %185
    %189 = vset.pattern.permute.xlu0 0
    %190 = vperm.xlu0 %189, %v79
    %v191 = vpop.permute.xlu0 %190
    %194 = vset.pattern.permute.xlu0 0
    %195 = vperm.xlu0 %194, %v80
    %v196 = vpop.permute.xlu0 %195
    %199 = vset.pattern.permute.xlu0 0
    %200 = vperm.xlu0 %199, %v81
    %v201 = vpop.permute.xlu0 %200
    %204 = vset.pattern.permute.xlu0 0
    %205 = vperm.xlu0 %204, %v82
    %v206 = vpop.permute.xlu0 %205
    %209 = vset.pattern.permute.xlu0 0
    %210 = vperm.xlu0 %209, %v83
    %v211 = vpop.permute.xlu0 %210
    %214 = vset.pattern.permute.xlu0 0
    %215 = vperm.xlu0 %214, %v84
    %v216 = vpop.permute.xlu0 %215
    %219 = vset.pattern.permute.xlu0 0
    %220 = vperm.xlu0 %219, %v85
    %v221 = vpop.permute.xlu0 %220
    %224 = vset.pattern.permute.xlu0 0
    %225 = vperm.xlu0 %224, %v86
    %v226 = vpop.permute.xlu0 %225
    %229 = vset.pattern.permute.xlu0 0
    %230 = vperm.xlu0 %229, %v87
    %v231 = vpop.permute.xlu0 %230
    %234 = vset.pattern.permute.xlu0 0
    %235 = vperm.xlu0 %234, %v88
    %v236 = vpop.permute.xlu0 %235
    %239 = vset.pattern.permute.xlu0 0
    %240 = vperm.xlu0 %239, %v89
    %v241 = vpop.permute.xlu0 %240
    %244 = vset.pattern.permute.xlu0 0
    %245 = vperm.xlu0 %244, %v90
    %v246 = vpop.permute.xlu0 %245
    %249 = vset.pattern.permute.xlu0 0
    %250 = vperm.xlu0 %249, %v91
    %v251 = vpop.permute.xlu0 %250
    %v253 = vlaneseq
    %v254 = vshrl.u32 %v253, 7
    %v255 = vsub.s32 0, %v254
    %v256 = vrot.slane %v92, %v255
    %v257 = vmul.f32 %v96, %v256
    %v258 = vmul.f32 %v101, %v256
    %v259 = vmul.f32 %v106, %v256
    %v260 = vmul.f32 %v111, %v256
    %v261 = vmul.f32 %v116, %v256
    %v262 = vmul.f32 %v121, %v256
    %v263 = vmul.f32 %v126, %v256
    %v264 = vmul.f32 %v131, %v256
    %v265 = vmul.f32 %v136, %v256
    %v266 = vmul.f32 %v141, %v256
    %v267 = vmul.f32 %v146, %v256
    %v268 = vmul.f32 %v151, %v256
    %v269 = vmul.f32 %v156, %v256
    %v270 = vmul.f32 %v161, %v256
    %v271 = vmul.f32 %v166, %v256
    %v272 = vmul.f32 %v171, %v256
    %v273 = vmul.f32 %v176, %v256
    %v274 = vmul.f32 %v181, %v256
    %v275 = vmul.f32 %v186, %v256
    %v276 = vmul.f32 %v191, %v256
    %v277 = vmul.f32 %v196, %v256
    %v278 = vmul.f32 %v201, %v256
    %v279 = vmul.f32 %v206, %v256
    %v280 = vmul.f32 %v211, %v256
    %v281 = vmul.f32 %v216, %v256
    %v282 = vmul.f32 %v221, %v256
    %v283 = vmul.f32 %v226, %v256
    %v284 = vmul.f32 %v231, %v256
    %v285 = vmul.f32 %v236, %v256
    %v286 = vmul.f32 %v241, %v256
    %v287 = vmul.f32 %v246, %v256
    %v288 = vmul.f32 %v251, %v256
    %290 = vset.pattern.permute.xlu0 0
    %291 = vperm.xlu0 %290, %v28
    %v292 = vpop.permute.xlu0 %291
    %295 = vset.pattern.permute.xlu0 0
    %296 = vperm.xlu0 %295, %v29
    %v297 = vpop.permute.xlu0 %296
    %300 = vset.pattern.permute.xlu0 0
    %301 = vperm.xlu0 %300, %v30
    %v302 = vpop.permute.xlu0 %301
    %305 = vset.pattern.permute.xlu0 0
    %306 = vperm.xlu0 %305, %v31
    %v307 = vpop.permute.xlu0 %306
    %310 = vset.pattern.permute.xlu0 0
    %311 = vperm.xlu0 %310, %v32
    %v312 = vpop.permute.xlu0 %311
    %315 = vset.pattern.permute.xlu0 0
    %316 = vperm.xlu0 %315, %v33
    %v317 = vpop.permute.xlu0 %316
    %320 = vset.pattern.permute.xlu0 0
    %321 = vperm.xlu0 %320, %v34
    %v322 = vpop.permute.xlu0 %321
    %325 = vset.pattern.permute.xlu0 0
    %326 = vperm.xlu0 %325, %v35
    %v327 = vpop.permute.xlu0 %326
    %330 = vset.pattern.permute.xlu0 0
    %331 = vperm.xlu0 %330, %v36
    %v332 = vpop.permute.xlu0 %331
    %335 = vset.pattern.permute.xlu0 0
    %336 = vperm.xlu0 %335, %v37
    %v337 = vpop.permute.xlu0 %336
    %340 = vset.pattern.permute.xlu0 0
    %341 = vperm.xlu0 %340, %v38
    %v342 = vpop.permute.xlu0 %341
    %345 = vset.pattern.permute.xlu0 0
    %346 = vperm.xlu0 %345, %v39
    %v347 = vpop.permute.xlu0 %346
    %350 = vset.pattern.permute.xlu0 0
    %351 = vperm.xlu0 %350, %v40
    %v352 = vpop.permute.xlu0 %351
    %355 = vset.pattern.permute.xlu0 0
    %356 = vperm.xlu0 %355, %v41
    %v357 = vpop.permute.xlu0 %356
    %360 = vset.pattern.permute.xlu0 0
    %361 = vperm.xlu0 %360, %v42
    %v362 = vpop.permute.xlu0 %361
    %365 = vset.pattern.permute.xlu0 0
    %366 = vperm.xlu0 %365, %v43
    %v367 = vpop.permute.xlu0 %366
    %370 = vset.pattern.permute.xlu0 0
    %371 = vperm.xlu0 %370, %v44
    %v372 = vpop.permute.xlu0 %371
    %375 = vset.pattern.permute.xlu0 0
    %376 = vperm.xlu0 %375, %v45
    %v377 = vpop.permute.xlu0 %376
    %380 = vset.pattern.permute.xlu0 0
    %381 = vperm.xlu0 %380, %v46
    %v382 = vpop.permute.xlu0 %381
    %385 = vset.pattern.permute.xlu0 0
    %386 = vperm.xlu0 %385, %v47
    %v387 = vpop.permute.xlu0 %386
    %390 = vset.pattern.permute.xlu0 0
    %391 = vperm.xlu0 %390, %v48
    %v392 = vpop.permute.xlu0 %391
    %395 = vset.pattern.permute.xlu0 0
    %396 = vperm.xlu0 %395, %v49
    %v397 = vpop.permute.xlu0 %396
    %400 = vset.pattern.permute.xlu0 0
    %401 = vperm.xlu0 %400, %v50
    %v402 = vpop.permute.xlu0 %401
    %405 = vset.pattern.permute.xlu0 0
    %406 = vperm.xlu0 %405, %v51
    %v407 = vpop.permute.xlu0 %406
    %410 = vset.pattern.permute.xlu0 0
    %411 = vperm.xlu0 %410, %v52
    %v412 = vpop.permute.xlu0 %411
    %415 = vset.pattern.permute.xlu0 0
    %416 = vperm.xlu0 %415, %v53
    %v417 = vpop.permute.xlu0 %416
    %420 = vset.pattern.permute.xlu0 0
    %421 = vperm.xlu0 %420, %v54
    %v422 = vpop.permute.xlu0 %421
    %425 = vset.pattern.permute.xlu0 0
    %426 = vperm.xlu0 %425, %v55
    %v427 = vpop.permute.xlu0 %426
    %430 = vset.pattern.permute.xlu0 0
    %431 = vperm.xlu0 %430, %v56
    %v432 = vpop.permute.xlu0 %431
    %435 = vset.pattern.permute.xlu0 0
    %436 = vperm.xlu0 %435, %v57
    %v437 = vpop.permute.xlu0 %436
    %440 = vset.pattern.permute.xlu0 0
    %441 = vperm.xlu0 %440, %v58
    %v442 = vpop.permute.xlu0 %441
    %445 = vset.pattern.permute.xlu0 0
    %446 = vperm.xlu0 %445, %v59
    %v447 = vpop.permute.xlu0 %446
    %v449 = vadd.f32 %v257, %v292
    %v450 = vadd.f32 %v258, %v297
    %v451 = vadd.f32 %v259, %v302
    %v452 = vadd.f32 %v260, %v307
    %v453 = vadd.f32 %v261, %v312
    %v454 = vadd.f32 %v262, %v317
    %v455 = vadd.f32 %v263, %v322
    %v456 = vadd.f32 %v264, %v327
    %v457 = vadd.f32 %v265, %v332
    %v458 = vadd.f32 %v266, %v337
    %v459 = vadd.f32 %v267, %v342
    %v460 = vadd.f32 %v268, %v347
    %v461 = vadd.f32 %v269, %v352
    %v462 = vadd.f32 %v270, %v357
    %v463 = vadd.f32 %v271, %v362
    %v464 = vadd.f32 %v272, %v367
    %v465 = vadd.f32 %v273, %v372
    %v466 = vadd.f32 %v274, %v377
    %v467 = vadd.f32 %v275, %v382
    %v468 = vadd.f32 %v276, %v387
    %v469 = vadd.f32 %v277, %v392
    %v470 = vadd.f32 %v278, %v397
    %v471 = vadd.f32 %v279, %v402
    %v472 = vadd.f32 %v280, %v407
    %v473 = vadd.f32 %v281, %v412
    %v474 = vadd.f32 %v282, %v417
    %v475 = vadd.f32 %v283, %v422
    %v476 = vadd.f32 %v284, %v427
    %v477 = vadd.f32 %v285, %v432
    %v478 = vadd.f32 %v286, %v437
    %v479 = vadd.f32 %v287, %v442
    %v480 = vadd.f32 %v288, %v447
    %481 = vst [vmem:[#allocation2] sm:$0xff] %v449
    %482 = vst [vmem:[#allocation2 + $0x40] sm:$0xff] %v450
    %483 = vst [vmem:[#allocation2 + $0x80] sm:$0xff] %v451
    %484 = vst [vmem:[#allocation2 + $0xc0] sm:$0xff] %v452
    %485 = vst [vmem:[#allocation2 + $0x100] sm:$0xff] %v453
    %486 = vst [vmem:[#allocation2 + $0x140] sm:$0xff] %v454
    %487 = vst [vmem:[#allocation2 + $0x180] sm:$0xff] %v455
    %488 = vst [vmem:[#allocation2 + $0x1c0] sm:$0xff] %v456
    %489 = vst [vmem:[#allocation2 + $0x200] sm:$0xff] %v457
    %490 = vst [vmem:[#allocation2 + $0x240] sm:$0xff] %v458
    %491 = vst [vmem:[#allocation2 + $0x280] sm:$0xff] %v459
    %492 = vst [vmem:[#allocation2 + $0x2c0] sm:$0xff] %v460
    %493 = vst [vmem:[#allocation2 + $0x300] sm:$0xff] %v461
    %494 = vst [vmem:[#allocation2 + $0x340] sm:$0xff] %v462
    %495 = vst [vmem:[#allocation2 + $0x380] sm:$0xff] %v463
    %496 = vst [vmem:[#allocation2 + $0x3c0] sm:$0xff] %v464
    %497 = vst [vmem:[#allocation2 + $0x400] sm:$0xff] %v465
    %498 = vst [vmem:[#allocation2 + $0x440] sm:$0xff] %v466
    %499 = vst [vmem:[#allocation2 + $0x480] sm:$0xff] %v467
    %500 = vst [vmem:[#allocation2 + $0x4c0] sm:$0xff] %v468
    %501 = vst [vmem:[#allocation2 + $0x500] sm:$0xff] %v469
    %502 = vst [vmem:[#allocation2 + $0x540] sm:$0xff] %v470
    %503 = vst [vmem:[#allocation2 + $0x580] sm:$0xff] %v471
    %504 = vst [vmem:[#allocation2 + $0x5c0] sm:$0xff] %v472
    %505 = vst [vmem:[#allocation2 + $0x600] sm:$0xff] %v473
    %506 = vst [vmem:[#allocation2 + $0x640] sm:$0xff] %v474
    %507 = vst [vmem:[#allocation2 + $0x680] sm:$0xff] %v475
    %508 = vst [vmem:[#allocation2 + $0x6c0] sm:$0xff] %v476
    %509 = vst [vmem:[#allocation2 + $0x700] sm:$0xff] %v477
    %510 = vst [vmem:[#allocation2 + $0x740] sm:$0xff] %v478
    %511 = vst [vmem:[#allocation2 + $0x780] sm:$0xff] %v479
    %512 = vst [vmem:[#allocation2 + $0x7c0] sm:$0xff] %v480
    %v513 = vld [vmem:[%s0 + $0x1] sm:$0x1]
    %v514 = vlaneseq
    %v515 = vshrl.u32 %v514, 7
    %v516 = vsub.s32 0, %v515
    %v517 = vrot.slane %v513, %v516
    %v518 = vmul.f32 %v96, %v517
    %v519 = vmul.f32 %v101, %v517
    %v520 = vmul.f32 %v106, %v517
    %v521 = vmul.f32 %v111, %v517
    %v522 = vmul.f32 %v116, %v517
    %v523 = vmul.f32 %v121, %v517
    %v524 = vmul.f32 %v126, %v517
    %v525 = vmul.f32 %v131, %v517
    %v526 = vmul.f32 %v136, %v517
    %v527 = vmul.f32 %v141, %v517
    %v528 = vmul.f32 %v146, %v517
    %v529 = vmul.f32 %v151, %v517
    %v530 = vmul.f32 %v156, %v517
    %v531 = vmul.f32 %v161, %v517
    %v532 = vmul.f32 %v166, %v517
    %v533 = vmul.f32 %v171, %v517
    %v534 = vmul.f32 %v176, %v517
    %v535 = vmul.f32 %v181, %v517
    %v536 = vmul.f32 %v186, %v517
    %v537 = vmul.f32 %v191, %v517
    %v538 = vmul.f32 %v196, %v517
    %v539 = vmul.f32 %v201, %v517
    %v540 = vmul.f32 %v206, %v517
    %v541 = vmul.f32 %v211, %v517
    %v542 = vmul.f32 %v216, %v517
    %v543 = vmul.f32 %v221, %v517
    %v544 = vmul.f32 %v226, %v517
    %v545 = vmul.f32 %v231, %v517
    %v546 = vmul.f32 %v236, %v517
    %v547 = vmul.f32 %v241, %v517
    %v548 = vmul.f32 %v246, %v517
    %v549 = vmul.f32 %v251, %v517
    %v550 = vadd.f32 %v518, %v292
    %v551 = vadd.f32 %v519, %v297
    %v552 = vadd.f32 %v520, %v302
    %v553 = vadd.f32 %v521, %v307
    %v554 = vadd.f32 %v522, %v312
    %v555 = vadd.f32 %v523, %v317
    %v556 = vadd.f32 %v524, %v322
    %v557 = vadd.f32 %v525, %v327
    %v558 = vadd.f32 %v526, %v332
    %v559 = vadd.f32 %v527, %v337
    %v560 = vadd.f32 %v528, %v342
    %v561 = vadd.f32 %v529, %v347
    %v562 = vadd.f32 %v530, %v352
    %v563 = vadd.f32 %v531, %v357
    %v564 = vadd.f32 %v532, %v362
    %v565 = vadd.f32 %v533, %v367
    %v566 = vadd.f32 %v534, %v372
    %v567 = vadd.f32 %v535, %v377
    %v568 = vadd.f32 %v536, %v382
    %v569 = vadd.f32 %v537, %v387
    %v570 = vadd.f32 %v538, %v392
    %v571 = vadd.f32 %v539, %v397
    %v572 = vadd.f32 %v540, %v402
    %v573 = vadd.f32 %v541, %v407
    %v574 = vadd.f32 %v542, %v412
    %v575 = vadd.f32 %v543, %v417
    %v576 = vadd.f32 %v544, %v422
    %v577 = vadd.f32 %v545, %v427
    %v578 = vadd.f32 %v546, %v432
    %v579 = vadd.f32 %v547, %v437
    %v580 = vadd.f32 %v548, %v442
    %v581 = vadd.f32 %v549, %v447
    %s582 = scalar_lea.vmem [#allocation2], 8
    %583 = vst [vmem:[%s582] sm:$0xff] %v550
    %584 = vst [vmem:[%s582 + $0x40] sm:$0xff] %v551
    %585 = vst [vmem:[%s582 + $0x80] sm:$0xff] %v552
    %586 = vst [vmem:[%s582 + $0xc0] sm:$0xff] %v553
    %587 = vst [vmem:[%s582 + $0x100] sm:$0xff] %v554
    %588 = vst [vmem:[%s582 + $0x140] sm:$0xff] %v555
    %589 = vst [vmem:[%s582 + $0x180] sm:$0xff] %v556
    %590 = vst [vmem:[%s582 + $0x1c0] sm:$0xff] %v557
    %591 = vst [vmem:[%s582 + $0x200] sm:$0xff] %v558
    %592 = vst [vmem:[%s582 + $0x240] sm:$0xff] %v559
    %593 = vst [vmem:[%s582 + $0x280] sm:$0xff] %v560
    %594 = vst [vmem:[%s582 + $0x2c0] sm:$0xff] %v561
    %595 = vst [vmem:[%s582 + $0x300] sm:$0xff] %v562
    %596 = vst [vmem:[%s582 + $0x340] sm:$0xff] %v563
    %597 = vst [vmem:[%s582 + $0x380] sm:$0xff] %v564
    %598 = vst [vmem:[%s582 + $0x3c0] sm:$0xff] %v565
    %599 = vst [vmem:[%s582 + $0x400] sm:$0xff] %v566
    %600 = vst [vmem:[%s582 + $0x440] sm:$0xff] %v567
    %601 = vst [vmem:[%s582 + $0x480] sm:$0xff] %v568
    %602 = vst [vmem:[%s582 + $0x4c0] sm:$0xff] %v569
    %603 = vst [vmem:[%s582 + $0x500] sm:$0xff] %v570
    %604 = vst [vmem:[%s582 + $0x540] sm:$0xff] %v571
    %605 = vst [vmem:[%s582 + $0x580] sm:$0xff] %v572
    %606 = vst [vmem:[%s582 + $0x5c0] sm:$0xff] %v573
    %607 = vst [vmem:[%s582 + $0x600] sm:$0xff] %v574
    %608 = vst [vmem:[%s582 + $0x640] sm:$0xff] %v575
    %609 = vst [vmem:[%s582 + $0x680] sm:$0xff] %v576
    %610 = vst [vmem:[%s582 + $0x6c0] sm:$0xff] %v577
    %611 = vst [vmem:[%s582 + $0x700] sm:$0xff] %v578
    %612 = vst [vmem:[%s582 + $0x740] sm:$0xff] %v579
    %613 = vst [vmem:[%s582 + $0x780] sm:$0xff] %v580
    %614 = vst [vmem:[%s582 + $0x7c0] sm:$0xff] %v581
    %v615 = vld [vmem:[%s0 + $0x2] sm:$0x1]
    %v616 = vlaneseq
    %v617 = vshrl.u32 %v616, 7
    %v618 = vsub.s32 0, %v617
    %v619 = vrot.slane %v615, %v618
    %v620 = vmul.f32 %v96, %v619
    %v621 = vmul.f32 %v101, %v619
    %v622 = vmul.f32 %v106, %v619
    %v623 = vmul.f32 %v111, %v619
    %v624 = vmul.f32 %v116, %v619
    %v625 = vmul.f32 %v121, %v619
    %v626 = vmul.f32 %v126, %v619
    %v627 = vmul.f32 %v131, %v619
    %v628 = vmul.f32 %v136, %v619
    %v629 = vmul.f32 %v141, %v619
    %v630 = vmul.f32 %v146, %v619
    %v631 = vmul.f32 %v151, %v619
    %v632 = vmul.f32 %v156, %v619
    %v633 = vmul.f32 %v161, %v619
    %v634 = vmul.f32 %v166, %v619
    %v635 = vmul.f32 %v171, %v619
    %v636 = vmul.f32 %v176, %v619
    %v637 = vmul.f32 %v181, %v619
    %v638 = vmul.f32 %v186, %v619
    %v639 = vmul.f32 %v191, %v619
    %v640 = vmul.f32 %v196, %v619
    %v641 = vmul.f32 %v201, %v619
    %v642 = vmul.f32 %v206, %v619
    %v643 = vmul.f32 %v211, %v619
    %v644 = vmul.f32 %v216, %v619
    %v645 = vmul.f32 %v221, %v619
    %v646 = vmul.f32 %v226, %v619
    %v647 = vmul.f32 %v231, %v619
    %v648 = vmul.f32 %v236, %v619
    %v649 = vmul.f32 %v241, %v619
    %v650 = vmul.f32 %v246, %v619
    %v651 = vmul.f32 %v251, %v619
    %v652 = vadd.f32 %v620, %v292
    %v653 = vadd.f32 %v621, %v297
    %v654 = vadd.f32 %v622, %v302
    %v655 = vadd.f32 %v623, %v307
    %v656 = vadd.f32 %v624, %v312
    %v657 = vadd.f32 %v625, %v317
    %v658 = vadd.f32 %v626, %v322
    %v659 = vadd.f32 %v627, %v327
    %v660 = vadd.f32 %v628, %v332
    %v661 = vadd.f32 %v629, %v337
    %v662 = vadd.f32 %v630, %v342
    %v663 = vadd.f32 %v631, %v347
    %v664 = vadd.f32 %v632, %v352
    %v665 = vadd.f32 %v633, %v357
    %v666 = vadd.f32 %v634, %v362
    %v667 = vadd.f32 %v635, %v367
    %v668 = vadd.f32 %v636, %v372
    %v669 = vadd.f32 %v637, %v377
    %v670 = vadd.f32 %v638, %v382
    %v671 = vadd.f32 %v639, %v387
    %v672 = vadd.f32 %v640, %v392
    %v673 = vadd.f32 %v641, %v397
    %v674 = vadd.f32 %v642, %v402
    %v675 = vadd.f32 %v643, %v407
    %v676 = vadd.f32 %v644, %v412
    %v677 = vadd.f32 %v645, %v417
    %v678 = vadd.f32 %v646, %v422
    %v679 = vadd.f32 %v647, %v427
    %v680 = vadd.f32 %v648, %v432
    %v681 = vadd.f32 %v649, %v437
    %v682 = vadd.f32 %v650, %v442
    %v683 = vadd.f32 %v651, %v447
    %s684 = scalar_lea.vmem [#allocation2], 16
    %685 = vst [vmem:[%s684] sm:$0xff] %v652
    %686 = vst [vmem:[%s684 + $0x40] sm:$0xff] %v653
    %687 = vst [vmem:[%s684 + $0x80] sm:$0xff] %v654
    %688 = vst [vmem:[%s684 + $0xc0] sm:$0xff] %v655
    %689 = vst [vmem:[%s684 + $0x100] sm:$0xff] %v656
    %690 = vst [vmem:[%s684 + $0x140] sm:$0xff] %v657
    %691 = vst [vmem:[%s684 + $0x180] sm:$0xff] %v658
    %692 = vst [vmem:[%s684 + $0x1c0] sm:$0xff] %v659
    %693 = vst [vmem:[%s684 + $0x200] sm:$0xff] %v660
    %694 = vst [vmem:[%s684 + $0x240] sm:$0xff] %v661
    %695 = vst [vmem:[%s684 + $0x280] sm:$0xff] %v662
    %696 = vst [vmem:[%s684 + $0x2c0] sm:$0xff] %v663
    %697 = vst [vmem:[%s684 + $0x300] sm:$0xff] %v664
    %698 = vst [vmem:[%s684 + $0x340] sm:$0xff] %v665
    %699 = vst [vmem:[%s684 + $0x380] sm:$0xff] %v666
    %700 = vst [vmem:[%s684 + $0x3c0] sm:$0xff] %v667
    %701 = vst [vmem:[%s684 + $0x400] sm:$0xff] %v668
    %702 = vst [vmem:[%s684 + $0x440] sm:$0xff] %v669
    %703 = vst [vmem:[%s684 + $0x480] sm:$0xff] %v670
    %704 = vst [vmem:[%s684 + $0x4c0] sm:$0xff] %v671
    %705 = vst [vmem:[%s684 + $0x500] sm:$0xff] %v672
    %706 = vst [vmem:[%s684 + $0x540] sm:$0xff] %v673
    %707 = vst [vmem:[%s684 + $0x580] sm:$0xff] %v674
    %708 = vst [vmem:[%s684 + $0x5c0] sm:$0xff] %v675
    %709 = vst [vmem:[%s684 + $0x600] sm:$0xff] %v676
    %710 = vst [vmem:[%s684 + $0x640] sm:$0xff] %v677
    %711 = vst [vmem:[%s684 + $0x680] sm:$0xff] %v678
    %712 = vst [vmem:[%s684 + $0x6c0] sm:$0xff] %v679
    %713 = vst [vmem:[%s684 + $0x700] sm:$0xff] %v680
    %714 = vst [vmem:[%s684 + $0x740] sm:$0xff] %v681
    %715 = vst [vmem:[%s684 + $0x780] sm:$0xff] %v682
    %716 = vst [vmem:[%s684 + $0x7c0] sm:$0xff] %v683
    %v717 = vld [vmem:[%s0 + $0x3] sm:$0x1]
    %v718 = vlaneseq
    %v719 = vshrl.u32 %v718, 7
    %v720 = vsub.s32 0, %v719
    %v721 = vrot.slane %v717, %v720
    %v722 = vmul.f32 %v96, %v721
    %v723 = vmul.f32 %v101, %v721
    %v724 = vmul.f32 %v106, %v721
    %v725 = vmul.f32 %v111, %v721
    %v726 = vmul.f32 %v116, %v721
    %v727 = vmul.f32 %v121, %v721
    %v728 = vmul.f32 %v126, %v721
    %v729 = vmul.f32 %v131, %v721
    %v730 = vmul.f32 %v136, %v721
    %v731 = vmul.f32 %v141, %v721
    %v732 = vmul.f32 %v146, %v721
    %v733 = vmul.f32 %v151, %v721
    %v734 = vmul.f32 %v156, %v721
    %v735 = vmul.f32 %v161, %v721
    %v736 = vmul.f32 %v166, %v721
    %v737 = vmul.f32 %v171, %v721
    %v738 = vmul.f32 %v176, %v721
    %v739 = vmul.f32 %v181, %v721
    %v740 = vmul.f32 %v186, %v721
    %v741 = vmul.f32 %v191, %v721
    %v742 = vmul.f32 %v196, %v721
    %v743 = vmul.f32 %v201, %v721
    %v744 = vmul.f32 %v206, %v721
    %v745 = vmul.f32 %v211, %v721
    %v746 = vmul.f32 %v216, %v721
    %v747 = vmul.f32 %v221, %v721
    %v748 = vmul.f32 %v226, %v721
    %v749 = vmul.f32 %v231, %v721
    %v750 = vmul.f32 %v236, %v721
    %v751 = vmul.f32 %v241, %v721
    %v752 = vmul.f32 %v246, %v721
    %v753 = vmul.f32 %v251, %v721
    %v754 = vadd.f32 %v722, %v292
    %v755 = vadd.f32 %v723, %v297
    %v756 = vadd.f32 %v724, %v302
    %v757 = vadd.f32 %v725, %v307
    %v758 = vadd.f32 %v726, %v312
    %v759 = vadd.f32 %v727, %v317
    %v760 = vadd.f32 %v728, %v322
    %v761 = vadd.f32 %v729, %v327
    %v762 = vadd.f32 %v730, %v332
    %v763 = vadd.f32 %v731, %v337
    %v764 = vadd.f32 %v732, %v342
    %v765 = vadd.f32 %v733, %v347
    %v766 = vadd.f32 %v734, %v352
    %v767 = vadd.f32 %v735, %v357
    %v768 = vadd.f32 %v736, %v362
    %v769 = vadd.f32 %v737, %v367
    %v770 = vadd.f32 %v738, %v372
    %v771 = vadd.f32 %v739, %v377
    %v772 = vadd.f32 %v740, %v382
    %v773 = vadd.f32 %v741, %v387
    %v774 = vadd.f32 %v742, %v392
    %v775 = vadd.f32 %v743, %v397
    %v776 = vadd.f32 %v744, %v402
    %v777 = vadd.f32 %v745, %v407
    %v778 = vadd.f32 %v746, %v412
    %v779 = vadd.f32 %v747, %v417
    %v780 = vadd.f32 %v748, %v422
    %v781 = vadd.f32 %v749, %v427
    %v782 = vadd.f32 %v750, %v432
    %v783 = vadd.f32 %v751, %v437
    %v784 = vadd.f32 %v752, %v442
    %v785 = vadd.f32 %v753, %v447
    %s786 = scalar_lea.vmem [#allocation2], 24
    %787 = vst [vmem:[%s786] sm:$0xff] %v754
    %788 = vst [vmem:[%s786 + $0x40] sm:$0xff] %v755
    %789 = vst [vmem:[%s786 + $0x80] sm:$0xff] %v756
    %790 = vst [vmem:[%s786 + $0xc0] sm:$0xff] %v757
    %791 = vst [vmem:[%s786 + $0x100] sm:$0xff] %v758
    %792 = vst [vmem:[%s786 + $0x140] sm:$0xff] %v759
    %793 = vst [vmem:[%s786 + $0x180] sm:$0xff] %v760
    %794 = vst [vmem:[%s786 + $0x1c0] sm:$0xff] %v761
    %795 = vst [vmem:[%s786 + $0x200] sm:$0xff] %v762
    %796 = vst [vmem:[%s786 + $0x240] sm:$0xff] %v763
    %797 = vst [vmem:[%s786 + $0x280] sm:$0xff] %v764
    %798 = vst [vmem:[%s786 + $0x2c0] sm:$0xff] %v765
    %799 = vst [vmem:[%s786 + $0x300] sm:$0xff] %v766
    %800 = vst [vmem:[%s786 + $0x340] sm:$0xff] %v767
    %801 = vst [vmem:[%s786 + $0x380] sm:$0xff] %v768
    %802 = vst [vmem:[%s786 + $0x3c0] sm:$0xff] %v769
    %803 = vst [vmem:[%s786 + $0x400] sm:$0xff] %v770
    %804 = vst [vmem:[%s786 + $0x440] sm:$0xff] %v771
    %805 = vst [vmem:[%s786 + $0x480] sm:$0xff] %v772
    %806 = vst [vmem:[%s786 + $0x4c0] sm:$0xff] %v773
    %807 = vst [vmem:[%s786 + $0x500] sm:$0xff] %v774
    %808 = vst [vmem:[%s786 + $0x540] sm:$0xff] %v775
    %809 = vst [vmem:[%s786 + $0x580] sm:$0xff] %v776
    %810 = vst [vmem:[%s786 + $0x5c0] sm:$0xff] %v777
    %811 = vst [vmem:[%s786 + $0x600] sm:$0xff] %v778
    %812 = vst [vmem:[%s786 + $0x640] sm:$0xff] %v779
    %813 = vst [vmem:[%s786 + $0x680] sm:$0xff] %v780
    %814 = vst [vmem:[%s786 + $0x6c0] sm:$0xff] %v781
    %815 = vst [vmem:[%s786 + $0x700] sm:$0xff] %v782
    %816 = vst [vmem:[%s786 + $0x740] sm:$0xff] %v783
    %817 = vst [vmem:[%s786 + $0x780] sm:$0xff] %v784
    %818 = vst [vmem:[%s786 + $0x7c0] sm:$0xff] %v785
    %v819 = vld [vmem:[%s0 + $0x4] sm:$0x1]
    %v820 = vlaneseq
    %v821 = vshrl.u32 %v820, 7
    %v822 = vsub.s32 0, %v821
    %v823 = vrot.slane %v819, %v822
    %v824 = vmul.f32 %v96, %v823
    %v825 = vmul.f32 %v101, %v823
    %v826 = vmul.f32 %v106, %v823
    %v827 = vmul.f32 %v111, %v823
    %v828 = vmul.f32 %v116, %v823
    %v829 = vmul.f32 %v121, %v823
    %v830 = vmul.f32 %v126, %v823
    %v831 = vmul.f32 %v131, %v823
    %v832 = vmul.f32 %v136, %v823
    %v833 = vmul.f32 %v141, %v823
    %v834 = vmul.f32 %v146, %v823
    %v835 = vmul.f32 %v151, %v823
    %v836 = vmul.f32 %v156, %v823
    %v837 = vmul.f32 %v161, %v823
    %v838 = vmul.f32 %v166, %v823
    %v839 = vmul.f32 %v171, %v823
    %v840 = vmul.f32 %v176, %v823
    %v841 = vmul.f32 %v181, %v823
    %v842 = vmul.f32 %v186, %v823
    %v843 = vmul.f32 %v191, %v823
    %v844 = vmul.f32 %v196, %v823
    %v845 = vmul.f32 %v201, %v823
    %v846 = vmul.f32 %v206, %v823
    %v847 = vmul.f32 %v211, %v823
    %v848 = vmul.f32 %v216, %v823
    %v849 = vmul.f32 %v221, %v823
    %v850 = vmul.f32 %v226, %v823
    %v851 = vmul.f32 %v231, %v823
    %v852 = vmul.f32 %v236, %v823
    %v853 = vmul.f32 %v241, %v823
    %v854 = vmul.f32 %v246, %v823
    %v855 = vmul.f32 %v251, %v823
    %v856 = vadd.f32 %v824, %v292
    %v857 = vadd.f32 %v825, %v297
    %v858 = vadd.f32 %v826, %v302
    %v859 = vadd.f32 %v827, %v307
    %v860 = vadd.f32 %v828, %v312
    %v861 = vadd.f32 %v829, %v317
    %v862 = vadd.f32 %v830, %v322
    %v863 = vadd.f32 %v831, %v327
    %v864 = vadd.f32 %v832, %v332
    %v865 = vadd.f32 %v833, %v337
    %v866 = vadd.f32 %v834, %v342
    %v867 = vadd.f32 %v835, %v347
    %v868 = vadd.f32 %v836, %v352
    %v869 = vadd.f32 %v837, %v357
    %v870 = vadd.f32 %v838, %v362
    %v871 = vadd.f32 %v839, %v367
    %v872 = vadd.f32 %v840, %v372
    %v873 = vadd.f32 %v841, %v377
    %v874 = vadd.f32 %v842, %v382
    %v875 = vadd.f32 %v843, %v387
    %v876 = vadd.f32 %v844, %v392
    %v877 = vadd.f32 %v845, %v397
    %v878 = vadd.f32 %v846, %v402
    %v879 = vadd.f32 %v847, %v407
    %v880 = vadd.f32 %v848, %v412
    %v881 = vadd.f32 %v849, %v417
    %v882 = vadd.f32 %v850, %v422
    %v883 = vadd.f32 %v851, %v427
    %v884 = vadd.f32 %v852, %v432
    %v885 = vadd.f32 %v853, %v437
    %v886 = vadd.f32 %v854, %v442
    %v887 = vadd.f32 %v855, %v447
    %s888 = scalar_lea.vmem [#allocation2], 32
    %889 = vst [vmem:[%s888] sm:$0xff] %v856
    %890 = vst [vmem:[%s888 + $0x40] sm:$0xff] %v857
    %891 = vst [vmem:[%s888 + $0x80] sm:$0xff] %v858
    %892 = vst [vmem:[%s888 + $0xc0] sm:$0xff] %v859
    %893 = vst [vmem:[%s888 + $0x100] sm:$0xff] %v860
    %894 = vst [vmem:[%s888 + $0x140] sm:$0xff] %v861
    %895 = vst [vmem:[%s888 + $0x180] sm:$0xff] %v862
    %896 = vst [vmem:[%s888 + $0x1c0] sm:$0xff] %v863
    %897 = vst [vmem:[%s888 + $0x200] sm:$0xff] %v864
    %898 = vst [vmem:[%s888 + $0x240] sm:$0xff] %v865
    %899 = vst [vmem:[%s888 + $0x280] sm:$0xff] %v866
    %900 = vst [vmem:[%s888 + $0x2c0] sm:$0xff] %v867
    %901 = vst [vmem:[%s888 + $0x300] sm:$0xff] %v868
    %902 = vst [vmem:[%s888 + $0x340] sm:$0xff] %v869
    %903 = vst [vmem:[%s888 + $0x380] sm:$0xff] %v870
    %904 = vst [vmem:[%s888 + $0x3c0] sm:$0xff] %v871
    %905 = vst [vmem:[%s888 + $0x400] sm:$0xff] %v872
    %906 = vst [vmem:[%s888 + $0x440] sm:$0xff] %v873
    %907 = vst [vmem:[%s888 + $0x480] sm:$0xff] %v874
    %908 = vst [vmem:[%s888 + $0x4c0] sm:$0xff] %v875
    %909 = vst [vmem:[%s888 + $0x500] sm:$0xff] %v876
    %910 = vst [vmem:[%s888 + $0x540] sm:$0xff] %v877
    %911 = vst [vmem:[%s888 + $0x580] sm:$0xff] %v878
    %912 = vst [vmem:[%s888 + $0x5c0] sm:$0xff] %v879
    %913 = vst [vmem:[%s888 + $0x600] sm:$0xff] %v880
    %914 = vst [vmem:[%s888 + $0x640] sm:$0xff] %v881
    %915 = vst [vmem:[%s888 + $0x680] sm:$0xff] %v882
    %916 = vst [vmem:[%s888 + $0x6c0] sm:$0xff] %v883
    %917 = vst [vmem:[%s888 + $0x700] sm:$0xff] %v884
    %918 = vst [vmem:[%s888 + $0x740] sm:$0xff] %v885
    %919 = vst [vmem:[%s888 + $0x780] sm:$0xff] %v886
    %920 = vst [vmem:[%s888 + $0x7c0] sm:$0xff] %v887
    %v921 = vld [vmem:[%s0 + $0x5] sm:$0x1]
    %v922 = vlaneseq
    %v923 = vshrl.u32 %v922, 7
    %v924 = vsub.s32 0, %v923
    %v925 = vrot.slane %v921, %v924
    %v926 = vmul.f32 %v96, %v925
    %v927 = vmul.f32 %v101, %v925
    %v928 = vmul.f32 %v106, %v925
    %v929 = vmul.f32 %v111, %v925
    %v930 = vmul.f32 %v116, %v925
    %v931 = vmul.f32 %v121, %v925
    %v932 = vmul.f32 %v126, %v925
    %v933 = vmul.f32 %v131, %v925
    %v934 = vmul.f32 %v136, %v925
    %v935 = vmul.f32 %v141, %v925
    %v936 = vmul.f32 %v146, %v925
    %v937 = vmul.f32 %v151, %v925
    %v938 = vmul.f32 %v156, %v925
    %v939 = vmul.f32 %v161, %v925
    %v940 = vmul.f32 %v166, %v925
    %v941 = vmul.f32 %v171, %v925
    %v942 = vmul.f32 %v176, %v925
    %v943 = vmul.f32 %v181, %v925
    %v944 = vmul.f32 %v186, %v925
    %v945 = vmul.f32 %v191, %v925
    %v946 = vmul.f32 %v196, %v925
    %v947 = vmul.f32 %v201, %v925
    %v948 = vmul.f32 %v206, %v925
    %v949 = vmul.f32 %v211, %v925
    %v950 = vmul.f32 %v216, %v925
    %v951 = vmul.f32 %v221, %v925
    %v952 = vmul.f32 %v226, %v925
    %v953 = vmul.f32 %v231, %v925
    %v954 = vmul.f32 %v236, %v925
    %v955 = vmul.f32 %v241, %v925
    %v956 = vmul.f32 %v246, %v925
    %v957 = vmul.f32 %v251, %v925
    %v958 = vadd.f32 %v926, %v292
    %v959 = vadd.f32 %v927, %v297
    %v960 = vadd.f32 %v928, %v302
    %v961 = vadd.f32 %v929, %v307
    %v962 = vadd.f32 %v930, %v312
    %v963 = vadd.f32 %v931, %v317
    %v964 = vadd.f32 %v932, %v322
    %v965 = vadd.f32 %v933, %v327
    %v966 = vadd.f32 %v934, %v332
    %v967 = vadd.f32 %v935, %v337
    %v968 = vadd.f32 %v936, %v342
    %v969 = vadd.f32 %v937, %v347
    %v970 = vadd.f32 %v938, %v352
    %v971 = vadd.f32 %v939, %v357
    %v972 = vadd.f32 %v940, %v362
    %v973 = vadd.f32 %v941, %v367
    %v974 = vadd.f32 %v942, %v372
    %v975 = vadd.f32 %v943, %v377
    %v976 = vadd.f32 %v944, %v382
    %v977 = vadd.f32 %v945, %v387
    %v978 = vadd.f32 %v946, %v392
    %v979 = vadd.f32 %v947, %v397
    %v980 = vadd.f32 %v948, %v402
    %v981 = vadd.f32 %v949, %v407
    %v982 = vadd.f32 %v950, %v412
    %v983 = vadd.f32 %v951, %v417
    %v984 = vadd.f32 %v952, %v422
    %v985 = vadd.f32 %v953, %v427
    %v986 = vadd.f32 %v954, %v432
    %v987 = vadd.f32 %v955, %v437
    %v988 = vadd.f32 %v956, %v442
    %v989 = vadd.f32 %v957, %v447
    %s990 = scalar_lea.vmem [#allocation2], 40
    %991 = vst [vmem:[%s990] sm:$0xff] %v958
    %992 = vst [vmem:[%s990 + $0x40] sm:$0xff] %v959
    %993 = vst [vmem:[%s990 + $0x80] sm:$0xff] %v960
    %994 = vst [vmem:[%s990 + $0xc0] sm:$0xff] %v961
    %995 = vst [vmem:[%s990 + $0x100] sm:$0xff] %v962
    %996 = vst [vmem:[%s990 + $0x140] sm:$0xff] %v963
    %997 = vst [vmem:[%s990 + $0x180] sm:$0xff] %v964
    %998 = vst [vmem:[%s990 + $0x1c0] sm:$0xff] %v965
    %999 = vst [vmem:[%s990 + $0x200] sm:$0xff] %v966
    %1000 = vst [vmem:[%s990 + $0x240] sm:$0xff] %v967
    %1001 = vst [vmem:[%s990 + $0x280] sm:$0xff] %v968
    %1002 = vst [vmem:[%s990 + $0x2c0] sm:$0xff] %v969
    %1003 = vst [vmem:[%s990 + $0x300] sm:$0xff] %v970
    %1004 = vst [vmem:[%s990 + $0x340] sm:$0xff] %v971
    %1005 = vst [vmem:[%s990 + $0x380] sm:$0xff] %v972
    %1006 = vst [vmem:[%s990 + $0x3c0] sm:$0xff] %v973
    %1007 = vst [vmem:[%s990 + $0x400] sm:$0xff] %v974
    %1008 = vst [vmem:[%s990 + $0x440] sm:$0xff] %v975
    %1009 = vst [vmem:[%s990 + $0x480] sm:$0xff] %v976
    %1010 = vst [vmem:[%s990 + $0x4c0] sm:$0xff] %v977
    %1011 = vst [vmem:[%s990 + $0x500] sm:$0xff] %v978
    %1012 = vst [vmem:[%s990 + $0x540] sm:$0xff] %v979
    %1013 = vst [vmem:[%s990 + $0x580] sm:$0xff] %v980
    %1014 = vst [vmem:[%s990 + $0x5c0] sm:$0xff] %v981
    %1015 = vst [vmem:[%s990 + $0x600] sm:$0xff] %v982
    %1016 = vst [vmem:[%s990 + $0x640] sm:$0xff] %v983
    %1017 = vst [vmem:[%s990 + $0x680] sm:$0xff] %v984
    %1018 = vst [vmem:[%s990 + $0x6c0] sm:$0xff] %v985
    %1019 = vst [vmem:[%s990 + $0x700] sm:$0xff] %v986
    %1020 = vst [vmem:[%s990 + $0x740] sm:$0xff] %v987
    %1021 = vst [vmem:[%s990 + $0x780] sm:$0xff] %v988
    %1022 = vst [vmem:[%s990 + $0x7c0] sm:$0xff] %v989
    %v1023 = vld [vmem:[%s0 + $0x6] sm:$0x1]
    %v1024 = vlaneseq
    %v1025 = vshrl.u32 %v1024, 7
    %v1026 = vsub.s32 0, %v1025
    %v1027 = vrot.slane %v1023, %v1026
    %v1028 = vmul.f32 %v96, %v1027
    %v1029 = vmul.f32 %v101, %v1027
    %v1030 = vmul.f32 %v106, %v1027
    %v1031 = vmul.f32 %v111, %v1027
    %v1032 = vmul.f32 %v116, %v1027
    %v1033 = vmul.f32 %v121, %v1027
    %v1034 = vmul.f32 %v126, %v1027
    %v1035 = vmul.f32 %v131, %v1027
    %v1036 = vmul.f32 %v136, %v1027
    %v1037 = vmul.f32 %v141, %v1027
    %v1038 = vmul.f32 %v146, %v1027
    %v1039 = vmul.f32 %v151, %v1027
    %v1040 = vmul.f32 %v156, %v1027
    %v1041 = vmul.f32 %v161, %v1027
    %v1042 = vmul.f32 %v166, %v1027
    %v1043 = vmul.f32 %v171, %v1027
    %v1044 = vmul.f32 %v176, %v1027
    %v1045 = vmul.f32 %v181, %v1027
    %v1046 = vmul.f32 %v186, %v1027
    %v1047 = vmul.f32 %v191, %v1027
    %v1048 = vmul.f32 %v196, %v1027
    %v1049 = vmul.f32 %v201, %v1027
    %v1050 = vmul.f32 %v206, %v1027
    %v1051 = vmul.f32 %v211, %v1027
    %v1052 = vmul.f32 %v216, %v1027
    %v1053 = vmul.f32 %v221, %v1027
    %v1054 = vmul.f32 %v226, %v1027
    %v1055 = vmul.f32 %v231, %v1027
    %v1056 = vmul.f32 %v236, %v1027
    %v1057 = vmul.f32 %v241, %v1027
    %v1058 = vmul.f32 %v246, %v1027
    %v1059 = vmul.f32 %v251, %v1027
    %v1060 = vadd.f32 %v1028, %v292
    %v1061 = vadd.f32 %v1029, %v297
    %v1062 = vadd.f32 %v1030, %v302
    %v1063 = vadd.f32 %v1031, %v307
    %v1064 = vadd.f32 %v1032, %v312
    %v1065 = vadd.f32 %v1033, %v317
    %v1066 = vadd.f32 %v1034, %v322
    %v1067 = vadd.f32 %v1035, %v327
    %v1068 = vadd.f32 %v1036, %v332
    %v1069 = vadd.f32 %v1037, %v337
    %v1070 = vadd.f32 %v1038, %v342
    %v1071 = vadd.f32 %v1039, %v347
    %v1072 = vadd.f32 %v1040, %v352
    %v1073 = vadd.f32 %v1041, %v357
    %v1074 = vadd.f32 %v1042, %v362
    %v1075 = vadd.f32 %v1043, %v367
    %v1076 = vadd.f32 %v1044, %v372
    %v1077 = vadd.f32 %v1045, %v377
    %v1078 = vadd.f32 %v1046, %v382
    %v1079 = vadd.f32 %v1047, %v387
    %v1080 = vadd.f32 %v1048, %v392
    %v1081 = vadd.f32 %v1049, %v397
    %v1082 = vadd.f32 %v1050, %v402
    %v1083 = vadd.f32 %v1051, %v407
    %v1084 = vadd.f32 %v1052, %v412
    %v1085 = vadd.f32 %v1053, %v417
    %v1086 = vadd.f32 %v1054, %v422
    %v1087 = vadd.f32 %v1055, %v427
    %v1088 = vadd.f32 %v1056, %v432
    %v1089 = vadd.f32 %v1057, %v437
    %v1090 = vadd.f32 %v1058, %v442
    %v1091 = vadd.f32 %v1059, %v447
    %s1092 = scalar_lea.vmem [#allocation2], 48
    %1093 = vst [vmem:[%s1092] sm:$0xff] %v1060
    %1094 = vst [vmem:[%s1092 + $0x40] sm:$0xff] %v1061
    %1095 = vst [vmem:[%s1092 + $0x80] sm:$0xff] %v1062
    %1096 = vst [vmem:[%s1092 + $0xc0] sm:$0xff] %v1063
    %1097 = vst [vmem:[%s1092 + $0x100] sm:$0xff] %v1064
    %1098 = vst [vmem:[%s1092 + $0x140] sm:$0xff] %v1065
    %1099 = vst [vmem:[%s1092 + $0x180] sm:$0xff] %v1066
    %1100 = vst [vmem:[%s1092 + $0x1c0] sm:$0xff] %v1067
    %1101 = vst [vmem:[%s1092 + $0x200] sm:$0xff] %v1068
    %1102 = vst [vmem:[%s1092 + $0x240] sm:$0xff] %v1069
    %1103 = vst [vmem:[%s1092 + $0x280] sm:$0xff] %v1070
    %1104 = vst [vmem:[%s1092 + $0x2c0] sm:$0xff] %v1071
    %1105 = vst [vmem:[%s1092 + $0x300] sm:$0xff] %v1072
    %1106 = vst [vmem:[%s1092 + $0x340] sm:$0xff] %v1073
    %1107 = vst [vmem:[%s1092 + $0x380] sm:$0xff] %v1074
    %1108 = vst [vmem:[%s1092 + $0x3c0] sm:$0xff] %v1075
    %1109 = vst [vmem:[%s1092 + $0x400] sm:$0xff] %v1076
    %1110 = vst [vmem:[%s1092 + $0x440] sm:$0xff] %v1077
    %1111 = vst [vmem:[%s1092 + $0x480] sm:$0xff] %v1078
    %1112 = vst [vmem:[%s1092 + $0x4c0] sm:$0xff] %v1079
    %1113 = vst [vmem:[%s1092 + $0x500] sm:$0xff] %v1080
    %1114 = vst [vmem:[%s1092 + $0x540] sm:$0xff] %v1081
    %1115 = vst [vmem:[%s1092 + $0x580] sm:$0xff] %v1082
    %1116 = vst [vmem:[%s1092 + $0x5c0] sm:$0xff] %v1083
    %1117 = vst [vmem:[%s1092 + $0x600] sm:$0xff] %v1084
    %1118 = vst [vmem:[%s1092 + $0x640] sm:$0xff] %v1085
    %1119 = vst [vmem:[%s1092 + $0x680] sm:$0xff] %v1086
    %1120 = vst [vmem:[%s1092 + $0x6c0] sm:$0xff] %v1087
    %1121 = vst [vmem:[%s1092 + $0x700] sm:$0xff] %v1088
    %1122 = vst [vmem:[%s1092 + $0x740] sm:$0xff] %v1089
    %1123 = vst [vmem:[%s1092 + $0x780] sm:$0xff] %v1090
    %1124 = vst [vmem:[%s1092 + $0x7c0] sm:$0xff] %v1091
    %v1125 = vld [vmem:[%s0 + $0x7] sm:$0x1]
    %v1126 = vlaneseq
    %v1127 = vshrl.u32 %v1126, 7
    %v1128 = vsub.s32 0, %v1127
    %v1129 = vrot.slane %v1125, %v1128
    %v1130 = vmul.f32 %v96, %v1129
    %v1131 = vmul.f32 %v101, %v1129
    %v1132 = vmul.f32 %v106, %v1129
    %v1133 = vmul.f32 %v111, %v1129
    %v1134 = vmul.f32 %v116, %v1129
    %v1135 = vmul.f32 %v121, %v1129
    %v1136 = vmul.f32 %v126, %v1129
    %v1137 = vmul.f32 %v131, %v1129
    %v1138 = vmul.f32 %v136, %v1129
    %v1139 = vmul.f32 %v141, %v1129
    %v1140 = vmul.f32 %v146, %v1129
    %v1141 = vmul.f32 %v151, %v1129
    %v1142 = vmul.f32 %v156, %v1129
    %v1143 = vmul.f32 %v161, %v1129
    %v1144 = vmul.f32 %v166, %v1129
    %v1145 = vmul.f32 %v171, %v1129
    %v1146 = vmul.f32 %v176, %v1129
    %v1147 = vmul.f32 %v181, %v1129
    %v1148 = vmul.f32 %v186, %v1129
    %v1149 = vmul.f32 %v191, %v1129
    %v1150 = vmul.f32 %v196, %v1129
    %v1151 = vmul.f32 %v201, %v1129
    %v1152 = vmul.f32 %v206, %v1129
    %v1153 = vmul.f32 %v211, %v1129
    %v1154 = vmul.f32 %v216, %v1129
    %v1155 = vmul.f32 %v221, %v1129
    %v1156 = vmul.f32 %v226, %v1129
    %v1157 = vmul.f32 %v231, %v1129
    %v1158 = vmul.f32 %v236, %v1129
    %v1159 = vmul.f32 %v241, %v1129
    %v1160 = vmul.f32 %v246, %v1129
    %v1161 = vmul.f32 %v251, %v1129
    %v1162 = vadd.f32 %v1130, %v292
    %v1163 = vadd.f32 %v1131, %v297
    %v1164 = vadd.f32 %v1132, %v302
    %v1165 = vadd.f32 %v1133, %v307
    %v1166 = vadd.f32 %v1134, %v312
    %v1167 = vadd.f32 %v1135, %v317
    %v1168 = vadd.f32 %v1136, %v322
    %v1169 = vadd.f32 %v1137, %v327
    %v1170 = vadd.f32 %v1138, %v332
    %v1171 = vadd.f32 %v1139, %v337
    %v1172 = vadd.f32 %v1140, %v342
    %v1173 = vadd.f32 %v1141, %v347
    %v1174 = vadd.f32 %v1142, %v352
    %v1175 = vadd.f32 %v1143, %v357
    %v1176 = vadd.f32 %v1144, %v362
    %v1177 = vadd.f32 %v1145, %v367
    %v1178 = vadd.f32 %v1146, %v372
    %v1179 = vadd.f32 %v1147, %v377
    %v1180 = vadd.f32 %v1148, %v382
    %v1181 = vadd.f32 %v1149, %v387
    %v1182 = vadd.f32 %v1150, %v392
    %v1183 = vadd.f32 %v1151, %v397
    %v1184 = vadd.f32 %v1152, %v402
    %v1185 = vadd.f32 %v1153, %v407
    %v1186 = vadd.f32 %v1154, %v412
    %v1187 = vadd.f32 %v1155, %v417
    %v1188 = vadd.f32 %v1156, %v422
    %v1189 = vadd.f32 %v1157, %v427
    %v1190 = vadd.f32 %v1158, %v432
    %v1191 = vadd.f32 %v1159, %v437
    %v1192 = vadd.f32 %v1160, %v442
    %v1193 = vadd.f32 %v1161, %v447
    %s1194 = scalar_lea.vmem [#allocation2], 56
    %1195 = vst [vmem:[%s1194] sm:$0xff] %v1162
    %1196 = vst [vmem:[%s1194 + $0x40] sm:$0xff] %v1163
    %1197 = vst [vmem:[%s1194 + $0x80] sm:$0xff] %v1164
    %1198 = vst [vmem:[%s1194 + $0xc0] sm:$0xff] %v1165
    %1199 = vst [vmem:[%s1194 + $0x100] sm:$0xff] %v1166
    %1200 = vst [vmem:[%s1194 + $0x140] sm:$0xff] %v1167
    %1201 = vst [vmem:[%s1194 + $0x180] sm:$0xff] %v1168
    %1202 = vst [vmem:[%s1194 + $0x1c0] sm:$0xff] %v1169
    %1203 = vst [vmem:[%s1194 + $0x200] sm:$0xff] %v1170
    %1204 = vst [vmem:[%s1194 + $0x240] sm:$0xff] %v1171
    %1205 = vst [vmem:[%s1194 + $0x280] sm:$0xff] %v1172
    %1206 = vst [vmem:[%s1194 + $0x2c0] sm:$0xff] %v1173
    %1207 = vst [vmem:[%s1194 + $0x300] sm:$0xff] %v1174
    %1208 = vst [vmem:[%s1194 + $0x340] sm:$0xff] %v1175
    %1209 = vst [vmem:[%s1194 + $0x380] sm:$0xff] %v1176
    %1210 = vst [vmem:[%s1194 + $0x3c0] sm:$0xff] %v1177
    %1211 = vst [vmem:[%s1194 + $0x400] sm:$0xff] %v1178
    %1212 = vst [vmem:[%s1194 + $0x440] sm:$0xff] %v1179
    %1213 = vst [vmem:[%s1194 + $0x480] sm:$0xff] %v1180
    %1214 = vst [vmem:[%s1194 + $0x4c0] sm:$0xff] %v1181
    %1215 = vst [vmem:[%s1194 + $0x500] sm:$0xff] %v1182
    %1216 = vst [vmem:[%s1194 + $0x540] sm:$0xff] %v1183
    %1217 = vst [vmem:[%s1194 + $0x580] sm:$0xff] %v1184
    %1218 = vst [vmem:[%s1194 + $0x5c0] sm:$0xff] %v1185
    %1219 = vst [vmem:[%s1194 + $0x600] sm:$0xff] %v1186
    %1220 = vst [vmem:[%s1194 + $0x640] sm:$0xff] %v1187
    %1221 = vst [vmem:[%s1194 + $0x680] sm:$0xff] %v1188
    %1222 = vst [vmem:[%s1194 + $0x6c0] sm:$0xff] %v1189
    %1223 = vst [vmem:[%s1194 + $0x700] sm:$0xff] %v1190
    %1224 = vst [vmem:[%s1194 + $0x740] sm:$0xff] %v1191
    %1225 = vst [vmem:[%s1194 + $0x780] sm:$0xff] %v1192
    %1226 = vst [vmem:[%s1194 + $0x7c0] sm:$0xff] %v1193
    %v1227 = vld [vmem:[%s4] sm:$0xf]
    %v1228 = vld [vmem:[%s4 + $0x4] sm:$0xf]
    %v1229 = vld [vmem:[%s4 + $0x8] sm:$0xf]
    %v1230 = vld [vmem:[%s4 + $0xc] sm:$0xf]
    %v1231 = vld [vmem:[%s4 + $0x10] sm:$0xf]
    %v1232 = vld [vmem:[%s4 + $0x14] sm:$0xf]
    %v1233 = vld [vmem:[%s4 + $0x18] sm:$0xf]
    %v1234 = vld [vmem:[%s4 + $0x1c] sm:$0xf]
    %v1235 = vld [vmem:[%s4 + $0x20] sm:$0xf]
    %v1236 = vld [vmem:[%s4 + $0x24] sm:$0xf]
    %v1237 = vld [vmem:[%s4 + $0x28] sm:$0xf]
    %v1238 = vld [vmem:[%s4 + $0x2c] sm:$0xf]
    %v1239 = vld [vmem:[%s4 + $0x30] sm:$0xf]
    %v1240 = vld [vmem:[%s4 + $0x34] sm:$0xf]
    %v1241 = vld [vmem:[%s4 + $0x38] sm:$0xf]
    %v1242 = vld [vmem:[%s4 + $0x3c] sm:$0xf]
    %v1243 = vld [vmem:[%s4 + $0x40] sm:$0xf]
    %v1244 = vld [vmem:[%s4 + $0x44] sm:$0xf]
    %v1245 = vld [vmem:[%s4 + $0x48] sm:$0xf]
    %v1246 = vld [vmem:[%s4 + $0x4c] sm:$0xf]
    %v1247 = vld [vmem:[%s4 + $0x50] sm:$0xf]
    %v1248 = vld [vmem:[%s4 + $0x54] sm:$0xf]
    %v1249 = vld [vmem:[%s4 + $0x58] sm:$0xf]
    %v1250 = vld [vmem:[%s4 + $0x5c] sm:$0xf]
    %v1251 = vld [vmem:[%s4 + $0x60] sm:$0xf]
    %v1252 = vld [vmem:[%s4 + $0x64] sm:$0xf]
    %v1253 = vld [vmem:[%s4 + $0x68] sm:$0xf]
    %v1254 = vld [vmem:[%s4 + $0x6c] sm:$0xf]
    %v1255 = vld [vmem:[%s4 + $0x70] sm:$0xf]
    %v1256 = vld [vmem:[%s4 + $0x74] sm:$0xf]
    %v1257 = vld [vmem:[%s4 + $0x78] sm:$0xf]
    %v1258 = vld [vmem:[%s4 + $0x7c] sm:$0xf]
    %v1291 = vunpack.c.l.b16 %v1227
    %v1292 = vunpack.c.l.b16 %v1228
    %v1293 = vunpack.c.l.b16 %v1229
    %v1294 = vunpack.c.l.b16 %v1230
    %v1295 = vunpack.c.l.b16 %v1231
    %v1296 = vunpack.c.l.b16 %v1232
    %v1297 = vunpack.c.l.b16 %v1233
    %v1298 = vunpack.c.l.b16 %v1234
    %v1299 = vunpack.c.l.b16 %v1235
    %v1300 = vunpack.c.l.b16 %v1236
    %v1301 = vunpack.c.l.b16 %v1237
    %v1302 = vunpack.c.l.b16 %v1238
    %v1303 = vunpack.c.l.b16 %v1239
    %v1304 = vunpack.c.l.b16 %v1240
    %v1305 = vunpack.c.l.b16 %v1241
    %v1306 = vunpack.c.l.b16 %v1242
    %v1307 = vunpack.c.l.b16 %v1243
    %v1308 = vunpack.c.l.b16 %v1244
    %v1309 = vunpack.c.l.b16 %v1245
    %v1310 = vunpack.c.l.b16 %v1246
    %v1311 = vunpack.c.l.b16 %v1247
    %v1312 = vunpack.c.l.b16 %v1248
    %v1313 = vunpack.c.l.b16 %v1249
    %v1314 = vunpack.c.l.b16 %v1250
    %v1315 = vunpack.c.l.b16 %v1251
    %v1316 = vunpack.c.l.b16 %v1252
    %v1317 = vunpack.c.l.b16 %v1253
    %v1318 = vunpack.c.l.b16 %v1254
    %v1319 = vunpack.c.l.b16 %v1255
    %v1320 = vunpack.c.l.b16 %v1256
    %v1321 = vunpack.c.l.b16 %v1257
    %v1322 = vunpack.c.l.b16 %v1258
    %v1323 = vpack.c.b16 %v1292, %v1291
    %v1324 = vpack.c.b16 %v1294, %v1293
    %v1325 = vpack.c.b16 %v1296, %v1295
    %v1326 = vpack.c.b16 %v1298, %v1297
    %v1327 = vpack.c.b16 %v1300, %v1299
    %v1328 = vpack.c.b16 %v1302, %v1301
    %v1329 = vpack.c.b16 %v1304, %v1303
    %v1330 = vpack.c.b16 %v1306, %v1305
    %v1331 = vpack.c.b16 %v1308, %v1307
    %v1332 = vpack.c.b16 %v1310, %v1309
    %v1333 = vpack.c.b16 %v1312, %v1311
    %v1334 = vpack.c.b16 %v1314, %v1313
    %v1335 = vpack.c.b16 %v1316, %v1315
    %v1336 = vpack.c.b16 %v1318, %v1317
    %v1337 = vpack.c.b16 %v1320, %v1319
    %v1338 = vpack.c.b16 %v1322, %v1321
    %vm1339 = vcmask 523264
    %v1341 = vsel %vm1339, %v1323, 0
    %v1344 = vsel %vm1339, %v1324, 0
    %v1347 = vsel %vm1339, %v1325, 0
    %v1350 = vsel %vm1339, %v1326, 0
    %v1353 = vsel %vm1339, %v1327, 0
    %v1356 = vsel %vm1339, %v1328, 0
    %v1359 = vsel %vm1339, %v1329, 0
    %v1362 = vsel %vm1339, %v1330, 0
    %v1365 = vsel %vm1339, %v1331, 0
    %v1368 = vsel %vm1339, %v1332, 0
    %v1371 = vsel %vm1339, %v1333, 0
    %v1374 = vsel %vm1339, %v1334, 0
    %v1377 = vsel %vm1339, %v1335, 0
    %v1380 = vsel %vm1339, %v1336, 0
    %v1383 = vsel %vm1339, %v1337, 0
    %v1386 = vsel %vm1339, %v1338, 0
    %1388 = vmatprep.subr.bf16.mxu0 0
    %1389 = vmatpush1.bf16.msra.mxu0 0
    %1390 = vmatprep.subr.bf16.mxu0 0
    %1391 = vmatpush1.bf16.msra.mxu0 0
    %1392 = vmatprep.subr.bf16.mxu0 0
    %1393 = vmatpush1.bf16.msra.mxu0 0
    %1394 = vmatprep.subr.bf16.mxu0 0
    %1395 = vmatpush1.bf16.msra.mxu0 0
    %1396 = vmatprep.subr.bf16.mxu0 0
    %1397 = vmatpush1.bf16.msra.mxu0 0
    %1398 = vmatprep.subr.bf16.mxu0 0
    %1399 = vmatpush1.bf16.msra.mxu0 0
    %1400 = vmatprep.subr.bf16.mxu0 0
    %1401 = vmatpush1.bf16.msra.mxu0 0
    %1402 = vmatprep.subr.bf16.mxu0 0
    %1403 = vmatpush1.bf16.msra.mxu0 0
    %1404 = vmatprep.subr.bf16.mxu0 0
    %1405 = vmatpush1.bf16.msra.mxu0 0
    %1406 = vmatprep.subr.bf16.mxu0 0
    %1407 = vmatpush1.bf16.msra.mxu0 0
    %1408 = vmatprep.subr.bf16.mxu0 0
    %1409 = vmatpush1.bf16.msra.mxu0 0
    %1410 = vmatprep.subr.bf16.mxu0 0
    %1411 = vmatpush1.bf16.msra.mxu0 0
    %1412 = vmatprep.subr.bf16.mxu0 0
    %1413 = vmatpush1.bf16.msra.mxu0 0
    %1414 = vmatprep.subr.bf16.mxu0 0
    %1415 = vmatpush1.bf16.msra.mxu0 0
    %1416 = vmatprep.subr.bf16.mxu0 0
    %1417 = vmatpush1.bf16.msra.mxu0 0
    %1418 = vmatprep.subr.bf16.mxu0 0
    %1419 = vmatpush1.bf16.msra.mxu0 0
    %1420 = vmatprep.mubr.bf16.mxu0 0
    %1421 = vmatmul.mubr.bf16.gmra.mrb[0].mxu0 %v1341
    %v1422 = vpop.f32.mrb[0].mxu0
    %v1423 = vadd.f32 0.0, %v1422
    %v1424 = vpop.f32.mrb[0].mxu0
    %v1425 = vpop.f32.mrb[0].mxu0
    %v1426 = vadd.f32 0.0, %v1425
    %v1427 = vpop.f32.mrb[0].mxu0
    %1428 = vmatprep.mubr.bf16.mxu0 0
    %1429 = vmatmul.mubr.bf16.gmra.mrb[0].mxu0 %v1344
    %v1430 = vpop.f32.mrb[0].mxu0
    %v1431 = vadd.f32 0.0, %v1430
    %v1432 = vpop.f32.mrb[0].mxu0
    %v1433 = vpop.f32.mrb[0].mxu0
    %v1434 = vadd.f32 0.0, %v1433
    %v1435 = vpop.f32.mrb[0].mxu0
    %1436 = vmatprep.mubr.bf16.mxu0 0
    %1437 = vmatmul.mubr.bf16.gmra.mrb[0].mxu0 %v1347
    %v1438 = vpop.f32.mrb[0].mxu0
    %v1439 = vadd.f32 0.0, %v1438
    %v1440 = vpop.f32.mrb[0].mxu0
    %v1441 = vpop.f32.mrb[0].mxu0
    %v1442 = vadd.f32 0.0, %v1441
    %v1443 = vpop.f32.mrb[0].mxu0
    %1444 = vmatprep.mubr.bf16.mxu0 0
    %1445 = vmatmul.mubr.bf16.gmra.mrb[0].mxu0 %v1350
    %v1446 = vpop.f32.mrb[0].mxu0
    %v1447 = vadd.f32 0.0, %v1446
    %v1448 = vpop.f32.mrb[0].mxu0
    %v1449 = vpop.f32.mrb[0].mxu0
    %v1450 = vadd.f32 0.0, %v1449
    %v1451 = vpop.f32.mrb[0].mxu0
    %1452 = vmatprep.mubr.bf16.mxu0 0
    %1453 = vmatmul.mubr.bf16.gmra.mrb[0].mxu0 %v1353
    %v1454 = vpop.f32.mrb[0].mxu0
    %v1455 = vadd.f32 0.0, %v1454
    %v1456 = vpop.f32.mrb[0].mxu0
    %v1457 = vpop.f32.mrb[0].mxu0
    %v1458 = vadd.f32 0.0, %v1457
    %v1459 = vpop.f32.mrb[0].mxu0
    %1460 = vmatprep.mubr.bf16.mxu0 0
    %1461 = vmatmul.mubr.bf16.gmra.mrb[0].mxu0 %v1356
    %v1462 = vpop.f32.mrb[0].mxu0
    %v1463 = vadd.f32 0.0, %v1462
    %v1464 = vpop.f32.mrb[0].mxu0
    %v1465 = vpop.f32.mrb[0].mxu0
    %v1466 = vadd.f32 0.0, %v1465
    %v1467 = vpop.f32.mrb[0].mxu0
    %1468 = vmatprep.mubr.bf16.mxu0 0
    %1469 = vmatmul.mubr.bf16.gmra.mrb[0].mxu0 %v1359
    %v1470 = vpop.f32.mrb[0].mxu0
    %v1471 = vadd.f32 0.0, %v1470
    %v1472 = vpop.f32.mrb[0].mxu0
    %v1473 = vpop.f32.mrb[0].mxu0
    %v1474 = vadd.f32 0.0, %v1473
    %v1475 = vpop.f32.mrb[0].mxu0
    %1476 = vmatprep.mubr.bf16.mxu0 0
    %1477 = vmatmul.mubr.bf16.gmra.mrb[0].mxu0 %v1362
    %v1478 = vpop.f32.mrb[0].mxu0
    %v1479 = vadd.f32 0.0, %v1478
    %v1480 = vpop.f32.mrb[0].mxu0
    %v1481 = vpop.f32.mrb[0].mxu0
    %v1482 = vadd.f32 0.0, %v1481
    %v1483 = vpop.f32.mrb[0].mxu0
    %1484 = vmatprep.mubr.bf16.mxu0 0
    %1485 = vmatmul.mubr.bf16.gmra.mrb[0].mxu0 %v1365
    %v1486 = vpop.f32.mrb[0].mxu0
    %v1487 = vadd.f32 0.0, %v1486
    %v1488 = vpop.f32.mrb[0].mxu0
    %v1489 = vpop.f32.mrb[0].mxu0
    %v1490 = vadd.f32 0.0, %v1489
    %v1491 = vpop.f32.mrb[0].mxu0
    %1492 = vmatprep.mubr.bf16.mxu0 0
    %1493 = vmatmul.mubr.bf16.gmra.mrb[0].mxu0 %v1368
    %v1494 = vpop.f32.mrb[0].mxu0
    %v1495 = vadd.f32 0.0, %v1494
    %v1496 = vpop.f32.mrb[0].mxu0
    %v1497 = vpop.f32.mrb[0].mxu0
    %v1498 = vadd.f32 0.0, %v1497
    %v1499 = vpop.f32.mrb[0].mxu0
    %1500 = vmatprep.mubr.bf16.mxu0 0
    %1501 = vmatmul.mubr.bf16.gmra.mrb[0].mxu0 %v1371
    %v1502 = vpop.f32.mrb[0].mxu0
    %v1503 = vadd.f32 0.0, %v1502
    %v1504 = vpop.f32.mrb[0].mxu0
    %v1505 = vpop.f32.mrb[0].mxu0
    %v1506 = vadd.f32 0.0, %v1505
    %v1507 = vpop.f32.mrb[0].mxu0
    %1508 = vmatprep.mubr.bf16.mxu0 0
    %1509 = vmatmul.mubr.bf16.gmra.mrb[0].mxu0 %v1374
    %v1510 = vpop.f32.mrb[0].mxu0
    %v1511 = vadd.f32 0.0, %v1510
    %v1512 = vpop.f32.mrb[0].mxu0
    %v1513 = vpop.f32.mrb[0].mxu0
    %v1514 = vadd.f32 0.0, %v1513
    %v1515 = vpop.f32.mrb[0].mxu0
    %1516 = vmatprep.mubr.bf16.mxu0 0
    %1517 = vmatmul.mubr.bf16.gmra.mrb[0].mxu0 %v1377
    %v1518 = vpop.f32.mrb[0].mxu0
    %v1519 = vadd.f32 0.0, %v1518
    %v1520 = vpop.f32.mrb[0].mxu0
    %v1521 = vpop.f32.mrb[0].mxu0
    %v1522 = vadd.f32 0.0, %v1521
    %v1523 = vpop.f32.mrb[0].mxu0
    %1524 = vmatprep.mubr.bf16.mxu0 0
    %1525 = vmatmul.mubr.bf16.gmra.mrb[0].mxu0 %v1380
    %v1526 = vpop.f32.mrb[0].mxu0
    %v1527 = vadd.f32 0.0, %v1526
    %v1528 = vpop.f32.mrb[0].mxu0
    %v1529 = vpop.f32.mrb[0].mxu0
    %v1530 = vadd.f32 0.0, %v1529
    %v1531 = vpop.f32.mrb[0].mxu0
    %1532 = vmatprep.mubr.bf16.mxu0 0
    %1533 = vmatmul.mubr.bf16.gmra.mrb[0].mxu0 %v1383
    %v1534 = vpop.f32.mrb[0].mxu0
    %v1535 = vadd.f32 0.0, %v1534
    %v1536 = vpop.f32.mrb[0].mxu0
    %v1537 = vpop.f32.mrb[0].mxu0
    %v1538 = vadd.f32 0.0, %v1537
    %v1539 = vpop.f32.mrb[0].mxu0
    %1540 = vmatprep.mubr.bf16.mxu0 0
    %1541 = vmatmul.mubr.bf16.gmra.mrb[0].mxu0 %v1386
    %v1542 = vpop.f32.mrb[0].mxu0
    %v1543 = vadd.f32 0.0, %v1542
    %v1544 = vpop.f32.mrb[0].mxu0
    %v1545 = vpop.f32.mrb[0].mxu0
    %v1546 = vadd.f32 0.0, %v1545
    %v1547 = vpop.f32.mrb[0].mxu0
    %1548 = vdwg.mxu0
    %v1549 = vld [vmem:[#allocation2] sm:$0xff]
    %v1550 = vld [vmem:[#allocation2 + $0x40] sm:$0xff]
    %v1551 = vld [vmem:[#allocation2 + $0x80] sm:$0xff]
    %v1552 = vld [vmem:[#allocation2 + $0xc0] sm:$0xff]
    %v1553 = vld [vmem:[#allocation2 + $0x100] sm:$0xff]
    %v1554 = vld [vmem:[#allocation2 + $0x140] sm:$0xff]
    %v1555 = vld [vmem:[#allocation2 + $0x180] sm:$0xff]
    %v1556 = vld [vmem:[#allocation2 + $0x1c0] sm:$0xff]
    %v1557 = vld [vmem:[#allocation2 + $0x200] sm:$0xff]
    %v1558 = vld [vmem:[#allocation2 + $0x240] sm:$0xff]
    %v1559 = vld [vmem:[#allocation2 + $0x280] sm:$0xff]
    %v1560 = vld [vmem:[#allocation2 + $0x2c0] sm:$0xff]
    %v1561 = vld [vmem:[#allocation2 + $0x300] sm:$0xff]
    %v1562 = vld [vmem:[#allocation2 + $0x340] sm:$0xff]
    %v1563 = vld [vmem:[#allocation2 + $0x380] sm:$0xff]
    %v1564 = vld [vmem:[#allocation2 + $0x3c0] sm:$0xff]
    %v1565 = vadd.f32 %v1423, %v1549
    %v1566 = vadd.f32 %v1426, %v1550
    %v1567 = vadd.f32 %v1431, %v1551
    %v1568 = vadd.f32 %v1434, %v1552
    %v1569 = vadd.f32 %v1439, %v1553
    %v1570 = vadd.f32 %v1442, %v1554
    %v1571 = vadd.f32 %v1447, %v1555
    %v1572 = vadd.f32 %v1450, %v1556
    %v1573 = vadd.f32 %v1455, %v1557
    %v1574 = vadd.f32 %v1458, %v1558
    %v1575 = vadd.f32 %v1463, %v1559
    %v1576 = vadd.f32 %v1466, %v1560
    %v1577 = vadd.f32 %v1471, %v1561
    %v1578 = vadd.f32 %v1474, %v1562
    %v1579 = vadd.f32 %v1479, %v1563
    %v1580 = vadd.f32 %v1482, %v1564
    %v1581 = vld [vmem:[%s1194 + $0x400] sm:$0xff]
    %v1582 = vld [vmem:[%s1194 + $0x440] sm:$0xff]
    %v1583 = vld [vmem:[%s1194 + $0x480] sm:$0xff]
    %v1584 = vld [vmem:[%s1194 + $0x4c0] sm:$0xff]
    %v1585 = vld [vmem:[%s1194 + $0x500] sm:$0xff]
    %v1586 = vld [vmem:[%s1194 + $0x540] sm:$0xff]
    %v1587 = vld [vmem:[%s1194 + $0x580] sm:$0xff]
    %v1588 = vld [vmem:[%s1194 + $0x5c0] sm:$0xff]
    %v1589 = vld [vmem:[%s1194 + $0x600] sm:$0xff]
    %v1590 = vld [vmem:[%s1194 + $0x640] sm:$0xff]
    %v1591 = vld [vmem:[%s1194 + $0x680] sm:$0xff]
    %v1592 = vld [vmem:[%s1194 + $0x6c0] sm:$0xff]
    %v1593 = vld [vmem:[%s1194 + $0x700] sm:$0xff]
    %v1594 = vld [vmem:[%s1194 + $0x740] sm:$0xff]
    %v1595 = vld [vmem:[%s1194 + $0x780] sm:$0xff]
    %v1596 = vld [vmem:[%s1194 + $0x7c0] sm:$0xff]
    %v1597 = vadd.f32 %v1487, %v1581
    %v1598 = vadd.f32 %v1490, %v1582
    %v1599 = vadd.f32 %v1495, %v1583
    %v1600 = vadd.f32 %v1498, %v1584
    %v1601 = vadd.f32 %v1503, %v1585
    %v1602 = vadd.f32 %v1506, %v1586
    %v1603 = vadd.f32 %v1511, %v1587
    %v1604 = vadd.f32 %v1514, %v1588
    %v1605 = vadd.f32 %v1519, %v1589
    %v1606 = vadd.f32 %v1522, %v1590
    %v1607 = vadd.f32 %v1527, %v1591
    %v1608 = vadd.f32 %v1530, %v1592
    %v1609 = vadd.f32 %v1535, %v1593
    %v1610 = vadd.f32 %v1538, %v1594
    %v1611 = vadd.f32 %v1543, %v1595
    %v1612 = vadd.f32 %v1546, %v1596
    %v1613 = vxor.u32 %v1565, 2147483648
    %v1614 = vxor.u32 %v1566, 2147483648
    %v1615 = vxor.u32 %v1567, 2147483648
    %v1616 = vxor.u32 %v1568, 2147483648
    %v1617 = vmul.f32 %v1613, 1.442695
    %v1618 = vpow.pop %v1617
    %v1619 = vmul.f32 %v1614, 1.442695
    %v1620 = vpow.pop %v1619
    %v1621 = vmul.f32 %v1615, 1.442695
    %v1622 = vpow.pop %v1621
    %v1623 = vmul.f32 %v1616, 1.442695
    %v1624 = vpow.pop %v1623
    %v1625 = vadd.f32 %v1618, 1.0
    %v1626 = vadd.f32 %v1620, 1.0
    %v1627 = vadd.f32 %v1622, 1.0
    %v1628 = vadd.f32 %v1624, 1.0
    %v1629 = vrcp.pop %v1625
    %v1630 = vmul.f32 1.0, %v1629
    %v1631 = vrcp.pop %v1626
    %v1632 = vmul.f32 1.0, %v1631
    %v1633 = vrcp.pop %v1627
    %v1634 = vmul.f32 1.0, %v1633
    %v1635 = vrcp.pop %v1628
    %v1636 = vmul.f32 1.0, %v1635
    %v1637 = vxor.u32 %v1569, 2147483648
    %v1638 = vxor.u32 %v1570, 2147483648
    %v1639 = vxor.u32 %v1571, 2147483648
    %v1640 = vxor.u32 %v1572, 2147483648
    %v1641 = vmul.f32 %v1637, 1.442695
    %v1642 = vpow.pop %v1641
    %v1643 = vmul.f32 %v1638, 1.442695
    %v1644 = vpow.pop %v1643
    %v1645 = vmul.f32 %v1639, 1.442695
    %v1646 = vpow.pop %v1645
    %v1647 = vmul.f32 %v1640, 1.442695
    %v1648 = vpow.pop %v1647
    %v1649 = vadd.f32 %v1642, 1.0
    %v1650 = vadd.f32 %v1644, 1.0
    %v1651 = vadd.f32 %v1646, 1.0
    %v1652 = vadd.f32 %v1648, 1.0
    %v1653 = vrcp.pop %v1649
    %v1654 = vmul.f32 1.0, %v1653
    %v1655 = vrcp.pop %v1650
    %v1656 = vmul.f32 1.0, %v1655
    %v1657 = vrcp.pop %v1651
    %v1658 = vmul.f32 1.0, %v1657
    %v1659 = vrcp.pop %v1652
    %v1660 = vmul.f32 1.0, %v1659
    %v1661 = vtanh.pop %v1573
    %v1662 = vtanh.pop %v1574
    %v1663 = vtanh.pop %v1575
    %v1664 = vtanh.pop %v1576
    %v1665 = vxor.u32 %v1577, 2147483648
    %v1666 = vxor.u32 %v1578, 2147483648
    %v1667 = vxor.u32 %v1579, 2147483648
    %v1668 = vxor.u32 %v1580, 2147483648
    %v1669 = vmul.f32 %v1665, 1.442695
    %v1670 = vpow.pop %v1669
    %v1671 = vmul.f32 %v1666, 1.442695
    %v1672 = vpow.pop %v1671
    %v1673 = vmul.f32 %v1667, 1.442695
    %v1674 = vpow.pop %v1673
    %v1675 = vmul.f32 %v1668, 1.442695
    %v1676 = vpow.pop %v1675
    %v1677 = vadd.f32 %v1670, 1.0
    %v1678 = vadd.f32 %v1672, 1.0
    %v1679 = vadd.f32 %v1674, 1.0
    %v1680 = vadd.f32 %v1676, 1.0
    %v1681 = vrcp.pop %v1677
    %v1682 = vmul.f32 1.0, %v1681
    %v1683 = vrcp.pop %v1678
    %v1684 = vmul.f32 1.0, %v1683
    %v1685 = vrcp.pop %v1679
    %v1686 = vmul.f32 1.0, %v1685
    %v1687 = vrcp.pop %v1680
    %v1688 = vmul.f32 1.0, %v1687
    %v1689 = vmul.f32 %v1654, 0.0
    %v1690 = vmul.f32 %v1656, 0.0
    %v1691 = vmul.f32 %v1658, 0.0
    %v1692 = vmul.f32 %v1660, 0.0
    %v1693 = vmul.f32 %v1630, %v1661
    %v1694 = vmul.f32 %v1632, %v1662
    %v1695 = vmul.f32 %v1634, %v1663
    %v1696 = vmul.f32 %v1636, %v1664
    %v1697 = vadd.f32 %v1689, %v1693
    %v1698 = vadd.f32 %v1690, %v1694
    %v1699 = vadd.f32 %v1691, %v1695
    %v1700 = vadd.f32 %v1692, %v1696
    %v1701 = vtanh.pop %v1697
    %v1702 = vtanh.pop %v1698
    %v1703 = vtanh.pop %v1699
    %v1704 = vtanh.pop %v1700
    %v1705 = vmul.f32 %v1682, %v1701
    %v1706 = vmul.f32 %v1684, %v1702
    %v1707 = vmul.f32 %v1686, %v1703
    %v1708 = vmul.f32 %v1688, %v1704
    %v1709 = vxor.u32 %v1597, 2147483648
    %v1710 = vxor.u32 %v1598, 2147483648
    %v1711 = vxor.u32 %v1599, 2147483648
    %v1712 = vxor.u32 %v1600, 2147483648
    %v1713 = vmul.f32 %v1709, 1.442695
    %v1714 = vpow.pop %v1713
    %v1715 = vmul.f32 %v1710, 1.442695
    %v1716 = vpow.pop %v1715
    %v1717 = vmul.f32 %v1711, 1.442695
    %v1718 = vpow.pop %v1717
    %v1719 = vmul.f32 %v1712, 1.442695
    %v1720 = vpow.pop %v1719
    %v1721 = vadd.f32 %v1714, 1.0
    %v1722 = vadd.f32 %v1716, 1.0
    %v1723 = vadd.f32 %v1718, 1.0
    %v1724 = vadd.f32 %v1720, 1.0
    %v1725 = vrcp.pop %v1721
    %v1726 = vmul.f32 1.0, %v1725
    %v1727 = vrcp.pop %v1722
    %v1728 = vmul.f32 1.0, %v1727
    %v1729 = vrcp.pop %v1723
    %v1730 = vmul.f32 1.0, %v1729
    %v1731 = vrcp.pop %v1724
    %v1732 = vmul.f32 1.0, %v1731
    %v1733 = vxor.u32 %v1601, 2147483648
    %v1734 = vxor.u32 %v1602, 2147483648
    %v1735 = vxor.u32 %v1603, 2147483648
    %v1736 = vxor.u32 %v1604, 2147483648
    %v1737 = vmul.f32 %v1733, 1.442695
    %v1738 = vpow.pop %v1737
    %v1739 = vmul.f32 %v1734, 1.442695
    %v1740 = vpow.pop %v1739
    %v1741 = vmul.f32 %v1735, 1.442695
    %v1742 = vpow.pop %v1741
    %v1743 = vmul.f32 %v1736, 1.442695
    %v1744 = vpow.pop %v1743
    %v1745 = vadd.f32 %v1738, 1.0
    %v1746 = vadd.f32 %v1740, 1.0
    %v1747 = vadd.f32 %v1742, 1.0
    %v1748 = vadd.f32 %v1744, 1.0
    %v1749 = vrcp.pop %v1745
    %v1750 = vmul.f32 1.0, %v1749
    %v1751 = vrcp.pop %v1746
    %v1752 = vmul.f32 1.0, %v1751
    %v1753 = vrcp.pop %v1747
    %v1754 = vmul.f32 1.0, %v1753
    %v1755 = vrcp.pop %v1748
    %v1756 = vmul.f32 1.0, %v1755
    %v1757 = vtanh.pop %v1605
    %v1758 = vtanh.pop %v1606
    %v1759 = vtanh.pop %v1607
    %v1760 = vtanh.pop %v1608
    %v1761 = vxor.u32 %v1609, 2147483648
    %v1762 = vxor.u32 %v1610, 2147483648
    %v1763 = vxor.u32 %v1611, 2147483648
    %v1764 = vxor.u32 %v1612, 2147483648
    %v1765 = vmul.f32 %v1761, 1.442695
    %v1766 = vpow.pop %v1765
    %v1767 = vmul.f32 %v1762, 1.442695
    %v1768 = vpow.pop %v1767
    %v1769 = vmul.f32 %v1763, 1.442695
    %v1770 = vpow.pop %v1769
    %v1771 = vmul.f32 %v1764, 1.442695
    %v1772 = vpow.pop %v1771
    %v1773 = vadd.f32 %v1766, 1.0
    %v1774 = vadd.f32 %v1768, 1.0
    %v1775 = vadd.f32 %v1770, 1.0
    %v1776 = vadd.f32 %v1772, 1.0
    %v1777 = vrcp.pop %v1773
    %v1778 = vmul.f32 1.0, %v1777
    %v1779 = vrcp.pop %v1774
    %v1780 = vmul.f32 1.0, %v1779
    %v1781 = vrcp.pop %v1775
    %v1782 = vmul.f32 1.0, %v1781
    %v1783 = vrcp.pop %v1776
    %v1784 = vmul.f32 1.0, %v1783
    %v1785 = vmul.f32 %v1750, 0.0
    %v1786 = vmul.f32 %v1752, 0.0
    %v1787 = vmul.f32 %v1754, 0.0
    %v1788 = vmul.f32 %v1756, 0.0
    %v1789 = vmul.f32 %v1726, %v1757
    %v1790 = vmul.f32 %v1728, %v1758
    %v1791 = vmul.f32 %v1730, %v1759
    %v1792 = vmul.f32 %v1732, %v1760
    %v1793 = vadd.f32 %v1785, %v1789
    %v1794 = vadd.f32 %v1786, %v1790
    %v1795 = vadd.f32 %v1787, %v1791
    %v1796 = vadd.f32 %v1788, %v1792
    %v1797 = vtanh.pop %v1793
    %v1798 = vtanh.pop %v1794
    %v1799 = vtanh.pop %v1795
    %v1800 = vtanh.pop %v1796
    %v1801 = vmul.f32 %v1778, %v1797
    %v1802 = vmul.f32 %v1780, %v1798
    %v1803 = vmul.f32 %v1782, %v1799
    %v1804 = vmul.f32 %v1784, %v1800
    %v1805 = vpack.c.bf16 %v1706, %v1705
    %v1806 = vpack.c.bf16 %v1708, %v1707
    %1807 = vst [vmem:[#allocation3] sm:$0xff] %v1805
    %1808 = vst [vmem:[#allocation3 + $0x40] sm:$0xff] %v1806
    %v1809 = vpack.c.bf16 %v1802, %v1801
    %v1810 = vpack.c.bf16 %v1804, %v1803
    %s1811 = scalar_lea.vmem [#allocation3], 56
    %1812 = vst [vmem:[%s1811 + $0x80] sm:$0xff] %v1809
    %1813 = vst [vmem:[%s1811 + $0xc0] sm:$0xff] %v1810
    %1814 = vmatprep.subr.bf16.mxu0 0
    %1815 = vmatpush1.bf16.msra.mxu0 %v1805
    %1816 = vmatprep.subr.bf16.mxu0 0
    %1817 = vmatpush1.bf16.msra.mxu0 %v1806
    %1818 = vmatprep.subr.bf16.mxu0 0
    %1819 = vmatpush1.bf16.msra.mxu0 %v1809
    %1820 = vmatprep.subr.bf16.mxu0 0
    %1821 = vmatpush1.bf16.msra.mxu0 %v1810
    %1822 = vmatprep.subr.bf16.mxu0 0
    %1823 = vmatpush1.bf16.msra.mxu0 0
    %1824 = vmatprep.subr.bf16.mxu0 0
    %1825 = vmatpush1.bf16.msra.mxu0 0
    %1826 = vmatprep.subr.bf16.mxu0 0
    %1827 = vmatpush1.bf16.msra.mxu0 0
    %1828 = vmatprep.subr.bf16.mxu0 0
    %1829 = vmatpush1.bf16.msra.mxu0 0
    %1830 = vmatprep.subr.bf16.mxu0 0
    %1831 = vmatpush1.bf16.msra.mxu0 0
    %1832 = vmatprep.subr.bf16.mxu0 0
    %1833 = vmatpush1.bf16.msra.mxu0 0
    %1834 = vmatprep.subr.bf16.mxu0 0
    %1835 = vmatpush1.bf16.msra.mxu0 0
    %1836 = vmatprep.subr.bf16.mxu0 0
    %1837 = vmatpush1.bf16.msra.mxu0 0
    %1838 = vmatprep.subr.bf16.mxu0 0
    %1839 = vmatpush1.bf16.msra.mxu0 0
    %1840 = vmatprep.subr.bf16.mxu0 0
    %1841 = vmatpush1.bf16.msra.mxu0 0
    %1842 = vmatprep.subr.bf16.mxu0 0
    %1843 = vmatpush1.bf16.msra.mxu0 0
    %1844 = vmatprep.subr.bf16.mxu0 0
    %1845 = vmatpush1.bf16.msra.mxu0 0
    %1846 = vmatprep.mubr.bf16.mxu0 0
    %1847 = vmatmul.mubr.bf16.gmra.mrb[0].mxu0 %v1341
    %v1848 = vpop.f32.mrb[0].mxu0
    %v1849 = vadd.f32 0.0, %v1848
    %v1850 = vpop.f32.mrb[0].mxu0
    %v1851 = vpop.f32.mrb[0].mxu0
    %v1852 = vadd.f32 0.0, %v1851
    %v1853 = vpop.f32.mrb[0].mxu0
    %1854 = vmatprep.mubr.bf16.mxu0 0
    %1855 = vmatmul.mubr.bf16.gmra.mrb[0].mxu0 %v1344
    %v1856 = vpop.f32.mrb[0].mxu0
    %v1857 = vadd.f32 0.0, %v1856
    %v1858 = vpop.f32.mrb[0].mxu0
    %v1859 = vpop.f32.mrb[0].mxu0
    %v1860 = vadd.f32 0.0, %v1859
    %v1861 = vpop.f32.mrb[0].mxu0
    %1862 = vmatprep.mubr.bf16.mxu0 0
    %1863 = vmatmul.mubr.bf16.gmra.mrb[0].mxu0 %v1347
    %v1864 = vpop.f32.mrb[0].mxu0
    %v1865 = vadd.f32 0.0, %v1864
    %v1866 = vpop.f32.mrb[0].mxu0
    %v1867 = vpop.f32.mrb[0].mxu0
    %v1868 = vadd.f32 0.0, %v1867
    %v1869 = vpop.f32.mrb[0].mxu0
    %1870 = vmatprep.mubr.bf16.mxu0 0
    %1871 = vmatmul.mubr.bf16.gmra.mrb[0].mxu0 %v1350
    %v1872 = vpop.f32.mrb[0].mxu0
    %v1873 = vadd.f32 0.0, %v1872
    %v1874 = vpop.f32.mrb[0].mxu0
    %v1875 = vpop.f32.mrb[0].mxu0
    %v1876 = vadd.f32 0.0, %v1875
    %v1877 = vpop.f32.mrb[0].mxu0
    %1878 = vmatprep.mubr.bf16.mxu0 0
    %1879 = vmatmul.mubr.bf16.gmra.mrb[0].mxu0 %v1353
    %v1880 = vpop.f32.mrb[0].mxu0
    %v1881 = vadd.f32 0.0, %v1880
    %v1882 = vpop.f32.mrb[0].mxu0
    %v1883 = vpop.f32.mrb[0].mxu0
    %v1884 = vadd.f32 0.0, %v1883
    %v1885 = vpop.f32.mrb[0].mxu0
    %1886 = vmatprep.mubr.bf16.mxu0 0
    %1887 = vmatmul.mubr.bf16.gmra.mrb[0].mxu0 %v1356
    %v1888 = vpop.f32.mrb[0].mxu0
    %v1889 = vadd.f32 0.0, %v1888
    %v1890 = vpop.f32.mrb[0].mxu0
    %v1891 = vpop.f32.mrb[0].mxu0
    %v1892 = vadd.f32 0.0, %v1891
    %v1893 = vpop.f32.mrb[0].mxu0
    %1894 = vmatprep.mubr.bf16.mxu0 0
    %1895 = vmatmul.mubr.bf16.gmra.mrb[0].mxu0 %v1359
    %v1896 = vpop.f32.mrb[0].mxu0
    %v1897 = vadd.f32 0.0, %v1896
    %v1898 = vpop.f32.mrb[0].mxu0
    %v1899 = vpop.f32.mrb[0].mxu0
    %v1900 = vadd.f32 0.0, %v1899
    %v1901 = vpop.f32.mrb[0].mxu0
    %1902 = vmatprep.mubr.bf16.mxu0 0
    %1903 = vmatmul.mubr.bf16.gmra.mrb[0].mxu0 %v1362
    %v1904 = vpop.f32.mrb[0].mxu0
    %v1905 = vadd.f32 0.0, %v1904
    %v1906 = vpop.f32.mrb[0].mxu0
    %v1907 = vpop.f32.mrb[0].mxu0
    %v1908 = vadd.f32 0.0, %v1907
    %v1909 = vpop.f32.mrb[0].mxu0
    %1910 = vmatprep.mubr.bf16.mxu0 0
    %1911 = vmatmul.mubr.bf16.gmra.mrb[0].mxu0 %v1365
    %v1912 = vpop.f32.mrb[0].mxu0
    %v1913 = vadd.f32 0.0, %v1912
    %v1914 = vpop.f32.mrb[0].mxu0
    %v1915 = vpop.f32.mrb[0].mxu0
    %v1916 = vadd.f32 0.0, %v1915
    %v1917 = vpop.f32.mrb[0].mxu0
    %1918 = vmatprep.mubr.bf16.mxu0 0
    %1919 = vmatmul.mubr.bf16.gmra.mrb[0].mxu0 %v1368
    %v1920 = vpop.f32.mrb[0].mxu0
    %v1921 = vadd.f32 0.0, %v1920
    %v1922 = vpop.f32.mrb[0].mxu0
    %v1923 = vpop.f32.mrb[0].mxu0
    %v1924 = vadd.f32 0.0, %v1923
    %v1925 = vpop.f32.mrb[0].mxu0
    %1926 = vmatprep.mubr.bf16.mxu0 0
    %1927 = vmatmul.mubr.bf16.gmra.mrb[0].mxu0 %v1371
    %v1928 = vpop.f32.mrb[0].mxu0
    %v1929 = vadd.f32 0.0, %v1928
    %v1930 = vpop.f32.mrb[0].mxu0
    %v1931 = vpop.f32.mrb[0].mxu0
    %v1932 = vadd.f32 0.0, %v1931
    %v1933 = vpop.f32.mrb[0].mxu0
    %1934 = vmatprep.mubr.bf16.mxu0 0
    %1935 = vmatmul.mubr.bf16.gmra.mrb[0].mxu0 %v1374
    %v1936 = vpop.f32.mrb[0].mxu0
    %v1937 = vadd.f32 0.0, %v1936
    %v1938 = vpop.f32.mrb[0].mxu0
    %v1939 = vpop.f32.mrb[0].mxu0
    %v1940 = vadd.f32 0.0, %v1939
    %v1941 = vpop.f32.mrb[0].mxu0
    %1942 = vmatprep.mubr.bf16.mxu0 0
    %1943 = vmatmul.mubr.bf16.gmra.mrb[0].mxu0 %v1377
    %v1944 = vpop.f32.mrb[0].mxu0
    %v1945 = vadd.f32 0.0, %v1944
    %v1946 = vpop.f32.mrb[0].mxu0
    %v1947 = vpop.f32.mrb[0].mxu0
    %v1948 = vadd.f32 0.0, %v1947
    %v1949 = vpop.f32.mrb[0].mxu0
    %1950 = vmatprep.mubr.bf16.mxu0 0
    %1951 = vmatmul.mubr.bf16.gmra.mrb[0].mxu0 %v1380
    %v1952 = vpop.f32.mrb[0].mxu0
    %v1953 = vadd.f32 0.0, %v1952
    %v1954 = vpop.f32.mrb[0].mxu0
    %v1955 = vpop.f32.mrb[0].mxu0
    %v1956 = vadd.f32 0.0, %v1955
    %v1957 = vpop.f32.mrb[0].mxu0
    %1958 = vmatprep.mubr.bf16.mxu0 0
    %1959 = vmatmul.mubr.bf16.gmra.mrb[0].mxu0 %v1383
    %v1960 = vpop.f32.mrb[0].mxu0
    %v1961 = vadd.f32 0.0, %v1960
    %v1962 = vpop.f32.mrb[0].mxu0
    %v1963 = vpop.f32.mrb[0].mxu0
    %v1964 = vadd.f32 0.0, %v1963
    %v1965 = vpop.f32.mrb[0].mxu0
    %1966 = vmatprep.mubr.bf16.mxu0 0
    %1967 = vmatmul.mubr.bf16.gmra.mrb[0].mxu0 %v1386
    %v1968 = vpop.f32.mrb[0].mxu0
    %v1969 = vadd.f32 0.0, %v1968
    %v1970 = vpop.f32.mrb[0].mxu0
    %v1971 = vpop.f32.mrb[0].mxu0
    %v1972 = vadd.f32 0.0, %v1971
    %v1973 = vpop.f32.mrb[0].mxu0
    %1974 = vdwg.mxu0
    %v1975 = vld [vmem:[%s582] sm:$0xff]
    %v1976 = vld [vmem:[%s582 + $0x40] sm:$0xff]
    %v1977 = vld [vmem:[%s582 + $0x80] sm:$0xff]
    %v1978 = vld [vmem:[%s582 + $0xc0] sm:$0xff]
    %v1979 = vld [vmem:[%s582 + $0x100] sm:$0xff]
    %v1980 = vld [vmem:[%s582 + $0x140] sm:$0xff]
    %v1981 = vld [vmem:[%s582 + $0x180] sm:$0xff]
    %v1982 = vld [vmem:[%s582 + $0x1c0] sm:$0xff]
    %v1983 = vld [vmem:[%s582 + $0x200] sm:$0xff]
    %v1984 = vld [vmem:[%s582 + $0x240] sm:$0xff]
    %v1985 = vld [vmem:[%s582 + $0x280] sm:$0xff]
    %v1986 = vld [vmem:[%s582 + $0x2c0] sm:$0xff]
    %v1987 = vld [vmem:[%s582 + $0x300] sm:$0xff]
    %v1988 = vld [vmem:[%s582 + $0x340] sm:$0xff]
    %v1989 = vld [vmem:[%s582 + $0x380] sm:$0xff]
    %v1990 = vld [vmem:[%s582 + $0x3c0] sm:$0xff]
    %v1991 = vadd.f32 %v1849, %v1975
    %v1992 = vadd.f32 %v1852, %v1976
    %v1993 = vadd.f32 %v1857, %v1977
    %v1994 = vadd.f32 %v1860, %v1978
    %v1995 = vadd.f32 %v1865, %v1979
    %v1996 = vadd.f32 %v1868, %v1980
    %v1997 = vadd.f32 %v1873, %v1981
    %v1998 = vadd.f32 %v1876, %v1982
    %v1999 = vadd.f32 %v1881, %v1983
    %v2000 = vadd.f32 %v1884, %v1984
    %v2001 = vadd.f32 %v1889, %v1985
    %v2002 = vadd.f32 %v1892, %v1986
    %v2003 = vadd.f32 %v1897, %v1987
    %v2004 = vadd.f32 %v1900, %v1988
    %v2005 = vadd.f32 %v1905, %v1989
    %v2006 = vadd.f32 %v1908, %v1990
    %v2007 = vld [vmem:[%s1092 + $0x400] sm:$0xff]
    %v2008 = vld [vmem:[%s1092 + $0x440] sm:$0xff]
    %v2009 = vld [vmem:[%s1092 + $0x480] sm:$0xff]
    %v2010 = vld [vmem:[%s1092 + $0x4c0] sm:$0xff]
    %v2011 = vld [vmem:[%s1092 + $0x500] sm:$0xff]
    %v2012 = vld [vmem:[%s1092 + $0x540] sm:$0xff]
    %v2013 = vld [vmem:[%s1092 + $0x580] sm:$0xff]
    %v2014 = vld [vmem:[%s1092 + $0x5c0] sm:$0xff]
    %v2015 = vld [vmem:[%s1092 + $0x600] sm:$0xff]
    %v2016 = vld [vmem:[%s1092 + $0x640] sm:$0xff]
    %v2017 = vld [vmem:[%s1092 + $0x680] sm:$0xff]
    %v2018 = vld [vmem:[%s1092 + $0x6c0] sm:$0xff]
    %v2019 = vld [vmem:[%s1092 + $0x700] sm:$0xff]
    %v2020 = vld [vmem:[%s1092 + $0x740] sm:$0xff]
    %v2021 = vld [vmem:[%s1092 + $0x780] sm:$0xff]
    %v2022 = vld [vmem:[%s1092 + $0x7c0] sm:$0xff]
    %v2023 = vadd.f32 %v1913, %v2007
    %v2024 = vadd.f32 %v1916, %v2008
    %v2025 = vadd.f32 %v1921, %v2009
    %v2026 = vadd.f32 %v1924, %v2010
    %v2027 = vadd.f32 %v1929, %v2011
    %v2028 = vadd.f32 %v1932, %v2012
    %v2029 = vadd.f32 %v1937, %v2013
    %v2030 = vadd.f32 %v1940, %v2014
    %v2031 = vadd.f32 %v1945, %v2015
    %v2032 = vadd.f32 %v1948, %v2016
    %v2033 = vadd.f32 %v1953, %v2017
    %v2034 = vadd.f32 %v1956, %v2018
    %v2035 = vadd.f32 %v1961, %v2019
    %v2036 = vadd.f32 %v1964, %v2020
    %v2037 = vadd.f32 %v1969, %v2021
    %v2038 = vadd.f32 %v1972, %v2022
    %v2039 = vxor.u32 %v1991, 2147483648
    %v2040 = vxor.u32 %v1992, 2147483648
    %v2041 = vxor.u32 %v1993, 2147483648
    %v2042 = vxor.u32 %v1994, 2147483648
    %v2043 = vmul.f32 %v2039, 1.442695
    %v2044 = vpow.pop %v2043
    %v2045 = vmul.f32 %v2040, 1.442695
    %v2046 = vpow.pop %v2045
    %v2047 = vmul.f32 %v2041, 1.442695
    %v2048 = vpow.pop %v2047
    %v2049 = vmul.f32 %v2042, 1.442695
    %v2050 = vpow.pop %v2049
    %v2051 = vadd.f32 %v2044, 1.0
    %v2052 = vadd.f32 %v2046, 1.0
    %v2053 = vadd.f32 %v2048, 1.0
    %v2054 = vadd.f32 %v2050, 1.0
    %v2055 = vrcp.pop %v2051
    %v2056 = vmul.f32 1.0, %v2055
    %v2057 = vrcp.pop %v2052
    %v2058 = vmul.f32 1.0, %v2057
    %v2059 = vrcp.pop %v2053
    %v2060 = vmul.f32 1.0, %v2059
    %v2061 = vrcp.pop %v2054
    %v2062 = vmul.f32 1.0, %v2061
    %v2063 = vxor.u32 %v1995, 2147483648
    %v2064 = vxor.u32 %v1996, 2147483648
    %v2065 = vxor.u32 %v1997, 2147483648
    %v2066 = vxor.u32 %v1998, 2147483648
    %v2067 = vmul.f32 %v2063, 1.442695
    %v2068 = vpow.pop %v2067
    %v2069 = vmul.f32 %v2064, 1.442695
    %v2070 = vpow.pop %v2069
    %v2071 = vmul.f32 %v2065, 1.442695
    %v2072 = vpow.pop %v2071
    %v2073 = vmul.f32 %v2066, 1.442695
    %v2074 = vpow.pop %v2073
    %v2075 = vadd.f32 %v2068, 1.0
    %v2076 = vadd.f32 %v2070, 1.0
    %v2077 = vadd.f32 %v2072, 1.0
    %v2078 = vadd.f32 %v2074, 1.0
    %v2079 = vrcp.pop %v2075
    %v2080 = vmul.f32 1.0, %v2079
    %v2081 = vrcp.pop %v2076
    %v2082 = vmul.f32 1.0, %v2081
    %v2083 = vrcp.pop %v2077
    %v2084 = vmul.f32 1.0, %v2083
    %v2085 = vrcp.pop %v2078
    %v2086 = vmul.f32 1.0, %v2085
    %v2087 = vtanh.pop %v1999
    %v2088 = vtanh.pop %v2000
    %v2089 = vtanh.pop %v2001
    %v2090 = vtanh.pop %v2002
    %v2091 = vxor.u32 %v2003, 2147483648
    %v2092 = vxor.u32 %v2004, 2147483648
    %v2093 = vxor.u32 %v2005, 2147483648
    %v2094 = vxor.u32 %v2006, 2147483648
    %v2095 = vmul.f32 %v2091, 1.442695
    %v2096 = vpow.pop %v2095
    %v2097 = vmul.f32 %v2092, 1.442695
    %v2098 = vpow.pop %v2097
    %v2099 = vmul.f32 %v2093, 1.442695
    %v2100 = vpow.pop %v2099
    %v2101 = vmul.f32 %v2094, 1.442695
    %v2102 = vpow.pop %v2101
    %v2103 = vadd.f32 %v2096, 1.0
    %v2104 = vadd.f32 %v2098, 1.0
    %v2105 = vadd.f32 %v2100, 1.0
    %v2106 = vadd.f32 %v2102, 1.0
    %v2107 = vrcp.pop %v2103
    %v2108 = vmul.f32 1.0, %v2107
    %v2109 = vrcp.pop %v2104
    %v2110 = vmul.f32 1.0, %v2109
    %v2111 = vrcp.pop %v2105
    %v2112 = vmul.f32 1.0, %v2111
    %v2113 = vrcp.pop %v2106
    %v2114 = vmul.f32 1.0, %v2113
    %v2115 = vmul.f32 %v2080, %v1697
    %v2116 = vmul.f32 %v2082, %v1698
    %v2117 = vmul.f32 %v2084, %v1699
    %v2118 = vmul.f32 %v2086, %v1700
    %v2119 = vmul.f32 %v2056, %v2087
    %v2120 = vmul.f32 %v2058, %v2088
    %v2121 = vmul.f32 %v2060, %v2089
    %v2122 = vmul.f32 %v2062, %v2090
    %v2123 = vadd.f32 %v2115, %v2119
    %v2124 = vadd.f32 %v2116, %v2120
    %v2125 = vadd.f32 %v2117, %v2121
    %v2126 = vadd.f32 %v2118, %v2122
    %v2127 = vtanh.pop %v2123
    %v2128 = vtanh.pop %v2124
    %v2129 = vtanh.pop %v2125
    %v2130 = vtanh.pop %v2126
    %v2131 = vmul.f32 %v2108, %v2127
    %v2132 = vmul.f32 %v2110, %v2128
    %v2133 = vmul.f32 %v2112, %v2129
    %v2134 = vmul.f32 %v2114, %v2130
    %v2135 = vxor.u32 %v2023, 2147483648
    %v2136 = vxor.u32 %v2024, 2147483648
    %v2137 = vxor.u32 %v2025, 2147483648
    %v2138 = vxor.u32 %v2026, 2147483648
    %v2139 = vmul.f32 %v2135, 1.442695
    %v2140 = vpow.pop %v2139
    %v2141 = vmul.f32 %v2136, 1.442695
    %v2142 = vpow.pop %v2141
    %v2143 = vmul.f32 %v2137, 1.442695
    %v2144 = vpow.pop %v2143
    %v2145 = vmul.f32 %v2138, 1.442695
    %v2146 = vpow.pop %v2145
    %v2147 = vadd.f32 %v2140, 1.0
    %v2148 = vadd.f32 %v2142, 1.0
    %v2149 = vadd.f32 %v2144, 1.0
    %v2150 = vadd.f32 %v2146, 1.0
    %v2151 = vrcp.pop %v2147
    %v2152 = vmul.f32 1.0, %v2151
    %v2153 = vrcp.pop %v2148
    %v2154 = vmul.f32 1.0, %v2153
    %v2155 = vrcp.pop %v2149
    %v2156 = vmul.f32 1.0, %v2155
    %v2157 = vrcp.pop %v2150
    %v2158 = vmul.f32 1.0, %v2157
    %v2159 = vxor.u32 %v2027, 2147483648
    %v2160 = vxor.u32 %v2028, 2147483648
    %v2161 = vxor.u32 %v2029, 2147483648
    %v2162 = vxor.u32 %v2030, 2147483648
    %v2163 = vmul.f32 %v2159, 1.442695
    %v2164 = vpow.pop %v2163
    %v2165 = vmul.f32 %v2160, 1.442695
    %v2166 = vpow.pop %v2165
    %v2167 = vmul.f32 %v2161, 1.442695
    %v2168 = vpow.pop %v2167
    %v2169 = vmul.f32 %v2162, 1.442695
    %v2170 = vpow.pop %v2169
    %v2171 = vadd.f32 %v2164, 1.0
    %v2172 = vadd.f32 %v2166, 1.0
    %v2173 = vadd.f32 %v2168, 1.0
    %v2174 = vadd.f32 %v2170, 1.0
    %v2175 = vrcp.pop %v2171
    %v2176 = vmul.f32 1.0, %v2175
    %v2177 = vrcp.pop %v2172
    %v2178 = vmul.f32 1.0, %v2177
    %v2179 = vrcp.pop %v2173
    %v2180 = vmul.f32 1.0, %v2179
    %v2181 = vrcp.pop %v2174
    %v2182 = vmul.f32 1.0, %v2181
    %v2183 = vtanh.pop %v2031
    %v2184 = vtanh.pop %v2032
    %v2185 = vtanh.pop %v2033
    %v2186 = vtanh.pop %v2034
    %v2187 = vxor.u32 %v2035, 2147483648
    %v2188 = vxor.u32 %v2036, 2147483648
    %v2189 = vxor.u32 %v2037, 2147483648
    %v2190 = vxor.u32 %v2038, 2147483648
    %v2191 = vmul.f32 %v2187, 1.442695
    %v2192 = vpow.pop %v2191
    %v2193 = vmul.f32 %v2188, 1.442695
    %v2194 = vpow.pop %v2193
    %v2195 = vmul.f32 %v2189, 1.442695
    %v2196 = vpow.pop %v2195
    %v2197 = vmul.f32 %v2190, 1.442695
    %v2198 = vpow.pop %v2197
    %v2199 = vadd.f32 %v2192, 1.0
    %v2200 = vadd.f32 %v2194, 1.0
    %v2201 = vadd.f32 %v2196, 1.0
    %v2202 = vadd.f32 %v2198, 1.0
    %v2203 = vrcp.pop %v2199
    %v2204 = vmul.f32 1.0, %v2203
    %v2205 = vrcp.pop %v2200
    %v2206 = vmul.f32 1.0, %v2205
    %v2207 = vrcp.pop %v2201
    %v2208 = vmul.f32 1.0, %v2207
    %v2209 = vrcp.pop %v2202
    %v2210 = vmul.f32 1.0, %v2209
    %v2211 = vmul.f32 %v2176, %v1793
    %v2212 = vmul.f32 %v2178, %v1794
    %v2213 = vmul.f32 %v2180, %v1795
    %v2214 = vmul.f32 %v2182, %v1796
    %v2215 = vmul.f32 %v2152, %v2183
    %v2216 = vmul.f32 %v2154, %v2184
    %v2217 = vmul.f32 %v2156, %v2185
    %v2218 = vmul.f32 %v2158, %v2186
    %v2219 = vadd.f32 %v2211, %v2215
    %v2220 = vadd.f32 %v2212, %v2216
    %v2221 = vadd.f32 %v2213, %v2217
    %v2222 = vadd.f32 %v2214, %v2218
    %v2223 = vtanh.pop %v2219
    %v2224 = vtanh.pop %v2220
    %v2225 = vtanh.pop %v2221
    %v2226 = vtanh.pop %v2222
    %v2227 = vmul.f32 %v2204, %v2223
    %v2228 = vmul.f32 %v2206, %v2224
    %v2229 = vmul.f32 %v2208, %v2225
    %v2230 = vmul.f32 %v2210, %v2226
    %v2231 = vpack.c.bf16 %v2132, %v2131
    %v2232 = vpack.c.bf16 %v2134, %v2133
    %s2233 = scalar_lea.vmem [#allocation3], 8
    %2234 = vst [vmem:[%s2233] sm:$0xff] %v2231
    %2235 = vst [vmem:[%s2233 + $0x40] sm:$0xff] %v2232
    %v2236 = vpack.c.bf16 %v2228, %v2227
    %v2237 = vpack.c.bf16 %v2230, %v2229
    %s2238 = scalar_lea.vmem [#allocation3], 48
    %2239 = vst [vmem:[%s2238 + $0x80] sm:$0xff] %v2236
    %2240 = vst [vmem:[%s2238 + $0xc0] sm:$0xff] %v2237
    %2241 = vmatprep.subr.bf16.mxu0 0
    %2242 = vmatpush1.bf16.msra.mxu0 %v2231
    %2243 = vmatprep.subr.bf16.mxu0 0
    %2244 = vmatpush1.bf16.msra.mxu0 %v2232
    %2245 = vmatprep.subr.bf16.mxu0 0
    %2246 = vmatpush1.bf16.msra.mxu0 %v2236
    %2247 = vmatprep.subr.bf16.mxu0 0
    %2248 = vmatpush1.bf16.msra.mxu0 %v2237
    %2249 = vmatprep.subr.bf16.mxu0 0
    %2250 = vmatpush1.bf16.msra.mxu0 0
    %2251 = vmatprep.subr.bf16.mxu0 0
    %2252 = vmatpush1.bf16.msra.mxu0 0
    %2253 = vmatprep.subr.bf16.mxu0 0
    %2254 = vmatpush1.bf16.msra.mxu0 0
    %2255 = vmatprep.subr.bf16.mxu0 0
    %2256 = vmatpush1.bf16.msra.mxu0 0
    %2257 = vmatprep.subr.bf16.mxu0 0
    %2258 = vmatpush1.bf16.msra.mxu0 0
    %2259 = vmatprep.subr.bf16.mxu0 0
    %2260 = vmatpush1.bf16.msra.mxu0 0
    %2261 = vmatprep.subr.bf16.mxu0 0
    %2262 = vmatpush1.bf16.msra.mxu0 0
    %2263 = vmatprep.subr.bf16.mxu0 0
    %2264 = vmatpush1.bf16.msra.mxu0 0
    %2265 = vmatprep.subr.bf16.mxu0 0
    %2266 = vmatpush1.bf16.msra.mxu0 0
    %2267 = vmatprep.subr.bf16.mxu0 0
    %2268 = vmatpush1.bf16.msra.mxu0 0
    %2269 = vmatprep.subr.bf16.mxu0 0
    %2270 = vmatpush1.bf16.msra.mxu0 0
    %2271 = vmatprep.subr.bf16.mxu0 0
    %2272 = vmatpush1.bf16.msra.mxu0 0
    %2273 = vmatprep.mubr.bf16.mxu0 0
    %2274 = vmatmul.mubr.bf16.gmra.mrb[0].mxu0 %v1341
    %v2275 = vpop.f32.mrb[0].mxu0
    %v2276 = vadd.f32 0.0, %v2275
    %v2277 = vpop.f32.mrb[0].mxu0
    %v2278 = vpop.f32.mrb[0].mxu0
    %v2279 = vadd.f32 0.0, %v2278
    %v2280 = vpop.f32.mrb[0].mxu0
    %2281 = vmatprep.mubr.bf16.mxu0 0
    %2282 = vmatmul.mubr.bf16.gmra.mrb[0].mxu0 %v1344
    %v2283 = vpop.f32.mrb[0].mxu0
    %v2284 = vadd.f32 0.0, %v2283
    %v2285 = vpop.f32.mrb[0].mxu0
    %v2286 = vpop.f32.mrb[0].mxu0
    %v2287 = vadd.f32 0.0, %v2286
    %v2288 = vpop.f32.mrb[0].mxu0
    %2289 = vmatprep.mubr.bf16.mxu0 0
    %2290 = vmatmul.mubr.bf16.gmra.mrb[0].mxu0 %v1347
    %v2291 = vpop.f32.mrb[0].mxu0
    %v2292 = vadd.f32 0.0, %v2291
    %v2293 = vpop.f32.mrb[0].mxu0
    %v2294 = vpop.f32.mrb[0].mxu0
    %v2295 = vadd.f32 0.0, %v2294
    %v2296 = vpop.f32.mrb[0].mxu0
    %2297 = vmatprep.mubr.bf16.mxu0 0
    %2298 = vmatmul.mubr.bf16.gmra.mrb[0].mxu0 %v1350
    %v2299 = vpop.f32.mrb[0].mxu0
    %v2300 = vadd.f32 0.0, %v2299
    %v2301 = vpop.f32.mrb[0].mxu0
    %v2302 = vpop.f32.mrb[0].mxu0
    %v2303 = vadd.f32 0.0, %v2302
    %v2304 = vpop.f32.mrb[0].mxu0
    %2305 = vmatprep.mubr.bf16.mxu0 0
    %2306 = vmatmul.mubr.bf16.gmra.mrb[0].mxu0 %v1353
    %v2307 = vpop.f32.mrb[0].mxu0
    %v2308 = vadd.f32 0.0, %v2307
    %v2309 = vpop.f32.mrb[0].mxu0
    %v2310 = vpop.f32.mrb[0].mxu0
    %v2311 = vadd.f32 0.0, %v2310
    %v2312 = vpop.f32.mrb[0].mxu0
    %2313 = vmatprep.mubr.bf16.mxu0 0
    %2314 = vmatmul.mubr.bf16.gmra.mrb[0].mxu0 %v1356
    %v2315 = vpop.f32.mrb[0].mxu0
    %v2316 = vadd.f32 0.0, %v2315
    %v2317 = vpop.f32.mrb[0].mxu0
    %v2318 = vpop.f32.mrb[0].mxu0
    %v2319 = vadd.f32 0.0, %v2318
    %v2320 = vpop.f32.mrb[0].mxu0
    %2321 = vmatprep.mubr.bf16.mxu0 0
    %2322 = vmatmul.mubr.bf16.gmra.mrb[0].mxu0 %v1359
    %v2323 = vpop.f32.mrb[0].mxu0
    %v2324 = vadd.f32 0.0, %v2323
    %v2325 = vpop.f32.mrb[0].mxu0
    %v2326 = vpop.f32.mrb[0].mxu0
    %v2327 = vadd.f32 0.0, %v2326
    %v2328 = vpop.f32.mrb[0].mxu0
    %2329 = vmatprep.mubr.bf16.mxu0 0
    %2330 = vmatmul.mubr.bf16.gmra.mrb[0].mxu0 %v1362
    %v2331 = vpop.f32.mrb[0].mxu0
    %v2332 = vadd.f32 0.0, %v2331
    %v2333 = vpop.f32.mrb[0].mxu0
    %v2334 = vpop.f32.mrb[0].mxu0
    %v2335 = vadd.f32 0.0, %v2334
    %v2336 = vpop.f32.mrb[0].mxu0
    %2337 = vmatprep.mubr.bf16.mxu0 0
    %2338 = vmatmul.mubr.bf16.gmra.mrb[0].mxu0 %v1365
    %v2339 = vpop.f32.mrb[0].mxu0
    %v2340 = vadd.f32 0.0, %v2339
    %v2341 = vpop.f32.mrb[0].mxu0
    %v2342 = vpop.f32.mrb[0].mxu0
    %v2343 = vadd.f32 0.0, %v2342
    %v2344 = vpop.f32.mrb[0].mxu0
    %2345 = vmatprep.mubr.bf16.mxu0 0
    %2346 = vmatmul.mubr.bf16.gmra.mrb[0].mxu0 %v1368
    %v2347 = vpop.f32.mrb[0].mxu0
    %v2348 = vadd.f32 0.0, %v2347
    %v2349 = vpop.f32.mrb[0].mxu0
    %v2350 = vpop.f32.mrb[0].mxu0
    %v2351 = vadd.f32 0.0, %v2350
    %v2352 = vpop.f32.mrb[0].mxu0
    %2353 = vmatprep.mubr.bf16.mxu0 0
    %2354 = vmatmul.mubr.bf16.gmra.mrb[0].mxu0 %v1371
    %v2355 = vpop.f32.mrb[0].mxu0
    %v2356 = vadd.f32 0.0, %v2355
    %v2357 = vpop.f32.mrb[0].mxu0
    %v2358 = vpop.f32.mrb[0].mxu0
    %v2359 = vadd.f32 0.0, %v2358
    %v2360 = vpop.f32.mrb[0].mxu0
    %2361 = vmatprep.mubr.bf16.mxu0 0
    %2362 = vmatmul.mubr.bf16.gmra.mrb[0].mxu0 %v1374
    %v2363 = vpop.f32.mrb[0].mxu0
    %v2364 = vadd.f32 0.0, %v2363
    %v2365 = vpop.f32.mrb[0].mxu0
    %v2366 = vpop.f32.mrb[0].mxu0
    %v2367 = vadd.f32 0.0, %v2366
    %v2368 = vpop.f32.mrb[0].mxu0
    %2369 = vmatprep.mubr.bf16.mxu0 0
    %2370 = vmatmul.mubr.bf16.gmra.mrb[0].mxu0 %v1377
    %v2371 = vpop.f32.mrb[0].mxu0
    %v2372 = vadd.f32 0.0, %v2371
    %v2373 = vpop.f32.mrb[0].mxu0
    %v2374 = vpop.f32.mrb[0].mxu0
    %v2375 = vadd.f32 0.0, %v2374
    %v2376 = vpop.f32.mrb[0].mxu0
    %2377 = vmatprep.mubr.bf16.mxu0 0
    %2378 = vmatmul.mubr.bf16.gmra.mrb[0].mxu0 %v1380
    %v2379 = vpop.f32.mrb[0].mxu0
    %v2380 = vadd.f32 0.0, %v2379
    %v2381 = vpop.f32.mrb[0].mxu0
    %v2382 = vpop.f32.mrb[0].mxu0
    %v2383 = vadd.f32 0.0, %v2382
    %v2384 = vpop.f32.mrb[0].mxu0
    %2385 = vmatprep.mubr.bf16.mxu0 0
    %2386 = vmatmul.mubr.bf16.gmra.mrb[0].mxu0 %v1383
    %v2387 = vpop.f32.mrb[0].mxu0
    %v2388 = vadd.f32 0.0, %v2387
    %v2389 = vpop.f32.mrb[0].mxu0
    %v2390 = vpop.f32.mrb[0].mxu0
    %v2391 = vadd.f32 0.0, %v2390
    %v2392 = vpop.f32.mrb[0].mxu0
    %2393 = vmatprep.mubr.bf16.mxu0 0
    %2394 = vmatmul.mubr.bf16.gmra.mrb[0].mxu0 %v1386
    %v2395 = vpop.f32.mrb[0].mxu0
    %v2396 = vadd.f32 0.0, %v2395
    %v2397 = vpop.f32.mrb[0].mxu0
    %v2398 = vpop.f32.mrb[0].mxu0
    %v2399 = vadd.f32 0.0, %v2398
    %v2400 = vpop.f32.mrb[0].mxu0
    %2401 = vdwg.mxu0
    %v2402 = vld [vmem:[%s684] sm:$0xff]
    %v2403 = vld [vmem:[%s684 + $0x40] sm:$0xff]
    %v2404 = vld [vmem:[%s684 + $0x80] sm:$0xff]
    %v2405 = vld [vmem:[%s684 + $0xc0] sm:$0xff]
    %v2406 = vld [vmem:[%s684 + $0x100] sm:$0xff]
    %v2407 = vld [vmem:[%s684 + $0x140] sm:$0xff]
    %v2408 = vld [vmem:[%s684 + $0x180] sm:$0xff]
    %v2409 = vld [vmem:[%s684 + $0x1c0] sm:$0xff]
    %v2410 = vld [vmem:[%s684 + $0x200] sm:$0xff]
    %v2411 = vld [vmem:[%s684 + $0x240] sm:$0xff]
    %v2412 = vld [vmem:[%s684 + $0x280] sm:$0xff]
    %v2413 = vld [vmem:[%s684 + $0x2c0] sm:$0xff]
    %v2414 = vld [vmem:[%s684 + $0x300] sm:$0xff]
    %v2415 = vld [vmem:[%s684 + $0x340] sm:$0xff]
    %v2416 = vld [vmem:[%s684 + $0x380] sm:$0xff]
    %v2417 = vld [vmem:[%s684 + $0x3c0] sm:$0xff]
    %v2418 = vadd.f32 %v2276, %v2402
    %v2419 = vadd.f32 %v2279, %v2403
    %v2420 = vadd.f32 %v2284, %v2404
    %v2421 = vadd.f32 %v2287, %v2405
    %v2422 = vadd.f32 %v2292, %v2406
    %v2423 = vadd.f32 %v2295, %v2407
    %v2424 = vadd.f32 %v2300, %v2408
    %v2425 = vadd.f32 %v2303, %v2409
    %v2426 = vadd.f32 %v2308, %v2410
    %v2427 = vadd.f32 %v2311, %v2411
    %v2428 = vadd.f32 %v2316, %v2412
    %v2429 = vadd.f32 %v2319, %v2413
    %v2430 = vadd.f32 %v2324, %v2414
    %v2431 = vadd.f32 %v2327, %v2415
    %v2432 = vadd.f32 %v2332, %v2416
    %v2433 = vadd.f32 %v2335, %v2417
    %v2434 = vld [vmem:[%s990 + $0x400] sm:$0xff]
    %v2435 = vld [vmem:[%s990 + $0x440] sm:$0xff]
    %v2436 = vld [vmem:[%s990 + $0x480] sm:$0xff]
    %v2437 = vld [vmem:[%s990 + $0x4c0] sm:$0xff]
    %v2438 = vld [vmem:[%s990 + $0x500] sm:$0xff]
    %v2439 = vld [vmem:[%s990 + $0x540] sm:$0xff]
    %v2440 = vld [vmem:[%s990 + $0x580] sm:$0xff]
    %v2441 = vld [vmem:[%s990 + $0x5c0] sm:$0xff]
    %v2442 = vld [vmem:[%s990 + $0x600] sm:$0xff]
    %v2443 = vld [vmem:[%s990 + $0x640] sm:$0xff]
    %v2444 = vld [vmem:[%s990 + $0x680] sm:$0xff]
    %v2445 = vld [vmem:[%s990 + $0x6c0] sm:$0xff]
    %v2446 = vld [vmem:[%s990 + $0x700] sm:$0xff]
    %v2447 = vld [vmem:[%s990 + $0x740] sm:$0xff]
    %v2448 = vld [vmem:[%s990 + $0x780] sm:$0xff]
    %v2449 = vld [vmem:[%s990 + $0x7c0] sm:$0xff]
    %v2450 = vadd.f32 %v2340, %v2434
    %v2451 = vadd.f32 %v2343, %v2435
    %v2452 = vadd.f32 %v2348, %v2436
    %v2453 = vadd.f32 %v2351, %v2437
    %v2454 = vadd.f32 %v2356, %v2438
    %v2455 = vadd.f32 %v2359, %v2439
    %v2456 = vadd.f32 %v2364, %v2440
    %v2457 = vadd.f32 %v2367, %v2441
    %v2458 = vadd.f32 %v2372, %v2442
    %v2459 = vadd.f32 %v2375, %v2443
    %v2460 = vadd.f32 %v2380, %v2444
    %v2461 = vadd.f32 %v2383, %v2445
    %v2462 = vadd.f32 %v2388, %v2446
    %v2463 = vadd.f32 %v2391, %v2447
    %v2464 = vadd.f32 %v2396, %v2448
    %v2465 = vadd.f32 %v2399, %v2449
    %v2466 = vxor.u32 %v2418, 2147483648
    %v2467 = vxor.u32 %v2419, 2147483648
    %v2468 = vxor.u32 %v2420, 2147483648
    %v2469 = vxor.u32 %v2421, 2147483648
    %v2470 = vmul.f32 %v2466, 1.442695
    %v2471 = vpow.pop %v2470
    %v2472 = vmul.f32 %v2467, 1.442695
    %v2473 = vpow.pop %v2472
    %v2474 = vmul.f32 %v2468, 1.442695
    %v2475 = vpow.pop %v2474
    %v2476 = vmul.f32 %v2469, 1.442695
    %v2477 = vpow.pop %v2476
    %v2478 = vadd.f32 %v2471, 1.0
    %v2479 = vadd.f32 %v2473, 1.0
    %v2480 = vadd.f32 %v2475, 1.0
    %v2481 = vadd.f32 %v2477, 1.0
    %v2482 = vrcp.pop %v2478
    %v2483 = vmul.f32 1.0, %v2482
    %v2484 = vrcp.pop %v2479
    %v2485 = vmul.f32 1.0, %v2484
    %v2486 = vrcp.pop %v2480
    %v2487 = vmul.f32 1.0, %v2486
    %v2488 = vrcp.pop %v2481
    %v2489 = vmul.f32 1.0, %v2488
    %v2490 = vxor.u32 %v2422, 2147483648
    %v2491 = vxor.u32 %v2423, 2147483648
    %v2492 = vxor.u32 %v2424, 2147483648
    %v2493 = vxor.u32 %v2425, 2147483648
    %v2494 = vmul.f32 %v2490, 1.442695
    %v2495 = vpow.pop %v2494
    %v2496 = vmul.f32 %v2491, 1.442695
    %v2497 = vpow.pop %v2496
    %v2498 = vmul.f32 %v2492, 1.442695
    %v2499 = vpow.pop %v2498
    %v2500 = vmul.f32 %v2493, 1.442695
    %v2501 = vpow.pop %v2500
    %v2502 = vadd.f32 %v2495, 1.0
    %v2503 = vadd.f32 %v2497, 1.0
    %v2504 = vadd.f32 %v2499, 1.0
    %v2505 = vadd.f32 %v2501, 1.0
    %v2506 = vrcp.pop %v2502
    %v2507 = vmul.f32 1.0, %v2506
    %v2508 = vrcp.pop %v2503
    %v2509 = vmul.f32 1.0, %v2508
    %v2510 = vrcp.pop %v2504
    %v2511 = vmul.f32 1.0, %v2510
    %v2512 = vrcp.pop %v2505
    %v2513 = vmul.f32 1.0, %v2512
    %v2514 = vtanh.pop %v2426
    %v2515 = vtanh.pop %v2427
    %v2516 = vtanh.pop %v2428
    %v2517 = vtanh.pop %v2429
    %v2518 = vxor.u32 %v2430, 2147483648
    %v2519 = vxor.u32 %v2431, 2147483648
    %v2520 = vxor.u32 %v2432, 2147483648
    %v2521 = vxor.u32 %v2433, 2147483648
    %v2522 = vmul.f32 %v2518, 1.442695
    %v2523 = vpow.pop %v2522
    %v2524 = vmul.f32 %v2519, 1.442695
    %v2525 = vpow.pop %v2524
    %v2526 = vmul.f32 %v2520, 1.442695
    %v2527 = vpow.pop %v2526
    %v2528 = vmul.f32 %v2521, 1.442695
    %v2529 = vpow.pop %v2528
    %v2530 = vadd.f32 %v2523, 1.0
    %v2531 = vadd.f32 %v2525, 1.0
    %v2532 = vadd.f32 %v2527, 1.0
    %v2533 = vadd.f32 %v2529, 1.0
    %v2534 = vrcp.pop %v2530
    %v2535 = vmul.f32 1.0, %v2534
    %v2536 = vrcp.pop %v2531
    %v2537 = vmul.f32 1.0, %v2536
    %v2538 = vrcp.pop %v2532
    %v2539 = vmul.f32 1.0, %v2538
    %v2540 = vrcp.pop %v2533
    %v2541 = vmul.f32 1.0, %v2540
    %v2542 = vmul.f32 %v2507, %v2123
    %v2543 = vmul.f32 %v2509, %v2124
    %v2544 = vmul.f32 %v2511, %v2125
    %v2545 = vmul.f32 %v2513, %v2126
    %v2546 = vmul.f32 %v2483, %v2514
    %v2547 = vmul.f32 %v2485, %v2515
    %v2548 = vmul.f32 %v2487, %v2516
    %v2549 = vmul.f32 %v2489, %v2517
    %v2550 = vadd.f32 %v2542, %v2546
    %v2551 = vadd.f32 %v2543, %v2547
    %v2552 = vadd.f32 %v2544, %v2548
    %v2553 = vadd.f32 %v2545, %v2549
    %v2554 = vtanh.pop %v2550
    %v2555 = vtanh.pop %v2551
    %v2556 = vtanh.pop %v2552
    %v2557 = vtanh.pop %v2553
    %v2558 = vmul.f32 %v2535, %v2554
    %v2559 = vmul.f32 %v2537, %v2555
    %v2560 = vmul.f32 %v2539, %v2556
    %v2561 = vmul.f32 %v2541, %v2557
    %v2562 = vxor.u32 %v2450, 2147483648
    %v2563 = vxor.u32 %v2451, 2147483648
    %v2564 = vxor.u32 %v2452, 2147483648
    %v2565 = vxor.u32 %v2453, 2147483648
    %v2566 = vmul.f32 %v2562, 1.442695
    %v2567 = vpow.pop %v2566
    %v2568 = vmul.f32 %v2563, 1.442695
    %v2569 = vpow.pop %v2568
    %v2570 = vmul.f32 %v2564, 1.442695
    %v2571 = vpow.pop %v2570
    %v2572 = vmul.f32 %v2565, 1.442695
    %v2573 = vpow.pop %v2572
    %v2574 = vadd.f32 %v2567, 1.0
    %v2575 = vadd.f32 %v2569, 1.0
    %v2576 = vadd.f32 %v2571, 1.0
    %v2577 = vadd.f32 %v2573, 1.0
    %v2578 = vrcp.pop %v2574
    %v2579 = vmul.f32 1.0, %v2578
    %v2580 = vrcp.pop %v2575
    %v2581 = vmul.f32 1.0, %v2580
    %v2582 = vrcp.pop %v2576
    %v2583 = vmul.f32 1.0, %v2582
    %v2584 = vrcp.pop %v2577
    %v2585 = vmul.f32 1.0, %v2584
    %v2586 = vxor.u32 %v2454, 2147483648
    %v2587 = vxor.u32 %v2455, 2147483648
    %v2588 = vxor.u32 %v2456, 2147483648
    %v2589 = vxor.u32 %v2457, 2147483648
    %v2590 = vmul.f32 %v2586, 1.442695
    %v2591 = vpow.pop %v2590
    %v2592 = vmul.f32 %v2587, 1.442695
    %v2593 = vpow.pop %v2592
    %v2594 = vmul.f32 %v2588, 1.442695
    %v2595 = vpow.pop %v2594
    %v2596 = vmul.f32 %v2589, 1.442695
    %v2597 = vpow.pop %v2596
    %v2598 = vadd.f32 %v2591, 1.0
    %v2599 = vadd.f32 %v2593, 1.0
    %v2600 = vadd.f32 %v2595, 1.0
    %v2601 = vadd.f32 %v2597, 1.0
    %v2602 = vrcp.pop %v2598
    %v2603 = vmul.f32 1.0, %v2602
    %v2604 = vrcp.pop %v2599
    %v2605 = vmul.f32 1.0, %v2604
    %v2606 = vrcp.pop %v2600
    %v2607 = vmul.f32 1.0, %v2606
    %v2608 = vrcp.pop %v2601
    %v2609 = vmul.f32 1.0, %v2608
    %v2610 = vtanh.pop %v2458
    %v2611 = vtanh.pop %v2459
    %v2612 = vtanh.pop %v2460
    %v2613 = vtanh.pop %v2461
    %v2614 = vxor.u32 %v2462, 2147483648
    %v2615 = vxor.u32 %v2463, 2147483648
    %v2616 = vxor.u32 %v2464, 2147483648
    %v2617 = vxor.u32 %v2465, 2147483648
    %v2618 = vmul.f32 %v2614, 1.442695
    %v2619 = vpow.pop %v2618
    %v2620 = vmul.f32 %v2615, 1.442695
    %v2621 = vpow.pop %v2620
    %v2622 = vmul.f32 %v2616, 1.442695
    %v2623 = vpow.pop %v2622
    %v2624 = vmul.f32 %v2617, 1.442695
    %v2625 = vpow.pop %v2624
    %v2626 = vadd.f32 %v2619, 1.0
    %v2627 = vadd.f32 %v2621, 1.0
    %v2628 = vadd.f32 %v2623, 1.0
    %v2629 = vadd.f32 %v2625, 1.0
    %v2630 = vrcp.pop %v2626
    %v2631 = vmul.f32 1.0, %v2630
    %v2632 = vrcp.pop %v2627
    %v2633 = vmul.f32 1.0, %v2632
    %v2634 = vrcp.pop %v2628
    %v2635 = vmul.f32 1.0, %v2634
    %v2636 = vrcp.pop %v2629
    %v2637 = vmul.f32 1.0, %v2636
    %v2638 = vmul.f32 %v2603, %v2219
    %v2639 = vmul.f32 %v2605, %v2220
    %v2640 = vmul.f32 %v2607, %v2221
    %v2641 = vmul.f32 %v2609, %v2222
    %v2642 = vmul.f32 %v2579, %v2610
    %v2643 = vmul.f32 %v2581, %v2611
    %v2644 = vmul.f32 %v2583, %v2612
    %v2645 = vmul.f32 %v2585, %v2613
    %v2646 = vadd.f32 %v2638, %v2642
    %v2647 = vadd.f32 %v2639, %v2643
    %v2648 = vadd.f32 %v2640, %v2644
    %v2649 = vadd.f32 %v2641, %v2645
    %v2650 = vtanh.pop %v2646
    %v2651 = vtanh.pop %v2647
    %v2652 = vtanh.pop %v2648
    %v2653 = vtanh.pop %v2649
    %v2654 = vmul.f32 %v2631, %v2650
    %v2655 = vmul.f32 %v2633, %v2651
    %v2656 = vmul.f32 %v2635, %v2652
    %v2657 = vmul.f32 %v2637, %v2653
    %v2658 = vpack.c.bf16 %v2559, %v2558
    %v2659 = vpack.c.bf16 %v2561, %v2560
    %s2660 = scalar_lea.vmem [#allocation3], 16
    %2661 = vst [vmem:[%s2660] sm:$0xff] %v2658
    %2662 = vst [vmem:[%s2660 + $0x40] sm:$0xff] %v2659
    %v2663 = vpack.c.bf16 %v2655, %v2654
    %v2664 = vpack.c.bf16 %v2657, %v2656
    %s2665 = scalar_lea.vmem [#allocation3], 40
    %2666 = vst [vmem:[%s2665 + $0x80] sm:$0xff] %v2663
    %2667 = vst [vmem:[%s2665 + $0xc0] sm:$0xff] %v2664
    %2668 = vmatprep.subr.bf16.mxu0 0
    %2669 = vmatpush1.bf16.msra.mxu0 %v2658
    %2670 = vmatprep.subr.bf16.mxu0 0
    %2671 = vmatpush1.bf16.msra.mxu0 %v2659
    %2672 = vmatprep.subr.bf16.mxu0 0
    %2673 = vmatpush1.bf16.msra.mxu0 %v2663
    %2674 = vmatprep.subr.bf16.mxu0 0
    %2675 = vmatpush1.bf16.msra.mxu0 %v2664
    %2676 = vmatprep.subr.bf16.mxu0 0
    %2677 = vmatpush1.bf16.msra.mxu0 0
    %2678 = vmatprep.subr.bf16.mxu0 0
    %2679 = vmatpush1.bf16.msra.mxu0 0
    %2680 = vmatprep.subr.bf16.mxu0 0
    %2681 = vmatpush1.bf16.msra.mxu0 0
    %2682 = vmatprep.subr.bf16.mxu0 0
    %2683 = vmatpush1.bf16.msra.mxu0 0
    %2684 = vmatprep.subr.bf16.mxu0 0
    %2685 = vmatpush1.bf16.msra.mxu0 0
    %2686 = vmatprep.subr.bf16.mxu0 0
    %2687 = vmatpush1.bf16.msra.mxu0 0
    %2688 = vmatprep.subr.bf16.mxu0 0
    %2689 = vmatpush1.bf16.msra.mxu0 0
    %2690 = vmatprep.subr.bf16.mxu0 0
    %2691 = vmatpush1.bf16.msra.mxu0 0
    %2692 = vmatprep.subr.bf16.mxu0 0
    %2693 = vmatpush1.bf16.msra.mxu0 0
    %2694 = vmatprep.subr.bf16.mxu0 0
    %2695 = vmatpush1.bf16.msra.mxu0 0
    %2696 = vmatprep.subr.bf16.mxu0 0
    %2697 = vmatpush1.bf16.msra.mxu0 0
    %2698 = vmatprep.subr.bf16.mxu0 0
    %2699 = vmatpush1.bf16.msra.mxu0 0
    %2700 = vmatprep.mubr.bf16.mxu0 0
    %2701 = vmatmul.mubr.bf16.gmra.mrb[0].mxu0 %v1341
    %v2702 = vpop.f32.mrb[0].mxu0
    %v2703 = vadd.f32 0.0, %v2702
    %v2704 = vpop.f32.mrb[0].mxu0
    %v2705 = vpop.f32.mrb[0].mxu0
    %v2706 = vadd.f32 0.0, %v2705
    %v2707 = vpop.f32.mrb[0].mxu0
    %2708 = vmatprep.mubr.bf16.mxu0 0
    %2709 = vmatmul.mubr.bf16.gmra.mrb[0].mxu0 %v1344
    %v2710 = vpop.f32.mrb[0].mxu0
    %v2711 = vadd.f32 0.0, %v2710
    %v2712 = vpop.f32.mrb[0].mxu0
    %v2713 = vpop.f32.mrb[0].mxu0
    %v2714 = vadd.f32 0.0, %v2713
    %v2715 = vpop.f32.mrb[0].mxu0
    %2716 = vmatprep.mubr.bf16.mxu0 0
    %2717 = vmatmul.mubr.bf16.gmra.mrb[0].mxu0 %v1347
    %v2718 = vpop.f32.mrb[0].mxu0
    %v2719 = vadd.f32 0.0, %v2718
    %v2720 = vpop.f32.mrb[0].mxu0
    %v2721 = vpop.f32.mrb[0].mxu0
    %v2722 = vadd.f32 0.0, %v2721
    %v2723 = vpop.f32.mrb[0].mxu0
    %2724 = vmatprep.mubr.bf16.mxu0 0
    %2725 = vmatmul.mubr.bf16.gmra.mrb[0].mxu0 %v1350
    %v2726 = vpop.f32.mrb[0].mxu0
    %v2727 = vadd.f32 0.0, %v2726
    %v2728 = vpop.f32.mrb[0].mxu0
    %v2729 = vpop.f32.mrb[0].mxu0
    %v2730 = vadd.f32 0.0, %v2729
    %v2731 = vpop.f32.mrb[0].mxu0
    %2732 = vmatprep.mubr.bf16.mxu0 0
    %2733 = vmatmul.mubr.bf16.gmra.mrb[0].mxu0 %v1353
    %v2734 = vpop.f32.mrb[0].mxu0
    %v2735 = vadd.f32 0.0, %v2734
    %v2736 = vpop.f32.mrb[0].mxu0
    %v2737 = vpop.f32.mrb[0].mxu0
    %v2738 = vadd.f32 0.0, %v2737
    %v2739 = vpop.f32.mrb[0].mxu0
    %2740 = vmatprep.mubr.bf16.mxu0 0
    %2741 = vmatmul.mubr.bf16.gmra.mrb[0].mxu0 %v1356
    %v2742 = vpop.f32.mrb[0].mxu0
    %v2743 = vadd.f32 0.0, %v2742
    %v2744 = vpop.f32.mrb[0].mxu0
    %v2745 = vpop.f32.mrb[0].mxu0
    %v2746 = vadd.f32 0.0, %v2745
    %v2747 = vpop.f32.mrb[0].mxu0
    %2748 = vmatprep.mubr.bf16.mxu0 0
    %2749 = vmatmul.mubr.bf16.gmra.mrb[0].mxu0 %v1359
    %v2750 = vpop.f32.mrb[0].mxu0
    %v2751 = vadd.f32 0.0, %v2750
    %v2752 = vpop.f32.mrb[0].mxu0
    %v2753 = vpop.f32.mrb[0].mxu0
    %v2754 = vadd.f32 0.0, %v2753
    %v2755 = vpop.f32.mrb[0].mxu0
    %2756 = vmatprep.mubr.bf16.mxu0 0
    %2757 = vmatmul.mubr.bf16.gmra.mrb[0].mxu0 %v1362
    %v2758 = vpop.f32.mrb[0].mxu0
    %v2759 = vadd.f32 0.0, %v2758
    %v2760 = vpop.f32.mrb[0].mxu0
    %v2761 = vpop.f32.mrb[0].mxu0
    %v2762 = vadd.f32 0.0, %v2761
    %v2763 = vpop.f32.mrb[0].mxu0
    %2764 = vmatprep.mubr.bf16.mxu0 0
    %2765 = vmatmul.mubr.bf16.gmra.mrb[0].mxu0 %v1365
    %v2766 = vpop.f32.mrb[0].mxu0
    %v2767 = vadd.f32 0.0, %v2766
    %v2768 = vpop.f32.mrb[0].mxu0
    %v2769 = vpop.f32.mrb[0].mxu0
    %v2770 = vadd.f32 0.0, %v2769
    %v2771 = vpop.f32.mrb[0].mxu0
    %2772 = vmatprep.mubr.bf16.mxu0 0
    %2773 = vmatmul.mubr.bf16.gmra.mrb[0].mxu0 %v1368
    %v2774 = vpop.f32.mrb[0].mxu0
    %v2775 = vadd.f32 0.0, %v2774
    %v2776 = vpop.f32.mrb[0].mxu0
    %v2777 = vpop.f32.mrb[0].mxu0
    %v2778 = vadd.f32 0.0, %v2777
    %v2779 = vpop.f32.mrb[0].mxu0
    %2780 = vmatprep.mubr.bf16.mxu0 0
    %2781 = vmatmul.mubr.bf16.gmra.mrb[0].mxu0 %v1371
    %v2782 = vpop.f32.mrb[0].mxu0
    %v2783 = vadd.f32 0.0, %v2782
    %v2784 = vpop.f32.mrb[0].mxu0
    %v2785 = vpop.f32.mrb[0].mxu0
    %v2786 = vadd.f32 0.0, %v2785
    %v2787 = vpop.f32.mrb[0].mxu0
    %2788 = vmatprep.mubr.bf16.mxu0 0
    %2789 = vmatmul.mubr.bf16.gmra.mrb[0].mxu0 %v1374
    %v2790 = vpop.f32.mrb[0].mxu0
    %v2791 = vadd.f32 0.0, %v2790
    %v2792 = vpop.f32.mrb[0].mxu0
    %v2793 = vpop.f32.mrb[0].mxu0
    %v2794 = vadd.f32 0.0, %v2793
    %v2795 = vpop.f32.mrb[0].mxu0
    %2796 = vmatprep.mubr.bf16.mxu0 0
    %2797 = vmatmul.mubr.bf16.gmra.mrb[0].mxu0 %v1377
    %v2798 = vpop.f32.mrb[0].mxu0
    %v2799 = vadd.f32 0.0, %v2798
    %v2800 = vpop.f32.mrb[0].mxu0
    %v2801 = vpop.f32.mrb[0].mxu0
    %v2802 = vadd.f32 0.0, %v2801
    %v2803 = vpop.f32.mrb[0].mxu0
    %2804 = vmatprep.mubr.bf16.mxu0 0
    %2805 = vmatmul.mubr.bf16.gmra.mrb[0].mxu0 %v1380
    %v2806 = vpop.f32.mrb[0].mxu0
    %v2807 = vadd.f32 0.0, %v2806
    %v2808 = vpop.f32.mrb[0].mxu0
    %v2809 = vpop.f32.mrb[0].mxu0
    %v2810 = vadd.f32 0.0, %v2809
    %v2811 = vpop.f32.mrb[0].mxu0
    %2812 = vmatprep.mubr.bf16.mxu0 0
    %2813 = vmatmul.mubr.bf16.gmra.mrb[0].mxu0 %v1383
    %v2814 = vpop.f32.mrb[0].mxu0
    %v2815 = vadd.f32 0.0, %v2814
    %v2816 = vpop.f32.mrb[0].mxu0
    %v2817 = vpop.f32.mrb[0].mxu0
    %v2818 = vadd.f32 0.0, %v2817
    %v2819 = vpop.f32.mrb[0].mxu0
    %2820 = vmatprep.mubr.bf16.mxu0 0
    %2821 = vmatmul.mubr.bf16.gmra.mrb[0].mxu0 %v1386
    %v2822 = vpop.f32.mrb[0].mxu0
    %v2823 = vadd.f32 0.0, %v2822
    %v2824 = vpop.f32.mrb[0].mxu0
    %v2825 = vpop.f32.mrb[0].mxu0
    %v2826 = vadd.f32 0.0, %v2825
    %v2827 = vpop.f32.mrb[0].mxu0
    %2828 = vdwg.mxu0
    %v2829 = vld [vmem:[%s786] sm:$0xff]
    %v2830 = vld [vmem:[%s786 + $0x40] sm:$0xff]
    %v2831 = vld [vmem:[%s786 + $0x80] sm:$0xff]
    %v2832 = vld [vmem:[%s786 + $0xc0] sm:$0xff]
    %v2833 = vld [vmem:[%s786 + $0x100] sm:$0xff]
    %v2834 = vld [vmem:[%s786 + $0x140] sm:$0xff]
    %v2835 = vld [vmem:[%s786 + $0x180] sm:$0xff]
    %v2836 = vld [vmem:[%s786 + $0x1c0] sm:$0xff]
    %v2837 = vld [vmem:[%s786 + $0x200] sm:$0xff]
    %v2838 = vld [vmem:[%s786 + $0x240] sm:$0xff]
    %v2839 = vld [vmem:[%s786 + $0x280] sm:$0xff]
    %v2840 = vld [vmem:[%s786 + $0x2c0] sm:$0xff]
    %v2841 = vld [vmem:[%s786 + $0x300] sm:$0xff]
    %v2842 = vld [vmem:[%s786 + $0x340] sm:$0xff]
    %v2843 = vld [vmem:[%s786 + $0x380] sm:$0xff]
    %v2844 = vld [vmem:[%s786 + $0x3c0] sm:$0xff]
    %v2845 = vadd.f32 %v2703, %v2829
    %v2846 = vadd.f32 %v2706, %v2830
    %v2847 = vadd.f32 %v2711, %v2831
    %v2848 = vadd.f32 %v2714, %v2832
    %v2849 = vadd.f32 %v2719, %v2833
    %v2850 = vadd.f32 %v2722, %v2834
    %v2851 = vadd.f32 %v2727, %v2835
    %v2852 = vadd.f32 %v2730, %v2836
    %v2853 = vadd.f32 %v2735, %v2837
    %v2854 = vadd.f32 %v2738, %v2838
    %v2855 = vadd.f32 %v2743, %v2839
    %v2856 = vadd.f32 %v2746, %v2840
    %v2857 = vadd.f32 %v2751, %v2841
    %v2858 = vadd.f32 %v2754, %v2842
    %v2859 = vadd.f32 %v2759, %v2843
    %v2860 = vadd.f32 %v2762, %v2844
    %v2861 = vld [vmem:[%s888 + $0x400] sm:$0xff]
    %v2862 = vld [vmem:[%s888 + $0x440] sm:$0xff]
    %v2863 = vld [vmem:[%s888 + $0x480] sm:$0xff]
    %v2864 = vld [vmem:[%s888 + $0x4c0] sm:$0xff]
    %v2865 = vld [vmem:[%s888 + $0x500] sm:$0xff]
    %v2866 = vld [vmem:[%s888 + $0x540] sm:$0xff]
    %v2867 = vld [vmem:[%s888 + $0x580] sm:$0xff]
    %v2868 = vld [vmem:[%s888 + $0x5c0] sm:$0xff]
    %v2869 = vld [vmem:[%s888 + $0x600] sm:$0xff]
    %v2870 = vld [vmem:[%s888 + $0x640] sm:$0xff]
    %v2871 = vld [vmem:[%s888 + $0x680] sm:$0xff]
    %v2872 = vld [vmem:[%s888 + $0x6c0] sm:$0xff]
    %v2873 = vld [vmem:[%s888 + $0x700] sm:$0xff]
    %v2874 = vld [vmem:[%s888 + $0x740] sm:$0xff]
    %v2875 = vld [vmem:[%s888 + $0x780] sm:$0xff]
    %v2876 = vld [vmem:[%s888 + $0x7c0] sm:$0xff]
    %v2877 = vadd.f32 %v2767, %v2861
    %v2878 = vadd.f32 %v2770, %v2862
    %v2879 = vadd.f32 %v2775, %v2863
    %v2880 = vadd.f32 %v2778, %v2864
    %v2881 = vadd.f32 %v2783, %v2865
    %v2882 = vadd.f32 %v2786, %v2866
    %v2883 = vadd.f32 %v2791, %v2867
    %v2884 = vadd.f32 %v2794, %v2868
    %v2885 = vadd.f32 %v2799, %v2869
    %v2886 = vadd.f32 %v2802, %v2870
    %v2887 = vadd.f32 %v2807, %v2871
    %v2888 = vadd.f32 %v2810, %v2872
    %v2889 = vadd.f32 %v2815, %v2873
    %v2890 = vadd.f32 %v2818, %v2874
    %v2891 = vadd.f32 %v2823, %v2875
    %v2892 = vadd.f32 %v2826, %v2876
    %v2893 = vxor.u32 %v2845, 2147483648
    %v2894 = vxor.u32 %v2846, 2147483648
    %v2895 = vxor.u32 %v2847, 2147483648
    %v2896 = vxor.u32 %v2848, 2147483648
    %v2897 = vmul.f32 %v2893, 1.442695
    %v2898 = vpow.pop %v2897
    %v2899 = vmul.f32 %v2894, 1.442695
    %v2900 = vpow.pop %v2899
    %v2901 = vmul.f32 %v2895, 1.442695
    %v2902 = vpow.pop %v2901
    %v2903 = vmul.f32 %v2896, 1.442695
    %v2904 = vpow.pop %v2903
    %v2905 = vadd.f32 %v2898, 1.0
    %v2906 = vadd.f32 %v2900, 1.0
    %v2907 = vadd.f32 %v2902, 1.0
    %v2908 = vadd.f32 %v2904, 1.0
    %v2909 = vrcp.pop %v2905
    %v2910 = vmul.f32 1.0, %v2909
    %v2911 = vrcp.pop %v2906
    %v2912 = vmul.f32 1.0, %v2911
    %v2913 = vrcp.pop %v2907
    %v2914 = vmul.f32 1.0, %v2913
    %v2915 = vrcp.pop %v2908
    %v2916 = vmul.f32 1.0, %v2915
    %v2917 = vxor.u32 %v2849, 2147483648
    %v2918 = vxor.u32 %v2850, 2147483648
    %v2919 = vxor.u32 %v2851, 2147483648
    %v2920 = vxor.u32 %v2852, 2147483648
    %v2921 = vmul.f32 %v2917, 1.442695
    %v2922 = vpow.pop %v2921
    %v2923 = vmul.f32 %v2918, 1.442695
    %v2924 = vpow.pop %v2923
    %v2925 = vmul.f32 %v2919, 1.442695
    %v2926 = vpow.pop %v2925
    %v2927 = vmul.f32 %v2920, 1.442695
    %v2928 = vpow.pop %v2927
    %v2929 = vadd.f32 %v2922, 1.0
    %v2930 = vadd.f32 %v2924, 1.0
    %v2931 = vadd.f32 %v2926, 1.0
    %v2932 = vadd.f32 %v2928, 1.0
    %v2933 = vrcp.pop %v2929
    %v2934 = vmul.f32 1.0, %v2933
    %v2935 = vrcp.pop %v2930
    %v2936 = vmul.f32 1.0, %v2935
    %v2937 = vrcp.pop %v2931
    %v2938 = vmul.f32 1.0, %v2937
    %v2939 = vrcp.pop %v2932
    %v2940 = vmul.f32 1.0, %v2939
    %v2941 = vtanh.pop %v2853
    %v2942 = vtanh.pop %v2854
    %v2943 = vtanh.pop %v2855
    %v2944 = vtanh.pop %v2856
    %v2945 = vxor.u32 %v2857, 2147483648
    %v2946 = vxor.u32 %v2858, 2147483648
    %v2947 = vxor.u32 %v2859, 2147483648
    %v2948 = vxor.u32 %v2860, 2147483648
    %v2949 = vmul.f32 %v2945, 1.442695
    %v2950 = vpow.pop %v2949
    %v2951 = vmul.f32 %v2946, 1.442695
    %v2952 = vpow.pop %v2951
    %v2953 = vmul.f32 %v2947, 1.442695
    %v2954 = vpow.pop %v2953
    %v2955 = vmul.f32 %v2948, 1.442695
    %v2956 = vpow.pop %v2955
    %v2957 = vadd.f32 %v2950, 1.0
    %v2958 = vadd.f32 %v2952, 1.0
    %v2959 = vadd.f32 %v2954, 1.0
    %v2960 = vadd.f32 %v2956, 1.0
    %v2961 = vrcp.pop %v2957
    %v2962 = vmul.f32 1.0, %v2961
    %v2963 = vrcp.pop %v2958
    %v2964 = vmul.f32 1.0, %v2963
    %v2965 = vrcp.pop %v2959
    %v2966 = vmul.f32 1.0, %v2965
    %v2967 = vrcp.pop %v2960
    %v2968 = vmul.f32 1.0, %v2967
    %v2969 = vmul.f32 %v2934, %v2550
    %v2970 = vmul.f32 %v2936, %v2551
    %v2971 = vmul.f32 %v2938, %v2552
    %v2972 = vmul.f32 %v2940, %v2553
    %v2973 = vmul.f32 %v2910, %v2941
    %v2974 = vmul.f32 %v2912, %v2942
    %v2975 = vmul.f32 %v2914, %v2943
    %v2976 = vmul.f32 %v2916, %v2944
    %v2977 = vadd.f32 %v2969, %v2973
    %v2978 = vadd.f32 %v2970, %v2974
    %v2979 = vadd.f32 %v2971, %v2975
    %v2980 = vadd.f32 %v2972, %v2976
    %v2981 = vtanh.pop %v2977
    %v2982 = vtanh.pop %v2978
    %v2983 = vtanh.pop %v2979
    %v2984 = vtanh.pop %v2980
    %v2985 = vmul.f32 %v2962, %v2981
    %v2986 = vmul.f32 %v2964, %v2982
    %v2987 = vmul.f32 %v2966, %v2983
    %v2988 = vmul.f32 %v2968, %v2984
    %v2989 = vxor.u32 %v2877, 2147483648
    %v2990 = vxor.u32 %v2878, 2147483648
    %v2991 = vxor.u32 %v2879, 2147483648
    %v2992 = vxor.u32 %v2880, 2147483648
    %v2993 = vmul.f32 %v2989, 1.442695
    %v2994 = vpow.pop %v2993
    %v2995 = vmul.f32 %v2990, 1.442695
    %v2996 = vpow.pop %v2995
    %v2997 = vmul.f32 %v2991, 1.442695
    %v2998 = vpow.pop %v2997
    %v2999 = vmul.f32 %v2992, 1.442695
    %v3000 = vpow.pop %v2999
    %v3001 = vadd.f32 %v2994, 1.0
    %v3002 = vadd.f32 %v2996, 1.0
    %v3003 = vadd.f32 %v2998, 1.0
    %v3004 = vadd.f32 %v3000, 1.0
    %v3005 = vrcp.pop %v3001
    %v3006 = vmul.f32 1.0, %v3005
    %v3007 = vrcp.pop %v3002
    %v3008 = vmul.f32 1.0, %v3007
    %v3009 = vrcp.pop %v3003
    %v3010 = vmul.f32 1.0, %v3009
    %v3011 = vrcp.pop %v3004
    %v3012 = vmul.f32 1.0, %v3011
    %v3013 = vxor.u32 %v2881, 2147483648
    %v3014 = vxor.u32 %v2882, 2147483648
    %v3015 = vxor.u32 %v2883, 2147483648
    %v3016 = vxor.u32 %v2884, 2147483648
    %v3017 = vmul.f32 %v3013, 1.442695
    %v3018 = vpow.pop %v3017
    %v3019 = vmul.f32 %v3014, 1.442695
    %v3020 = vpow.pop %v3019
    %v3021 = vmul.f32 %v3015, 1.442695
    %v3022 = vpow.pop %v3021
    %v3023 = vmul.f32 %v3016, 1.442695
    %v3024 = vpow.pop %v3023
    %v3025 = vadd.f32 %v3018, 1.0
    %v3026 = vadd.f32 %v3020, 1.0
    %v3027 = vadd.f32 %v3022, 1.0
    %v3028 = vadd.f32 %v3024, 1.0
    %v3029 = vrcp.pop %v3025
    %v3030 = vmul.f32 1.0, %v3029
    %v3031 = vrcp.pop %v3026
    %v3032 = vmul.f32 1.0, %v3031
    %v3033 = vrcp.pop %v3027
    %v3034 = vmul.f32 1.0, %v3033
    %v3035 = vrcp.pop %v3028
    %v3036 = vmul.f32 1.0, %v3035
    %v3037 = vtanh.pop %v2885
    %v3038 = vtanh.pop %v2886
    %v3039 = vtanh.pop %v2887
    %v3040 = vtanh.pop %v2888
    %v3041 = vxor.u32 %v2889, 2147483648
    %v3042 = vxor.u32 %v2890, 2147483648
    %v3043 = vxor.u32 %v2891, 2147483648
    %v3044 = vxor.u32 %v2892, 2147483648
    %v3045 = vmul.f32 %v3041, 1.442695
    %v3046 = vpow.pop %v3045
    %v3047 = vmul.f32 %v3042, 1.442695
    %v3048 = vpow.pop %v3047
    %v3049 = vmul.f32 %v3043, 1.442695
    %v3050 = vpow.pop %v3049
    %v3051 = vmul.f32 %v3044, 1.442695
    %v3052 = vpow.pop %v3051
    %v3053 = vadd.f32 %v3046, 1.0
    %v3054 = vadd.f32 %v3048, 1.0
    %v3055 = vadd.f32 %v3050, 1.0
    %v3056 = vadd.f32 %v3052, 1.0
    %v3057 = vrcp.pop %v3053
    %v3058 = vmul.f32 1.0, %v3057
    %v3059 = vrcp.pop %v3054
    %v3060 = vmul.f32 1.0, %v3059
    %v3061 = vrcp.pop %v3055
    %v3062 = vmul.f32 1.0, %v3061
    %v3063 = vrcp.pop %v3056
    %v3064 = vmul.f32 1.0, %v3063
    %v3065 = vmul.f32 %v3030, %v2646
    %v3066 = vmul.f32 %v3032, %v2647
    %v3067 = vmul.f32 %v3034, %v2648
    %v3068 = vmul.f32 %v3036, %v2649
    %v3069 = vmul.f32 %v3006, %v3037
    %v3070 = vmul.f32 %v3008, %v3038
    %v3071 = vmul.f32 %v3010, %v3039
    %v3072 = vmul.f32 %v3012, %v3040
    %v3073 = vadd.f32 %v3065, %v3069
    %v3074 = vadd.f32 %v3066, %v3070
    %v3075 = vadd.f32 %v3067, %v3071
    %v3076 = vadd.f32 %v3068, %v3072
    %v3077 = vtanh.pop %v3073
    %v3078 = vtanh.pop %v3074
    %v3079 = vtanh.pop %v3075
    %v3080 = vtanh.pop %v3076
    %v3081 = vmul.f32 %v3058, %v3077
    %v3082 = vmul.f32 %v3060, %v3078
    %v3083 = vmul.f32 %v3062, %v3079
    %v3084 = vmul.f32 %v3064, %v3080
    %v3085 = vpack.c.bf16 %v2986, %v2985
    %v3086 = vpack.c.bf16 %v2988, %v2987
    %s3087 = scalar_lea.vmem [#allocation3], 24
    %3088 = vst [vmem:[%s3087] sm:$0xff] %v3085
    %3089 = vst [vmem:[%s3087 + $0x40] sm:$0xff] %v3086
    %v3090 = vpack.c.bf16 %v3082, %v3081
    %v3091 = vpack.c.bf16 %v3084, %v3083
    %s3092 = scalar_lea.vmem [#allocation3], 32
    %3093 = vst [vmem:[%s3092 + $0x80] sm:$0xff] %v3090
    %3094 = vst [vmem:[%s3092 + $0xc0] sm:$0xff] %v3091
    %3095 = vmatprep.subr.bf16.mxu0 0
    %3096 = vmatpush1.bf16.msra.mxu0 %v3085
    %3097 = vmatprep.subr.bf16.mxu0 0
    %3098 = vmatpush1.bf16.msra.mxu0 %v3086
    %3099 = vmatprep.subr.bf16.mxu0 0
    %3100 = vmatpush1.bf16.msra.mxu0 %v3090
    %3101 = vmatprep.subr.bf16.mxu0 0
    %3102 = vmatpush1.bf16.msra.mxu0 %v3091
    %3103 = vmatprep.subr.bf16.mxu0 0
    %3104 = vmatpush1.bf16.msra.mxu0 0
    %3105 = vmatprep.subr.bf16.mxu0 0
    %3106 = vmatpush1.bf16.msra.mxu0 0
    %3107 = vmatprep.subr.bf16.mxu0 0
    %3108 = vmatpush1.bf16.msra.mxu0 0
    %3109 = vmatprep.subr.bf16.mxu0 0
    %3110 = vmatpush1.bf16.msra.mxu0 0
    %3111 = vmatprep.subr.bf16.mxu0 0
    %3112 = vmatpush1.bf16.msra.mxu0 0
    %3113 = vmatprep.subr.bf16.mxu0 0
    %3114 = vmatpush1.bf16.msra.mxu0 0
    %3115 = vmatprep.subr.bf16.mxu0 0
    %3116 = vmatpush1.bf16.msra.mxu0 0
    %3117 = vmatprep.subr.bf16.mxu0 0
    %3118 = vmatpush1.bf16.msra.mxu0 0
    %3119 = vmatprep.subr.bf16.mxu0 0
    %3120 = vmatpush1.bf16.msra.mxu0 0
    %3121 = vmatprep.subr.bf16.mxu0 0
    %3122 = vmatpush1.bf16.msra.mxu0 0
    %3123 = vmatprep.subr.bf16.mxu0 0
    %3124 = vmatpush1.bf16.msra.mxu0 0
    %3125 = vmatprep.subr.bf16.mxu0 0
    %3126 = vmatpush1.bf16.msra.mxu0 0
    %3127 = vmatprep.mubr.bf16.mxu0 0
    %3128 = vmatmul.mubr.bf16.gmra.mrb[0].mxu0 %v1341
    %v3129 = vpop.f32.mrb[0].mxu0
    %v3130 = vadd.f32 0.0, %v3129
    %v3131 = vpop.f32.mrb[0].mxu0
    %v3132 = vpop.f32.mrb[0].mxu0
    %v3133 = vadd.f32 0.0, %v3132
    %v3134 = vpop.f32.mrb[0].mxu0
    %3135 = vmatprep.mubr.bf16.mxu0 0
    %3136 = vmatmul.mubr.bf16.gmra.mrb[0].mxu0 %v1344
    %v3137 = vpop.f32.mrb[0].mxu0
    %v3138 = vadd.f32 0.0, %v3137
    %v3139 = vpop.f32.mrb[0].mxu0
    %v3140 = vpop.f32.mrb[0].mxu0
    %v3141 = vadd.f32 0.0, %v3140
    %v3142 = vpop.f32.mrb[0].mxu0
    %3143 = vmatprep.mubr.bf16.mxu0 0
    %3144 = vmatmul.mubr.bf16.gmra.mrb[0].mxu0 %v1347
    %v3145 = vpop.f32.mrb[0].mxu0
    %v3146 = vadd.f32 0.0, %v3145
    %v3147 = vpop.f32.mrb[0].mxu0
    %v3148 = vpop.f32.mrb[0].mxu0
    %v3149 = vadd.f32 0.0, %v3148
    %v3150 = vpop.f32.mrb[0].mxu0
    %3151 = vmatprep.mubr.bf16.mxu0 0
    %3152 = vmatmul.mubr.bf16.gmra.mrb[0].mxu0 %v1350
    %v3153 = vpop.f32.mrb[0].mxu0
    %v3154 = vadd.f32 0.0, %v3153
    %v3155 = vpop.f32.mrb[0].mxu0
    %v3156 = vpop.f32.mrb[0].mxu0
    %v3157 = vadd.f32 0.0, %v3156
    %v3158 = vpop.f32.mrb[0].mxu0
    %3159 = vmatprep.mubr.bf16.mxu0 0
    %3160 = vmatmul.mubr.bf16.gmra.mrb[0].mxu0 %v1353
    %v3161 = vpop.f32.mrb[0].mxu0
    %v3162 = vadd.f32 0.0, %v3161
    %v3163 = vpop.f32.mrb[0].mxu0
    %v3164 = vpop.f32.mrb[0].mxu0
    %v3165 = vadd.f32 0.0, %v3164
    %v3166 = vpop.f32.mrb[0].mxu0
    %3167 = vmatprep.mubr.bf16.mxu0 0
    %3168 = vmatmul.mubr.bf16.gmra.mrb[0].mxu0 %v1356
    %v3169 = vpop.f32.mrb[0].mxu0
    %v3170 = vadd.f32 0.0, %v3169
    %v3171 = vpop.f32.mrb[0].mxu0
    %v3172 = vpop.f32.mrb[0].mxu0
    %v3173 = vadd.f32 0.0, %v3172
    %v3174 = vpop.f32.mrb[0].mxu0
    %3175 = vmatprep.mubr.bf16.mxu0 0
    %3176 = vmatmul.mubr.bf16.gmra.mrb[0].mxu0 %v1359
    %v3177 = vpop.f32.mrb[0].mxu0
    %v3178 = vadd.f32 0.0, %v3177
    %v3179 = vpop.f32.mrb[0].mxu0
    %v3180 = vpop.f32.mrb[0].mxu0
    %v3181 = vadd.f32 0.0, %v3180
    %v3182 = vpop.f32.mrb[0].mxu0
    %3183 = vmatprep.mubr.bf16.mxu0 0
    %3184 = vmatmul.mubr.bf16.gmra.mrb[0].mxu0 %v1362
    %v3185 = vpop.f32.mrb[0].mxu0
    %v3186 = vadd.f32 0.0, %v3185
    %v3187 = vpop.f32.mrb[0].mxu0
    %v3188 = vpop.f32.mrb[0].mxu0
    %v3189 = vadd.f32 0.0, %v3188
    %v3190 = vpop.f32.mrb[0].mxu0
    %3191 = vmatprep.mubr.bf16.mxu0 0
    %3192 = vmatmul.mubr.bf16.gmra.mrb[0].mxu0 %v1365
    %v3193 = vpop.f32.mrb[0].mxu0
    %v3194 = vadd.f32 0.0, %v3193
    %v3195 = vpop.f32.mrb[0].mxu0
    %v3196 = vpop.f32.mrb[0].mxu0
    %v3197 = vadd.f32 0.0, %v3196
    %v3198 = vpop.f32.mrb[0].mxu0
    %3199 = vmatprep.mubr.bf16.mxu0 0
    %3200 = vmatmul.mubr.bf16.gmra.mrb[0].mxu0 %v1368
    %v3201 = vpop.f32.mrb[0].mxu0
    %v3202 = vadd.f32 0.0, %v3201
    %v3203 = vpop.f32.mrb[0].mxu0
    %v3204 = vpop.f32.mrb[0].mxu0
    %v3205 = vadd.f32 0.0, %v3204
    %v3206 = vpop.f32.mrb[0].mxu0
    %3207 = vmatprep.mubr.bf16.mxu0 0
    %3208 = vmatmul.mubr.bf16.gmra.mrb[0].mxu0 %v1371
    %v3209 = vpop.f32.mrb[0].mxu0
    %v3210 = vadd.f32 0.0, %v3209
    %v3211 = vpop.f32.mrb[0].mxu0
    %v3212 = vpop.f32.mrb[0].mxu0
    %v3213 = vadd.f32 0.0, %v3212
    %v3214 = vpop.f32.mrb[0].mxu0
    %3215 = vmatprep.mubr.bf16.mxu0 0
    %3216 = vmatmul.mubr.bf16.gmra.mrb[0].mxu0 %v1374
    %v3217 = vpop.f32.mrb[0].mxu0
    %v3218 = vadd.f32 0.0, %v3217
    %v3219 = vpop.f32.mrb[0].mxu0
    %v3220 = vpop.f32.mrb[0].mxu0
    %v3221 = vadd.f32 0.0, %v3220
    %v3222 = vpop.f32.mrb[0].mxu0
    %3223 = vmatprep.mubr.bf16.mxu0 0
    %3224 = vmatmul.mubr.bf16.gmra.mrb[0].mxu0 %v1377
    %v3225 = vpop.f32.mrb[0].mxu0
    %v3226 = vadd.f32 0.0, %v3225
    %v3227 = vpop.f32.mrb[0].mxu0
    %v3228 = vpop.f32.mrb[0].mxu0
    %v3229 = vadd.f32 0.0, %v3228
    %v3230 = vpop.f32.mrb[0].mxu0
    %3231 = vmatprep.mubr.bf16.mxu0 0
    %3232 = vmatmul.mubr.bf16.gmra.mrb[0].mxu0 %v1380
    %v3233 = vpop.f32.mrb[0].mxu0
    %v3234 = vadd.f32 0.0, %v3233
    %v3235 = vpop.f32.mrb[0].mxu0
    %v3236 = vpop.f32.mrb[0].mxu0
    %v3237 = vadd.f32 0.0, %v3236
    %v3238 = vpop.f32.mrb[0].mxu0
    %3239 = vmatprep.mubr.bf16.mxu0 0
    %3240 = vmatmul.mubr.bf16.gmra.mrb[0].mxu0 %v1383
    %v3241 = vpop.f32.mrb[0].mxu0
    %v3242 = vadd.f32 0.0, %v3241
    %v3243 = vpop.f32.mrb[0].mxu0
    %v3244 = vpop.f32.mrb[0].mxu0
    %v3245 = vadd.f32 0.0, %v3244
    %v3246 = vpop.f32.mrb[0].mxu0
    %3247 = vmatprep.mubr.bf16.mxu0 0
    %3248 = vmatmul.mubr.bf16.gmra.mrb[0].mxu0 %v1386
    %v3249 = vpop.f32.mrb[0].mxu0
    %v3250 = vadd.f32 0.0, %v3249
    %v3251 = vpop.f32.mrb[0].mxu0
    %v3252 = vpop.f32.mrb[0].mxu0
    %v3253 = vadd.f32 0.0, %v3252
    %v3254 = vpop.f32.mrb[0].mxu0
    %3255 = vdwg.mxu0
    %v3256 = vld [vmem:[%s888] sm:$0xff]
    %v3257 = vld [vmem:[%s888 + $0x40] sm:$0xff]
    %v3258 = vld [vmem:[%s888 + $0x80] sm:$0xff]
    %v3259 = vld [vmem:[%s888 + $0xc0] sm:$0xff]
    %v3260 = vld [vmem:[%s888 + $0x100] sm:$0xff]
    %v3261 = vld [vmem:[%s888 + $0x140] sm:$0xff]
    %v3262 = vld [vmem:[%s888 + $0x180] sm:$0xff]
    %v3263 = vld [vmem:[%s888 + $0x1c0] sm:$0xff]
    %v3264 = vld [vmem:[%s888 + $0x200] sm:$0xff]
    %v3265 = vld [vmem:[%s888 + $0x240] sm:$0xff]
    %v3266 = vld [vmem:[%s888 + $0x280] sm:$0xff]
    %v3267 = vld [vmem:[%s888 + $0x2c0] sm:$0xff]
    %v3268 = vld [vmem:[%s888 + $0x300] sm:$0xff]
    %v3269 = vld [vmem:[%s888 + $0x340] sm:$0xff]
    %v3270 = vld [vmem:[%s888 + $0x380] sm:$0xff]
    %v3271 = vld [vmem:[%s888 + $0x3c0] sm:$0xff]
    %v3272 = vadd.f32 %v3130, %v3256
    %v3273 = vadd.f32 %v3133, %v3257
    %v3274 = vadd.f32 %v3138, %v3258
    %v3275 = vadd.f32 %v3141, %v3259
    %v3276 = vadd.f32 %v3146, %v3260
    %v3277 = vadd.f32 %v3149, %v3261
    %v3278 = vadd.f32 %v3154, %v3262
    %v3279 = vadd.f32 %v3157, %v3263
    %v3280 = vadd.f32 %v3162, %v3264
    %v3281 = vadd.f32 %v3165, %v3265
    %v3282 = vadd.f32 %v3170, %v3266
    %v3283 = vadd.f32 %v3173, %v3267
    %v3284 = vadd.f32 %v3178, %v3268
    %v3285 = vadd.f32 %v3181, %v3269
    %v3286 = vadd.f32 %v3186, %v3270
    %v3287 = vadd.f32 %v3189, %v3271
    %v3288 = vld [vmem:[%s786 + $0x400] sm:$0xff]
    %v3289 = vld [vmem:[%s786 + $0x440] sm:$0xff]
    %v3290 = vld [vmem:[%s786 + $0x480] sm:$0xff]
    %v3291 = vld [vmem:[%s786 + $0x4c0] sm:$0xff]
    %v3292 = vld [vmem:[%s786 + $0x500] sm:$0xff]
    %v3293 = vld [vmem:[%s786 + $0x540] sm:$0xff]
    %v3294 = vld [vmem:[%s786 + $0x580] sm:$0xff]
    %v3295 = vld [vmem:[%s786 + $0x5c0] sm:$0xff]
    %v3296 = vld [vmem:[%s786 + $0x600] sm:$0xff]
    %v3297 = vld [vmem:[%s786 + $0x640] sm:$0xff]
    %v3298 = vld [vmem:[%s786 + $0x680] sm:$0xff]
    %v3299 = vld [vmem:[%s786 + $0x6c0] sm:$0xff]
    %v3300 = vld [vmem:[%s786 + $0x700] sm:$0xff]
    %v3301 = vld [vmem:[%s786 + $0x740] sm:$0xff]
    %v3302 = vld [vmem:[%s786 + $0x780] sm:$0xff]
    %v3303 = vld [vmem:[%s786 + $0x7c0] sm:$0xff]
    %v3304 = vadd.f32 %v3194, %v3288
    %v3305 = vadd.f32 %v3197, %v3289
    %v3306 = vadd.f32 %v3202, %v3290
    %v3307 = vadd.f32 %v3205, %v3291
    %v3308 = vadd.f32 %v3210, %v3292
    %v3309 = vadd.f32 %v3213, %v3293
    %v3310 = vadd.f32 %v3218, %v3294
    %v3311 = vadd.f32 %v3221, %v3295
    %v3312 = vadd.f32 %v3226, %v3296
    %v3313 = vadd.f32 %v3229, %v3297
    %v3314 = vadd.f32 %v3234, %v3298
    %v3315 = vadd.f32 %v3237, %v3299
    %v3316 = vadd.f32 %v3242, %v3300
    %v3317 = vadd.f32 %v3245, %v3301
    %v3318 = vadd.f32 %v3250, %v3302
    %v3319 = vadd.f32 %v3253, %v3303
    %v3320 = vxor.u32 %v3272, 2147483648
    %v3321 = vxor.u32 %v3273, 2147483648
    %v3322 = vxor.u32 %v3274, 2147483648
    %v3323 = vxor.u32 %v3275, 2147483648
    %v3324 = vmul.f32 %v3320, 1.442695
    %v3325 = vpow.pop %v3324
    %v3326 = vmul.f32 %v3321, 1.442695
    %v3327 = vpow.pop %v3326
    %v3328 = vmul.f32 %v3322, 1.442695
    %v3329 = vpow.pop %v3328
    %v3330 = vmul.f32 %v3323, 1.442695
    %v3331 = vpow.pop %v3330
    %v3332 = vadd.f32 %v3325, 1.0
    %v3333 = vadd.f32 %v3327, 1.0
    %v3334 = vadd.f32 %v3329, 1.0
    %v3335 = vadd.f32 %v3331, 1.0
    %v3336 = vrcp.pop %v3332
    %v3337 = vmul.f32 1.0, %v3336
    %v3338 = vrcp.pop %v3333
    %v3339 = vmul.f32 1.0, %v3338
    %v3340 = vrcp.pop %v3334
    %v3341 = vmul.f32 1.0, %v3340
    %v3342 = vrcp.pop %v3335
    %v3343 = vmul.f32 1.0, %v3342
    %v3344 = vxor.u32 %v3276, 2147483648
    %v3345 = vxor.u32 %v3277, 2147483648
    %v3346 = vxor.u32 %v3278, 2147483648
    %v3347 = vxor.u32 %v3279, 2147483648
    %v3348 = vmul.f32 %v3344, 1.442695
    %v3349 = vpow.pop %v3348
    %v3350 = vmul.f32 %v3345, 1.442695
    %v3351 = vpow.pop %v3350
    %v3352 = vmul.f32 %v3346, 1.442695
    %v3353 = vpow.pop %v3352
    %v3354 = vmul.f32 %v3347, 1.442695
    %v3355 = vpow.pop %v3354
    %v3356 = vadd.f32 %v3349, 1.0
    %v3357 = vadd.f32 %v3351, 1.0
    %v3358 = vadd.f32 %v3353, 1.0
    %v3359 = vadd.f32 %v3355, 1.0
    %v3360 = vrcp.pop %v3356
    %v3361 = vmul.f32 1.0, %v3360
    %v3362 = vrcp.pop %v3357
    %v3363 = vmul.f32 1.0, %v3362
    %v3364 = vrcp.pop %v3358
    %v3365 = vmul.f32 1.0, %v3364
    %v3366 = vrcp.pop %v3359
    %v3367 = vmul.f32 1.0, %v3366
    %v3368 = vtanh.pop %v3280
    %v3369 = vtanh.pop %v3281
    %v3370 = vtanh.pop %v3282
    %v3371 = vtanh.pop %v3283
    %v3372 = vxor.u32 %v3284, 2147483648
    %v3373 = vxor.u32 %v3285, 2147483648
    %v3374 = vxor.u32 %v3286, 2147483648
    %v3375 = vxor.u32 %v3287, 2147483648
    %v3376 = vmul.f32 %v3372, 1.442695
    %v3377 = vpow.pop %v3376
    %v3378 = vmul.f32 %v3373, 1.442695
    %v3379 = vpow.pop %v3378
    %v3380 = vmul.f32 %v3374, 1.442695
    %v3381 = vpow.pop %v3380
    %v3382 = vmul.f32 %v3375, 1.442695
    %v3383 = vpow.pop %v3382
    %v3384 = vadd.f32 %v3377, 1.0
    %v3385 = vadd.f32 %v3379, 1.0
    %v3386 = vadd.f32 %v3381, 1.0
    %v3387 = vadd.f32 %v3383, 1.0
    %v3388 = vrcp.pop %v3384
    %v3389 = vmul.f32 1.0, %v3388
    %v3390 = vrcp.pop %v3385
    %v3391 = vmul.f32 1.0, %v3390
    %v3392 = vrcp.pop %v3386
    %v3393 = vmul.f32 1.0, %v3392
    %v3394 = vrcp.pop %v3387
    %v3395 = vmul.f32 1.0, %v3394
    %v3396 = vmul.f32 %v3361, %v2977
    %v3397 = vmul.f32 %v3363, %v2978
    %v3398 = vmul.f32 %v3365, %v2979
    %v3399 = vmul.f32 %v3367, %v2980
    %v3400 = vmul.f32 %v3337, %v3368
    %v3401 = vmul.f32 %v3339, %v3369
    %v3402 = vmul.f32 %v3341, %v3370
    %v3403 = vmul.f32 %v3343, %v3371
    %v3404 = vadd.f32 %v3396, %v3400
    %v3405 = vadd.f32 %v3397, %v3401
    %v3406 = vadd.f32 %v3398, %v3402
    %v3407 = vadd.f32 %v3399, %v3403
    %v3408 = vtanh.pop %v3404
    %v3409 = vtanh.pop %v3405
    %v3410 = vtanh.pop %v3406
    %v3411 = vtanh.pop %v3407
    %v3412 = vmul.f32 %v3389, %v3408
    %v3413 = vmul.f32 %v3391, %v3409
    %v3414 = vmul.f32 %v3393, %v3410
    %v3415 = vmul.f32 %v3395, %v3411
    %v3416 = vxor.u32 %v3304, 2147483648
    %v3417 = vxor.u32 %v3305, 2147483648
    %v3418 = vxor.u32 %v3306, 2147483648
    %v3419 = vxor.u32 %v3307, 2147483648
    %v3420 = vmul.f32 %v3416, 1.442695
    %v3421 = vpow.pop %v3420
    %v3422 = vmul.f32 %v3417, 1.442695
    %v3423 = vpow.pop %v3422
    %v3424 = vmul.f32 %v3418, 1.442695
    %v3425 = vpow.pop %v3424
    %v3426 = vmul.f32 %v3419, 1.442695
    %v3427 = vpow.pop %v3426
    %v3428 = vadd.f32 %v3421, 1.0
    %v3429 = vadd.f32 %v3423, 1.0
    %v3430 = vadd.f32 %v3425, 1.0
    %v3431 = vadd.f32 %v3427, 1.0
    %v3432 = vrcp.pop %v3428
    %v3433 = vmul.f32 1.0, %v3432
    %v3434 = vrcp.pop %v3429
    %v3435 = vmul.f32 1.0, %v3434
    %v3436 = vrcp.pop %v3430
    %v3437 = vmul.f32 1.0, %v3436
    %v3438 = vrcp.pop %v3431
    %v3439 = vmul.f32 1.0, %v3438
    %v3440 = vxor.u32 %v3308, 2147483648
    %v3441 = vxor.u32 %v3309, 2147483648
    %v3442 = vxor.u32 %v3310, 2147483648
    %v3443 = vxor.u32 %v3311, 2147483648
    %v3444 = vmul.f32 %v3440, 1.442695
    %v3445 = vpow.pop %v3444
    %v3446 = vmul.f32 %v3441, 1.442695
    %v3447 = vpow.pop %v3446
    %v3448 = vmul.f32 %v3442, 1.442695
    %v3449 = vpow.pop %v3448
    %v3450 = vmul.f32 %v3443, 1.442695
    %v3451 = vpow.pop %v3450
    %v3452 = vadd.f32 %v3445, 1.0
    %v3453 = vadd.f32 %v3447, 1.0
    %v3454 = vadd.f32 %v3449, 1.0
    %v3455 = vadd.f32 %v3451, 1.0
    %v3456 = vrcp.pop %v3452
    %v3457 = vmul.f32 1.0, %v3456
    %v3458 = vrcp.pop %v3453
    %v3459 = vmul.f32 1.0, %v3458
    %v3460 = vrcp.pop %v3454
    %v3461 = vmul.f32 1.0, %v3460
    %v3462 = vrcp.pop %v3455
    %v3463 = vmul.f32 1.0, %v3462
    %v3464 = vtanh.pop %v3312
    %v3465 = vtanh.pop %v3313
    %v3466 = vtanh.pop %v3314
    %v3467 = vtanh.pop %v3315
    %v3468 = vxor.u32 %v3316, 2147483648
    %v3469 = vxor.u32 %v3317, 2147483648
    %v3470 = vxor.u32 %v3318, 2147483648
    %v3471 = vxor.u32 %v3319, 2147483648
    %v3472 = vmul.f32 %v3468, 1.442695
    %v3473 = vpow.pop %v3472
    %v3474 = vmul.f32 %v3469, 1.442695
    %v3475 = vpow.pop %v3474
    %v3476 = vmul.f32 %v3470, 1.442695
    %v3477 = vpow.pop %v3476
    %v3478 = vmul.f32 %v3471, 1.442695
    %v3479 = vpow.pop %v3478
    %v3480 = vadd.f32 %v3473, 1.0
    %v3481 = vadd.f32 %v3475, 1.0
    %v3482 = vadd.f32 %v3477, 1.0
    %v3483 = vadd.f32 %v3479, 1.0
    %v3484 = vrcp.pop %v3480
    %v3485 = vmul.f32 1.0, %v3484
    %v3486 = vrcp.pop %v3481
    %v3487 = vmul.f32 1.0, %v3486
    %v3488 = vrcp.pop %v3482
    %v3489 = vmul.f32 1.0, %v3488
    %v3490 = vrcp.pop %v3483
    %v3491 = vmul.f32 1.0, %v3490
    %v3492 = vmul.f32 %v3457, %v3073
    %v3493 = vmul.f32 %v3459, %v3074
    %v3494 = vmul.f32 %v3461, %v3075
    %v3495 = vmul.f32 %v3463, %v3076
    %v3496 = vmul.f32 %v3433, %v3464
    %v3497 = vmul.f32 %v3435, %v3465
    %v3498 = vmul.f32 %v3437, %v3466
    %v3499 = vmul.f32 %v3439, %v3467
    %v3500 = vadd.f32 %v3492, %v3496
    %v3501 = vadd.f32 %v3493, %v3497
    %v3502 = vadd.f32 %v3494, %v3498
    %v3503 = vadd.f32 %v3495, %v3499
    %v3504 = vtanh.pop %v3500
    %v3505 = vtanh.pop %v3501
    %v3506 = vtanh.pop %v3502
    %v3507 = vtanh.pop %v3503
    %v3508 = vmul.f32 %v3485, %v3504
    %v3509 = vmul.f32 %v3487, %v3505
    %v3510 = vmul.f32 %v3489, %v3506
    %v3511 = vmul.f32 %v3491, %v3507
    %v3512 = vpack.c.bf16 %v3413, %v3412
    %v3513 = vpack.c.bf16 %v3415, %v3414
    %3514 = vst [vmem:[%s3092] sm:$0xff] %v3512
    %3515 = vst [vmem:[%s3092 + $0x40] sm:$0xff] %v3513
    %v3516 = vpack.c.bf16 %v3509, %v3508
    %v3517 = vpack.c.bf16 %v3511, %v3510
    %3518 = vst [vmem:[%s3087 + $0x80] sm:$0xff] %v3516
    %3519 = vst [vmem:[%s3087 + $0xc0] sm:$0xff] %v3517
    %3520 = vmatprep.subr.bf16.mxu0 0
    %3521 = vmatpush1.bf16.msra.mxu0 %v3512
    %3522 = vmatprep.subr.bf16.mxu0 0
    %3523 = vmatpush1.bf16.msra.mxu0 %v3513
    %3524 = vmatprep.subr.bf16.mxu0 0
    %3525 = vmatpush1.bf16.msra.mxu0 %v3516
    %3526 = vmatprep.subr.bf16.mxu0 0
    %3527 = vmatpush1.bf16.msra.mxu0 %v3517
    %3528 = vmatprep.subr.bf16.mxu0 0
    %3529 = vmatpush1.bf16.msra.mxu0 0
    %3530 = vmatprep.subr.bf16.mxu0 0
    %3531 = vmatpush1.bf16.msra.mxu0 0
    %3532 = vmatprep.subr.bf16.mxu0 0
    %3533 = vmatpush1.bf16.msra.mxu0 0
    %3534 = vmatprep.subr.bf16.mxu0 0
    %3535 = vmatpush1.bf16.msra.mxu0 0
    %3536 = vmatprep.subr.bf16.mxu0 0
    %3537 = vmatpush1.bf16.msra.mxu0 0
    %3538 = vmatprep.subr.bf16.mxu0 0
    %3539 = vmatpush1.bf16.msra.mxu0 0
    %3540 = vmatprep.subr.bf16.mxu0 0
    %3541 = vmatpush1.bf16.msra.mxu0 0
    %3542 = vmatprep.subr.bf16.mxu0 0
    %3543 = vmatpush1.bf16.msra.mxu0 0
    %3544 = vmatprep.subr.bf16.mxu0 0
    %3545 = vmatpush1.bf16.msra.mxu0 0
    %3546 = vmatprep.subr.bf16.mxu0 0
    %3547 = vmatpush1.bf16.msra.mxu0 0
    %3548 = vmatprep.subr.bf16.mxu0 0
    %3549 = vmatpush1.bf16.msra.mxu0 0
    %3550 = vmatprep.subr.bf16.mxu0 0
    %3551 = vmatpush1.bf16.msra.mxu0 0
    %3552 = vmatprep.mubr.bf16.mxu0 0
    %3553 = vmatmul.mubr.bf16.gmra.mrb[0].mxu0 %v1341
    %v3554 = vpop.f32.mrb[0].mxu0
    %v3555 = vadd.f32 0.0, %v3554
    %v3556 = vpop.f32.mrb[0].mxu0
    %v3557 = vpop.f32.mrb[0].mxu0
    %v3558 = vadd.f32 0.0, %v3557
    %v3559 = vpop.f32.mrb[0].mxu0
    %3560 = vmatprep.mubr.bf16.mxu0 0
    %3561 = vmatmul.mubr.bf16.gmra.mrb[0].mxu0 %v1344
    %v3562 = vpop.f32.mrb[0].mxu0
    %v3563 = vadd.f32 0.0, %v3562
    %v3564 = vpop.f32.mrb[0].mxu0
    %v3565 = vpop.f32.mrb[0].mxu0
    %v3566 = vadd.f32 0.0, %v3565
    %v3567 = vpop.f32.mrb[0].mxu0
    %3568 = vmatprep.mubr.bf16.mxu0 0
    %3569 = vmatmul.mubr.bf16.gmra.mrb[0].mxu0 %v1347
    %v3570 = vpop.f32.mrb[0].mxu0
    %v3571 = vadd.f32 0.0, %v3570
    %v3572 = vpop.f32.mrb[0].mxu0
    %v3573 = vpop.f32.mrb[0].mxu0
    %v3574 = vadd.f32 0.0, %v3573
    %v3575 = vpop.f32.mrb[0].mxu0
    %3576 = vmatprep.mubr.bf16.mxu0 0
    %3577 = vmatmul.mubr.bf16.gmra.mrb[0].mxu0 %v1350
    %v3578 = vpop.f32.mrb[0].mxu0
    %v3579 = vadd.f32 0.0, %v3578
    %v3580 = vpop.f32.mrb[0].mxu0
    %v3581 = vpop.f32.mrb[0].mxu0
    %v3582 = vadd.f32 0.0, %v3581
    %v3583 = vpop.f32.mrb[0].mxu0
    %3584 = vmatprep.mubr.bf16.mxu0 0
    %3585 = vmatmul.mubr.bf16.gmra.mrb[0].mxu0 %v1353
    %v3586 = vpop.f32.mrb[0].mxu0
    %v3587 = vadd.f32 0.0, %v3586
    %v3588 = vpop.f32.mrb[0].mxu0
    %v3589 = vpop.f32.mrb[0].mxu0
    %v3590 = vadd.f32 0.0, %v3589
    %v3591 = vpop.f32.mrb[0].mxu0
    %3592 = vmatprep.mubr.bf16.mxu0 0
    %3593 = vmatmul.mubr.bf16.gmra.mrb[0].mxu0 %v1356
    %v3594 = vpop.f32.mrb[0].mxu0
    %v3595 = vadd.f32 0.0, %v3594
    %v3596 = vpop.f32.mrb[0].mxu0
    %v3597 = vpop.f32.mrb[0].mxu0
    %v3598 = vadd.f32 0.0, %v3597
    %v3599 = vpop.f32.mrb[0].mxu0
    %3600 = vmatprep.mubr.bf16.mxu0 0
    %3601 = vmatmul.mubr.bf16.gmra.mrb[0].mxu0 %v1359
    %v3602 = vpop.f32.mrb[0].mxu0
    %v3603 = vadd.f32 0.0, %v3602
    %v3604 = vpop.f32.mrb[0].mxu0
    %v3605 = vpop.f32.mrb[0].mxu0
    %v3606 = vadd.f32 0.0, %v3605
    %v3607 = vpop.f32.mrb[0].mxu0
    %3608 = vmatprep.mubr.bf16.mxu0 0
    %3609 = vmatmul.mubr.bf16.gmra.mrb[0].mxu0 %v1362
    %v3610 = vpop.f32.mrb[0].mxu0
    %v3611 = vadd.f32 0.0, %v3610
    %v3612 = vpop.f32.mrb[0].mxu0
    %v3613 = vpop.f32.mrb[0].mxu0
    %v3614 = vadd.f32 0.0, %v3613
    %v3615 = vpop.f32.mrb[0].mxu0
    %3616 = vmatprep.mubr.bf16.mxu0 0
    %3617 = vmatmul.mubr.bf16.gmra.mrb[0].mxu0 %v1365
    %v3618 = vpop.f32.mrb[0].mxu0
    %v3619 = vadd.f32 0.0, %v3618
    %v3620 = vpop.f32.mrb[0].mxu0
    %v3621 = vpop.f32.mrb[0].mxu0
    %v3622 = vadd.f32 0.0, %v3621
    %v3623 = vpop.f32.mrb[0].mxu0
    %3624 = vmatprep.mubr.bf16.mxu0 0
    %3625 = vmatmul.mubr.bf16.gmra.mrb[0].mxu0 %v1368
    %v3626 = vpop.f32.mrb[0].mxu0
    %v3627 = vadd.f32 0.0, %v3626
    %v3628 = vpop.f32.mrb[0].mxu0
    %v3629 = vpop.f32.mrb[0].mxu0
    %v3630 = vadd.f32 0.0, %v3629
    %v3631 = vpop.f32.mrb[0].mxu0
    %3632 = vmatprep.mubr.bf16.mxu0 0
    %3633 = vmatmul.mubr.bf16.gmra.mrb[0].mxu0 %v1371
    %v3634 = vpop.f32.mrb[0].mxu0
    %v3635 = vadd.f32 0.0, %v3634
    %v3636 = vpop.f32.mrb[0].mxu0
    %v3637 = vpop.f32.mrb[0].mxu0
    %v3638 = vadd.f32 0.0, %v3637
    %v3639 = vpop.f32.mrb[0].mxu0
    %3640 = vmatprep.mubr.bf16.mxu0 0
    %3641 = vmatmul.mubr.bf16.gmra.mrb[0].mxu0 %v1374
    %v3642 = vpop.f32.mrb[0].mxu0
    %v3643 = vadd.f32 0.0, %v3642
    %v3644 = vpop.f32.mrb[0].mxu0
    %v3645 = vpop.f32.mrb[0].mxu0
    %v3646 = vadd.f32 0.0, %v3645
    %v3647 = vpop.f32.mrb[0].mxu0
    %3648 = vmatprep.mubr.bf16.mxu0 0
    %3649 = vmatmul.mubr.bf16.gmra.mrb[0].mxu0 %v1377
    %v3650 = vpop.f32.mrb[0].mxu0
    %v3651 = vadd.f32 0.0, %v3650
    %v3652 = vpop.f32.mrb[0].mxu0
    %v3653 = vpop.f32.mrb[0].mxu0
    %v3654 = vadd.f32 0.0, %v3653
    %v3655 = vpop.f32.mrb[0].mxu0
    %3656 = vmatprep.mubr.bf16.mxu0 0
    %3657 = vmatmul.mubr.bf16.gmra.mrb[0].mxu0 %v1380
    %v3658 = vpop.f32.mrb[0].mxu0
    %v3659 = vadd.f32 0.0, %v3658
    %v3660 = vpop.f32.mrb[0].mxu0
    %v3661 = vpop.f32.mrb[0].mxu0
    %v3662 = vadd.f32 0.0, %v3661
    %v3663 = vpop.f32.mrb[0].mxu0
    %3664 = vmatprep.mubr.bf16.mxu0 0
    %3665 = vmatmul.mubr.bf16.gmra.mrb[0].mxu0 %v1383
    %v3666 = vpop.f32.mrb[0].mxu0
    %v3667 = vadd.f32 0.0, %v3666
    %v3668 = vpop.f32.mrb[0].mxu0
    %v3669 = vpop.f32.mrb[0].mxu0
    %v3670 = vadd.f32 0.0, %v3669
    %v3671 = vpop.f32.mrb[0].mxu0
    %3672 = vmatprep.mubr.bf16.mxu0 0
    %3673 = vmatmul.mubr.bf16.gmra.mrb[0].mxu0 %v1386
    %v3674 = vpop.f32.mrb[0].mxu0
    %v3675 = vadd.f32 0.0, %v3674
    %v3676 = vpop.f32.mrb[0].mxu0
    %v3677 = vpop.f32.mrb[0].mxu0
    %v3678 = vadd.f32 0.0, %v3677
    %v3679 = vpop.f32.mrb[0].mxu0
    %3680 = vdwg.mxu0
    %v3681 = vld [vmem:[%s990] sm:$0xff]
    %v3682 = vld [vmem:[%s990 + $0x40] sm:$0xff]
    %v3683 = vld [vmem:[%s990 + $0x80] sm:$0xff]
    %v3684 = vld [vmem:[%s990 + $0xc0] sm:$0xff]
    %v3685 = vld [vmem:[%s990 + $0x100] sm:$0xff]
    %v3686 = vld [vmem:[%s990 + $0x140] sm:$0xff]
    %v3687 = vld [vmem:[%s990 + $0x180] sm:$0xff]
    %v3688 = vld [vmem:[%s990 + $0x1c0] sm:$0xff]
    %v3689 = vld [vmem:[%s990 + $0x200] sm:$0xff]
    %v3690 = vld [vmem:[%s990 + $0x240] sm:$0xff]
    %v3691 = vld [vmem:[%s990 + $0x280] sm:$0xff]
    %v3692 = vld [vmem:[%s990 + $0x2c0] sm:$0xff]
    %v3693 = vld [vmem:[%s990 + $0x300] sm:$0xff]
    %v3694 = vld [vmem:[%s990 + $0x340] sm:$0xff]
    %v3695 = vld [vmem:[%s990 + $0x380] sm:$0xff]
    %v3696 = vld [vmem:[%s990 + $0x3c0] sm:$0xff]
    %v3697 = vadd.f32 %v3555, %v3681
    %v3698 = vadd.f32 %v3558, %v3682
    %v3699 = vadd.f32 %v3563, %v3683
    %v3700 = vadd.f32 %v3566, %v3684
    %v3701 = vadd.f32 %v3571, %v3685
    %v3702 = vadd.f32 %v3574, %v3686
    %v3703 = vadd.f32 %v3579, %v3687
    %v3704 = vadd.f32 %v3582, %v3688
    %v3705 = vadd.f32 %v3587, %v3689
    %v3706 = vadd.f32 %v3590, %v3690
    %v3707 = vadd.f32 %v3595, %v3691
    %v3708 = vadd.f32 %v3598, %v3692
    %v3709 = vadd.f32 %v3603, %v3693
    %v3710 = vadd.f32 %v3606, %v3694
    %v3711 = vadd.f32 %v3611, %v3695
    %v3712 = vadd.f32 %v3614, %v3696
    %v3713 = vld [vmem:[%s684 + $0x400] sm:$0xff]
    %v3714 = vld [vmem:[%s684 + $0x440] sm:$0xff]
    %v3715 = vld [vmem:[%s684 + $0x480] sm:$0xff]
    %v3716 = vld [vmem:[%s684 + $0x4c0] sm:$0xff]
    %v3717 = vld [vmem:[%s684 + $0x500] sm:$0xff]
    %v3718 = vld [vmem:[%s684 + $0x540] sm:$0xff]
    %v3719 = vld [vmem:[%s684 + $0x580] sm:$0xff]
    %v3720 = vld [vmem:[%s684 + $0x5c0] sm:$0xff]
    %v3721 = vld [vmem:[%s684 + $0x600] sm:$0xff]
    %v3722 = vld [vmem:[%s684 + $0x640] sm:$0xff]
    %v3723 = vld [vmem:[%s684 + $0x680] sm:$0xff]
    %v3724 = vld [vmem:[%s684 + $0x6c0] sm:$0xff]
    %v3725 = vld [vmem:[%s684 + $0x700] sm:$0xff]
    %v3726 = vld [vmem:[%s684 + $0x740] sm:$0xff]
    %v3727 = vld [vmem:[%s684 + $0x780] sm:$0xff]
    %v3728 = vld [vmem:[%s684 + $0x7c0] sm:$0xff]
    %v3729 = vadd.f32 %v3619, %v3713
    %v3730 = vadd.f32 %v3622, %v3714
    %v3731 = vadd.f32 %v3627, %v3715
    %v3732 = vadd.f32 %v3630, %v3716
    %v3733 = vadd.f32 %v3635, %v3717
    %v3734 = vadd.f32 %v3638, %v3718
    %v3735 = vadd.f32 %v3643, %v3719
    %v3736 = vadd.f32 %v3646, %v3720
    %v3737 = vadd.f32 %v3651, %v3721
    %v3738 = vadd.f32 %v3654, %v3722
    %v3739 = vadd.f32 %v3659, %v3723
    %v3740 = vadd.f32 %v3662, %v3724
    %v3741 = vadd.f32 %v3667, %v3725
    %v3742 = vadd.f32 %v3670, %v3726
    %v3743 = vadd.f32 %v3675, %v3727
    %v3744 = vadd.f32 %v3678, %v3728
    %v3745 = vxor.u32 %v3697, 2147483648
    %v3746 = vxor.u32 %v3698, 2147483648
    %v3747 = vxor.u32 %v3699, 2147483648
    %v3748 = vxor.u32 %v3700, 2147483648
    %v3749 = vmul.f32 %v3745, 1.442695
    %v3750 = vpow.pop %v3749
    %v3751 = vmul.f32 %v3746, 1.442695
    %v3752 = vpow.pop %v3751
    %v3753 = vmul.f32 %v3747, 1.442695
    %v3754 = vpow.pop %v3753
    %v3755 = vmul.f32 %v3748, 1.442695
    %v3756 = vpow.pop %v3755
    %v3757 = vadd.f32 %v3750, 1.0
    %v3758 = vadd.f32 %v3752, 1.0
    %v3759 = vadd.f32 %v3754, 1.0
    %v3760 = vadd.f32 %v3756, 1.0
    %v3761 = vrcp.pop %v3757
    %v3762 = vmul.f32 1.0, %v3761
    %v3763 = vrcp.pop %v3758
    %v3764 = vmul.f32 1.0, %v3763
    %v3765 = vrcp.pop %v3759
    %v3766 = vmul.f32 1.0, %v3765
    %v3767 = vrcp.pop %v3760
    %v3768 = vmul.f32 1.0, %v3767
    %v3769 = vxor.u32 %v3701, 2147483648
    %v3770 = vxor.u32 %v3702, 2147483648
    %v3771 = vxor.u32 %v3703, 2147483648
    %v3772 = vxor.u32 %v3704, 2147483648
    %v3773 = vmul.f32 %v3769, 1.442695
    %v3774 = vpow.pop %v3773
    %v3775 = vmul.f32 %v3770, 1.442695
    %v3776 = vpow.pop %v3775
    %v3777 = vmul.f32 %v3771, 1.442695
    %v3778 = vpow.pop %v3777
    %v3779 = vmul.f32 %v3772, 1.442695
    %v3780 = vpow.pop %v3779
    %v3781 = vadd.f32 %v3774, 1.0
    %v3782 = vadd.f32 %v3776, 1.0
    %v3783 = vadd.f32 %v3778, 1.0
    %v3784 = vadd.f32 %v3780, 1.0
    %v3785 = vrcp.pop %v3781
    %v3786 = vmul.f32 1.0, %v3785
    %v3787 = vrcp.pop %v3782
    %v3788 = vmul.f32 1.0, %v3787
    %v3789 = vrcp.pop %v3783
    %v3790 = vmul.f32 1.0, %v3789
    %v3791 = vrcp.pop %v3784
    %v3792 = vmul.f32 1.0, %v3791
    %v3793 = vtanh.pop %v3705
    %v3794 = vtanh.pop %v3706
    %v3795 = vtanh.pop %v3707
    %v3796 = vtanh.pop %v3708
    %v3797 = vxor.u32 %v3709, 2147483648
    %v3798 = vxor.u32 %v3710, 2147483648
    %v3799 = vxor.u32 %v3711, 2147483648
    %v3800 = vxor.u32 %v3712, 2147483648
    %v3801 = vmul.f32 %v3797, 1.442695
    %v3802 = vpow.pop %v3801
    %v3803 = vmul.f32 %v3798, 1.442695
    %v3804 = vpow.pop %v3803
    %v3805 = vmul.f32 %v3799, 1.442695
    %v3806 = vpow.pop %v3805
    %v3807 = vmul.f32 %v3800, 1.442695
    %v3808 = vpow.pop %v3807
    %v3809 = vadd.f32 %v3802, 1.0
    %v3810 = vadd.f32 %v3804, 1.0
    %v3811 = vadd.f32 %v3806, 1.0
    %v3812 = vadd.f32 %v3808, 1.0
    %v3813 = vrcp.pop %v3809
    %v3814 = vmul.f32 1.0, %v3813
    %v3815 = vrcp.pop %v3810
    %v3816 = vmul.f32 1.0, %v3815
    %v3817 = vrcp.pop %v3811
    %v3818 = vmul.f32 1.0, %v3817
    %v3819 = vrcp.pop %v3812
    %v3820 = vmul.f32 1.0, %v3819
    %v3821 = vmul.f32 %v3786, %v3404
    %v3822 = vmul.f32 %v3788, %v3405
    %v3823 = vmul.f32 %v3790, %v3406
    %v3824 = vmul.f32 %v3792, %v3407
    %v3825 = vmul.f32 %v3762, %v3793
    %v3826 = vmul.f32 %v3764, %v3794
    %v3827 = vmul.f32 %v3766, %v3795
    %v3828 = vmul.f32 %v3768, %v3796
    %v3829 = vadd.f32 %v3821, %v3825
    %v3830 = vadd.f32 %v3822, %v3826
    %v3831 = vadd.f32 %v3823, %v3827
    %v3832 = vadd.f32 %v3824, %v3828
    %v3833 = vtanh.pop %v3829
    %v3834 = vtanh.pop %v3830
    %v3835 = vtanh.pop %v3831
    %v3836 = vtanh.pop %v3832
    %v3837 = vmul.f32 %v3814, %v3833
    %v3838 = vmul.f32 %v3816, %v3834
    %v3839 = vmul.f32 %v3818, %v3835
    %v3840 = vmul.f32 %v3820, %v3836
    %v3841 = vxor.u32 %v3729, 2147483648
    %v3842 = vxor.u32 %v3730, 2147483648
    %v3843 = vxor.u32 %v3731, 2147483648
    %v3844 = vxor.u32 %v3732, 2147483648
    %v3845 = vmul.f32 %v3841, 1.442695
    %v3846 = vpow.pop %v3845
    %v3847 = vmul.f32 %v3842, 1.442695
    %v3848 = vpow.pop %v3847
    %v3849 = vmul.f32 %v3843, 1.442695
    %v3850 = vpow.pop %v3849
    %v3851 = vmul.f32 %v3844, 1.442695
    %v3852 = vpow.pop %v3851
    %v3853 = vadd.f32 %v3846, 1.0
    %v3854 = vadd.f32 %v3848, 1.0
    %v3855 = vadd.f32 %v3850, 1.0
    %v3856 = vadd.f32 %v3852, 1.0
    %v3857 = vrcp.pop %v3853
    %v3858 = vmul.f32 1.0, %v3857
    %v3859 = vrcp.pop %v3854
    %v3860 = vmul.f32 1.0, %v3859
    %v3861 = vrcp.pop %v3855
    %v3862 = vmul.f32 1.0, %v3861
    %v3863 = vrcp.pop %v3856
    %v3864 = vmul.f32 1.0, %v3863
    %v3865 = vxor.u32 %v3733, 2147483648
    %v3866 = vxor.u32 %v3734, 2147483648
    %v3867 = vxor.u32 %v3735, 2147483648
    %v3868 = vxor.u32 %v3736, 2147483648
    %v3869 = vmul.f32 %v3865, 1.442695
    %v3870 = vpow.pop %v3869
    %v3871 = vmul.f32 %v3866, 1.442695
    %v3872 = vpow.pop %v3871
    %v3873 = vmul.f32 %v3867, 1.442695
    %v3874 = vpow.pop %v3873
    %v3875 = vmul.f32 %v3868, 1.442695
    %v3876 = vpow.pop %v3875
    %v3877 = vadd.f32 %v3870, 1.0
    %v3878 = vadd.f32 %v3872, 1.0
    %v3879 = vadd.f32 %v3874, 1.0
    %v3880 = vadd.f32 %v3876, 1.0
    %v3881 = vrcp.pop %v3877
    %v3882 = vmul.f32 1.0, %v3881
    %v3883 = vrcp.pop %v3878
    %v3884 = vmul.f32 1.0, %v3883
    %v3885 = vrcp.pop %v3879
    %v3886 = vmul.f32 1.0, %v3885
    %v3887 = vrcp.pop %v3880
    %v3888 = vmul.f32 1.0, %v3887
    %v3889 = vtanh.pop %v3737
    %v3890 = vtanh.pop %v3738
    %v3891 = vtanh.pop %v3739
    %v3892 = vtanh.pop %v3740
    %v3893 = vxor.u32 %v3741, 2147483648
    %v3894 = vxor.u32 %v3742, 2147483648
    %v3895 = vxor.u32 %v3743, 2147483648
    %v3896 = vxor.u32 %v3744, 2147483648
    %v3897 = vmul.f32 %v3893, 1.442695
    %v3898 = vpow.pop %v3897
    %v3899 = vmul.f32 %v3894, 1.442695
    %v3900 = vpow.pop %v3899
    %v3901 = vmul.f32 %v3895, 1.442695
    %v3902 = vpow.pop %v3901
    %v3903 = vmul.f32 %v3896, 1.442695
    %v3904 = vpow.pop %v3903
    %v3905 = vadd.f32 %v3898, 1.0
    %v3906 = vadd.f32 %v3900, 1.0
    %v3907 = vadd.f32 %v3902, 1.0
    %v3908 = vadd.f32 %v3904, 1.0
    %v3909 = vrcp.pop %v3905
    %v3910 = vmul.f32 1.0, %v3909
    %v3911 = vrcp.pop %v3906
    %v3912 = vmul.f32 1.0, %v3911
    %v3913 = vrcp.pop %v3907
    %v3914 = vmul.f32 1.0, %v3913
    %v3915 = vrcp.pop %v3908
    %v3916 = vmul.f32 1.0, %v3915
    %v3917 = vmul.f32 %v3882, %v3500
    %v3918 = vmul.f32 %v3884, %v3501
    %v3919 = vmul.f32 %v3886, %v3502
    %v3920 = vmul.f32 %v3888, %v3503
    %v3921 = vmul.f32 %v3858, %v3889
    %v3922 = vmul.f32 %v3860, %v3890
    %v3923 = vmul.f32 %v3862, %v3891
    %v3924 = vmul.f32 %v3864, %v3892
    %v3925 = vadd.f32 %v3917, %v3921
    %v3926 = vadd.f32 %v3918, %v3922
    %v3927 = vadd.f32 %v3919, %v3923
    %v3928 = vadd.f32 %v3920, %v3924
    %v3929 = vtanh.pop %v3925
    %v3930 = vtanh.pop %v3926
    %v3931 = vtanh.pop %v3927
    %v3932 = vtanh.pop %v3928
    %v3933 = vmul.f32 %v3910, %v3929
    %v3934 = vmul.f32 %v3912, %v3930
    %v3935 = vmul.f32 %v3914, %v3931
    %v3936 = vmul.f32 %v3916, %v3932
    %v3937 = vpack.c.bf16 %v3838, %v3837
    %v3938 = vpack.c.bf16 %v3840, %v3839
    %3939 = vst [vmem:[%s2665] sm:$0xff] %v3937
    %3940 = vst [vmem:[%s2665 + $0x40] sm:$0xff] %v3938
    %v3941 = vpack.c.bf16 %v3934, %v3933
    %v3942 = vpack.c.bf16 %v3936, %v3935
    %3943 = vst [vmem:[%s2660 + $0x80] sm:$0xff] %v3941
    %3944 = vst [vmem:[%s2660 + $0xc0] sm:$0xff] %v3942
    %3945 = vmatprep.subr.bf16.mxu0 0
    %3946 = vmatpush1.bf16.msra.mxu0 %v3937
    %3947 = vmatprep.subr.bf16.mxu0 0
    %3948 = vmatpush1.bf16.msra.mxu0 %v3938
    %3949 = vmatprep.subr.bf16.mxu0 0
    %3950 = vmatpush1.bf16.msra.mxu0 %v3941
    %3951 = vmatprep.subr.bf16.mxu0 0
    %3952 = vmatpush1.bf16.msra.mxu0 %v3942
    %3953 = vmatprep.subr.bf16.mxu0 0
    %3954 = vmatpush1.bf16.msra.mxu0 0
    %3955 = vmatprep.subr.bf16.mxu0 0
    %3956 = vmatpush1.bf16.msra.mxu0 0
    %3957 = vmatprep.subr.bf16.mxu0 0
    %3958 = vmatpush1.bf16.msra.mxu0 0
    %3959 = vmatprep.subr.bf16.mxu0 0
    %3960 = vmatpush1.bf16.msra.mxu0 0
    %3961 = vmatprep.subr.bf16.mxu0 0
    %3962 = vmatpush1.bf16.msra.mxu0 0
    %3963 = vmatprep.subr.bf16.mxu0 0
    %3964 = vmatpush1.bf16.msra.mxu0 0
    %3965 = vmatprep.subr.bf16.mxu0 0
    %3966 = vmatpush1.bf16.msra.mxu0 0
    %3967 = vmatprep.subr.bf16.mxu0 0
    %3968 = vmatpush1.bf16.msra.mxu0 0
    %3969 = vmatprep.subr.bf16.mxu0 0
    %3970 = vmatpush1.bf16.msra.mxu0 0
    %3971 = vmatprep.subr.bf16.mxu0 0
    %3972 = vmatpush1.bf16.msra.mxu0 0
    %3973 = vmatprep.subr.bf16.mxu0 0
    %3974 = vmatpush1.bf16.msra.mxu0 0
    %3975 = vmatprep.subr.bf16.mxu0 0
    %3976 = vmatpush1.bf16.msra.mxu0 0
    %3977 = vmatprep.mubr.bf16.mxu0 0
    %3978 = vmatmul.mubr.bf16.gmra.mrb[0].mxu0 %v1341
    %v3979 = vpop.f32.mrb[0].mxu0
    %v3980 = vadd.f32 0.0, %v3979
    %v3981 = vpop.f32.mrb[0].mxu0
    %v3982 = vpop.f32.mrb[0].mxu0
    %v3983 = vadd.f32 0.0, %v3982
    %v3984 = vpop.f32.mrb[0].mxu0
    %3985 = vmatprep.mubr.bf16.mxu0 0
    %3986 = vmatmul.mubr.bf16.gmra.mrb[0].mxu0 %v1344
    %v3987 = vpop.f32.mrb[0].mxu0
    %v3988 = vadd.f32 0.0, %v3987
    %v3989 = vpop.f32.mrb[0].mxu0
    %v3990 = vpop.f32.mrb[0].mxu0
    %v3991 = vadd.f32 0.0, %v3990
    %v3992 = vpop.f32.mrb[0].mxu0
    %3993 = vmatprep.mubr.bf16.mxu0 0
    %3994 = vmatmul.mubr.bf16.gmra.mrb[0].mxu0 %v1347
    %v3995 = vpop.f32.mrb[0].mxu0
    %v3996 = vadd.f32 0.0, %v3995
    %v3997 = vpop.f32.mrb[0].mxu0
    %v3998 = vpop.f32.mrb[0].mxu0
    %v3999 = vadd.f32 0.0, %v3998
    %v4000 = vpop.f32.mrb[0].mxu0
    %4001 = vmatprep.mubr.bf16.mxu0 0
    %4002 = vmatmul.mubr.bf16.gmra.mrb[0].mxu0 %v1350
    %v4003 = vpop.f32.mrb[0].mxu0
    %v4004 = vadd.f32 0.0, %v4003
    %v4005 = vpop.f32.mrb[0].mxu0
    %v4006 = vpop.f32.mrb[0].mxu0
    %v4007 = vadd.f32 0.0, %v4006
    %v4008 = vpop.f32.mrb[0].mxu0
    %4009 = vmatprep.mubr.bf16.mxu0 0
    %4010 = vmatmul.mubr.bf16.gmra.mrb[0].mxu0 %v1353
    %v4011 = vpop.f32.mrb[0].mxu0
    %v4012 = vadd.f32 0.0, %v4011
    %v4013 = vpop.f32.mrb[0].mxu0
    %v4014 = vpop.f32.mrb[0].mxu0
    %v4015 = vadd.f32 0.0, %v4014
    %v4016 = vpop.f32.mrb[0].mxu0
    %4017 = vmatprep.mubr.bf16.mxu0 0
    %4018 = vmatmul.mubr.bf16.gmra.mrb[0].mxu0 %v1356
    %v4019 = vpop.f32.mrb[0].mxu0
    %v4020 = vadd.f32 0.0, %v4019
    %v4021 = vpop.f32.mrb[0].mxu0
    %v4022 = vpop.f32.mrb[0].mxu0
    %v4023 = vadd.f32 0.0, %v4022
    %v4024 = vpop.f32.mrb[0].mxu0
    %4025 = vmatprep.mubr.bf16.mxu0 0
    %4026 = vmatmul.mubr.bf16.gmra.mrb[0].mxu0 %v1359
    %v4027 = vpop.f32.mrb[0].mxu0
    %v4028 = vadd.f32 0.0, %v4027
    %v4029 = vpop.f32.mrb[0].mxu0
    %v4030 = vpop.f32.mrb[0].mxu0
    %v4031 = vadd.f32 0.0, %v4030
    %v4032 = vpop.f32.mrb[0].mxu0
    %4033 = vmatprep.mubr.bf16.mxu0 0
    %4034 = vmatmul.mubr.bf16.gmra.mrb[0].mxu0 %v1362
    %v4035 = vpop.f32.mrb[0].mxu0
    %v4036 = vadd.f32 0.0, %v4035
    %v4037 = vpop.f32.mrb[0].mxu0
    %v4038 = vpop.f32.mrb[0].mxu0
    %v4039 = vadd.f32 0.0, %v4038
    %v4040 = vpop.f32.mrb[0].mxu0
    %4041 = vmatprep.mubr.bf16.mxu0 0
    %4042 = vmatmul.mubr.bf16.gmra.mrb[0].mxu0 %v1365
    %v4043 = vpop.f32.mrb[0].mxu0
    %v4044 = vadd.f32 0.0, %v4043
    %v4045 = vpop.f32.mrb[0].mxu0
    %v4046 = vpop.f32.mrb[0].mxu0
    %v4047 = vadd.f32 0.0, %v4046
    %v4048 = vpop.f32.mrb[0].mxu0
    %4049 = vmatprep.mubr.bf16.mxu0 0
    %4050 = vmatmul.mubr.bf16.gmra.mrb[0].mxu0 %v1368
    %v4051 = vpop.f32.mrb[0].mxu0
    %v4052 = vadd.f32 0.0, %v4051
    %v4053 = vpop.f32.mrb[0].mxu0
    %v4054 = vpop.f32.mrb[0].mxu0
    %v4055 = vadd.f32 0.0, %v4054
    %v4056 = vpop.f32.mrb[0].mxu0
    %4057 = vmatprep.mubr.bf16.mxu0 0
    %4058 = vmatmul.mubr.bf16.gmra.mrb[0].mxu0 %v1371
    %v4059 = vpop.f32.mrb[0].mxu0
    %v4060 = vadd.f32 0.0, %v4059
    %v4061 = vpop.f32.mrb[0].mxu0
    %v4062 = vpop.f32.mrb[0].mxu0
    %v4063 = vadd.f32 0.0, %v4062
    %v4064 = vpop.f32.mrb[0].mxu0
    %4065 = vmatprep.mubr.bf16.mxu0 0
    %4066 = vmatmul.mubr.bf16.gmra.mrb[0].mxu0 %v1374
    %v4067 = vpop.f32.mrb[0].mxu0
    %v4068 = vadd.f32 0.0, %v4067
    %v4069 = vpop.f32.mrb[0].mxu0
    %v4070 = vpop.f32.mrb[0].mxu0
    %v4071 = vadd.f32 0.0, %v4070
    %v4072 = vpop.f32.mrb[0].mxu0
    %4073 = vmatprep.mubr.bf16.mxu0 0
    %4074 = vmatmul.mubr.bf16.gmra.mrb[0].mxu0 %v1377
    %v4075 = vpop.f32.mrb[0].mxu0
    %v4076 = vadd.f32 0.0, %v4075
    %v4077 = vpop.f32.mrb[0].mxu0
    %v4078 = vpop.f32.mrb[0].mxu0
    %v4079 = vadd.f32 0.0, %v4078
    %v4080 = vpop.f32.mrb[0].mxu0
    %4081 = vmatprep.mubr.bf16.mxu0 0
    %4082 = vmatmul.mubr.bf16.gmra.mrb[0].mxu0 %v1380
    %v4083 = vpop.f32.mrb[0].mxu0
    %v4084 = vadd.f32 0.0, %v4083
    %v4085 = vpop.f32.mrb[0].mxu0
    %v4086 = vpop.f32.mrb[0].mxu0
    %v4087 = vadd.f32 0.0, %v4086
    %v4088 = vpop.f32.mrb[0].mxu0
    %4089 = vmatprep.mubr.bf16.mxu0 0
    %4090 = vmatmul.mubr.bf16.gmra.mrb[0].mxu0 %v1383
    %v4091 = vpop.f32.mrb[0].mxu0
    %v4092 = vadd.f32 0.0, %v4091
    %v4093 = vpop.f32.mrb[0].mxu0
    %v4094 = vpop.f32.mrb[0].mxu0
    %v4095 = vadd.f32 0.0, %v4094
    %v4096 = vpop.f32.mrb[0].mxu0
    %4097 = vmatprep.mubr.bf16.mxu0 0
    %4098 = vmatmul.mubr.bf16.gmra.mrb[0].mxu0 %v1386
    %v4099 = vpop.f32.mrb[0].mxu0
    %v4100 = vadd.f32 0.0, %v4099
    %v4101 = vpop.f32.mrb[0].mxu0
    %v4102 = vpop.f32.mrb[0].mxu0
    %v4103 = vadd.f32 0.0, %v4102
    %v4104 = vpop.f32.mrb[0].mxu0
    %4105 = vdwg.mxu0
    %v4106 = vld [vmem:[%s1092] sm:$0xff]
    %v4107 = vld [vmem:[%s1092 + $0x40] sm:$0xff]
    %v4108 = vld [vmem:[%s1092 + $0x80] sm:$0xff]
    %v4109 = vld [vmem:[%s1092 + $0xc0] sm:$0xff]
    %v4110 = vld [vmem:[%s1092 + $0x100] sm:$0xff]
    %v4111 = vld [vmem:[%s1092 + $0x140] sm:$0xff]
    %v4112 = vld [vmem:[%s1092 + $0x180] sm:$0xff]
    %v4113 = vld [vmem:[%s1092 + $0x1c0] sm:$0xff]
    %v4114 = vld [vmem:[%s1092 + $0x200] sm:$0xff]
    %v4115 = vld [vmem:[%s1092 + $0x240] sm:$0xff]
    %v4116 = vld [vmem:[%s1092 + $0x280] sm:$0xff]
    %v4117 = vld [vmem:[%s1092 + $0x2c0] sm:$0xff]
    %v4118 = vld [vmem:[%s1092 + $0x300] sm:$0xff]
    %v4119 = vld [vmem:[%s1092 + $0x340] sm:$0xff]
    %v4120 = vld [vmem:[%s1092 + $0x380] sm:$0xff]
    %v4121 = vld [vmem:[%s1092 + $0x3c0] sm:$0xff]
    %v4122 = vadd.f32 %v3980, %v4106
    %v4123 = vadd.f32 %v3983, %v4107
    %v4124 = vadd.f32 %v3988, %v4108
    %v4125 = vadd.f32 %v3991, %v4109
    %v4126 = vadd.f32 %v3996, %v4110
    %v4127 = vadd.f32 %v3999, %v4111
    %v4128 = vadd.f32 %v4004, %v4112
    %v4129 = vadd.f32 %v4007, %v4113
    %v4130 = vadd.f32 %v4012, %v4114
    %v4131 = vadd.f32 %v4015, %v4115
    %v4132 = vadd.f32 %v4020, %v4116
    %v4133 = vadd.f32 %v4023, %v4117
    %v4134 = vadd.f32 %v4028, %v4118
    %v4135 = vadd.f32 %v4031, %v4119
    %v4136 = vadd.f32 %v4036, %v4120
    %v4137 = vadd.f32 %v4039, %v4121
    %v4138 = vld [vmem:[%s582 + $0x400] sm:$0xff]
    %v4139 = vld [vmem:[%s582 + $0x440] sm:$0xff]
    %v4140 = vld [vmem:[%s582 + $0x480] sm:$0xff]
    %v4141 = vld [vmem:[%s582 + $0x4c0] sm:$0xff]
    %v4142 = vld [vmem:[%s582 + $0x500] sm:$0xff]
    %v4143 = vld [vmem:[%s582 + $0x540] sm:$0xff]
    %v4144 = vld [vmem:[%s582 + $0x580] sm:$0xff]
    %v4145 = vld [vmem:[%s582 + $0x5c0] sm:$0xff]
    %v4146 = vld [vmem:[%s582 + $0x600] sm:$0xff]
    %v4147 = vld [vmem:[%s582 + $0x640] sm:$0xff]
    %v4148 = vld [vmem:[%s582 + $0x680] sm:$0xff]
    %v4149 = vld [vmem:[%s582 + $0x6c0] sm:$0xff]
    %v4150 = vld [vmem:[%s582 + $0x700] sm:$0xff]
    %v4151 = vld [vmem:[%s582 + $0x740] sm:$0xff]
    %v4152 = vld [vmem:[%s582 + $0x780] sm:$0xff]
    %v4153 = vld [vmem:[%s582 + $0x7c0] sm:$0xff]
    %v4154 = vadd.f32 %v4044, %v4138
    %v4155 = vadd.f32 %v4047, %v4139
    %v4156 = vadd.f32 %v4052, %v4140
    %v4157 = vadd.f32 %v4055, %v4141
    %v4158 = vadd.f32 %v4060, %v4142
    %v4159 = vadd.f32 %v4063, %v4143
    %v4160 = vadd.f32 %v4068, %v4144
    %v4161 = vadd.f32 %v4071, %v4145
    %v4162 = vadd.f32 %v4076, %v4146
    %v4163 = vadd.f32 %v4079, %v4147
    %v4164 = vadd.f32 %v4084, %v4148
    %v4165 = vadd.f32 %v4087, %v4149
    %v4166 = vadd.f32 %v4092, %v4150
    %v4167 = vadd.f32 %v4095, %v4151
    %v4168 = vadd.f32 %v4100, %v4152
    %v4169 = vadd.f32 %v4103, %v4153
    %v4170 = vxor.u32 %v4122, 2147483648
    %v4171 = vxor.u32 %v4123, 2147483648
    %v4172 = vxor.u32 %v4124, 2147483648
    %v4173 = vxor.u32 %v4125, 2147483648
    %v4174 = vmul.f32 %v4170, 1.442695
    %v4175 = vpow.pop %v4174
    %v4176 = vmul.f32 %v4171, 1.442695
    %v4177 = vpow.pop %v4176
    %v4178 = vmul.f32 %v4172, 1.442695
    %v4179 = vpow.pop %v4178
    %v4180 = vmul.f32 %v4173, 1.442695
    %v4181 = vpow.pop %v4180
    %v4182 = vadd.f32 %v4175, 1.0
    %v4183 = vadd.f32 %v4177, 1.0
    %v4184 = vadd.f32 %v4179, 1.0
    %v4185 = vadd.f32 %v4181, 1.0
    %v4186 = vrcp.pop %v4182
    %v4187 = vmul.f32 1.0, %v4186
    %v4188 = vrcp.pop %v4183
    %v4189 = vmul.f32 1.0, %v4188
    %v4190 = vrcp.pop %v4184
    %v4191 = vmul.f32 1.0, %v4190
    %v4192 = vrcp.pop %v4185
    %v4193 = vmul.f32 1.0, %v4192
    %v4194 = vxor.u32 %v4126, 2147483648
    %v4195 = vxor.u32 %v4127, 2147483648
    %v4196 = vxor.u32 %v4128, 2147483648
    %v4197 = vxor.u32 %v4129, 2147483648
    %v4198 = vmul.f32 %v4194, 1.442695
    %v4199 = vpow.pop %v4198
    %v4200 = vmul.f32 %v4195, 1.442695
    %v4201 = vpow.pop %v4200
    %v4202 = vmul.f32 %v4196, 1.442695
    %v4203 = vpow.pop %v4202
    %v4204 = vmul.f32 %v4197, 1.442695
    %v4205 = vpow.pop %v4204
    %v4206 = vadd.f32 %v4199, 1.0
    %v4207 = vadd.f32 %v4201, 1.0
    %v4208 = vadd.f32 %v4203, 1.0
    %v4209 = vadd.f32 %v4205, 1.0
    %v4210 = vrcp.pop %v4206
    %v4211 = vmul.f32 1.0, %v4210
    %v4212 = vrcp.pop %v4207
    %v4213 = vmul.f32 1.0, %v4212
    %v4214 = vrcp.pop %v4208
    %v4215 = vmul.f32 1.0, %v4214
    %v4216 = vrcp.pop %v4209
    %v4217 = vmul.f32 1.0, %v4216
    %v4218 = vtanh.pop %v4130
    %v4219 = vtanh.pop %v4131
    %v4220 = vtanh.pop %v4132
    %v4221 = vtanh.pop %v4133
    %v4222 = vxor.u32 %v4134, 2147483648
    %v4223 = vxor.u32 %v4135, 2147483648
    %v4224 = vxor.u32 %v4136, 2147483648
    %v4225 = vxor.u32 %v4137, 2147483648
    %v4226 = vmul.f32 %v4222, 1.442695
    %v4227 = vpow.pop %v4226
    %v4228 = vmul.f32 %v4223, 1.442695
    %v4229 = vpow.pop %v4228
    %v4230 = vmul.f32 %v4224, 1.442695
    %v4231 = vpow.pop %v4230
    %v4232 = vmul.f32 %v4225, 1.442695
    %v4233 = vpow.pop %v4232
    %v4234 = vadd.f32 %v4227, 1.0
    %v4235 = vadd.f32 %v4229, 1.0
    %v4236 = vadd.f32 %v4231, 1.0
    %v4237 = vadd.f32 %v4233, 1.0
    %v4238 = vrcp.pop %v4234
    %v4239 = vmul.f32 1.0, %v4238
    %v4240 = vrcp.pop %v4235
    %v4241 = vmul.f32 1.0, %v4240
    %v4242 = vrcp.pop %v4236
    %v4243 = vmul.f32 1.0, %v4242
    %v4244 = vrcp.pop %v4237
    %v4245 = vmul.f32 1.0, %v4244
    %v4246 = vmul.f32 %v4211, %v3829
    %v4247 = vmul.f32 %v4213, %v3830
    %v4248 = vmul.f32 %v4215, %v3831
    %v4249 = vmul.f32 %v4217, %v3832
    %v4250 = vmul.f32 %v4187, %v4218
    %v4251 = vmul.f32 %v4189, %v4219
    %v4252 = vmul.f32 %v4191, %v4220
    %v4253 = vmul.f32 %v4193, %v4221
    %v4254 = vadd.f32 %v4246, %v4250
    %v4255 = vadd.f32 %v4247, %v4251
    %v4256 = vadd.f32 %v4248, %v4252
    %v4257 = vadd.f32 %v4249, %v4253
    %v4258 = vtanh.pop %v4254
    %v4259 = vtanh.pop %v4255
    %v4260 = vtanh.pop %v4256
    %v4261 = vtanh.pop %v4257
    %v4262 = vmul.f32 %v4239, %v4258
    %v4263 = vmul.f32 %v4241, %v4259
    %v4264 = vmul.f32 %v4243, %v4260
    %v4265 = vmul.f32 %v4245, %v4261
    %v4266 = vxor.u32 %v4154, 2147483648
    %v4267 = vxor.u32 %v4155, 2147483648
    %v4268 = vxor.u32 %v4156, 2147483648
    %v4269 = vxor.u32 %v4157, 2147483648
    %v4270 = vmul.f32 %v4266, 1.442695
    %v4271 = vpow.pop %v4270
    %v4272 = vmul.f32 %v4267, 1.442695
    %v4273 = vpow.pop %v4272
    %v4274 = vmul.f32 %v4268, 1.442695
    %v4275 = vpow.pop %v4274
    %v4276 = vmul.f32 %v4269, 1.442695
    %v4277 = vpow.pop %v4276
    %v4278 = vadd.f32 %v4271, 1.0
    %v4279 = vadd.f32 %v4273, 1.0
    %v4280 = vadd.f32 %v4275, 1.0
    %v4281 = vadd.f32 %v4277, 1.0
    %v4282 = vrcp.pop %v4278
    %v4283 = vmul.f32 1.0, %v4282
    %v4284 = vrcp.pop %v4279
    %v4285 = vmul.f32 1.0, %v4284
    %v4286 = vrcp.pop %v4280
    %v4287 = vmul.f32 1.0, %v4286
    %v4288 = vrcp.pop %v4281
    %v4289 = vmul.f32 1.0, %v4288
    %v4290 = vxor.u32 %v4158, 2147483648
    %v4291 = vxor.u32 %v4159, 2147483648
    %v4292 = vxor.u32 %v4160, 2147483648
    %v4293 = vxor.u32 %v4161, 2147483648
    %v4294 = vmul.f32 %v4290, 1.442695
    %v4295 = vpow.pop %v4294
    %v4296 = vmul.f32 %v4291, 1.442695
    %v4297 = vpow.pop %v4296
    %v4298 = vmul.f32 %v4292, 1.442695
    %v4299 = vpow.pop %v4298
    %v4300 = vmul.f32 %v4293, 1.442695
    %v4301 = vpow.pop %v4300
    %v4302 = vadd.f32 %v4295, 1.0
    %v4303 = vadd.f32 %v4297, 1.0
    %v4304 = vadd.f32 %v4299, 1.0
    %v4305 = vadd.f32 %v4301, 1.0
    %v4306 = vrcp.pop %v4302
    %v4307 = vmul.f32 1.0, %v4306
    %v4308 = vrcp.pop %v4303
    %v4309 = vmul.f32 1.0, %v4308
    %v4310 = vrcp.pop %v4304
    %v4311 = vmul.f32 1.0, %v4310
    %v4312 = vrcp.pop %v4305
    %v4313 = vmul.f32 1.0, %v4312
    %v4314 = vtanh.pop %v4162
    %v4315 = vtanh.pop %v4163
    %v4316 = vtanh.pop %v4164
    %v4317 = vtanh.pop %v4165
    %v4318 = vxor.u32 %v4166, 2147483648
    %v4319 = vxor.u32 %v4167, 2147483648
    %v4320 = vxor.u32 %v4168, 2147483648
    %v4321 = vxor.u32 %v4169, 2147483648
    %v4322 = vmul.f32 %v4318, 1.442695
    %v4323 = vpow.pop %v4322
    %v4324 = vmul.f32 %v4319, 1.442695
    %v4325 = vpow.pop %v4324
    %v4326 = vmul.f32 %v4320, 1.442695
    %v4327 = vpow.pop %v4326
    %v4328 = vmul.f32 %v4321, 1.442695
    %v4329 = vpow.pop %v4328
    %v4330 = vadd.f32 %v4323, 1.0
    %v4331 = vadd.f32 %v4325, 1.0
    %v4332 = vadd.f32 %v4327, 1.0
    %v4333 = vadd.f32 %v4329, 1.0
    %v4334 = vrcp.pop %v4330
    %v4335 = vmul.f32 1.0, %v4334
    %v4336 = vrcp.pop %v4331
    %v4337 = vmul.f32 1.0, %v4336
    %v4338 = vrcp.pop %v4332
    %v4339 = vmul.f32 1.0, %v4338
    %v4340 = vrcp.pop %v4333
    %v4341 = vmul.f32 1.0, %v4340
    %v4342 = vmul.f32 %v4307, %v3925
    %v4343 = vmul.f32 %v4309, %v3926
    %v4344 = vmul.f32 %v4311, %v3927
    %v4345 = vmul.f32 %v4313, %v3928
    %v4346 = vmul.f32 %v4283, %v4314
    %v4347 = vmul.f32 %v4285, %v4315
    %v4348 = vmul.f32 %v4287, %v4316
    %v4349 = vmul.f32 %v4289, %v4317
    %v4350 = vadd.f32 %v4342, %v4346
    %v4351 = vadd.f32 %v4343, %v4347
    %v4352 = vadd.f32 %v4344, %v4348
    %v4353 = vadd.f32 %v4345, %v4349
    %v4354 = vtanh.pop %v4350
    %v4355 = vtanh.pop %v4351
    %v4356 = vtanh.pop %v4352
    %v4357 = vtanh.pop %v4353
    %v4358 = vmul.f32 %v4335, %v4354
    %v4359 = vmul.f32 %v4337, %v4355
    %v4360 = vmul.f32 %v4339, %v4356
    %v4361 = vmul.f32 %v4341, %v4357
    %v4362 = vpack.c.bf16 %v4263, %v4262
    %v4363 = vpack.c.bf16 %v4265, %v4264
    %4364 = vst [vmem:[%s2238] sm:$0xff] %v4362
    %4365 = vst [vmem:[%s2238 + $0x40] sm:$0xff] %v4363
    %v4366 = vpack.c.bf16 %v4359, %v4358
    %v4367 = vpack.c.bf16 %v4361, %v4360
    %4368 = vst [vmem:[%s2233 + $0x80] sm:$0xff] %v4366
    %4369 = vst [vmem:[%s2233 + $0xc0] sm:$0xff] %v4367
    %4370 = vmatprep.subr.bf16.mxu0 0
    %4371 = vmatpush1.bf16.msra.mxu0 %v4362
    %4372 = vmatprep.subr.bf16.mxu0 0
    %4373 = vmatpush1.bf16.msra.mxu0 %v4363
    %4374 = vmatprep.subr.bf16.mxu0 0
    %4375 = vmatpush1.bf16.msra.mxu0 %v4366
    %4376 = vmatprep.subr.bf16.mxu0 0
    %4377 = vmatpush1.bf16.msra.mxu0 %v4367
    %4378 = vmatprep.subr.bf16.mxu0 0
    %4379 = vmatpush1.bf16.msra.mxu0 0
    %4380 = vmatprep.subr.bf16.mxu0 0
    %4381 = vmatpush1.bf16.msra.mxu0 0
    %4382 = vmatprep.subr.bf16.mxu0 0
    %4383 = vmatpush1.bf16.msra.mxu0 0
    %4384 = vmatprep.subr.bf16.mxu0 0
    %4385 = vmatpush1.bf16.msra.mxu0 0
    %4386 = vmatprep.subr.bf16.mxu0 0
    %4387 = vmatpush1.bf16.msra.mxu0 0
    %4388 = vmatprep.subr.bf16.mxu0 0
    %4389 = vmatpush1.bf16.msra.mxu0 0
    %4390 = vmatprep.subr.bf16.mxu0 0
    %4391 = vmatpush1.bf16.msra.mxu0 0
    %4392 = vmatprep.subr.bf16.mxu0 0
    %4393 = vmatpush1.bf16.msra.mxu0 0
    %4394 = vmatprep.subr.bf16.mxu0 0
    %4395 = vmatpush1.bf16.msra.mxu0 0
    %4396 = vmatprep.subr.bf16.mxu0 0
    %4397 = vmatpush1.bf16.msra.mxu0 0
    %4398 = vmatprep.subr.bf16.mxu0 0
    %4399 = vmatpush1.bf16.msra.mxu0 0
    %4400 = vmatprep.subr.bf16.mxu0 0
    %4401 = vmatpush1.bf16.msra.mxu0 0
    %4402 = vmatprep.mubr.bf16.mxu0 0
    %4403 = vmatmul.mubr.bf16.gmra.mrb[0].mxu0 %v1341
    %v4404 = vpop.f32.mrb[0].mxu0
    %v4405 = vadd.f32 0.0, %v4404
    %v4406 = vpop.f32.mrb[0].mxu0
    %v4407 = vpop.f32.mrb[0].mxu0
    %v4408 = vadd.f32 0.0, %v4407
    %v4409 = vpop.f32.mrb[0].mxu0
    %4410 = vmatprep.mubr.bf16.mxu0 0
    %4411 = vmatmul.mubr.bf16.gmra.mrb[0].mxu0 %v1344
    %v4412 = vpop.f32.mrb[0].mxu0
    %v4413 = vadd.f32 0.0, %v4412
    %v4414 = vpop.f32.mrb[0].mxu0
    %v4415 = vpop.f32.mrb[0].mxu0
    %v4416 = vadd.f32 0.0, %v4415
    %v4417 = vpop.f32.mrb[0].mxu0
    %4418 = vmatprep.mubr.bf16.mxu0 0
    %4419 = vmatmul.mubr.bf16.gmra.mrb[0].mxu0 %v1347
    %v4420 = vpop.f32.mrb[0].mxu0
    %v4421 = vadd.f32 0.0, %v4420
    %v4422 = vpop.f32.mrb[0].mxu0
    %v4423 = vpop.f32.mrb[0].mxu0
    %v4424 = vadd.f32 0.0, %v4423
    %v4425 = vpop.f32.mrb[0].mxu0
    %4426 = vmatprep.mubr.bf16.mxu0 0
    %4427 = vmatmul.mubr.bf16.gmra.mrb[0].mxu0 %v1350
    %v4428 = vpop.f32.mrb[0].mxu0
    %v4429 = vadd.f32 0.0, %v4428
    %v4430 = vpop.f32.mrb[0].mxu0
    %v4431 = vpop.f32.mrb[0].mxu0
    %v4432 = vadd.f32 0.0, %v4431
    %v4433 = vpop.f32.mrb[0].mxu0
    %4434 = vmatprep.mubr.bf16.mxu0 0
    %4435 = vmatmul.mubr.bf16.gmra.mrb[0].mxu0 %v1353
    %v4436 = vpop.f32.mrb[0].mxu0
    %v4437 = vadd.f32 0.0, %v4436
    %v4438 = vpop.f32.mrb[0].mxu0
    %v4439 = vpop.f32.mrb[0].mxu0
    %v4440 = vadd.f32 0.0, %v4439
    %v4441 = vpop.f32.mrb[0].mxu0
    %4442 = vmatprep.mubr.bf16.mxu0 0
    %4443 = vmatmul.mubr.bf16.gmra.mrb[0].mxu0 %v1356
    %v4444 = vpop.f32.mrb[0].mxu0
    %v4445 = vadd.f32 0.0, %v4444
    %v4446 = vpop.f32.mrb[0].mxu0
    %v4447 = vpop.f32.mrb[0].mxu0
    %v4448 = vadd.f32 0.0, %v4447
    %v4449 = vpop.f32.mrb[0].mxu0
    %4450 = vmatprep.mubr.bf16.mxu0 0
    %4451 = vmatmul.mubr.bf16.gmra.mrb[0].mxu0 %v1359
    %v4452 = vpop.f32.mrb[0].mxu0
    %v4453 = vadd.f32 0.0, %v4452
    %v4454 = vpop.f32.mrb[0].mxu0
    %v4455 = vpop.f32.mrb[0].mxu0
    %v4456 = vadd.f32 0.0, %v4455
    %v4457 = vpop.f32.mrb[0].mxu0
    %4458 = vmatprep.mubr.bf16.mxu0 0
    %4459 = vmatmul.mubr.bf16.gmra.mrb[0].mxu0 %v1362
    %v4460 = vpop.f32.mrb[0].mxu0
    %v4461 = vadd.f32 0.0, %v4460
    %v4462 = vpop.f32.mrb[0].mxu0
    %v4463 = vpop.f32.mrb[0].mxu0
    %v4464 = vadd.f32 0.0, %v4463
    %v4465 = vpop.f32.mrb[0].mxu0
    %4466 = vmatprep.mubr.bf16.mxu0 0
    %4467 = vmatmul.mubr.bf16.gmra.mrb[0].mxu0 %v1365
    %v4468 = vpop.f32.mrb[0].mxu0
    %v4469 = vadd.f32 0.0, %v4468
    %v4470 = vpop.f32.mrb[0].mxu0
    %v4471 = vpop.f32.mrb[0].mxu0
    %v4472 = vadd.f32 0.0, %v4471
    %v4473 = vpop.f32.mrb[0].mxu0
    %4474 = vmatprep.mubr.bf16.mxu0 0
    %4475 = vmatmul.mubr.bf16.gmra.mrb[0].mxu0 %v1368
    %v4476 = vpop.f32.mrb[0].mxu0
    %v4477 = vadd.f32 0.0, %v4476
    %v4478 = vpop.f32.mrb[0].mxu0
    %v4479 = vpop.f32.mrb[0].mxu0
    %v4480 = vadd.f32 0.0, %v4479
    %v4481 = vpop.f32.mrb[0].mxu0
    %4482 = vmatprep.mubr.bf16.mxu0 0
    %4483 = vmatmul.mubr.bf16.gmra.mrb[0].mxu0 %v1371
    %v4484 = vpop.f32.mrb[0].mxu0
    %v4485 = vadd.f32 0.0, %v4484
    %v4486 = vpop.f32.mrb[0].mxu0
    %v4487 = vpop.f32.mrb[0].mxu0
    %v4488 = vadd.f32 0.0, %v4487
    %v4489 = vpop.f32.mrb[0].mxu0
    %4490 = vmatprep.mubr.bf16.mxu0 0
    %4491 = vmatmul.mubr.bf16.gmra.mrb[0].mxu0 %v1374
    %v4492 = vpop.f32.mrb[0].mxu0
    %v4493 = vadd.f32 0.0, %v4492
    %v4494 = vpop.f32.mrb[0].mxu0
    %v4495 = vpop.f32.mrb[0].mxu0
    %v4496 = vadd.f32 0.0, %v4495
    %v4497 = vpop.f32.mrb[0].mxu0
    %4498 = vmatprep.mubr.bf16.mxu0 0
    %4499 = vmatmul.mubr.bf16.gmra.mrb[0].mxu0 %v1377
    %v4500 = vpop.f32.mrb[0].mxu0
    %v4501 = vadd.f32 0.0, %v4500
    %v4502 = vpop.f32.mrb[0].mxu0
    %v4503 = vpop.f32.mrb[0].mxu0
    %v4504 = vadd.f32 0.0, %v4503
    %v4505 = vpop.f32.mrb[0].mxu0
    %4506 = vmatprep.mubr.bf16.mxu0 0
    %4507 = vmatmul.mubr.bf16.gmra.mrb[0].mxu0 %v1380
    %v4508 = vpop.f32.mrb[0].mxu0
    %v4509 = vadd.f32 0.0, %v4508
    %v4510 = vpop.f32.mrb[0].mxu0
    %v4511 = vpop.f32.mrb[0].mxu0
    %v4512 = vadd.f32 0.0, %v4511
    %v4513 = vpop.f32.mrb[0].mxu0
    %4514 = vmatprep.mubr.bf16.mxu0 0
    %4515 = vmatmul.mubr.bf16.gmra.mrb[0].mxu0 %v1383
    %v4516 = vpop.f32.mrb[0].mxu0
    %v4517 = vadd.f32 0.0, %v4516
    %v4518 = vpop.f32.mrb[0].mxu0
    %v4519 = vpop.f32.mrb[0].mxu0
    %v4520 = vadd.f32 0.0, %v4519
    %v4521 = vpop.f32.mrb[0].mxu0
    %4522 = vmatprep.mubr.bf16.mxu0 0
    %4523 = vmatmul.mubr.bf16.gmra.mrb[0].mxu0 %v1386
    %v4524 = vpop.f32.mrb[0].mxu0
    %v4525 = vadd.f32 0.0, %v4524
    %v4526 = vpop.f32.mrb[0].mxu0
    %v4527 = vpop.f32.mrb[0].mxu0
    %v4528 = vadd.f32 0.0, %v4527
    %v4529 = vpop.f32.mrb[0].mxu0
    %4530 = vdwg.mxu0
    %v4531 = vld [vmem:[%s1194] sm:$0xff]
    %v4532 = vld [vmem:[%s1194 + $0x40] sm:$0xff]
    %v4533 = vld [vmem:[%s1194 + $0x80] sm:$0xff]
    %v4534 = vld [vmem:[%s1194 + $0xc0] sm:$0xff]
    %v4535 = vld [vmem:[%s1194 + $0x100] sm:$0xff]
    %v4536 = vld [vmem:[%s1194 + $0x140] sm:$0xff]
    %v4537 = vld [vmem:[%s1194 + $0x180] sm:$0xff]
    %v4538 = vld [vmem:[%s1194 + $0x1c0] sm:$0xff]
    %v4539 = vld [vmem:[%s1194 + $0x200] sm:$0xff]
    %v4540 = vld [vmem:[%s1194 + $0x240] sm:$0xff]
    %v4541 = vld [vmem:[%s1194 + $0x280] sm:$0xff]
    %v4542 = vld [vmem:[%s1194 + $0x2c0] sm:$0xff]
    %v4543 = vld [vmem:[%s1194 + $0x300] sm:$0xff]
    %v4544 = vld [vmem:[%s1194 + $0x340] sm:$0xff]
    %v4545 = vld [vmem:[%s1194 + $0x380] sm:$0xff]
    %v4546 = vld [vmem:[%s1194 + $0x3c0] sm:$0xff]
    %v4547 = vadd.f32 %v4405, %v4531
    %v4548 = vadd.f32 %v4408, %v4532
    %v4549 = vadd.f32 %v4413, %v4533
    %v4550 = vadd.f32 %v4416, %v4534
    %v4551 = vadd.f32 %v4421, %v4535
    %v4552 = vadd.f32 %v4424, %v4536
    %v4553 = vadd.f32 %v4429, %v4537
    %v4554 = vadd.f32 %v4432, %v4538
    %v4555 = vadd.f32 %v4437, %v4539
    %v4556 = vadd.f32 %v4440, %v4540
    %v4557 = vadd.f32 %v4445, %v4541
    %v4558 = vadd.f32 %v4448, %v4542
    %v4559 = vadd.f32 %v4453, %v4543
    %v4560 = vadd.f32 %v4456, %v4544
    %v4561 = vadd.f32 %v4461, %v4545
    %v4562 = vadd.f32 %v4464, %v4546
    %v4563 = vld [vmem:[#allocation2 + $0x400] sm:$0xff]
    %v4564 = vld [vmem:[#allocation2 + $0x440] sm:$0xff]
    %v4565 = vld [vmem:[#allocation2 + $0x480] sm:$0xff]
    %v4566 = vld [vmem:[#allocation2 + $0x4c0] sm:$0xff]
    %v4567 = vld [vmem:[#allocation2 + $0x500] sm:$0xff]
    %v4568 = vld [vmem:[#allocation2 + $0x540] sm:$0xff]
    %v4569 = vld [vmem:[#allocation2 + $0x580] sm:$0xff]
    %v4570 = vld [vmem:[#allocation2 + $0x5c0] sm:$0xff]
    %v4571 = vld [vmem:[#allocation2 + $0x600] sm:$0xff]
    %v4572 = vld [vmem:[#allocation2 + $0x640] sm:$0xff]
    %v4573 = vld [vmem:[#allocation2 + $0x680] sm:$0xff]
    %v4574 = vld [vmem:[#allocation2 + $0x6c0] sm:$0xff]
    %v4575 = vld [vmem:[#allocation2 + $0x700] sm:$0xff]
    %v4576 = vld [vmem:[#allocation2 + $0x740] sm:$0xff]
    %v4577 = vld [vmem:[#allocation2 + $0x780] sm:$0xff]
    %v4578 = vld [vmem:[#allocation2 + $0x7c0] sm:$0xff]
    %v4579 = vadd.f32 %v4469, %v4563
    %v4580 = vadd.f32 %v4472, %v4564
    %v4581 = vadd.f32 %v4477, %v4565
    %v4582 = vadd.f32 %v4480, %v4566
    %v4583 = vadd.f32 %v4485, %v4567
    %v4584 = vadd.f32 %v4488, %v4568
    %v4585 = vadd.f32 %v4493, %v4569
    %v4586 = vadd.f32 %v4496, %v4570
    %v4587 = vadd.f32 %v4501, %v4571
    %v4588 = vadd.f32 %v4504, %v4572
    %v4589 = vadd.f32 %v4509, %v4573
    %v4590 = vadd.f32 %v4512, %v4574
    %v4591 = vadd.f32 %v4517, %v4575
    %v4592 = vadd.f32 %v4520, %v4576
    %v4593 = vadd.f32 %v4525, %v4577
    %v4594 = vadd.f32 %v4528, %v4578
    %v4595 = vxor.u32 %v4547, 2147483648
    %v4596 = vxor.u32 %v4548, 2147483648
    %v4597 = vxor.u32 %v4549, 2147483648
    %v4598 = vxor.u32 %v4550, 2147483648
    %v4599 = vmul.f32 %v4595, 1.442695
    %v4600 = vpow.pop %v4599
    %v4601 = vmul.f32 %v4596, 1.442695
    %v4602 = vpow.pop %v4601
    %v4603 = vmul.f32 %v4597, 1.442695
    %v4604 = vpow.pop %v4603
    %v4605 = vmul.f32 %v4598, 1.442695
    %v4606 = vpow.pop %v4605
    %v4607 = vadd.f32 %v4600, 1.0
    %v4608 = vadd.f32 %v4602, 1.0
    %v4609 = vadd.f32 %v4604, 1.0
    %v4610 = vadd.f32 %v4606, 1.0
    %v4611 = vrcp.pop %v4607
    %v4612 = vmul.f32 1.0, %v4611
    %v4613 = vrcp.pop %v4608
    %v4614 = vmul.f32 1.0, %v4613
    %v4615 = vrcp.pop %v4609
    %v4616 = vmul.f32 1.0, %v4615
    %v4617 = vrcp.pop %v4610
    %v4618 = vmul.f32 1.0, %v4617
    %v4619 = vxor.u32 %v4551, 2147483648
    %v4620 = vxor.u32 %v4552, 2147483648
    %v4621 = vxor.u32 %v4553, 2147483648
    %v4622 = vxor.u32 %v4554, 2147483648
    %v4623 = vmul.f32 %v4619, 1.442695
    %v4624 = vpow.pop %v4623
    %v4625 = vmul.f32 %v4620, 1.442695
    %v4626 = vpow.pop %v4625
    %v4627 = vmul.f32 %v4621, 1.442695
    %v4628 = vpow.pop %v4627
    %v4629 = vmul.f32 %v4622, 1.442695
    %v4630 = vpow.pop %v4629
    %v4631 = vadd.f32 %v4624, 1.0
    %v4632 = vadd.f32 %v4626, 1.0
    %v4633 = vadd.f32 %v4628, 1.0
    %v4634 = vadd.f32 %v4630, 1.0
    %v4635 = vrcp.pop %v4631
    %v4636 = vmul.f32 1.0, %v4635
    %v4637 = vrcp.pop %v4632
    %v4638 = vmul.f32 1.0, %v4637
    %v4639 = vrcp.pop %v4633
    %v4640 = vmul.f32 1.0, %v4639
    %v4641 = vrcp.pop %v4634
    %v4642 = vmul.f32 1.0, %v4641
    %v4643 = vtanh.pop %v4555
    %v4644 = vtanh.pop %v4556
    %v4645 = vtanh.pop %v4557
    %v4646 = vtanh.pop %v4558
    %v4647 = vxor.u32 %v4559, 2147483648
    %v4648 = vxor.u32 %v4560, 2147483648
    %v4649 = vxor.u32 %v4561, 2147483648
    %v4650 = vxor.u32 %v4562, 2147483648
    %v4651 = vmul.f32 %v4647, 1.442695
    %v4652 = vpow.pop %v4651
    %v4653 = vmul.f32 %v4648, 1.442695
    %v4654 = vpow.pop %v4653
    %v4655 = vmul.f32 %v4649, 1.442695
    %v4656 = vpow.pop %v4655
    %v4657 = vmul.f32 %v4650, 1.442695
    %v4658 = vpow.pop %v4657
    %v4659 = vadd.f32 %v4652, 1.0
    %v4660 = vadd.f32 %v4654, 1.0
    %v4661 = vadd.f32 %v4656, 1.0
    %v4662 = vadd.f32 %v4658, 1.0
    %v4663 = vrcp.pop %v4659
    %v4664 = vmul.f32 1.0, %v4663
    %v4665 = vrcp.pop %v4660
    %v4666 = vmul.f32 1.0, %v4665
    %v4667 = vrcp.pop %v4661
    %v4668 = vmul.f32 1.0, %v4667
    %v4669 = vrcp.pop %v4662
    %v4670 = vmul.f32 1.0, %v4669
    %v4671 = vmul.f32 %v4636, %v4254
    %v4672 = vmul.f32 %v4638, %v4255
    %v4673 = vmul.f32 %v4640, %v4256
    %v4674 = vmul.f32 %v4642, %v4257
    %v4675 = vmul.f32 %v4612, %v4643
    %v4676 = vmul.f32 %v4614, %v4644
    %v4677 = vmul.f32 %v4616, %v4645
    %v4678 = vmul.f32 %v4618, %v4646
    %v4679 = vadd.f32 %v4671, %v4675
    %v4680 = vadd.f32 %v4672, %v4676
    %v4681 = vadd.f32 %v4673, %v4677
    %v4682 = vadd.f32 %v4674, %v4678
    %v4683 = vtanh.pop %v4679
    %v4684 = vtanh.pop %v4680
    %v4685 = vtanh.pop %v4681
    %v4686 = vtanh.pop %v4682
    %v4687 = vmul.f32 %v4664, %v4683
    %v4688 = vmul.f32 %v4666, %v4684
    %v4689 = vmul.f32 %v4668, %v4685
    %v4690 = vmul.f32 %v4670, %v4686
    %v4691 = vxor.u32 %v4579, 2147483648
    %v4692 = vxor.u32 %v4580, 2147483648
    %v4693 = vxor.u32 %v4581, 2147483648
    %v4694 = vxor.u32 %v4582, 2147483648
    %v4695 = vmul.f32 %v4691, 1.442695
    %v4696 = vpow.pop %v4695
    %v4697 = vmul.f32 %v4692, 1.442695
    %v4698 = vpow.pop %v4697
    %v4699 = vmul.f32 %v4693, 1.442695
    %v4700 = vpow.pop %v4699
    %v4701 = vmul.f32 %v4694, 1.442695
    %v4702 = vpow.pop %v4701
    %v4703 = vadd.f32 %v4696, 1.0
    %v4704 = vadd.f32 %v4698, 1.0
    %v4705 = vadd.f32 %v4700, 1.0
    %v4706 = vadd.f32 %v4702, 1.0
    %v4707 = vrcp.pop %v4703
    %v4708 = vmul.f32 1.0, %v4707
    %v4709 = vrcp.pop %v4704
    %v4710 = vmul.f32 1.0, %v4709
    %v4711 = vrcp.pop %v4705
    %v4712 = vmul.f32 1.0, %v4711
    %v4713 = vrcp.pop %v4706
    %v4714 = vmul.f32 1.0, %v4713
    %v4715 = vxor.u32 %v4583, 2147483648
    %v4716 = vxor.u32 %v4584, 2147483648
    %v4717 = vxor.u32 %v4585, 2147483648
    %v4718 = vxor.u32 %v4586, 2147483648
    %v4719 = vmul.f32 %v4715, 1.442695
    %v4720 = vpow.pop %v4719
    %v4721 = vmul.f32 %v4716, 1.442695
    %v4722 = vpow.pop %v4721
    %v4723 = vmul.f32 %v4717, 1.442695
    %v4724 = vpow.pop %v4723
    %v4725 = vmul.f32 %v4718, 1.442695
    %v4726 = vpow.pop %v4725
    %v4727 = vadd.f32 %v4720, 1.0
    %v4728 = vadd.f32 %v4722, 1.0
    %v4729 = vadd.f32 %v4724, 1.0
    %v4730 = vadd.f32 %v4726, 1.0
    %v4731 = vrcp.pop %v4727
    %v4732 = vmul.f32 1.0, %v4731
    %v4733 = vrcp.pop %v4728
    %v4734 = vmul.f32 1.0, %v4733
    %v4735 = vrcp.pop %v4729
    %v4736 = vmul.f32 1.0, %v4735
    %v4737 = vrcp.pop %v4730
    %v4738 = vmul.f32 1.0, %v4737
    %v4739 = vtanh.pop %v4587
    %v4740 = vtanh.pop %v4588
    %v4741 = vtanh.pop %v4589
    %v4742 = vtanh.pop %v4590
    %v4743 = vxor.u32 %v4591, 2147483648
    %v4744 = vxor.u32 %v4592, 2147483648
    %v4745 = vxor.u32 %v4593, 2147483648
    %v4746 = vxor.u32 %v4594, 2147483648
    %v4747 = vmul.f32 %v4743, 1.442695
    %v4748 = vpow.pop %v4747
    %v4749 = vmul.f32 %v4744, 1.442695
    %v4750 = vpow.pop %v4749
    %v4751 = vmul.f32 %v4745, 1.442695
    %v4752 = vpow.pop %v4751
    %v4753 = vmul.f32 %v4746, 1.442695
    %v4754 = vpow.pop %v4753
    %v4755 = vadd.f32 %v4748, 1.0
    %v4756 = vadd.f32 %v4750, 1.0
    %v4757 = vadd.f32 %v4752, 1.0
    %v4758 = vadd.f32 %v4754, 1.0
    %v4759 = vrcp.pop %v4755
    %v4760 = vmul.f32 1.0, %v4759
    %v4761 = vrcp.pop %v4756
    %v4762 = vmul.f32 1.0, %v4761
    %v4763 = vrcp.pop %v4757
    %v4764 = vmul.f32 1.0, %v4763
    %v4765 = vrcp.pop %v4758
    %v4766 = vmul.f32 1.0, %v4765
    %v4767 = vmul.f32 %v4732, %v4350
    %v4768 = vmul.f32 %v4734, %v4351
    %v4769 = vmul.f32 %v4736, %v4352
    %v4770 = vmul.f32 %v4738, %v4353
    %v4771 = vmul.f32 %v4708, %v4739
    %v4772 = vmul.f32 %v4710, %v4740
    %v4773 = vmul.f32 %v4712, %v4741
    %v4774 = vmul.f32 %v4714, %v4742
    %v4775 = vadd.f32 %v4767, %v4771
    %v4776 = vadd.f32 %v4768, %v4772
    %v4777 = vadd.f32 %v4769, %v4773
    %v4778 = vadd.f32 %v4770, %v4774
    %v4779 = vtanh.pop %v4775
    %v4780 = vtanh.pop %v4776
    %v4781 = vtanh.pop %v4777
    %v4782 = vtanh.pop %v4778
    %v4783 = vmul.f32 %v4760, %v4779
    %v4784 = vmul.f32 %v4762, %v4780
    %v4785 = vmul.f32 %v4764, %v4781
    %v4786 = vmul.f32 %v4766, %v4782
    %v4787 = vpack.c.bf16 %v4688, %v4687
    %v4788 = vpack.c.bf16 %v4690, %v4689
    %4789 = vst [vmem:[%s1811] sm:$0xff] %v4787
    %4790 = vst [vmem:[%s1811 + $0x40] sm:$0xff] %v4788
    %v4791 = vpack.c.bf16 %v4784, %v4783
    %v4792 = vpack.c.bf16 %v4786, %v4785
    %4793 = vst [vmem:[#allocation3 + $0x80] sm:$0xff] %v4791
    %4794 = vst [vmem:[#allocation3 + $0xc0] sm:$0xff] %v4792
    %s4795 = scalar_lea.vmem %s2, 256
    %v4796 = vld [vmem:[%s4795] sm:$0xff]
    %v4797 = vld [vmem:[%s4795 + $0x8] sm:$0xff]
    %v4798 = vld [vmem:[%s4795 + $0x10] sm:$0xff]
    %v4799 = vld [vmem:[%s4795 + $0x18] sm:$0xff]
    %v4800 = vld [vmem:[%s4795 + $0x20] sm:$0xff]
    %v4801 = vld [vmem:[%s4795 + $0x28] sm:$0xff]
    %v4802 = vld [vmem:[%s4795 + $0x30] sm:$0xff]
    %v4803 = vld [vmem:[%s4795 + $0x38] sm:$0xff]
    %v4804 = vld [vmem:[%s4795 + $0x40] sm:$0xff]
    %v4805 = vld [vmem:[%s4795 + $0x48] sm:$0xff]
    %v4806 = vld [vmem:[%s4795 + $0x50] sm:$0xff]
    %v4807 = vld [vmem:[%s4795 + $0x58] sm:$0xff]
    %v4808 = vld [vmem:[%s4795 + $0x60] sm:$0xff]
    %v4809 = vld [vmem:[%s4795 + $0x68] sm:$0xff]
    %v4810 = vld [vmem:[%s4795 + $0x70] sm:$0xff]
    %v4811 = vld [vmem:[%s4795 + $0x78] sm:$0xff]
    %v4812 = vld [vmem:[%s4795 + $0x80] sm:$0xff]
    %v4813 = vld [vmem:[%s4795 + $0x88] sm:$0xff]
    %v4814 = vld [vmem:[%s4795 + $0x90] sm:$0xff]
    %v4815 = vld [vmem:[%s4795 + $0x98] sm:$0xff]
    %v4816 = vld [vmem:[%s4795 + $0xa0] sm:$0xff]
    %v4817 = vld [vmem:[%s4795 + $0xa8] sm:$0xff]
    %v4818 = vld [vmem:[%s4795 + $0xb0] sm:$0xff]
    %v4819 = vld [vmem:[%s4795 + $0xb8] sm:$0xff]
    %v4820 = vld [vmem:[%s4795 + $0xc0] sm:$0xff]
    %v4821 = vld [vmem:[%s4795 + $0xc8] sm:$0xff]
    %v4822 = vld [vmem:[%s4795 + $0xd0] sm:$0xff]
    %v4823 = vld [vmem:[%s4795 + $0xd8] sm:$0xff]
    %v4824 = vld [vmem:[%s4795 + $0xe0] sm:$0xff]
    %v4825 = vld [vmem:[%s4795 + $0xe8] sm:$0xff]
    %v4826 = vld [vmem:[%s4795 + $0xf0] sm:$0xff]
    %v4827 = vld [vmem:[%s4795 + $0xf8] sm:$0xff]
    %v4828 = vld [vmem:[%s3] sm:$0xf]
    %v4829 = vld [vmem:[%s3 + $0x4] sm:$0xf]
    %v4830 = vld [vmem:[%s3 + $0x8] sm:$0xf]
    %v4831 = vld [vmem:[%s3 + $0xc] sm:$0xf]
    %v4832 = vld [vmem:[%s3 + $0x10] sm:$0xf]
    %v4833 = vld [vmem:[%s3 + $0x14] sm:$0xf]
    %v4834 = vld [vmem:[%s3 + $0x18] sm:$0xf]
    %v4835 = vld [vmem:[%s3 + $0x1c] sm:$0xf]
    %v4836 = vld [vmem:[%s3 + $0x20] sm:$0xf]
    %v4837 = vld [vmem:[%s3 + $0x24] sm:$0xf]
    %v4838 = vld [vmem:[%s3 + $0x28] sm:$0xf]
    %v4839 = vld [vmem:[%s3 + $0x2c] sm:$0xf]
    %v4840 = vld [vmem:[%s3 + $0x30] sm:$0xf]
    %v4841 = vld [vmem:[%s3 + $0x34] sm:$0xf]
    %v4842 = vld [vmem:[%s3 + $0x38] sm:$0xf]
    %v4843 = vld [vmem:[%s3 + $0x3c] sm:$0xf]
    %v4844 = vld [vmem:[%s3 + $0x40] sm:$0xf]
    %v4845 = vld [vmem:[%s3 + $0x44] sm:$0xf]
    %v4846 = vld [vmem:[%s3 + $0x48] sm:$0xf]
    %v4847 = vld [vmem:[%s3 + $0x4c] sm:$0xf]
    %v4848 = vld [vmem:[%s3 + $0x50] sm:$0xf]
    %v4849 = vld [vmem:[%s3 + $0x54] sm:$0xf]
    %v4850 = vld [vmem:[%s3 + $0x58] sm:$0xf]
    %v4851 = vld [vmem:[%s3 + $0x5c] sm:$0xf]
    %v4852 = vld [vmem:[%s3 + $0x60] sm:$0xf]
    %v4853 = vld [vmem:[%s3 + $0x64] sm:$0xf]
    %v4854 = vld [vmem:[%s3 + $0x68] sm:$0xf]
    %v4855 = vld [vmem:[%s3 + $0x6c] sm:$0xf]
    %v4856 = vld [vmem:[%s3 + $0x70] sm:$0xf]
    %v4857 = vld [vmem:[%s3 + $0x74] sm:$0xf]
    %v4858 = vld [vmem:[%s3 + $0x78] sm:$0xf]
    %v4859 = vld [vmem:[%s3 + $0x7c] sm:$0xf]
    %v4860 = vld [vmem:[#allocation3] sm:$0xff]
    %v4861 = vld [vmem:[#allocation3 + $0x8] sm:$0xff]
    %v4862 = vld [vmem:[#allocation3 + $0x10] sm:$0xff]
    %v4863 = vld [vmem:[#allocation3 + $0x18] sm:$0xff]
    %v4864 = vld [vmem:[#allocation3 + $0x20] sm:$0xff]
    %v4865 = vld [vmem:[#allocation3 + $0x28] sm:$0xff]
    %v4866 = vld [vmem:[#allocation3 + $0x30] sm:$0xff]
    %v4867 = vld [vmem:[#allocation3 + $0x38] sm:$0xff]
    %v4868 = vld [vmem:[#allocation3 + $0x40] sm:$0xff]
    %v4869 = vld [vmem:[#allocation3 + $0x48] sm:$0xff]
    %v4870 = vld [vmem:[#allocation3 + $0x50] sm:$0xff]
    %v4871 = vld [vmem:[#allocation3 + $0x58] sm:$0xff]
    %v4872 = vld [vmem:[#allocation3 + $0x60] sm:$0xff]
    %v4873 = vld [vmem:[#allocation3 + $0x68] sm:$0xff]
    %v4874 = vld [vmem:[#allocation3 + $0x70] sm:$0xff]
    %v4875 = vld [vmem:[#allocation3 + $0x78] sm:$0xff]
    %v4876 = vld [vmem:[#allocation3 + $0x80] sm:$0xff]
    %v4877 = vld [vmem:[#allocation3 + $0x88] sm:$0xff]
    %v4878 = vld [vmem:[#allocation3 + $0x90] sm:$0xff]
    %v4879 = vld [vmem:[#allocation3 + $0x98] sm:$0xff]
    %v4880 = vld [vmem:[#allocation3 + $0xa0] sm:$0xff]
    %v4881 = vld [vmem:[#allocation3 + $0xa8] sm:$0xff]
    %v4882 = vld [vmem:[#allocation3 + $0xb0] sm:$0xff]
    %v4883 = vld [vmem:[#allocation3 + $0xb8] sm:$0xff]
    %v4884 = vld [vmem:[#allocation3 + $0xc0] sm:$0xff]
    %v4885 = vld [vmem:[#allocation3 + $0xc8] sm:$0xff]
    %v4886 = vld [vmem:[#allocation3 + $0xd0] sm:$0xff]
    %v4887 = vld [vmem:[#allocation3 + $0xd8] sm:$0xff]
    %v4888 = vld [vmem:[#allocation3 + $0xe0] sm:$0xff]
    %v4889 = vld [vmem:[#allocation3 + $0xe8] sm:$0xff]
    %v4890 = vld [vmem:[#allocation3 + $0xf0] sm:$0xff]
    %v4891 = vld [vmem:[#allocation3 + $0xf8] sm:$0xff]
    %4893 = vset.pattern.permute.xlu0 0
    %4894 = vperm.xlu0 %4893, %v4796
    %v4895 = vpop.permute.xlu0 %4894
    %4898 = vset.pattern.permute.xlu0 0
    %4899 = vperm.xlu0 %4898, %v4797
    %v4900 = vpop.permute.xlu0 %4899
    %4903 = vset.pattern.permute.xlu0 0
    %4904 = vperm.xlu0 %4903, %v4798
    %v4905 = vpop.permute.xlu0 %4904
    %4908 = vset.pattern.permute.xlu0 0
    %4909 = vperm.xlu0 %4908, %v4799
    %v4910 = vpop.permute.xlu0 %4909
    %4913 = vset.pattern.permute.xlu0 0
    %4914 = vperm.xlu0 %4913, %v4800
    %v4915 = vpop.permute.xlu0 %4914
    %4918 = vset.pattern.permute.xlu0 0
    %4919 = vperm.xlu0 %4918, %v4801
    %v4920 = vpop.permute.xlu0 %4919
    %4923 = vset.pattern.permute.xlu0 0
    %4924 = vperm.xlu0 %4923, %v4802
    %v4925 = vpop.permute.xlu0 %4924
    %4928 = vset.pattern.permute.xlu0 0
    %4929 = vperm.xlu0 %4928, %v4803
    %v4930 = vpop.permute.xlu0 %4929
    %4933 = vset.pattern.permute.xlu0 0
    %4934 = vperm.xlu0 %4933, %v4804
    %v4935 = vpop.permute.xlu0 %4934
    %4938 = vset.pattern.permute.xlu0 0
    %4939 = vperm.xlu0 %4938, %v4805
    %v4940 = vpop.permute.xlu0 %4939
    %4943 = vset.pattern.permute.xlu0 0
    %4944 = vperm.xlu0 %4943, %v4806
    %v4945 = vpop.permute.xlu0 %4944
    %4948 = vset.pattern.permute.xlu0 0
    %4949 = vperm.xlu0 %4948, %v4807
    %v4950 = vpop.permute.xlu0 %4949
    %4953 = vset.pattern.permute.xlu0 0
    %4954 = vperm.xlu0 %4953, %v4808
    %v4955 = vpop.permute.xlu0 %4954
    %4958 = vset.pattern.permute.xlu0 0
    %4959 = vperm.xlu0 %4958, %v4809
    %v4960 = vpop.permute.xlu0 %4959
    %4963 = vset.pattern.permute.xlu0 0
    %4964 = vperm.xlu0 %4963, %v4810
    %v4965 = vpop.permute.xlu0 %4964
    %4968 = vset.pattern.permute.xlu0 0
    %4969 = vperm.xlu0 %4968, %v4811
    %v4970 = vpop.permute.xlu0 %4969
    %4973 = vset.pattern.permute.xlu0 0
    %4974 = vperm.xlu0 %4973, %v4812
    %v4975 = vpop.permute.xlu0 %4974
    %4978 = vset.pattern.permute.xlu0 0
    %4979 = vperm.xlu0 %4978, %v4813
    %v4980 = vpop.permute.xlu0 %4979
    %4983 = vset.pattern.permute.xlu0 0
    %4984 = vperm.xlu0 %4983, %v4814
    %v4985 = vpop.permute.xlu0 %4984
    %4988 = vset.pattern.permute.xlu0 0
    %4989 = vperm.xlu0 %4988, %v4815
    %v4990 = vpop.permute.xlu0 %4989
    %4993 = vset.pattern.permute.xlu0 0
    %4994 = vperm.xlu0 %4993, %v4816
    %v4995 = vpop.permute.xlu0 %4994
    %4998 = vset.pattern.permute.xlu0 0
    %4999 = vperm.xlu0 %4998, %v4817
    %v5000 = vpop.permute.xlu0 %4999
    %5003 = vset.pattern.permute.xlu0 0
    %5004 = vperm.xlu0 %5003, %v4818
    %v5005 = vpop.permute.xlu0 %5004
    %5008 = vset.pattern.permute.xlu0 0
    %5009 = vperm.xlu0 %5008, %v4819
    %v5010 = vpop.permute.xlu0 %5009
    %5013 = vset.pattern.permute.xlu0 0
    %5014 = vperm.xlu0 %5013, %v4820
    %v5015 = vpop.permute.xlu0 %5014
    %5018 = vset.pattern.permute.xlu0 0
    %5019 = vperm.xlu0 %5018, %v4821
    %v5020 = vpop.permute.xlu0 %5019
    %5023 = vset.pattern.permute.xlu0 0
    %5024 = vperm.xlu0 %5023, %v4822
    %v5025 = vpop.permute.xlu0 %5024
    %5028 = vset.pattern.permute.xlu0 0
    %5029 = vperm.xlu0 %5028, %v4823
    %v5030 = vpop.permute.xlu0 %5029
    %5033 = vset.pattern.permute.xlu0 0
    %5034 = vperm.xlu0 %5033, %v4824
    %v5035 = vpop.permute.xlu0 %5034
    %5038 = vset.pattern.permute.xlu0 0
    %5039 = vperm.xlu0 %5038, %v4825
    %v5040 = vpop.permute.xlu0 %5039
    %5043 = vset.pattern.permute.xlu0 0
    %5044 = vperm.xlu0 %5043, %v4826
    %v5045 = vpop.permute.xlu0 %5044
    %5048 = vset.pattern.permute.xlu0 0
    %5049 = vperm.xlu0 %5048, %v4827
    %v5050 = vpop.permute.xlu0 %5049
    %v5084 = vunpack.c.l.b16 %v4828
    %v5085 = vunpack.c.l.b16 %v4829
    %v5086 = vunpack.c.l.b16 %v4830
    %v5087 = vunpack.c.l.b16 %v4831
    %v5088 = vunpack.c.l.b16 %v4832
    %v5089 = vunpack.c.l.b16 %v4833
    %v5090 = vunpack.c.l.b16 %v4834
    %v5091 = vunpack.c.l.b16 %v4835
    %v5092 = vunpack.c.l.b16 %v4836
    %v5093 = vunpack.c.l.b16 %v4837
    %v5094 = vunpack.c.l.b16 %v4838
    %v5095 = vunpack.c.l.b16 %v4839
    %v5096 = vunpack.c.l.b16 %v4840
    %v5097 = vunpack.c.l.b16 %v4841
    %v5098 = vunpack.c.l.b16 %v4842
    %v5099 = vunpack.c.l.b16 %v4843
    %v5100 = vunpack.c.l.b16 %v4844
    %v5101 = vunpack.c.l.b16 %v4845
    %v5102 = vunpack.c.l.b16 %v4846
    %v5103 = vunpack.c.l.b16 %v4847
    %v5104 = vunpack.c.l.b16 %v4848
    %v5105 = vunpack.c.l.b16 %v4849
    %v5106 = vunpack.c.l.b16 %v4850
    %v5107 = vunpack.c.l.b16 %v4851
    %v5108 = vunpack.c.l.b16 %v4852
    %v5109 = vunpack.c.l.b16 %v4853
    %v5110 = vunpack.c.l.b16 %v4854
    %v5111 = vunpack.c.l.b16 %v4855
    %v5112 = vunpack.c.l.b16 %v4856
    %v5113 = vunpack.c.l.b16 %v4857
    %v5114 = vunpack.c.l.b16 %v4858
    %v5115 = vunpack.c.l.b16 %v4859
    %v5116 = vpack.c.b16 %v5085, %v5084
    %v5117 = vpack.c.b16 %v5087, %v5086
    %v5118 = vpack.c.b16 %v5089, %v5088
    %v5119 = vpack.c.b16 %v5091, %v5090
    %v5120 = vpack.c.b16 %v5093, %v5092
    %v5121 = vpack.c.b16 %v5095, %v5094
    %v5122 = vpack.c.b16 %v5097, %v5096
    %v5123 = vpack.c.b16 %v5099, %v5098
    %v5124 = vpack.c.b16 %v5101, %v5100
    %v5125 = vpack.c.b16 %v5103, %v5102
    %v5126 = vpack.c.b16 %v5105, %v5104
    %v5127 = vpack.c.b16 %v5107, %v5106
    %v5128 = vpack.c.b16 %v5109, %v5108
    %v5129 = vpack.c.b16 %v5111, %v5110
    %v5130 = vpack.c.b16 %v5113, %v5112
    %v5131 = vpack.c.b16 %v5115, %v5114
    %v5133 = vsel %vm1339, %v5116, 0
    %v5136 = vsel %vm1339, %v5117, 0
    %v5139 = vsel %vm1339, %v5118, 0
    %v5142 = vsel %vm1339, %v5119, 0
    %v5145 = vsel %vm1339, %v5120, 0
    %v5148 = vsel %vm1339, %v5121, 0
    %v5151 = vsel %vm1339, %v5122, 0
    %v5154 = vsel %vm1339, %v5123, 0
    %v5157 = vsel %vm1339, %v5124, 0
    %v5160 = vsel %vm1339, %v5125, 0
    %v5163 = vsel %vm1339, %v5126, 0
    %v5166 = vsel %vm1339, %v5127, 0
    %v5169 = vsel %vm1339, %v5128, 0
    %v5172 = vsel %vm1339, %v5129, 0
    %v5175 = vsel %vm1339, %v5130, 0
    %v5178 = vsel %vm1339, %v5131, 0
    %5180 = vmatprep.subr.bf16.mxu0 %v4861
    %5181 = vmatpush1.bf16.msra.mxu0 %v4860
    %5182 = vmatprep.subr.bf16.mxu0 %v4869
    %5183 = vmatpush1.bf16.msra.mxu0 %v4868
    %5184 = vmatprep.subr.bf16.mxu0 %v4877
    %5185 = vmatpush1.bf16.msra.mxu0 %v4876
    %5186 = vmatprep.subr.bf16.mxu0 %v4885
    %5187 = vmatpush1.bf16.msra.mxu0 %v4884
    %5188 = vmatprep.subr.bf16.mxu0 0
    %5189 = vmatpush1.bf16.msra.mxu0 0
    %5190 = vmatprep.subr.bf16.mxu0 0
    %5191 = vmatpush1.bf16.msra.mxu0 0
    %5192 = vmatprep.subr.bf16.mxu0 0
    %5193 = vmatpush1.bf16.msra.mxu0 0
    %5194 = vmatprep.subr.bf16.mxu0 0
    %5195 = vmatpush1.bf16.msra.mxu0 0
    %5196 = vmatprep.subr.bf16.mxu0 0
    %5197 = vmatpush1.bf16.msra.mxu0 0
    %5198 = vmatprep.subr.bf16.mxu0 0
    %5199 = vmatpush1.bf16.msra.mxu0 0
    %5200 = vmatprep.subr.bf16.mxu0 0
    %5201 = vmatpush1.bf16.msra.mxu0 0
    %5202 = vmatprep.subr.bf16.mxu0 0
    %5203 = vmatpush1.bf16.msra.mxu0 0
    %5204 = vmatprep.subr.bf16.mxu0 0
    %5205 = vmatpush1.bf16.msra.mxu0 0
    %5206 = vmatprep.subr.bf16.mxu0 0
    %5207 = vmatpush1.bf16.msra.mxu0 0
    %5208 = vmatprep.subr.bf16.mxu0 0
    %5209 = vmatpush1.bf16.msra.mxu0 0
    %5210 = vmatprep.subr.bf16.mxu0 0
    %5211 = vmatpush1.bf16.msra.mxu0 0
    %5212 = vmatprep.mubr.bf16.mxu0 0
    %5213 = vmatmul.mubr.bf16.gmra.mrb[0].mxu0 %v5133
    %v5214 = vpop.f32.mrb[0].mxu0
    %v5215 = vadd.f32 %v4895, %v5214
    %v5216 = vpop.f32.mrb[0].mxu0
    %v5217 = vadd.f32 %v4895, %v5216
    %v5218 = vpop.f32.mrb[0].mxu0
    %v5219 = vadd.f32 %v4900, %v5218
    %v5220 = vpop.f32.mrb[0].mxu0
    %v5221 = vadd.f32 %v4900, %v5220
    %5222 = vmatprep.mubr.bf16.mxu0 0
    %5223 = vmatmul.mubr.bf16.gmra.mrb[0].mxu0 %v5136
    %v5224 = vpop.f32.mrb[0].mxu0
    %v5225 = vadd.f32 %v4905, %v5224
    %v5226 = vpop.f32.mrb[0].mxu0
    %v5227 = vadd.f32 %v4905, %v5226
    %v5228 = vpop.f32.mrb[0].mxu0
    %v5229 = vadd.f32 %v4910, %v5228
    %v5230 = vpop.f32.mrb[0].mxu0
    %v5231 = vadd.f32 %v4910, %v5230
    %5232 = vmatprep.mubr.bf16.mxu0 0
    %5233 = vmatmul.mubr.bf16.gmra.mrb[0].mxu0 %v5139
    %v5234 = vpop.f32.mrb[0].mxu0
    %v5235 = vadd.f32 %v4915, %v5234
    %v5236 = vpop.f32.mrb[0].mxu0
    %v5237 = vadd.f32 %v4915, %v5236
    %v5238 = vpop.f32.mrb[0].mxu0
    %v5239 = vadd.f32 %v4920, %v5238
    %v5240 = vpop.f32.mrb[0].mxu0
    %v5241 = vadd.f32 %v4920, %v5240
    %5242 = vmatprep.mubr.bf16.mxu0 0
    %5243 = vmatmul.mubr.bf16.gmra.mrb[0].mxu0 %v5142
    %v5244 = vpop.f32.mrb[0].mxu0
    %v5245 = vadd.f32 %v4925, %v5244
    %v5246 = vpop.f32.mrb[0].mxu0
    %v5247 = vadd.f32 %v4925, %v5246
    %v5248 = vpop.f32.mrb[0].mxu0
    %v5249 = vadd.f32 %v4930, %v5248
    %v5250 = vpop.f32.mrb[0].mxu0
    %v5251 = vadd.f32 %v4930, %v5250
    %5252 = vmatprep.mubr.bf16.mxu0 0
    %5253 = vmatmul.mubr.bf16.gmra.mrb[0].mxu0 %v5145
    %v5254 = vpop.f32.mrb[0].mxu0
    %v5255 = vadd.f32 %v4935, %v5254
    %v5256 = vpop.f32.mrb[0].mxu0
    %v5257 = vadd.f32 %v4935, %v5256
    %v5258 = vpop.f32.mrb[0].mxu0
    %v5259 = vadd.f32 %v4940, %v5258
    %v5260 = vpop.f32.mrb[0].mxu0
    %v5261 = vadd.f32 %v4940, %v5260
    %5262 = vmatprep.mubr.bf16.mxu0 0
    %5263 = vmatmul.mubr.bf16.gmra.mrb[0].mxu0 %v5148
    %v5264 = vpop.f32.mrb[0].mxu0
    %v5265 = vadd.f32 %v4945, %v5264
    %v5266 = vpop.f32.mrb[0].mxu0
    %v5267 = vadd.f32 %v4945, %v5266
    %v5268 = vpop.f32.mrb[0].mxu0
    %v5269 = vadd.f32 %v4950, %v5268
    %v5270 = vpop.f32.mrb[0].mxu0
    %v5271 = vadd.f32 %v4950, %v5270
    %5272 = vmatprep.mubr.bf16.mxu0 0
    %5273 = vmatmul.mubr.bf16.gmra.mrb[0].mxu0 %v5151
    %v5274 = vpop.f32.mrb[0].mxu0
    %v5275 = vadd.f32 %v4955, %v5274
    %v5276 = vpop.f32.mrb[0].mxu0
    %v5277 = vadd.f32 %v4955, %v5276
    %v5278 = vpop.f32.mrb[0].mxu0
    %v5279 = vadd.f32 %v4960, %v5278
    %v5280 = vpop.f32.mrb[0].mxu0
    %v5281 = vadd.f32 %v4960, %v5280
    %5282 = vmatprep.mubr.bf16.mxu0 0
    %5283 = vmatmul.mubr.bf16.gmra.mrb[0].mxu0 %v5154
    %v5284 = vpop.f32.mrb[0].mxu0
    %v5285 = vadd.f32 %v4965, %v5284
    %v5286 = vpop.f32.mrb[0].mxu0
    %v5287 = vadd.f32 %v4965, %v5286
    %v5288 = vpop.f32.mrb[0].mxu0
    %v5289 = vadd.f32 %v4970, %v5288
    %v5290 = vpop.f32.mrb[0].mxu0
    %v5291 = vadd.f32 %v4970, %v5290
    %5292 = vmatprep.mubr.bf16.mxu0 0
    %5293 = vmatmul.mubr.bf16.gmra.mrb[0].mxu0 %v5157
    %v5294 = vpop.f32.mrb[0].mxu0
    %v5295 = vadd.f32 %v4975, %v5294
    %v5296 = vpop.f32.mrb[0].mxu0
    %v5297 = vadd.f32 %v4975, %v5296
    %v5298 = vpop.f32.mrb[0].mxu0
    %v5299 = vadd.f32 %v4980, %v5298
    %v5300 = vpop.f32.mrb[0].mxu0
    %v5301 = vadd.f32 %v4980, %v5300
    %5302 = vmatprep.mubr.bf16.mxu0 0
    %5303 = vmatmul.mubr.bf16.gmra.mrb[0].mxu0 %v5160
    %v5304 = vpop.f32.mrb[0].mxu0
    %v5305 = vadd.f32 %v4985, %v5304
    %v5306 = vpop.f32.mrb[0].mxu0
    %v5307 = vadd.f32 %v4985, %v5306
    %v5308 = vpop.f32.mrb[0].mxu0
    %v5309 = vadd.f32 %v4990, %v5308
    %v5310 = vpop.f32.mrb[0].mxu0
    %v5311 = vadd.f32 %v4990, %v5310
    %5312 = vmatprep.mubr.bf16.mxu0 0
    %5313 = vmatmul.mubr.bf16.gmra.mrb[0].mxu0 %v5163
    %v5314 = vpop.f32.mrb[0].mxu0
    %v5315 = vadd.f32 %v4995, %v5314
    %v5316 = vpop.f32.mrb[0].mxu0
    %v5317 = vadd.f32 %v4995, %v5316
    %v5318 = vpop.f32.mrb[0].mxu0
    %v5319 = vadd.f32 %v5000, %v5318
    %v5320 = vpop.f32.mrb[0].mxu0
    %v5321 = vadd.f32 %v5000, %v5320
    %5322 = vmatprep.mubr.bf16.mxu0 0
    %5323 = vmatmul.mubr.bf16.gmra.mrb[0].mxu0 %v5166
    %v5324 = vpop.f32.mrb[0].mxu0
    %v5325 = vadd.f32 %v5005, %v5324
    %v5326 = vpop.f32.mrb[0].mxu0
    %v5327 = vadd.f32 %v5005, %v5326
    %v5328 = vpop.f32.mrb[0].mxu0
    %v5329 = vadd.f32 %v5010, %v5328
    %v5330 = vpop.f32.mrb[0].mxu0
    %v5331 = vadd.f32 %v5010, %v5330
    %5332 = vmatprep.mubr.bf16.mxu0 0
    %5333 = vmatmul.mubr.bf16.gmra.mrb[0].mxu0 %v5169
    %v5334 = vpop.f32.mrb[0].mxu0
    %v5335 = vadd.f32 %v5015, %v5334
    %v5336 = vpop.f32.mrb[0].mxu0
    %v5337 = vadd.f32 %v5015, %v5336
    %v5338 = vpop.f32.mrb[0].mxu0
    %v5339 = vadd.f32 %v5020, %v5338
    %v5340 = vpop.f32.mrb[0].mxu0
    %v5341 = vadd.f32 %v5020, %v5340
    %5342 = vmatprep.mubr.bf16.mxu0 0
    %5343 = vmatmul.mubr.bf16.gmra.mrb[0].mxu0 %v5172
    %v5344 = vpop.f32.mrb[0].mxu0
    %v5345 = vadd.f32 %v5025, %v5344
    %v5346 = vpop.f32.mrb[0].mxu0
    %v5347 = vadd.f32 %v5025, %v5346
    %v5348 = vpop.f32.mrb[0].mxu0
    %v5349 = vadd.f32 %v5030, %v5348
    %v5350 = vpop.f32.mrb[0].mxu0
    %v5351 = vadd.f32 %v5030, %v5350
    %5352 = vmatprep.mubr.bf16.mxu0 0
    %5353 = vmatmul.mubr.bf16.gmra.mrb[0].mxu0 %v5175
    %v5354 = vpop.f32.mrb[0].mxu0
    %v5355 = vadd.f32 %v5035, %v5354
    %v5356 = vpop.f32.mrb[0].mxu0
    %v5357 = vadd.f32 %v5035, %v5356
    %v5358 = vpop.f32.mrb[0].mxu0
    %v5359 = vadd.f32 %v5040, %v5358
    %v5360 = vpop.f32.mrb[0].mxu0
    %v5361 = vadd.f32 %v5040, %v5360
    %5362 = vmatprep.mubr.bf16.mxu0 0
    %5363 = vmatmul.mubr.bf16.gmra.mrb[0].mxu0 %v5178
    %v5364 = vpop.f32.mrb[0].mxu0
    %v5365 = vadd.f32 %v5045, %v5364
    %v5366 = vpop.f32.mrb[0].mxu0
    %v5367 = vadd.f32 %v5045, %v5366
    %v5368 = vpop.f32.mrb[0].mxu0
    %v5369 = vadd.f32 %v5050, %v5368
    %v5370 = vpop.f32.mrb[0].mxu0
    %v5371 = vadd.f32 %v5050, %v5370
    %5372 = vdwg.mxu0
    %5373 = vmatprep.subr.bf16.mxu0 %v4863
    %5374 = vmatpush1.bf16.msra.mxu0 %v4862
    %5375 = vmatprep.subr.bf16.mxu0 %v4871
    %5376 = vmatpush1.bf16.msra.mxu0 %v4870
    %5377 = vmatprep.subr.bf16.mxu0 %v4879
    %5378 = vmatpush1.bf16.msra.mxu0 %v4878
    %5379 = vmatprep.subr.bf16.mxu0 %v4887
    %5380 = vmatpush1.bf16.msra.mxu0 %v4886
    %5381 = vmatprep.subr.bf16.mxu0 0
    %5382 = vmatpush1.bf16.msra.mxu0 0
    %5383 = vmatprep.subr.bf16.mxu0 0
    %5384 = vmatpush1.bf16.msra.mxu0 0
    %5385 = vmatprep.subr.bf16.mxu0 0
    %5386 = vmatpush1.bf16.msra.mxu0 0
    %5387 = vmatprep.subr.bf16.mxu0 0
    %5388 = vmatpush1.bf16.msra.mxu0 0
    %5389 = vmatprep.subr.bf16.mxu0 0
    %5390 = vmatpush1.bf16.msra.mxu0 0
    %5391 = vmatprep.subr.bf16.mxu0 0
    %5392 = vmatpush1.bf16.msra.mxu0 0
    %5393 = vmatprep.subr.bf16.mxu0 0
    %5394 = vmatpush1.bf16.msra.mxu0 0
    %5395 = vmatprep.subr.bf16.mxu0 0
    %5396 = vmatpush1.bf16.msra.mxu0 0
    %5397 = vmatprep.subr.bf16.mxu0 0
    %5398 = vmatpush1.bf16.msra.mxu0 0
    %5399 = vmatprep.subr.bf16.mxu0 0
    %5400 = vmatpush1.bf16.msra.mxu0 0
    %5401 = vmatprep.subr.bf16.mxu0 0
    %5402 = vmatpush1.bf16.msra.mxu0 0
    %5403 = vmatprep.subr.bf16.mxu0 0
    %5404 = vmatpush1.bf16.msra.mxu0 0
    %5405 = vmatprep.mubr.bf16.mxu0 0
    %5406 = vmatmul.mubr.bf16.gmra.mrb[0].mxu0 %v5133
    %v5407 = vpop.f32.mrb[0].mxu0
    %v5408 = vadd.f32 %v4895, %v5407
    %v5409 = vpop.f32.mrb[0].mxu0
    %v5410 = vadd.f32 %v4895, %v5409
    %v5411 = vpop.f32.mrb[0].mxu0
    %v5412 = vadd.f32 %v4900, %v5411
    %v5413 = vpop.f32.mrb[0].mxu0
    %v5414 = vadd.f32 %v4900, %v5413
    %5415 = vmatprep.mubr.bf16.mxu0 0
    %5416 = vmatmul.mubr.bf16.gmra.mrb[0].mxu0 %v5136
    %v5417 = vpop.f32.mrb[0].mxu0
    %v5418 = vadd.f32 %v4905, %v5417
    %v5419 = vpop.f32.mrb[0].mxu0
    %v5420 = vadd.f32 %v4905, %v5419
    %v5421 = vpop.f32.mrb[0].mxu0
    %v5422 = vadd.f32 %v4910, %v5421
    %v5423 = vpop.f32.mrb[0].mxu0
    %v5424 = vadd.f32 %v4910, %v5423
    %5425 = vmatprep.mubr.bf16.mxu0 0
    %5426 = vmatmul.mubr.bf16.gmra.mrb[0].mxu0 %v5139
    %v5427 = vpop.f32.mrb[0].mxu0
    %v5428 = vadd.f32 %v4915, %v5427
    %v5429 = vpop.f32.mrb[0].mxu0
    %v5430 = vadd.f32 %v4915, %v5429
    %v5431 = vpop.f32.mrb[0].mxu0
    %v5432 = vadd.f32 %v4920, %v5431
    %v5433 = vpop.f32.mrb[0].mxu0
    %v5434 = vadd.f32 %v4920, %v5433
    %5435 = vmatprep.mubr.bf16.mxu0 0
    %5436 = vmatmul.mubr.bf16.gmra.mrb[0].mxu0 %v5142
    %v5437 = vpop.f32.mrb[0].mxu0
    %v5438 = vadd.f32 %v4925, %v5437
    %v5439 = vpop.f32.mrb[0].mxu0
    %v5440 = vadd.f32 %v4925, %v5439
    %v5441 = vpop.f32.mrb[0].mxu0
    %v5442 = vadd.f32 %v4930, %v5441
    %v5443 = vpop.f32.mrb[0].mxu0
    %v5444 = vadd.f32 %v4930, %v5443
    %5445 = vmatprep.mubr.bf16.mxu0 0
    %5446 = vmatmul.mubr.bf16.gmra.mrb[0].mxu0 %v5145
    %v5447 = vpop.f32.mrb[0].mxu0
    %v5448 = vadd.f32 %v4935, %v5447
    %v5449 = vpop.f32.mrb[0].mxu0
    %v5450 = vadd.f32 %v4935, %v5449
    %v5451 = vpop.f32.mrb[0].mxu0
    %v5452 = vadd.f32 %v4940, %v5451
    %v5453 = vpop.f32.mrb[0].mxu0
    %v5454 = vadd.f32 %v4940, %v5453
    %5455 = vmatprep.mubr.bf16.mxu0 0
    %5456 = vmatmul.mubr.bf16.gmra.mrb[0].mxu0 %v5148
    %v5457 = vpop.f32.mrb[0].mxu0
    %v5458 = vadd.f32 %v4945, %v5457
    %v5459 = vpop.f32.mrb[0].mxu0
    %v5460 = vadd.f32 %v4945, %v5459
    %v5461 = vpop.f32.mrb[0].mxu0
    %v5462 = vadd.f32 %v4950, %v5461
    %v5463 = vpop.f32.mrb[0].mxu0
    %v5464 = vadd.f32 %v4950, %v5463
    %5465 = vmatprep.mubr.bf16.mxu0 0
    %5466 = vmatmul.mubr.bf16.gmra.mrb[0].mxu0 %v5151
    %v5467 = vpop.f32.mrb[0].mxu0
    %v5468 = vadd.f32 %v4955, %v5467
    %v5469 = vpop.f32.mrb[0].mxu0
    %v5470 = vadd.f32 %v4955, %v5469
    %v5471 = vpop.f32.mrb[0].mxu0
    %v5472 = vadd.f32 %v4960, %v5471
    %v5473 = vpop.f32.mrb[0].mxu0
    %v5474 = vadd.f32 %v4960, %v5473
    %5475 = vmatprep.mubr.bf16.mxu0 0
    %5476 = vmatmul.mubr.bf16.gmra.mrb[0].mxu0 %v5154
    %v5477 = vpop.f32.mrb[0].mxu0
    %v5478 = vadd.f32 %v4965, %v5477
    %v5479 = vpop.f32.mrb[0].mxu0
    %v5480 = vadd.f32 %v4965, %v5479
    %v5481 = vpop.f32.mrb[0].mxu0
    %v5482 = vadd.f32 %v4970, %v5481
    %v5483 = vpop.f32.mrb[0].mxu0
    %v5484 = vadd.f32 %v4970, %v5483
    %5485 = vmatprep.mubr.bf16.mxu0 0
    %5486 = vmatmul.mubr.bf16.gmra.mrb[0].mxu0 %v5157
    %v5487 = vpop.f32.mrb[0].mxu0
    %v5488 = vadd.f32 %v4975, %v5487
    %v5489 = vpop.f32.mrb[0].mxu0
    %v5490 = vadd.f32 %v4975, %v5489
    %v5491 = vpop.f32.mrb[0].mxu0
    %v5492 = vadd.f32 %v4980, %v5491
    %v5493 = vpop.f32.mrb[0].mxu0
    %v5494 = vadd.f32 %v4980, %v5493
    %5495 = vmatprep.mubr.bf16.mxu0 0
    %5496 = vmatmul.mubr.bf16.gmra.mrb[0].mxu0 %v5160
    %v5497 = vpop.f32.mrb[0].mxu0
    %v5498 = vadd.f32 %v4985, %v5497
    %v5499 = vpop.f32.mrb[0].mxu0
    %v5500 = vadd.f32 %v4985, %v5499
    %v5501 = vpop.f32.mrb[0].mxu0
    %v5502 = vadd.f32 %v4990, %v5501
    %v5503 = vpop.f32.mrb[0].mxu0
    %v5504 = vadd.f32 %v4990, %v5503
    %5505 = vmatprep.mubr.bf16.mxu0 0
    %5506 = vmatmul.mubr.bf16.gmra.mrb[0].mxu0 %v5163
    %v5507 = vpop.f32.mrb[0].mxu0
    %v5508 = vadd.f32 %v4995, %v5507
    %v5509 = vpop.f32.mrb[0].mxu0
    %v5510 = vadd.f32 %v4995, %v5509
    %v5511 = vpop.f32.mrb[0].mxu0
    %v5512 = vadd.f32 %v5000, %v5511
    %v5513 = vpop.f32.mrb[0].mxu0
    %v5514 = vadd.f32 %v5000, %v5513
    %5515 = vmatprep.mubr.bf16.mxu0 0
    %5516 = vmatmul.mubr.bf16.gmra.mrb[0].mxu0 %v5166
    %v5517 = vpop.f32.mrb[0].mxu0
    %v5518 = vadd.f32 %v5005, %v5517
    %v5519 = vpop.f32.mrb[0].mxu0
    %v5520 = vadd.f32 %v5005, %v5519
    %v5521 = vpop.f32.mrb[0].mxu0
    %v5522 = vadd.f32 %v5010, %v5521
    %v5523 = vpop.f32.mrb[0].mxu0
    %v5524 = vadd.f32 %v5010, %v5523
    %5525 = vmatprep.mubr.bf16.mxu0 0
    %5526 = vmatmul.mubr.bf16.gmra.mrb[0].mxu0 %v5169
    %v5527 = vpop.f32.mrb[0].mxu0
    %v5528 = vadd.f32 %v5015, %v5527
    %v5529 = vpop.f32.mrb[0].mxu0
    %v5530 = vadd.f32 %v5015, %v5529
    %v5531 = vpop.f32.mrb[0].mxu0
    %v5532 = vadd.f32 %v5020, %v5531
    %v5533 = vpop.f32.mrb[0].mxu0
    %v5534 = vadd.f32 %v5020, %v5533
    %5535 = vmatprep.mubr.bf16.mxu0 0
    %5536 = vmatmul.mubr.bf16.gmra.mrb[0].mxu0 %v5172
    %v5537 = vpop.f32.mrb[0].mxu0
    %v5538 = vadd.f32 %v5025, %v5537
    %v5539 = vpop.f32.mrb[0].mxu0
    %v5540 = vadd.f32 %v5025, %v5539
    %v5541 = vpop.f32.mrb[0].mxu0
    %v5542 = vadd.f32 %v5030, %v5541
    %v5543 = vpop.f32.mrb[0].mxu0
    %v5544 = vadd.f32 %v5030, %v5543
    %5545 = vmatprep.mubr.bf16.mxu0 0
    %5546 = vmatmul.mubr.bf16.gmra.mrb[0].mxu0 %v5175
    %v5547 = vpop.f32.mrb[0].mxu0
    %v5548 = vadd.f32 %v5035, %v5547
    %v5549 = vpop.f32.mrb[0].mxu0
    %v5550 = vadd.f32 %v5035, %v5549
    %v5551 = vpop.f32.mrb[0].mxu0
    %v5552 = vadd.f32 %v5040, %v5551
    %v5553 = vpop.f32.mrb[0].mxu0
    %v5554 = vadd.f32 %v5040, %v5553
    %5555 = vmatprep.mubr.bf16.mxu0 0
    %5556 = vmatmul.mubr.bf16.gmra.mrb[0].mxu0 %v5178
    %v5557 = vpop.f32.mrb[0].mxu0
    %v5558 = vadd.f32 %v5045, %v5557
    %v5559 = vpop.f32.mrb[0].mxu0
    %v5560 = vadd.f32 %v5045, %v5559
    %v5561 = vpop.f32.mrb[0].mxu0
    %v5562 = vadd.f32 %v5050, %v5561
    %v5563 = vpop.f32.mrb[0].mxu0
    %v5564 = vadd.f32 %v5050, %v5563
    %5565 = vdwg.mxu0
    %5566 = vmatprep.subr.bf16.mxu0 %v4865
    %5567 = vmatpush1.bf16.msra.mxu0 %v4864
    %5568 = vmatprep.subr.bf16.mxu0 %v4873
    %5569 = vmatpush1.bf16.msra.mxu0 %v4872
    %5570 = vmatprep.subr.bf16.mxu0 %v4881
    %5571 = vmatpush1.bf16.msra.mxu0 %v4880
    %5572 = vmatprep.subr.bf16.mxu0 %v4889
    %5573 = vmatpush1.bf16.msra.mxu0 %v4888
    %5574 = vmatprep.subr.bf16.mxu0 0
    %5575 = vmatpush1.bf16.msra.mxu0 0
    %5576 = vmatprep.subr.bf16.mxu0 0
    %5577 = vmatpush1.bf16.msra.mxu0 0
    %5578 = vmatprep.subr.bf16.mxu0 0
    %5579 = vmatpush1.bf16.msra.mxu0 0
    %5580 = vmatprep.subr.bf16.mxu0 0
    %5581 = vmatpush1.bf16.msra.mxu0 0
    %5582 = vmatprep.subr.bf16.mxu0 0
    %5583 = vmatpush1.bf16.msra.mxu0 0
    %5584 = vmatprep.subr.bf16.mxu0 0
    %5585 = vmatpush1.bf16.msra.mxu0 0
    %5586 = vmatprep.subr.bf16.mxu0 0
    %5587 = vmatpush1.bf16.msra.mxu0 0
    %5588 = vmatprep.subr.bf16.mxu0 0
    %5589 = vmatpush1.bf16.msra.mxu0 0
    %5590 = vmatprep.subr.bf16.mxu0 0
    %5591 = vmatpush1.bf16.msra.mxu0 0
    %5592 = vmatprep.subr.bf16.mxu0 0
    %5593 = vmatpush1.bf16.msra.mxu0 0
    %5594 = vmatprep.subr.bf16.mxu0 0
    %5595 = vmatpush1.bf16.msra.mxu0 0
    %5596 = vmatprep.subr.bf16.mxu0 0
    %5597 = vmatpush1.bf16.msra.mxu0 0
    %5598 = vmatprep.mubr.bf16.mxu0 0
    %5599 = vmatmul.mubr.bf16.gmra.mrb[0].mxu0 %v5133
    %v5600 = vpop.f32.mrb[0].mxu0
    %v5601 = vadd.f32 %v4895, %v5600
    %v5602 = vpop.f32.mrb[0].mxu0
    %v5603 = vadd.f32 %v4895, %v5602
    %v5604 = vpop.f32.mrb[0].mxu0
    %v5605 = vadd.f32 %v4900, %v5604
    %v5606 = vpop.f32.mrb[0].mxu0
    %v5607 = vadd.f32 %v4900, %v5606
    %5608 = vmatprep.mubr.bf16.mxu0 0
    %5609 = vmatmul.mubr.bf16.gmra.mrb[0].mxu0 %v5136
    %v5610 = vpop.f32.mrb[0].mxu0
    %v5611 = vadd.f32 %v4905, %v5610
    %v5612 = vpop.f32.mrb[0].mxu0
    %v5613 = vadd.f32 %v4905, %v5612
    %v5614 = vpop.f32.mrb[0].mxu0
    %v5615 = vadd.f32 %v4910, %v5614
    %v5616 = vpop.f32.mrb[0].mxu0
    %v5617 = vadd.f32 %v4910, %v5616
    %5618 = vmatprep.mubr.bf16.mxu0 0
    %5619 = vmatmul.mubr.bf16.gmra.mrb[0].mxu0 %v5139
    %v5620 = vpop.f32.mrb[0].mxu0
    %v5621 = vadd.f32 %v4915, %v5620
    %v5622 = vpop.f32.mrb[0].mxu0
    %v5623 = vadd.f32 %v4915, %v5622
    %v5624 = vpop.f32.mrb[0].mxu0
    %v5625 = vadd.f32 %v4920, %v5624
    %v5626 = vpop.f32.mrb[0].mxu0
    %v5627 = vadd.f32 %v4920, %v5626
    %5628 = vmatprep.mubr.bf16.mxu0 0
    %5629 = vmatmul.mubr.bf16.gmra.mrb[0].mxu0 %v5142
    %v5630 = vpop.f32.mrb[0].mxu0
    %v5631 = vadd.f32 %v4925, %v5630
    %v5632 = vpop.f32.mrb[0].mxu0
    %v5633 = vadd.f32 %v4925, %v5632
    %v5634 = vpop.f32.mrb[0].mxu0
    %v5635 = vadd.f32 %v4930, %v5634
    %v5636 = vpop.f32.mrb[0].mxu0
    %v5637 = vadd.f32 %v4930, %v5636
    %5638 = vmatprep.mubr.bf16.mxu0 0
    %5639 = vmatmul.mubr.bf16.gmra.mrb[0].mxu0 %v5145
    %v5640 = vpop.f32.mrb[0].mxu0
    %v5641 = vadd.f32 %v4935, %v5640
    %v5642 = vpop.f32.mrb[0].mxu0
    %v5643 = vadd.f32 %v4935, %v5642
    %v5644 = vpop.f32.mrb[0].mxu0
    %v5645 = vadd.f32 %v4940, %v5644
    %v5646 = vpop.f32.mrb[0].mxu0
    %v5647 = vadd.f32 %v4940, %v5646
    %5648 = vmatprep.mubr.bf16.mxu0 0
    %5649 = vmatmul.mubr.bf16.gmra.mrb[0].mxu0 %v5148
    %v5650 = vpop.f32.mrb[0].mxu0
    %v5651 = vadd.f32 %v4945, %v5650
    %v5652 = vpop.f32.mrb[0].mxu0
    %v5653 = vadd.f32 %v4945, %v5652
    %v5654 = vpop.f32.mrb[0].mxu0
    %v5655 = vadd.f32 %v4950, %v5654
    %v5656 = vpop.f32.mrb[0].mxu0
    %v5657 = vadd.f32 %v4950, %v5656
    %5658 = vmatprep.mubr.bf16.mxu0 0
    %5659 = vmatmul.mubr.bf16.gmra.mrb[0].mxu0 %v5151
    %v5660 = vpop.f32.mrb[0].mxu0
    %v5661 = vadd.f32 %v4955, %v5660
    %v5662 = vpop.f32.mrb[0].mxu0
    %v5663 = vadd.f32 %v4955, %v5662
    %v5664 = vpop.f32.mrb[0].mxu0
    %v5665 = vadd.f32 %v4960, %v5664
    %v5666 = vpop.f32.mrb[0].mxu0
    %v5667 = vadd.f32 %v4960, %v5666
    %5668 = vmatprep.mubr.bf16.mxu0 0
    %5669 = vmatmul.mubr.bf16.gmra.mrb[0].mxu0 %v5154
    %v5670 = vpop.f32.mrb[0].mxu0
    %v5671 = vadd.f32 %v4965, %v5670
    %v5672 = vpop.f32.mrb[0].mxu0
    %v5673 = vadd.f32 %v4965, %v5672
    %v5674 = vpop.f32.mrb[0].mxu0
    %v5675 = vadd.f32 %v4970, %v5674
    %v5676 = vpop.f32.mrb[0].mxu0
    %v5677 = vadd.f32 %v4970, %v5676
    %5678 = vmatprep.mubr.bf16.mxu0 0
    %5679 = vmatmul.mubr.bf16.gmra.mrb[0].mxu0 %v5157
    %v5680 = vpop.f32.mrb[0].mxu0
    %v5681 = vadd.f32 %v4975, %v5680
    %v5682 = vpop.f32.mrb[0].mxu0
    %v5683 = vadd.f32 %v4975, %v5682
    %v5684 = vpop.f32.mrb[0].mxu0
    %v5685 = vadd.f32 %v4980, %v5684
    %v5686 = vpop.f32.mrb[0].mxu0
    %v5687 = vadd.f32 %v4980, %v5686
    %5688 = vmatprep.mubr.bf16.mxu0 0
    %5689 = vmatmul.mubr.bf16.gmra.mrb[0].mxu0 %v5160
    %v5690 = vpop.f32.mrb[0].mxu0
    %v5691 = vadd.f32 %v4985, %v5690
    %v5692 = vpop.f32.mrb[0].mxu0
    %v5693 = vadd.f32 %v4985, %v5692
    %v5694 = vpop.f32.mrb[0].mxu0
    %v5695 = vadd.f32 %v4990, %v5694
    %v5696 = vpop.f32.mrb[0].mxu0
    %v5697 = vadd.f32 %v4990, %v5696
    %5698 = vmatprep.mubr.bf16.mxu0 0
    %5699 = vmatmul.mubr.bf16.gmra.mrb[0].mxu0 %v5163
    %v5700 = vpop.f32.mrb[0].mxu0
    %v5701 = vadd.f32 %v4995, %v5700
    %v5702 = vpop.f32.mrb[0].mxu0
    %v5703 = vadd.f32 %v4995, %v5702
    %v5704 = vpop.f32.mrb[0].mxu0
    %v5705 = vadd.f32 %v5000, %v5704
    %v5706 = vpop.f32.mrb[0].mxu0
    %v5707 = vadd.f32 %v5000, %v5706
    %5708 = vmatprep.mubr.bf16.mxu0 0
    %5709 = vmatmul.mubr.bf16.gmra.mrb[0].mxu0 %v5166
    %v5710 = vpop.f32.mrb[0].mxu0
    %v5711 = vadd.f32 %v5005, %v5710
    %v5712 = vpop.f32.mrb[0].mxu0
    %v5713 = vadd.f32 %v5005, %v5712
    %v5714 = vpop.f32.mrb[0].mxu0
    %v5715 = vadd.f32 %v5010, %v5714
    %v5716 = vpop.f32.mrb[0].mxu0
    %v5717 = vadd.f32 %v5010, %v5716
    %5718 = vmatprep.mubr.bf16.mxu0 0
    %5719 = vmatmul.mubr.bf16.gmra.mrb[0].mxu0 %v5169
    %v5720 = vpop.f32.mrb[0].mxu0
    %v5721 = vadd.f32 %v5015, %v5720
    %v5722 = vpop.f32.mrb[0].mxu0
    %v5723 = vadd.f32 %v5015, %v5722
    %v5724 = vpop.f32.mrb[0].mxu0
    %v5725 = vadd.f32 %v5020, %v5724
    %v5726 = vpop.f32.mrb[0].mxu0
    %v5727 = vadd.f32 %v5020, %v5726
    %5728 = vmatprep.mubr.bf16.mxu0 0
    %5729 = vmatmul.mubr.bf16.gmra.mrb[0].mxu0 %v5172
    %v5730 = vpop.f32.mrb[0].mxu0
    %v5731 = vadd.f32 %v5025, %v5730
    %v5732 = vpop.f32.mrb[0].mxu0
    %v5733 = vadd.f32 %v5025, %v5732
    %v5734 = vpop.f32.mrb[0].mxu0
    %v5735 = vadd.f32 %v5030, %v5734
    %v5736 = vpop.f32.mrb[0].mxu0
    %v5737 = vadd.f32 %v5030, %v5736
    %5738 = vmatprep.mubr.bf16.mxu0 0
    %5739 = vmatmul.mubr.bf16.gmra.mrb[0].mxu0 %v5175
    %v5740 = vpop.f32.mrb[0].mxu0
    %v5741 = vadd.f32 %v5035, %v5740
    %v5742 = vpop.f32.mrb[0].mxu0
    %v5743 = vadd.f32 %v5035, %v5742
    %v5744 = vpop.f32.mrb[0].mxu0
    %v5745 = vadd.f32 %v5040, %v5744
    %v5746 = vpop.f32.mrb[0].mxu0
    %v5747 = vadd.f32 %v5040, %v5746
    %5748 = vmatprep.mubr.bf16.mxu0 0
    %5749 = vmatmul.mubr.bf16.gmra.mrb[0].mxu0 %v5178
    %v5750 = vpop.f32.mrb[0].mxu0
    %v5751 = vadd.f32 %v5045, %v5750
    %v5752 = vpop.f32.mrb[0].mxu0
    %v5753 = vadd.f32 %v5045, %v5752
    %v5754 = vpop.f32.mrb[0].mxu0
    %v5755 = vadd.f32 %v5050, %v5754
    %v5756 = vpop.f32.mrb[0].mxu0
    %v5757 = vadd.f32 %v5050, %v5756
    %5758 = vdwg.mxu0
    %5759 = vmatprep.subr.bf16.mxu0 %v4867
    %5760 = vmatpush1.bf16.msra.mxu0 %v4866
    %5761 = vmatprep.subr.bf16.mxu0 %v4875
    %5762 = vmatpush1.bf16.msra.mxu0 %v4874
    %5763 = vmatprep.subr.bf16.mxu0 %v4883
    %5764 = vmatpush1.bf16.msra.mxu0 %v4882
    %5765 = vmatprep.subr.bf16.mxu0 %v4891
    %5766 = vmatpush1.bf16.msra.mxu0 %v4890
    %5767 = vmatprep.subr.bf16.mxu0 0
    %5768 = vmatpush1.bf16.msra.mxu0 0
    %5769 = vmatprep.subr.bf16.mxu0 0
    %5770 = vmatpush1.bf16.msra.mxu0 0
    %5771 = vmatprep.subr.bf16.mxu0 0
    %5772 = vmatpush1.bf16.msra.mxu0 0
    %5773 = vmatprep.subr.bf16.mxu0 0
    %5774 = vmatpush1.bf16.msra.mxu0 0
    %5775 = vmatprep.subr.bf16.mxu0 0
    %5776 = vmatpush1.bf16.msra.mxu0 0
    %5777 = vmatprep.subr.bf16.mxu0 0
    %5778 = vmatpush1.bf16.msra.mxu0 0
    %5779 = vmatprep.subr.bf16.mxu0 0
    %5780 = vmatpush1.bf16.msra.mxu0 0
    %5781 = vmatprep.subr.bf16.mxu0 0
    %5782 = vmatpush1.bf16.msra.mxu0 0
    %5783 = vmatprep.subr.bf16.mxu0 0
    %5784 = vmatpush1.bf16.msra.mxu0 0
    %5785 = vmatprep.subr.bf16.mxu0 0
    %5786 = vmatpush1.bf16.msra.mxu0 0
    %5787 = vmatprep.subr.bf16.mxu0 0
    %5788 = vmatpush1.bf16.msra.mxu0 0
    %5789 = vmatprep.subr.bf16.mxu0 0
    %5790 = vmatpush1.bf16.msra.mxu0 0
    %5791 = vmatprep.mubr.bf16.mxu0 0
    %5792 = vmatmul.mubr.bf16.gmra.mrb[0].mxu0 %v5133
    %v5793 = vpop.f32.mrb[0].mxu0
    %v5794 = vadd.f32 %v4895, %v5793
    %v5795 = vpop.f32.mrb[0].mxu0
    %v5796 = vadd.f32 %v4895, %v5795
    %v5797 = vpop.f32.mrb[0].mxu0
    %v5798 = vadd.f32 %v4900, %v5797
    %v5799 = vpop.f32.mrb[0].mxu0
    %v5800 = vadd.f32 %v4900, %v5799
    %5801 = vmatprep.mubr.bf16.mxu0 0
    %5802 = vmatmul.mubr.bf16.gmra.mrb[0].mxu0 %v5136
    %v5803 = vpop.f32.mrb[0].mxu0
    %v5804 = vadd.f32 %v4905, %v5803
    %v5805 = vpop.f32.mrb[0].mxu0
    %v5806 = vadd.f32 %v4905, %v5805
    %v5807 = vpop.f32.mrb[0].mxu0
    %v5808 = vadd.f32 %v4910, %v5807
    %v5809 = vpop.f32.mrb[0].mxu0
    %v5810 = vadd.f32 %v4910, %v5809
    %5811 = vmatprep.mubr.bf16.mxu0 0
    %5812 = vmatmul.mubr.bf16.gmra.mrb[0].mxu0 %v5139
    %v5813 = vpop.f32.mrb[0].mxu0
    %v5814 = vadd.f32 %v4915, %v5813
    %v5815 = vpop.f32.mrb[0].mxu0
    %v5816 = vadd.f32 %v4915, %v5815
    %v5817 = vpop.f32.mrb[0].mxu0
    %v5818 = vadd.f32 %v4920, %v5817
    %v5819 = vpop.f32.mrb[0].mxu0
    %v5820 = vadd.f32 %v4920, %v5819
    %5821 = vmatprep.mubr.bf16.mxu0 0
    %5822 = vmatmul.mubr.bf16.gmra.mrb[0].mxu0 %v5142
    %v5823 = vpop.f32.mrb[0].mxu0
    %v5824 = vadd.f32 %v4925, %v5823
    %v5825 = vpop.f32.mrb[0].mxu0
    %v5826 = vadd.f32 %v4925, %v5825
    %v5827 = vpop.f32.mrb[0].mxu0
    %v5828 = vadd.f32 %v4930, %v5827
    %v5829 = vpop.f32.mrb[0].mxu0
    %v5830 = vadd.f32 %v4930, %v5829
    %5831 = vmatprep.mubr.bf16.mxu0 0
    %5832 = vmatmul.mubr.bf16.gmra.mrb[0].mxu0 %v5145
    %v5833 = vpop.f32.mrb[0].mxu0
    %v5834 = vadd.f32 %v4935, %v5833
    %v5835 = vpop.f32.mrb[0].mxu0
    %v5836 = vadd.f32 %v4935, %v5835
    %v5837 = vpop.f32.mrb[0].mxu0
    %v5838 = vadd.f32 %v4940, %v5837
    %v5839 = vpop.f32.mrb[0].mxu0
    %v5840 = vadd.f32 %v4940, %v5839
    %5841 = vmatprep.mubr.bf16.mxu0 0
    %5842 = vmatmul.mubr.bf16.gmra.mrb[0].mxu0 %v5148
    %v5843 = vpop.f32.mrb[0].mxu0
    %v5844 = vadd.f32 %v4945, %v5843
    %v5845 = vpop.f32.mrb[0].mxu0
    %v5846 = vadd.f32 %v4945, %v5845
    %v5847 = vpop.f32.mrb[0].mxu0
    %v5848 = vadd.f32 %v4950, %v5847
    %v5849 = vpop.f32.mrb[0].mxu0
    %v5850 = vadd.f32 %v4950, %v5849
    %5851 = vmatprep.mubr.bf16.mxu0 0
    %5852 = vmatmul.mubr.bf16.gmra.mrb[0].mxu0 %v5151
    %v5853 = vpop.f32.mrb[0].mxu0
    %v5854 = vadd.f32 %v4955, %v5853
    %v5855 = vpop.f32.mrb[0].mxu0
    %v5856 = vadd.f32 %v4955, %v5855
    %v5857 = vpop.f32.mrb[0].mxu0
    %v5858 = vadd.f32 %v4960, %v5857
    %v5859 = vpop.f32.mrb[0].mxu0
    %v5860 = vadd.f32 %v4960, %v5859
    %5861 = vmatprep.mubr.bf16.mxu0 0
    %5862 = vmatmul.mubr.bf16.gmra.mrb[0].mxu0 %v5154
    %v5863 = vpop.f32.mrb[0].mxu0
    %v5864 = vadd.f32 %v4965, %v5863
    %v5865 = vpop.f32.mrb[0].mxu0
    %v5866 = vadd.f32 %v4965, %v5865
    %v5867 = vpop.f32.mrb[0].mxu0
    %v5868 = vadd.f32 %v4970, %v5867
    %v5869 = vpop.f32.mrb[0].mxu0
    %v5870 = vadd.f32 %v4970, %v5869
    %5871 = vmatprep.mubr.bf16.mxu0 0
    %5872 = vmatmul.mubr.bf16.gmra.mrb[0].mxu0 %v5157
    %v5873 = vpop.f32.mrb[0].mxu0
    %v5874 = vadd.f32 %v4975, %v5873
    %v5875 = vpop.f32.mrb[0].mxu0
    %v5876 = vadd.f32 %v4975, %v5875
    %v5877 = vpop.f32.mrb[0].mxu0
    %v5878 = vadd.f32 %v4980, %v5877
    %v5879 = vpop.f32.mrb[0].mxu0
    %v5880 = vadd.f32 %v4980, %v5879
    %5881 = vmatprep.mubr.bf16.mxu0 0
    %5882 = vmatmul.mubr.bf16.gmra.mrb[0].mxu0 %v5160
    %v5883 = vpop.f32.mrb[0].mxu0
    %v5884 = vadd.f32 %v4985, %v5883
    %v5885 = vpop.f32.mrb[0].mxu0
    %v5886 = vadd.f32 %v4985, %v5885
    %v5887 = vpop.f32.mrb[0].mxu0
    %v5888 = vadd.f32 %v4990, %v5887
    %v5889 = vpop.f32.mrb[0].mxu0
    %v5890 = vadd.f32 %v4990, %v5889
    %5891 = vmatprep.mubr.bf16.mxu0 0
    %5892 = vmatmul.mubr.bf16.gmra.mrb[0].mxu0 %v5163
    %v5893 = vpop.f32.mrb[0].mxu0
    %v5894 = vadd.f32 %v4995, %v5893
    %v5895 = vpop.f32.mrb[0].mxu0
    %v5896 = vadd.f32 %v4995, %v5895
    %v5897 = vpop.f32.mrb[0].mxu0
    %v5898 = vadd.f32 %v5000, %v5897
    %v5899 = vpop.f32.mrb[0].mxu0
    %v5900 = vadd.f32 %v5000, %v5899
    %5901 = vmatprep.mubr.bf16.mxu0 0
    %5902 = vmatmul.mubr.bf16.gmra.mrb[0].mxu0 %v5166
    %v5903 = vpop.f32.mrb[0].mxu0
    %v5904 = vadd.f32 %v5005, %v5903
    %v5905 = vpop.f32.mrb[0].mxu0
    %v5906 = vadd.f32 %v5005, %v5905
    %v5907 = vpop.f32.mrb[0].mxu0
    %v5908 = vadd.f32 %v5010, %v5907
    %v5909 = vpop.f32.mrb[0].mxu0
    %v5910 = vadd.f32 %v5010, %v5909
    %5911 = vmatprep.mubr.bf16.mxu0 0
    %5912 = vmatmul.mubr.bf16.gmra.mrb[0].mxu0 %v5169
    %v5913 = vpop.f32.mrb[0].mxu0
    %v5914 = vadd.f32 %v5015, %v5913
    %v5915 = vpop.f32.mrb[0].mxu0
    %v5916 = vadd.f32 %v5015, %v5915
    %v5917 = vpop.f32.mrb[0].mxu0
    %v5918 = vadd.f32 %v5020, %v5917
    %v5919 = vpop.f32.mrb[0].mxu0
    %v5920 = vadd.f32 %v5020, %v5919
    %5921 = vmatprep.mubr.bf16.mxu0 0
    %5922 = vmatmul.mubr.bf16.gmra.mrb[0].mxu0 %v5172
    %v5923 = vpop.f32.mrb[0].mxu0
    %v5924 = vadd.f32 %v5025, %v5923
    %v5925 = vpop.f32.mrb[0].mxu0
    %v5926 = vadd.f32 %v5025, %v5925
    %v5927 = vpop.f32.mrb[0].mxu0
    %v5928 = vadd.f32 %v5030, %v5927
    %v5929 = vpop.f32.mrb[0].mxu0
    %v5930 = vadd.f32 %v5030, %v5929
    %5931 = vmatprep.mubr.bf16.mxu0 0
    %5932 = vmatmul.mubr.bf16.gmra.mrb[0].mxu0 %v5175
    %v5933 = vpop.f32.mrb[0].mxu0
    %v5934 = vadd.f32 %v5035, %v5933
    %v5935 = vpop.f32.mrb[0].mxu0
    %v5936 = vadd.f32 %v5035, %v5935
    %v5937 = vpop.f32.mrb[0].mxu0
    %v5938 = vadd.f32 %v5040, %v5937
    %v5939 = vpop.f32.mrb[0].mxu0
    %v5940 = vadd.f32 %v5040, %v5939
    %5941 = vmatprep.mubr.bf16.mxu0 0
    %5942 = vmatmul.mubr.bf16.gmra.mrb[0].mxu0 %v5178
    %v5943 = vpop.f32.mrb[0].mxu0
    %v5944 = vadd.f32 %v5045, %v5943
    %v5945 = vpop.f32.mrb[0].mxu0
    %v5946 = vadd.f32 %v5045, %v5945
    %v5947 = vpop.f32.mrb[0].mxu0
    %v5948 = vadd.f32 %v5050, %v5947
    %v5949 = vpop.f32.mrb[0].mxu0
    %v5950 = vadd.f32 %v5050, %v5949
    %5951 = vdwg.mxu0
    %5952 = vst [vmem:[#allocation2] sm:$0xff] %v5215
    %5953 = vst [vmem:[#allocation2 + $0x8] sm:$0xff] %v5217
    %5954 = vst [vmem:[#allocation2 + $0x10] sm:$0xff] %v5408
    %5955 = vst [vmem:[#allocation2 + $0x18] sm:$0xff] %v5410
    %5956 = vst [vmem:[#allocation2 + $0x20] sm:$0xff] %v5601
    %5957 = vst [vmem:[#allocation2 + $0x28] sm:$0xff] %v5603
    %5958 = vst [vmem:[#allocation2 + $0x30] sm:$0xff] %v5794
    %5959 = vst [vmem:[#allocation2 + $0x38] sm:$0xff] %v5796
    %5960 = vst [vmem:[#allocation2 + $0x40] sm:$0xff] %v5219
    %5961 = vst [vmem:[#allocation2 + $0x48] sm:$0xff] %v5221
    %5962 = vst [vmem:[#allocation2 + $0x50] sm:$0xff] %v5412
    %5963 = vst [vmem:[#allocation2 + $0x58] sm:$0xff] %v5414
    %5964 = vst [vmem:[#allocation2 + $0x60] sm:$0xff] %v5605
    %5965 = vst [vmem:[#allocation2 + $0x68] sm:$0xff] %v5607
    %5966 = vst [vmem:[#allocation2 + $0x70] sm:$0xff] %v5798
    %5967 = vst [vmem:[#allocation2 + $0x78] sm:$0xff] %v5800
    %5968 = vst [vmem:[#allocation2 + $0x80] sm:$0xff] %v5225
    %5969 = vst [vmem:[#allocation2 + $0x88] sm:$0xff] %v5227
    %5970 = vst [vmem:[#allocation2 + $0x90] sm:$0xff] %v5418
    %5971 = vst [vmem:[#allocation2 + $0x98] sm:$0xff] %v5420
    %5972 = vst [vmem:[#allocation2 + $0xa0] sm:$0xff] %v5611
    %5973 = vst [vmem:[#allocation2 + $0xa8] sm:$0xff] %v5613
    %5974 = vst [vmem:[#allocation2 + $0xb0] sm:$0xff] %v5804
    %5975 = vst [vmem:[#allocation2 + $0xb8] sm:$0xff] %v5806
    %5976 = vst [vmem:[#allocation2 + $0xc0] sm:$0xff] %v5229
    %5977 = vst [vmem:[#allocation2 + $0xc8] sm:$0xff] %v5231
    %5978 = vst [vmem:[#allocation2 + $0xd0] sm:$0xff] %v5422
    %5979 = vst [vmem:[#allocation2 + $0xd8] sm:$0xff] %v5424
    %5980 = vst [vmem:[#allocation2 + $0xe0] sm:$0xff] %v5615
    %5981 = vst [vmem:[#allocation2 + $0xe8] sm:$0xff] %v5617
    %5982 = vst [vmem:[#allocation2 + $0xf0] sm:$0xff] %v5808
    %5983 = vst [vmem:[#allocation2 + $0xf8] sm:$0xff] %v5810
    %5984 = vst [vmem:[#allocation2 + $0x100] sm:$0xff] %v5235
    %5985 = vst [vmem:[#allocation2 + $0x108] sm:$0xff] %v5237
    %5986 = vst [vmem:[#allocation2 + $0x110] sm:$0xff] %v5428
    %5987 = vst [vmem:[#allocation2 + $0x118] sm:$0xff] %v5430
    %5988 = vst [vmem:[#allocation2 + $0x120] sm:$0xff] %v5621
    %5989 = vst [vmem:[#allocation2 + $0x128] sm:$0xff] %v5623
    %5990 = vst [vmem:[#allocation2 + $0x130] sm:$0xff] %v5814
    %5991 = vst [vmem:[#allocation2 + $0x138] sm:$0xff] %v5816
    %5992 = vst [vmem:[#allocation2 + $0x140] sm:$0xff] %v5239
    %5993 = vst [vmem:[#allocation2 + $0x148] sm:$0xff] %v5241
    %5994 = vst [vmem:[#allocation2 + $0x150] sm:$0xff] %v5432
    %5995 = vst [vmem:[#allocation2 + $0x158] sm:$0xff] %v5434
    %5996 = vst [vmem:[#allocation2 + $0x160] sm:$0xff] %v5625
    %5997 = vst [vmem:[#allocation2 + $0x168] sm:$0xff] %v5627
    %5998 = vst [vmem:[#allocation2 + $0x170] sm:$0xff] %v5818
    %5999 = vst [vmem:[#allocation2 + $0x178] sm:$0xff] %v5820
    %6000 = vst [vmem:[#allocation2 + $0x180] sm:$0xff] %v5245
    %6001 = vst [vmem:[#allocation2 + $0x188] sm:$0xff] %v5247
    %6002 = vst [vmem:[#allocation2 + $0x190] sm:$0xff] %v5438
    %6003 = vst [vmem:[#allocation2 + $0x198] sm:$0xff] %v5440
    %6004 = vst [vmem:[#allocation2 + $0x1a0] sm:$0xff] %v5631
    %6005 = vst [vmem:[#allocation2 + $0x1a8] sm:$0xff] %v5633
    %6006 = vst [vmem:[#allocation2 + $0x1b0] sm:$0xff] %v5824
    %6007 = vst [vmem:[#allocation2 + $0x1b8] sm:$0xff] %v5826
    %6008 = vst [vmem:[#allocation2 + $0x1c0] sm:$0xff] %v5249
    %6009 = vst [vmem:[#allocation2 + $0x1c8] sm:$0xff] %v5251
    %6010 = vst [vmem:[#allocation2 + $0x1d0] sm:$0xff] %v5442
    %6011 = vst [vmem:[#allocation2 + $0x1d8] sm:$0xff] %v5444
    %6012 = vst [vmem:[#allocation2 + $0x1e0] sm:$0xff] %v5635
    %6013 = vst [vmem:[#allocation2 + $0x1e8] sm:$0xff] %v5637
    %6014 = vst [vmem:[#allocation2 + $0x1f0] sm:$0xff] %v5828
    %6015 = vst [vmem:[#allocation2 + $0x1f8] sm:$0xff] %v5830
    %6016 = vst [vmem:[#allocation2 + $0x200] sm:$0xff] %v5255
    %6017 = vst [vmem:[#allocation2 + $0x208] sm:$0xff] %v5257
    %6018 = vst [vmem:[#allocation2 + $0x210] sm:$0xff] %v5448
    %6019 = vst [vmem:[#allocation2 + $0x218] sm:$0xff] %v5450
    %6020 = vst [vmem:[#allocation2 + $0x220] sm:$0xff] %v5641
    %6021 = vst [vmem:[#allocation2 + $0x228] sm:$0xff] %v5643
    %6022 = vst [vmem:[#allocation2 + $0x230] sm:$0xff] %v5834
    %6023 = vst [vmem:[#allocation2 + $0x238] sm:$0xff] %v5836
    %6024 = vst [vmem:[#allocation2 + $0x240] sm:$0xff] %v5259
    %6025 = vst [vmem:[#allocation2 + $0x248] sm:$0xff] %v5261
    %6026 = vst [vmem:[#allocation2 + $0x250] sm:$0xff] %v5452
    %6027 = vst [vmem:[#allocation2 + $0x258] sm:$0xff] %v5454
    %6028 = vst [vmem:[#allocation2 + $0x260] sm:$0xff] %v5645
    %6029 = vst [vmem:[#allocation2 + $0x268] sm:$0xff] %v5647
    %6030 = vst [vmem:[#allocation2 + $0x270] sm:$0xff] %v5838
    %6031 = vst [vmem:[#allocation2 + $0x278] sm:$0xff] %v5840
    %6032 = vst [vmem:[#allocation2 + $0x280] sm:$0xff] %v5265
    %6033 = vst [vmem:[#allocation2 + $0x288] sm:$0xff] %v5267
    %6034 = vst [vmem:[#allocation2 + $0x290] sm:$0xff] %v5458
    %6035 = vst [vmem:[#allocation2 + $0x298] sm:$0xff] %v5460
    %6036 = vst [vmem:[#allocation2 + $0x2a0] sm:$0xff] %v5651
    %6037 = vst [vmem:[#allocation2 + $0x2a8] sm:$0xff] %v5653
    %6038 = vst [vmem:[#allocation2 + $0x2b0] sm:$0xff] %v5844
    %6039 = vst [vmem:[#allocation2 + $0x2b8] sm:$0xff] %v5846
    %6040 = vst [vmem:[#allocation2 + $0x2c0] sm:$0xff] %v5269
    %6041 = vst [vmem:[#allocation2 + $0x2c8] sm:$0xff] %v5271
    %6042 = vst [vmem:[#allocation2 + $0x2d0] sm:$0xff] %v5462
    %6043 = vst [vmem:[#allocation2 + $0x2d8] sm:$0xff] %v5464
    %6044 = vst [vmem:[#allocation2 + $0x2e0] sm:$0xff] %v5655
    %6045 = vst [vmem:[#allocation2 + $0x2e8] sm:$0xff] %v5657
    %6046 = vst [vmem:[#allocation2 + $0x2f0] sm:$0xff] %v5848
    %6047 = vst [vmem:[#allocation2 + $0x2f8] sm:$0xff] %v5850
    %6048 = vst [vmem:[#allocation2 + $0x300] sm:$0xff] %v5275
    %6049 = vst [vmem:[#allocation2 + $0x308] sm:$0xff] %v5277
    %6050 = vst [vmem:[#allocation2 + $0x310] sm:$0xff] %v5468
    %6051 = vst [vmem:[#allocation2 + $0x318] sm:$0xff] %v5470
    %6052 = vst [vmem:[#allocation2 + $0x320] sm:$0xff] %v5661
    %6053 = vst [vmem:[#allocation2 + $0x328] sm:$0xff] %v5663
    %6054 = vst [vmem:[#allocation2 + $0x330] sm:$0xff] %v5854
    %6055 = vst [vmem:[#allocation2 + $0x338] sm:$0xff] %v5856
    %6056 = vst [vmem:[#allocation2 + $0x340] sm:$0xff] %v5279
    %6057 = vst [vmem:[#allocation2 + $0x348] sm:$0xff] %v5281
    %6058 = vst [vmem:[#allocation2 + $0x350] sm:$0xff] %v5472
    %6059 = vst [vmem:[#allocation2 + $0x358] sm:$0xff] %v5474
    %6060 = vst [vmem:[#allocation2 + $0x360] sm:$0xff] %v5665
    %6061 = vst [vmem:[#allocation2 + $0x368] sm:$0xff] %v5667
    %6062 = vst [vmem:[#allocation2 + $0x370] sm:$0xff] %v5858
    %6063 = vst [vmem:[#allocation2 + $0x378] sm:$0xff] %v5860
    %6064 = vst [vmem:[#allocation2 + $0x380] sm:$0xff] %v5285
    %6065 = vst [vmem:[#allocation2 + $0x388] sm:$0xff] %v5287
    %6066 = vst [vmem:[#allocation2 + $0x390] sm:$0xff] %v5478
    %6067 = vst [vmem:[#allocation2 + $0x398] sm:$0xff] %v5480
    %6068 = vst [vmem:[#allocation2 + $0x3a0] sm:$0xff] %v5671
    %6069 = vst [vmem:[#allocation2 + $0x3a8] sm:$0xff] %v5673
    %6070 = vst [vmem:[#allocation2 + $0x3b0] sm:$0xff] %v5864
    %6071 = vst [vmem:[#allocation2 + $0x3b8] sm:$0xff] %v5866
    %6072 = vst [vmem:[#allocation2 + $0x3c0] sm:$0xff] %v5289
    %6073 = vst [vmem:[#allocation2 + $0x3c8] sm:$0xff] %v5291
    %6074 = vst [vmem:[#allocation2 + $0x3d0] sm:$0xff] %v5482
    %6075 = vst [vmem:[#allocation2 + $0x3d8] sm:$0xff] %v5484
    %6076 = vst [vmem:[#allocation2 + $0x3e0] sm:$0xff] %v5675
    %6077 = vst [vmem:[#allocation2 + $0x3e8] sm:$0xff] %v5677
    %6078 = vst [vmem:[#allocation2 + $0x3f0] sm:$0xff] %v5868
    %6079 = vst [vmem:[#allocation2 + $0x3f8] sm:$0xff] %v5870
    %6080 = vst [vmem:[#allocation2 + $0x400] sm:$0xff] %v5295
    %6081 = vst [vmem:[#allocation2 + $0x408] sm:$0xff] %v5297
    %6082 = vst [vmem:[#allocation2 + $0x410] sm:$0xff] %v5488
    %6083 = vst [vmem:[#allocation2 + $0x418] sm:$0xff] %v5490
    %6084 = vst [vmem:[#allocation2 + $0x420] sm:$0xff] %v5681
    %6085 = vst [vmem:[#allocation2 + $0x428] sm:$0xff] %v5683
    %6086 = vst [vmem:[#allocation2 + $0x430] sm:$0xff] %v5874
    %6087 = vst [vmem:[#allocation2 + $0x438] sm:$0xff] %v5876
    %6088 = vst [vmem:[#allocation2 + $0x440] sm:$0xff] %v5299
    %6089 = vst [vmem:[#allocation2 + $0x448] sm:$0xff] %v5301
    %6090 = vst [vmem:[#allocation2 + $0x450] sm:$0xff] %v5492
    %6091 = vst [vmem:[#allocation2 + $0x458] sm:$0xff] %v5494
    %6092 = vst [vmem:[#allocation2 + $0x460] sm:$0xff] %v5685
    %6093 = vst [vmem:[#allocation2 + $0x468] sm:$0xff] %v5687
    %6094 = vst [vmem:[#allocation2 + $0x470] sm:$0xff] %v5878
    %6095 = vst [vmem:[#allocation2 + $0x478] sm:$0xff] %v5880
    %6096 = vst [vmem:[#allocation2 + $0x480] sm:$0xff] %v5305
    %6097 = vst [vmem:[#allocation2 + $0x488] sm:$0xff] %v5307
    %6098 = vst [vmem:[#allocation2 + $0x490] sm:$0xff] %v5498
    %6099 = vst [vmem:[#allocation2 + $0x498] sm:$0xff] %v5500
    %6100 = vst [vmem:[#allocation2 + $0x4a0] sm:$0xff] %v5691
    %6101 = vst [vmem:[#allocation2 + $0x4a8] sm:$0xff] %v5693
    %6102 = vst [vmem:[#allocation2 + $0x4b0] sm:$0xff] %v5884
    %6103 = vst [vmem:[#allocation2 + $0x4b8] sm:$0xff] %v5886
    %6104 = vst [vmem:[#allocation2 + $0x4c0] sm:$0xff] %v5309
    %6105 = vst [vmem:[#allocation2 + $0x4c8] sm:$0xff] %v5311
    %6106 = vst [vmem:[#allocation2 + $0x4d0] sm:$0xff] %v5502
    %6107 = vst [vmem:[#allocation2 + $0x4d8] sm:$0xff] %v5504
    %6108 = vst [vmem:[#allocation2 + $0x4e0] sm:$0xff] %v5695
    %6109 = vst [vmem:[#allocation2 + $0x4e8] sm:$0xff] %v5697
    %6110 = vst [vmem:[#allocation2 + $0x4f0] sm:$0xff] %v5888
    %6111 = vst [vmem:[#allocation2 + $0x4f8] sm:$0xff] %v5890
    %6112 = vst [vmem:[#allocation2 + $0x500] sm:$0xff] %v5315
    %6113 = vst [vmem:[#allocation2 + $0x508] sm:$0xff] %v5317
    %6114 = vst [vmem:[#allocation2 + $0x510] sm:$0xff] %v5508
    %6115 = vst [vmem:[#allocation2 + $0x518] sm:$0xff] %v5510
    %6116 = vst [vmem:[#allocation2 + $0x520] sm:$0xff] %v5701
    %6117 = vst [vmem:[#allocation2 + $0x528] sm:$0xff] %v5703
    %6118 = vst [vmem:[#allocation2 + $0x530] sm:$0xff] %v5894
    %6119 = vst [vmem:[#allocation2 + $0x538] sm:$0xff] %v5896
    %6120 = vst [vmem:[#allocation2 + $0x540] sm:$0xff] %v5319
    %6121 = vst [vmem:[#allocation2 + $0x548] sm:$0xff] %v5321
    %6122 = vst [vmem:[#allocation2 + $0x550] sm:$0xff] %v5512
    %6123 = vst [vmem:[#allocation2 + $0x558] sm:$0xff] %v5514
    %6124 = vst [vmem:[#allocation2 + $0x560] sm:$0xff] %v5705
    %6125 = vst [vmem:[#allocation2 + $0x568] sm:$0xff] %v5707
    %6126 = vst [vmem:[#allocation2 + $0x570] sm:$0xff] %v5898
    %6127 = vst [vmem:[#allocation2 + $0x578] sm:$0xff] %v5900
    %6128 = vst [vmem:[#allocation2 + $0x580] sm:$0xff] %v5325
    %6129 = vst [vmem:[#allocation2 + $0x588] sm:$0xff] %v5327
    %6130 = vst [vmem:[#allocation2 + $0x590] sm:$0xff] %v5518
    %6131 = vst [vmem:[#allocation2 + $0x598] sm:$0xff] %v5520
    %6132 = vst [vmem:[#allocation2 + $0x5a0] sm:$0xff] %v5711
    %6133 = vst [vmem:[#allocation2 + $0x5a8] sm:$0xff] %v5713
    %6134 = vst [vmem:[#allocation2 + $0x5b0] sm:$0xff] %v5904
    %6135 = vst [vmem:[#allocation2 + $0x5b8] sm:$0xff] %v5906
    %6136 = vst [vmem:[#allocation2 + $0x5c0] sm:$0xff] %v5329
    %6137 = vst [vmem:[#allocation2 + $0x5c8] sm:$0xff] %v5331
    %6138 = vst [vmem:[#allocation2 + $0x5d0] sm:$0xff] %v5522
    %6139 = vst [vmem:[#allocation2 + $0x5d8] sm:$0xff] %v5524
    %6140 = vst [vmem:[#allocation2 + $0x5e0] sm:$0xff] %v5715
    %6141 = vst [vmem:[#allocation2 + $0x5e8] sm:$0xff] %v5717
    %6142 = vst [vmem:[#allocation2 + $0x5f0] sm:$0xff] %v5908
    %6143 = vst [vmem:[#allocation2 + $0x5f8] sm:$0xff] %v5910
    %6144 = vst [vmem:[#allocation2 + $0x600] sm:$0xff] %v5335
    %6145 = vst [vmem:[#allocation2 + $0x608] sm:$0xff] %v5337
    %6146 = vst [vmem:[#allocation2 + $0x610] sm:$0xff] %v5528
    %6147 = vst [vmem:[#allocation2 + $0x618] sm:$0xff] %v5530
    %6148 = vst [vmem:[#allocation2 + $0x620] sm:$0xff] %v5721
    %6149 = vst [vmem:[#allocation2 + $0x628] sm:$0xff] %v5723
    %6150 = vst [vmem:[#allocation2 + $0x630] sm:$0xff] %v5914
    %6151 = vst [vmem:[#allocation2 + $0x638] sm:$0xff] %v5916
    %6152 = vst [vmem:[#allocation2 + $0x640] sm:$0xff] %v5339
    %6153 = vst [vmem:[#allocation2 + $0x648] sm:$0xff] %v5341
    %6154 = vst [vmem:[#allocation2 + $0x650] sm:$0xff] %v5532
    %6155 = vst [vmem:[#allocation2 + $0x658] sm:$0xff] %v5534
    %6156 = vst [vmem:[#allocation2 + $0x660] sm:$0xff] %v5725
    %6157 = vst [vmem:[#allocation2 + $0x668] sm:$0xff] %v5727
    %6158 = vst [vmem:[#allocation2 + $0x670] sm:$0xff] %v5918
    %6159 = vst [vmem:[#allocation2 + $0x678] sm:$0xff] %v5920
    %6160 = vst [vmem:[#allocation2 + $0x680] sm:$0xff] %v5345
    %6161 = vst [vmem:[#allocation2 + $0x688] sm:$0xff] %v5347
    %6162 = vst [vmem:[#allocation2 + $0x690] sm:$0xff] %v5538
    %6163 = vst [vmem:[#allocation2 + $0x698] sm:$0xff] %v5540
    %6164 = vst [vmem:[#allocation2 + $0x6a0] sm:$0xff] %v5731
    %6165 = vst [vmem:[#allocation2 + $0x6a8] sm:$0xff] %v5733
    %6166 = vst [vmem:[#allocation2 + $0x6b0] sm:$0xff] %v5924
    %6167 = vst [vmem:[#allocation2 + $0x6b8] sm:$0xff] %v5926
    %6168 = vst [vmem:[#allocation2 + $0x6c0] sm:$0xff] %v5349
    %6169 = vst [vmem:[#allocation2 + $0x6c8] sm:$0xff] %v5351
    %6170 = vst [vmem:[#allocation2 + $0x6d0] sm:$0xff] %v5542
    %6171 = vst [vmem:[#allocation2 + $0x6d8] sm:$0xff] %v5544
    %6172 = vst [vmem:[#allocation2 + $0x6e0] sm:$0xff] %v5735
    %6173 = vst [vmem:[#allocation2 + $0x6e8] sm:$0xff] %v5737
    %6174 = vst [vmem:[#allocation2 + $0x6f0] sm:$0xff] %v5928
    %6175 = vst [vmem:[#allocation2 + $0x6f8] sm:$0xff] %v5930
    %6176 = vst [vmem:[#allocation2 + $0x700] sm:$0xff] %v5355
    %6177 = vst [vmem:[#allocation2 + $0x708] sm:$0xff] %v5357
    %6178 = vst [vmem:[#allocation2 + $0x710] sm:$0xff] %v5548
    %6179 = vst [vmem:[#allocation2 + $0x718] sm:$0xff] %v5550
    %6180 = vst [vmem:[#allocation2 + $0x720] sm:$0xff] %v5741
    %6181 = vst [vmem:[#allocation2 + $0x728] sm:$0xff] %v5743
    %6182 = vst [vmem:[#allocation2 + $0x730] sm:$0xff] %v5934
    %6183 = vst [vmem:[#allocation2 + $0x738] sm:$0xff] %v5936
    %6184 = vst [vmem:[#allocation2 + $0x740] sm:$0xff] %v5359
    %6185 = vst [vmem:[#allocation2 + $0x748] sm:$0xff] %v5361
    %6186 = vst [vmem:[#allocation2 + $0x750] sm:$0xff] %v5552
    %6187 = vst [vmem:[#allocation2 + $0x758] sm:$0xff] %v5554
    %6188 = vst [vmem:[#allocation2 + $0x760] sm:$0xff] %v5745
    %6189 = vst [vmem:[#allocation2 + $0x768] sm:$0xff] %v5747
    %6190 = vst [vmem:[#allocation2 + $0x770] sm:$0xff] %v5938
    %6191 = vst [vmem:[#allocation2 + $0x778] sm:$0xff] %v5940
    %6192 = vst [vmem:[#allocation2 + $0x780] sm:$0xff] %v5365
    %6193 = vst [vmem:[#allocation2 + $0x788] sm:$0xff] %v5367
    %6194 = vst [vmem:[#allocation2 + $0x790] sm:$0xff] %v5558
    %6195 = vst [vmem:[#allocation2 + $0x798] sm:$0xff] %v5560
    %6196 = vst [vmem:[#allocation2 + $0x7a0] sm:$0xff] %v5751
    %6197 = vst [vmem:[#allocation2 + $0x7a8] sm:$0xff] %v5753
    %6198 = vst [vmem:[#allocation2 + $0x7b0] sm:$0xff] %v5944
    %6199 = vst [vmem:[#allocation2 + $0x7b8] sm:$0xff] %v5946
    %6200 = vst [vmem:[#allocation2 + $0x7c0] sm:$0xff] %v5369
    %6201 = vst [vmem:[#allocation2 + $0x7c8] sm:$0xff] %v5371
    %6202 = vst [vmem:[#allocation2 + $0x7d0] sm:$0xff] %v5562
    %6203 = vst [vmem:[#allocation2 + $0x7d8] sm:$0xff] %v5564
    %6204 = vst [vmem:[#allocation2 + $0x7e0] sm:$0xff] %v5755
    %6205 = vst [vmem:[#allocation2 + $0x7e8] sm:$0xff] %v5757
    %6206 = vst [vmem:[#allocation2 + $0x7f0] sm:$0xff] %v5948
    %6207 = vst [vmem:[#allocation2 + $0x7f8] sm:$0xff] %v5950
    %s6208 = scalar_lea.vmem %s4, 128
    %v6209 = vld [vmem:[%s6208] sm:$0xf]
    %v6210 = vld [vmem:[%s6208 + $0x4] sm:$0xf]
    %v6211 = vld [vmem:[%s6208 + $0x8] sm:$0xf]
    %v6212 = vld [vmem:[%s6208 + $0xc] sm:$0xf]
    %v6213 = vld [vmem:[%s6208 + $0x10] sm:$0xf]
    %v6214 = vld [vmem:[%s6208 + $0x14] sm:$0xf]
    %v6215 = vld [vmem:[%s6208 + $0x18] sm:$0xf]
    %v6216 = vld [vmem:[%s6208 + $0x1c] sm:$0xf]
    %v6217 = vld [vmem:[%s6208 + $0x20] sm:$0xf]
    %v6218 = vld [vmem:[%s6208 + $0x24] sm:$0xf]
    %v6219 = vld [vmem:[%s6208 + $0x28] sm:$0xf]
    %v6220 = vld [vmem:[%s6208 + $0x2c] sm:$0xf]
    %v6221 = vld [vmem:[%s6208 + $0x30] sm:$0xf]
    %v6222 = vld [vmem:[%s6208 + $0x34] sm:$0xf]
    %v6223 = vld [vmem:[%s6208 + $0x38] sm:$0xf]
    %v6224 = vld [vmem:[%s6208 + $0x3c] sm:$0xf]
    %v6225 = vld [vmem:[%s6208 + $0x40] sm:$0xf]
    %v6226 = vld [vmem:[%s6208 + $0x44] sm:$0xf]
    %v6227 = vld [vmem:[%s6208 + $0x48] sm:$0xf]
    %v6228 = vld [vmem:[%s6208 + $0x4c] sm:$0xf]
    %v6229 = vld [vmem:[%s6208 + $0x50] sm:$0xf]
    %v6230 = vld [vmem:[%s6208 + $0x54] sm:$0xf]
    %v6231 = vld [vmem:[%s6208 + $0x58] sm:$0xf]
    %v6232 = vld [vmem:[%s6208 + $0x5c] sm:$0xf]
    %v6233 = vld [vmem:[%s6208 + $0x60] sm:$0xf]
    %v6234 = vld [vmem:[%s6208 + $0x64] sm:$0xf]
    %v6235 = vld [vmem:[%s6208 + $0x68] sm:$0xf]
    %v6236 = vld [vmem:[%s6208 + $0x6c] sm:$0xf]
    %v6237 = vld [vmem:[%s6208 + $0x70] sm:$0xf]
    %v6238 = vld [vmem:[%s6208 + $0x74] sm:$0xf]
    %v6239 = vld [vmem:[%s6208 + $0x78] sm:$0xf]
    %v6240 = vld [vmem:[%s6208 + $0x7c] sm:$0xf]
    %v6273 = vunpack.c.l.b16 %v6209
    %v6274 = vunpack.c.l.b16 %v6210
    %v6275 = vunpack.c.l.b16 %v6211
    %v6276 = vunpack.c.l.b16 %v6212
    %v6277 = vunpack.c.l.b16 %v6213
    %v6278 = vunpack.c.l.b16 %v6214
    %v6279 = vunpack.c.l.b16 %v6215
    %v6280 = vunpack.c.l.b16 %v6216
    %v6281 = vunpack.c.l.b16 %v6217
    %v6282 = vunpack.c.l.b16 %v6218
    %v6283 = vunpack.c.l.b16 %v6219
    %v6284 = vunpack.c.l.b16 %v6220
    %v6285 = vunpack.c.l.b16 %v6221
    %v6286 = vunpack.c.l.b16 %v6222
    %v6287 = vunpack.c.l.b16 %v6223
    %v6288 = vunpack.c.l.b16 %v6224
    %v6289 = vunpack.c.l.b16 %v6225
    %v6290 = vunpack.c.l.b16 %v6226
    %v6291 = vunpack.c.l.b16 %v6227
    %v6292 = vunpack.c.l.b16 %v6228
    %v6293 = vunpack.c.l.b16 %v6229
    %v6294 = vunpack.c.l.b16 %v6230
    %v6295 = vunpack.c.l.b16 %v6231
    %v6296 = vunpack.c.l.b16 %v6232
    %v6297 = vunpack.c.l.b16 %v6233
    %v6298 = vunpack.c.l.b16 %v6234
    %v6299 = vunpack.c.l.b16 %v6235
    %v6300 = vunpack.c.l.b16 %v6236
    %v6301 = vunpack.c.l.b16 %v6237
    %v6302 = vunpack.c.l.b16 %v6238
    %v6303 = vunpack.c.l.b16 %v6239
    %v6304 = vunpack.c.l.b16 %v6240
    %v6305 = vpack.c.b16 %v6274, %v6273
    %v6306 = vpack.c.b16 %v6276, %v6275
    %v6307 = vpack.c.b16 %v6278, %v6277
    %v6308 = vpack.c.b16 %v6280, %v6279
    %v6309 = vpack.c.b16 %v6282, %v6281
    %v6310 = vpack.c.b16 %v6284, %v6283
    %v6311 = vpack.c.b16 %v6286, %v6285
    %v6312 = vpack.c.b16 %v6288, %v6287
    %v6313 = vpack.c.b16 %v6290, %v6289
    %v6314 = vpack.c.b16 %v6292, %v6291
    %v6315 = vpack.c.b16 %v6294, %v6293
    %v6316 = vpack.c.b16 %v6296, %v6295
    %v6317 = vpack.c.b16 %v6298, %v6297
    %v6318 = vpack.c.b16 %v6300, %v6299
    %v6319 = vpack.c.b16 %v6302, %v6301
    %v6320 = vpack.c.b16 %v6304, %v6303
    %v6322 = vsel %vm1339, %v6305, 0
    %v6325 = vsel %vm1339, %v6306, 0
    %v6328 = vsel %vm1339, %v6307, 0
    %v6331 = vsel %vm1339, %v6308, 0
    %v6334 = vsel %vm1339, %v6309, 0
    %v6337 = vsel %vm1339, %v6310, 0
    %v6340 = vsel %vm1339, %v6311, 0
    %v6343 = vsel %vm1339, %v6312, 0
    %v6346 = vsel %vm1339, %v6313, 0
    %v6349 = vsel %vm1339, %v6314, 0
    %v6352 = vsel %vm1339, %v6315, 0
    %v6355 = vsel %vm1339, %v6316, 0
    %v6358 = vsel %vm1339, %v6317, 0
    %v6361 = vsel %vm1339, %v6318, 0
    %v6364 = vsel %vm1339, %v6319, 0
    %v6367 = vsel %vm1339, %v6320, 0
    %6369 = vmatprep.subr.bf16.mxu0 0
    %6370 = vmatpush1.bf16.msra.mxu0 0
    %6371 = vmatprep.subr.bf16.mxu0 0
    %6372 = vmatpush1.bf16.msra.mxu0 0
    %6373 = vmatprep.subr.bf16.mxu0 0
    %6374 = vmatpush1.bf16.msra.mxu0 0
    %6375 = vmatprep.subr.bf16.mxu0 0
    %6376 = vmatpush1.bf16.msra.mxu0 0
    %6377 = vmatprep.subr.bf16.mxu0 0
    %6378 = vmatpush1.bf16.msra.mxu0 0
    %6379 = vmatprep.subr.bf16.mxu0 0
    %6380 = vmatpush1.bf16.msra.mxu0 0
    %6381 = vmatprep.subr.bf16.mxu0 0
    %6382 = vmatpush1.bf16.msra.mxu0 0
    %6383 = vmatprep.subr.bf16.mxu0 0
    %6384 = vmatpush1.bf16.msra.mxu0 0
    %6385 = vmatprep.subr.bf16.mxu0 0
    %6386 = vmatpush1.bf16.msra.mxu0 0
    %6387 = vmatprep.subr.bf16.mxu0 0
    %6388 = vmatpush1.bf16.msra.mxu0 0
    %6389 = vmatprep.subr.bf16.mxu0 0
    %6390 = vmatpush1.bf16.msra.mxu0 0
    %6391 = vmatprep.subr.bf16.mxu0 0
    %6392 = vmatpush1.bf16.msra.mxu0 0
    %6393 = vmatprep.subr.bf16.mxu0 0
    %6394 = vmatpush1.bf16.msra.mxu0 0
    %6395 = vmatprep.subr.bf16.mxu0 0
    %6396 = vmatpush1.bf16.msra.mxu0 0
    %6397 = vmatprep.subr.bf16.mxu0 0
    %6398 = vmatpush1.bf16.msra.mxu0 0
    %6399 = vmatprep.subr.bf16.mxu0 0
    %6400 = vmatpush1.bf16.msra.mxu0 0
    %6401 = vmatprep.mubr.bf16.mxu0 0
    %6402 = vmatmul.mubr.bf16.gmra.mrb[0].mxu0 %v6322
    %v6403 = vpop.f32.mrb[0].mxu0
    %v6404 = vadd.f32 0.0, %v6403
    %v6405 = vpop.f32.mrb[0].mxu0
    %v6406 = vpop.f32.mrb[0].mxu0
    %v6407 = vadd.f32 0.0, %v6406
    %v6408 = vpop.f32.mrb[0].mxu0
    %6409 = vmatprep.mubr.bf16.mxu0 0
    %6410 = vmatmul.mubr.bf16.gmra.mrb[0].mxu0 %v6325
    %v6411 = vpop.f32.mrb[0].mxu0
    %v6412 = vadd.f32 0.0, %v6411
    %v6413 = vpop.f32.mrb[0].mxu0
    %v6414 = vpop.f32.mrb[0].mxu0
    %v6415 = vadd.f32 0.0, %v6414
    %v6416 = vpop.f32.mrb[0].mxu0
    %6417 = vmatprep.mubr.bf16.mxu0 0
    %6418 = vmatmul.mubr.bf16.gmra.mrb[0].mxu0 %v6328
    %v6419 = vpop.f32.mrb[0].mxu0
    %v6420 = vadd.f32 0.0, %v6419
    %v6421 = vpop.f32.mrb[0].mxu0
    %v6422 = vpop.f32.mrb[0].mxu0
    %v6423 = vadd.f32 0.0, %v6422
    %v6424 = vpop.f32.mrb[0].mxu0
    %6425 = vmatprep.mubr.bf16.mxu0 0
    %6426 = vmatmul.mubr.bf16.gmra.mrb[0].mxu0 %v6331
    %v6427 = vpop.f32.mrb[0].mxu0
    %v6428 = vadd.f32 0.0, %v6427
    %v6429 = vpop.f32.mrb[0].mxu0
    %v6430 = vpop.f32.mrb[0].mxu0
    %v6431 = vadd.f32 0.0, %v6430
    %v6432 = vpop.f32.mrb[0].mxu0
    %6433 = vmatprep.mubr.bf16.mxu0 0
    %6434 = vmatmul.mubr.bf16.gmra.mrb[0].mxu0 %v6334
    %v6435 = vpop.f32.mrb[0].mxu0
    %v6436 = vadd.f32 0.0, %v6435
    %v6437 = vpop.f32.mrb[0].mxu0
    %v6438 = vpop.f32.mrb[0].mxu0
    %v6439 = vadd.f32 0.0, %v6438
    %v6440 = vpop.f32.mrb[0].mxu0
    %6441 = vmatprep.mubr.bf16.mxu0 0
    %6442 = vmatmul.mubr.bf16.gmra.mrb[0].mxu0 %v6337
    %v6443 = vpop.f32.mrb[0].mxu0
    %v6444 = vadd.f32 0.0, %v6443
    %v6445 = vpop.f32.mrb[0].mxu0
    %v6446 = vpop.f32.mrb[0].mxu0
    %v6447 = vadd.f32 0.0, %v6446
    %v6448 = vpop.f32.mrb[0].mxu0
    %6449 = vmatprep.mubr.bf16.mxu0 0
    %6450 = vmatmul.mubr.bf16.gmra.mrb[0].mxu0 %v6340
    %v6451 = vpop.f32.mrb[0].mxu0
    %v6452 = vadd.f32 0.0, %v6451
    %v6453 = vpop.f32.mrb[0].mxu0
    %v6454 = vpop.f32.mrb[0].mxu0
    %v6455 = vadd.f32 0.0, %v6454
    %v6456 = vpop.f32.mrb[0].mxu0
    %6457 = vmatprep.mubr.bf16.mxu0 0
    %6458 = vmatmul.mubr.bf16.gmra.mrb[0].mxu0 %v6343
    %v6459 = vpop.f32.mrb[0].mxu0
    %v6460 = vadd.f32 0.0, %v6459
    %v6461 = vpop.f32.mrb[0].mxu0
    %v6462 = vpop.f32.mrb[0].mxu0
    %v6463 = vadd.f32 0.0, %v6462
    %v6464 = vpop.f32.mrb[0].mxu0
    %6465 = vmatprep.mubr.bf16.mxu0 0
    %6466 = vmatmul.mubr.bf16.gmra.mrb[0].mxu0 %v6346
    %v6467 = vpop.f32.mrb[0].mxu0
    %v6468 = vadd.f32 0.0, %v6467
    %v6469 = vpop.f32.mrb[0].mxu0
    %v6470 = vpop.f32.mrb[0].mxu0
    %v6471 = vadd.f32 0.0, %v6470
    %v6472 = vpop.f32.mrb[0].mxu0
    %6473 = vmatprep.mubr.bf16.mxu0 0
    %6474 = vmatmul.mubr.bf16.gmra.mrb[0].mxu0 %v6349
    %v6475 = vpop.f32.mrb[0].mxu0
    %v6476 = vadd.f32 0.0, %v6475
    %v6477 = vpop.f32.mrb[0].mxu0
    %v6478 = vpop.f32.mrb[0].mxu0
    %v6479 = vadd.f32 0.0, %v6478
    %v6480 = vpop.f32.mrb[0].mxu0
    %6481 = vmatprep.mubr.bf16.mxu0 0
    %6482 = vmatmul.mubr.bf16.gmra.mrb[0].mxu0 %v6352
    %v6483 = vpop.f32.mrb[0].mxu0
    %v6484 = vadd.f32 0.0, %v6483
    %v6485 = vpop.f32.mrb[0].mxu0
    %v6486 = vpop.f32.mrb[0].mxu0
    %v6487 = vadd.f32 0.0, %v6486
    %v6488 = vpop.f32.mrb[0].mxu0
    %6489 = vmatprep.mubr.bf16.mxu0 0
    %6490 = vmatmul.mubr.bf16.gmra.mrb[0].mxu0 %v6355
    %v6491 = vpop.f32.mrb[0].mxu0
    %v6492 = vadd.f32 0.0, %v6491
    %v6493 = vpop.f32.mrb[0].mxu0
    %v6494 = vpop.f32.mrb[0].mxu0
    %v6495 = vadd.f32 0.0, %v6494
    %v6496 = vpop.f32.mrb[0].mxu0
    %6497 = vmatprep.mubr.bf16.mxu0 0
    %6498 = vmatmul.mubr.bf16.gmra.mrb[0].mxu0 %v6358
    %v6499 = vpop.f32.mrb[0].mxu0
    %v6500 = vadd.f32 0.0, %v6499
    %v6501 = vpop.f32.mrb[0].mxu0
    %v6502 = vpop.f32.mrb[0].mxu0
    %v6503 = vadd.f32 0.0, %v6502
    %v6504 = vpop.f32.mrb[0].mxu0
    %6505 = vmatprep.mubr.bf16.mxu0 0
    %6506 = vmatmul.mubr.bf16.gmra.mrb[0].mxu0 %v6361
    %v6507 = vpop.f32.mrb[0].mxu0
    %v6508 = vadd.f32 0.0, %v6507
    %v6509 = vpop.f32.mrb[0].mxu0
    %v6510 = vpop.f32.mrb[0].mxu0
    %v6511 = vadd.f32 0.0, %v6510
    %v6512 = vpop.f32.mrb[0].mxu0
    %6513 = vmatprep.mubr.bf16.mxu0 0
    %6514 = vmatmul.mubr.bf16.gmra.mrb[0].mxu0 %v6364
    %v6515 = vpop.f32.mrb[0].mxu0
    %v6516 = vadd.f32 0.0, %v6515
    %v6517 = vpop.f32.mrb[0].mxu0
    %v6518 = vpop.f32.mrb[0].mxu0
    %v6519 = vadd.f32 0.0, %v6518
    %v6520 = vpop.f32.mrb[0].mxu0
    %6521 = vmatprep.mubr.bf16.mxu0 0
    %6522 = vmatmul.mubr.bf16.gmra.mrb[0].mxu0 %v6367
    %v6523 = vpop.f32.mrb[0].mxu0
    %v6524 = vadd.f32 0.0, %v6523
    %v6525 = vpop.f32.mrb[0].mxu0
    %v6526 = vpop.f32.mrb[0].mxu0
    %v6527 = vadd.f32 0.0, %v6526
    %v6528 = vpop.f32.mrb[0].mxu0
    %6529 = vdwg.mxu0
    %v6530 = vld [vmem:[#allocation2] sm:$0xff]
    %v6531 = vld [vmem:[#allocation2 + $0x40] sm:$0xff]
    %v6532 = vld [vmem:[#allocation2 + $0x80] sm:$0xff]
    %v6533 = vld [vmem:[#allocation2 + $0xc0] sm:$0xff]
    %v6534 = vld [vmem:[#allocation2 + $0x100] sm:$0xff]
    %v6535 = vld [vmem:[#allocation2 + $0x140] sm:$0xff]
    %v6536 = vld [vmem:[#allocation2 + $0x180] sm:$0xff]
    %v6537 = vld [vmem:[#allocation2 + $0x1c0] sm:$0xff]
    %v6538 = vld [vmem:[#allocation2 + $0x200] sm:$0xff]
    %v6539 = vld [vmem:[#allocation2 + $0x240] sm:$0xff]
    %v6540 = vld [vmem:[#allocation2 + $0x280] sm:$0xff]
    %v6541 = vld [vmem:[#allocation2 + $0x2c0] sm:$0xff]
    %v6542 = vld [vmem:[#allocation2 + $0x300] sm:$0xff]
    %v6543 = vld [vmem:[#allocation2 + $0x340] sm:$0xff]
    %v6544 = vld [vmem:[#allocation2 + $0x380] sm:$0xff]
    %v6545 = vld [vmem:[#allocation2 + $0x3c0] sm:$0xff]
    %v6546 = vadd.f32 %v6404, %v6530
    %v6547 = vadd.f32 %v6407, %v6531
    %v6548 = vadd.f32 %v6412, %v6532
    %v6549 = vadd.f32 %v6415, %v6533
    %v6550 = vadd.f32 %v6420, %v6534
    %v6551 = vadd.f32 %v6423, %v6535
    %v6552 = vadd.f32 %v6428, %v6536
    %v6553 = vadd.f32 %v6431, %v6537
    %v6554 = vadd.f32 %v6436, %v6538
    %v6555 = vadd.f32 %v6439, %v6539
    %v6556 = vadd.f32 %v6444, %v6540
    %v6557 = vadd.f32 %v6447, %v6541
    %v6558 = vadd.f32 %v6452, %v6542
    %v6559 = vadd.f32 %v6455, %v6543
    %v6560 = vadd.f32 %v6460, %v6544
    %v6561 = vadd.f32 %v6463, %v6545
    %v6562 = vld [vmem:[%s1194 + $0x400] sm:$0xff]
    %v6563 = vld [vmem:[%s1194 + $0x440] sm:$0xff]
    %v6564 = vld [vmem:[%s1194 + $0x480] sm:$0xff]
    %v6565 = vld [vmem:[%s1194 + $0x4c0] sm:$0xff]
    %v6566 = vld [vmem:[%s1194 + $0x500] sm:$0xff]
    %v6567 = vld [vmem:[%s1194 + $0x540] sm:$0xff]
    %v6568 = vld [vmem:[%s1194 + $0x580] sm:$0xff]
    %v6569 = vld [vmem:[%s1194 + $0x5c0] sm:$0xff]
    %v6570 = vld [vmem:[%s1194 + $0x600] sm:$0xff]
    %v6571 = vld [vmem:[%s1194 + $0x640] sm:$0xff]
    %v6572 = vld [vmem:[%s1194 + $0x680] sm:$0xff]
    %v6573 = vld [vmem:[%s1194 + $0x6c0] sm:$0xff]
    %v6574 = vld [vmem:[%s1194 + $0x700] sm:$0xff]
    %v6575 = vld [vmem:[%s1194 + $0x740] sm:$0xff]
    %v6576 = vld [vmem:[%s1194 + $0x780] sm:$0xff]
    %v6577 = vld [vmem:[%s1194 + $0x7c0] sm:$0xff]
    %v6578 = vadd.f32 %v6468, %v6562
    %v6579 = vadd.f32 %v6471, %v6563
    %v6580 = vadd.f32 %v6476, %v6564
    %v6581 = vadd.f32 %v6479, %v6565
    %v6582 = vadd.f32 %v6484, %v6566
    %v6583 = vadd.f32 %v6487, %v6567
    %v6584 = vadd.f32 %v6492, %v6568
    %v6585 = vadd.f32 %v6495, %v6569
    %v6586 = vadd.f32 %v6500, %v6570
    %v6587 = vadd.f32 %v6503, %v6571
    %v6588 = vadd.f32 %v6508, %v6572
    %v6589 = vadd.f32 %v6511, %v6573
    %v6590 = vadd.f32 %v6516, %v6574
    %v6591 = vadd.f32 %v6519, %v6575
    %v6592 = vadd.f32 %v6524, %v6576
    %v6593 = vadd.f32 %v6527, %v6577
    %v6594 = vxor.u32 %v6546, 2147483648
    %v6595 = vxor.u32 %v6547, 2147483648
    %v6596 = vxor.u32 %v6548, 2147483648
    %v6597 = vxor.u32 %v6549, 2147483648
    %v6598 = vmul.f32 %v6594, 1.442695
    %v6599 = vpow.pop %v6598
    %v6600 = vmul.f32 %v6595, 1.442695
    %v6601 = vpow.pop %v6600
    %v6602 = vmul.f32 %v6596, 1.442695
    %v6603 = vpow.pop %v6602
    %v6604 = vmul.f32 %v6597, 1.442695
    %v6605 = vpow.pop %v6604
    %v6606 = vadd.f32 %v6599, 1.0
    %v6607 = vadd.f32 %v6601, 1.0
    %v6608 = vadd.f32 %v6603, 1.0
    %v6609 = vadd.f32 %v6605, 1.0
    %v6610 = vrcp.pop %v6606
    %v6611 = vmul.f32 1.0, %v6610
    %v6612 = vrcp.pop %v6607
    %v6613 = vmul.f32 1.0, %v6612
    %v6614 = vrcp.pop %v6608
    %v6615 = vmul.f32 1.0, %v6614
    %v6616 = vrcp.pop %v6609
    %v6617 = vmul.f32 1.0, %v6616
    %v6618 = vxor.u32 %v6550, 2147483648
    %v6619 = vxor.u32 %v6551, 2147483648
    %v6620 = vxor.u32 %v6552, 2147483648
    %v6621 = vxor.u32 %v6553, 2147483648
    %v6622 = vmul.f32 %v6618, 1.442695
    %v6623 = vpow.pop %v6622
    %v6624 = vmul.f32 %v6619, 1.442695
    %v6625 = vpow.pop %v6624
    %v6626 = vmul.f32 %v6620, 1.442695
    %v6627 = vpow.pop %v6626
    %v6628 = vmul.f32 %v6621, 1.442695
    %v6629 = vpow.pop %v6628
    %v6630 = vadd.f32 %v6623, 1.0
    %v6631 = vadd.f32 %v6625, 1.0
    %v6632 = vadd.f32 %v6627, 1.0
    %v6633 = vadd.f32 %v6629, 1.0
    %v6634 = vrcp.pop %v6630
    %v6635 = vmul.f32 1.0, %v6634
    %v6636 = vrcp.pop %v6631
    %v6637 = vmul.f32 1.0, %v6636
    %v6638 = vrcp.pop %v6632
    %v6639 = vmul.f32 1.0, %v6638
    %v6640 = vrcp.pop %v6633
    %v6641 = vmul.f32 1.0, %v6640
    %v6642 = vtanh.pop %v6554
    %v6643 = vtanh.pop %v6555
    %v6644 = vtanh.pop %v6556
    %v6645 = vtanh.pop %v6557
    %v6646 = vxor.u32 %v6558, 2147483648
    %v6647 = vxor.u32 %v6559, 2147483648
    %v6648 = vxor.u32 %v6560, 2147483648
    %v6649 = vxor.u32 %v6561, 2147483648
    %v6650 = vmul.f32 %v6646, 1.442695
    %v6651 = vpow.pop %v6650
    %v6652 = vmul.f32 %v6647, 1.442695
    %v6653 = vpow.pop %v6652
    %v6654 = vmul.f32 %v6648, 1.442695
    %v6655 = vpow.pop %v6654
    %v6656 = vmul.f32 %v6649, 1.442695
    %v6657 = vpow.pop %v6656
    %v6658 = vadd.f32 %v6651, 1.0
    %v6659 = vadd.f32 %v6653, 1.0
    %v6660 = vadd.f32 %v6655, 1.0
    %v6661 = vadd.f32 %v6657, 1.0
    %v6662 = vrcp.pop %v6658
    %v6663 = vmul.f32 1.0, %v6662
    %v6664 = vrcp.pop %v6659
    %v6665 = vmul.f32 1.0, %v6664
    %v6666 = vrcp.pop %v6660
    %v6667 = vmul.f32 1.0, %v6666
    %v6668 = vrcp.pop %v6661
    %v6669 = vmul.f32 1.0, %v6668
    %v6670 = vmul.f32 %v6635, 0.0
    %v6671 = vmul.f32 %v6637, 0.0
    %v6672 = vmul.f32 %v6639, 0.0
    %v6673 = vmul.f32 %v6641, 0.0
    %v6674 = vmul.f32 %v6611, %v6642
    %v6675 = vmul.f32 %v6613, %v6643
    %v6676 = vmul.f32 %v6615, %v6644
    %v6677 = vmul.f32 %v6617, %v6645
    %v6678 = vadd.f32 %v6670, %v6674
    %v6679 = vadd.f32 %v6671, %v6675
    %v6680 = vadd.f32 %v6672, %v6676
    %v6681 = vadd.f32 %v6673, %v6677
    %v6682 = vtanh.pop %v6678
    %v6683 = vtanh.pop %v6679
    %v6684 = vtanh.pop %v6680
    %v6685 = vtanh.pop %v6681
    %v6686 = vmul.f32 %v6663, %v6682
    %v6687 = vmul.f32 %v6665, %v6683
    %v6688 = vmul.f32 %v6667, %v6684
    %v6689 = vmul.f32 %v6669, %v6685
    %v6690 = vxor.u32 %v6578, 2147483648
    %v6691 = vxor.u32 %v6579, 2147483648
    %v6692 = vxor.u32 %v6580, 2147483648
    %v6693 = vxor.u32 %v6581, 2147483648
    %v6694 = vmul.f32 %v6690, 1.442695
    %v6695 = vpow.pop %v6694
    %v6696 = vmul.f32 %v6691, 1.442695
    %v6697 = vpow.pop %v6696
    %v6698 = vmul.f32 %v6692, 1.442695
    %v6699 = vpow.pop %v6698
    %v6700 = vmul.f32 %v6693, 1.442695
    %v6701 = vpow.pop %v6700
    %v6702 = vadd.f32 %v6695, 1.0
    %v6703 = vadd.f32 %v6697, 1.0
    %v6704 = vadd.f32 %v6699, 1.0
    %v6705 = vadd.f32 %v6701, 1.0
    %v6706 = vrcp.pop %v6702
    %v6707 = vmul.f32 1.0, %v6706
    %v6708 = vrcp.pop %v6703
    %v6709 = vmul.f32 1.0, %v6708
    %v6710 = vrcp.pop %v6704
    %v6711 = vmul.f32 1.0, %v6710
    %v6712 = vrcp.pop %v6705
    %v6713 = vmul.f32 1.0, %v6712
    %v6714 = vxor.u32 %v6582, 2147483648
    %v6715 = vxor.u32 %v6583, 2147483648
    %v6716 = vxor.u32 %v6584, 2147483648
    %v6717 = vxor.u32 %v6585, 2147483648
    %v6718 = vmul.f32 %v6714, 1.442695
    %v6719 = vpow.pop %v6718
    %v6720 = vmul.f32 %v6715, 1.442695
    %v6721 = vpow.pop %v6720
    %v6722 = vmul.f32 %v6716, 1.442695
    %v6723 = vpow.pop %v6722
    %v6724 = vmul.f32 %v6717, 1.442695
    %v6725 = vpow.pop %v6724
    %v6726 = vadd.f32 %v6719, 1.0
    %v6727 = vadd.f32 %v6721, 1.0
    %v6728 = vadd.f32 %v6723, 1.0
    %v6729 = vadd.f32 %v6725, 1.0
    %v6730 = vrcp.pop %v6726
    %v6731 = vmul.f32 1.0, %v6730
    %v6732 = vrcp.pop %v6727
    %v6733 = vmul.f32 1.0, %v6732
    %v6734 = vrcp.pop %v6728
    %v6735 = vmul.f32 1.0, %v6734
    %v6736 = vrcp.pop %v6729
    %v6737 = vmul.f32 1.0, %v6736
    %v6738 = vtanh.pop %v6586
    %v6739 = vtanh.pop %v6587
    %v6740 = vtanh.pop %v6588
    %v6741 = vtanh.pop %v6589
    %v6742 = vxor.u32 %v6590, 2147483648
    %v6743 = vxor.u32 %v6591, 2147483648
    %v6744 = vxor.u32 %v6592, 2147483648
    %v6745 = vxor.u32 %v6593, 2147483648
    %v6746 = vmul.f32 %v6742, 1.442695
    %v6747 = vpow.pop %v6746
    %v6748 = vmul.f32 %v6743, 1.442695
    %v6749 = vpow.pop %v6748
    %v6750 = vmul.f32 %v6744, 1.442695
    %v6751 = vpow.pop %v6750
    %v6752 = vmul.f32 %v6745, 1.442695
    %v6753 = vpow.pop %v6752
    %v6754 = vadd.f32 %v6747, 1.0
    %v6755 = vadd.f32 %v6749, 1.0
    %v6756 = vadd.f32 %v6751, 1.0
    %v6757 = vadd.f32 %v6753, 1.0
    %v6758 = vrcp.pop %v6754
    %v6759 = vmul.f32 1.0, %v6758
    %v6760 = vrcp.pop %v6755
    %v6761 = vmul.f32 1.0, %v6760
    %v6762 = vrcp.pop %v6756
    %v6763 = vmul.f32 1.0, %v6762
    %v6764 = vrcp.pop %v6757
    %v6765 = vmul.f32 1.0, %v6764
    %v6766 = vmul.f32 %v6731, 0.0
    %v6767 = vmul.f32 %v6733, 0.0
    %v6768 = vmul.f32 %v6735, 0.0
    %v6769 = vmul.f32 %v6737, 0.0
    %v6770 = vmul.f32 %v6707, %v6738
    %v6771 = vmul.f32 %v6709, %v6739
    %v6772 = vmul.f32 %v6711, %v6740
    %v6773 = vmul.f32 %v6713, %v6741
    %v6774 = vadd.f32 %v6766, %v6770
    %v6775 = vadd.f32 %v6767, %v6771
    %v6776 = vadd.f32 %v6768, %v6772
    %v6777 = vadd.f32 %v6769, %v6773
    %v6778 = vtanh.pop %v6774
    %v6779 = vtanh.pop %v6775
    %v6780 = vtanh.pop %v6776
    %v6781 = vtanh.pop %v6777
    %v6782 = vmul.f32 %v6759, %v6778
    %v6783 = vmul.f32 %v6761, %v6779
    %v6784 = vmul.f32 %v6763, %v6780
    %v6785 = vmul.f32 %v6765, %v6781
    %v6786 = vpack.c.bf16 %v6687, %v6686
    %v6787 = vpack.c.bf16 %v6689, %v6688
    %v6788 = vpack.c.bf16 %v6783, %v6782
    %v6789 = vpack.c.bf16 %v6785, %v6784
    %6790 = vmatprep.subr.bf16.mxu0 0
    %6791 = vmatpush1.bf16.msra.mxu0 %v6786
    %6792 = vmatprep.subr.bf16.mxu0 0
    %6793 = vmatpush1.bf16.msra.mxu0 %v6787
    %6794 = vmatprep.subr.bf16.mxu0 0
    %6795 = vmatpush1.bf16.msra.mxu0 %v6788
    %6796 = vmatprep.subr.bf16.mxu0 0
    %6797 = vmatpush1.bf16.msra.mxu0 %v6789
    %6798 = vmatprep.subr.bf16.mxu0 0
    %6799 = vmatpush1.bf16.msra.mxu0 0
    %6800 = vmatprep.subr.bf16.mxu0 0
    %6801 = vmatpush1.bf16.msra.mxu0 0
    %6802 = vmatprep.subr.bf16.mxu0 0
    %6803 = vmatpush1.bf16.msra.mxu0 0
    %6804 = vmatprep.subr.bf16.mxu0 0
    %6805 = vmatpush1.bf16.msra.mxu0 0
    %6806 = vmatprep.subr.bf16.mxu0 0
    %6807 = vmatpush1.bf16.msra.mxu0 0
    %6808 = vmatprep.subr.bf16.mxu0 0
    %6809 = vmatpush1.bf16.msra.mxu0 0
    %6810 = vmatprep.subr.bf16.mxu0 0
    %6811 = vmatpush1.bf16.msra.mxu0 0
    %6812 = vmatprep.subr.bf16.mxu0 0
    %6813 = vmatpush1.bf16.msra.mxu0 0
    %6814 = vmatprep.subr.bf16.mxu0 0
    %6815 = vmatpush1.bf16.msra.mxu0 0
    %6816 = vmatprep.subr.bf16.mxu0 0
    %6817 = vmatpush1.bf16.msra.mxu0 0
    %6818 = vmatprep.subr.bf16.mxu0 0
    %6819 = vmatpush1.bf16.msra.mxu0 0
    %6820 = vmatprep.subr.bf16.mxu0 0
    %6821 = vmatpush1.bf16.msra.mxu0 0
    %6822 = vmatprep.mubr.bf16.mxu0 0
    %6823 = vmatmul.mubr.bf16.gmra.mrb[0].mxu0 %v6322
    %v6824 = vpop.f32.mrb[0].mxu0
    %v6825 = vadd.f32 0.0, %v6824
    %v6826 = vpop.f32.mrb[0].mxu0
    %v6827 = vpop.f32.mrb[0].mxu0
    %v6828 = vadd.f32 0.0, %v6827
    %v6829 = vpop.f32.mrb[0].mxu0
    %6830 = vmatprep.mubr.bf16.mxu0 0
    %6831 = vmatmul.mubr.bf16.gmra.mrb[0].mxu0 %v6325
    %v6832 = vpop.f32.mrb[0].mxu0
    %v6833 = vadd.f32 0.0, %v6832
    %v6834 = vpop.f32.mrb[0].mxu0
    %v6835 = vpop.f32.mrb[0].mxu0
    %v6836 = vadd.f32 0.0, %v6835
    %v6837 = vpop.f32.mrb[0].mxu0
    %6838 = vmatprep.mubr.bf16.mxu0 0
    %6839 = vmatmul.mubr.bf16.gmra.mrb[0].mxu0 %v6328
    %v6840 = vpop.f32.mrb[0].mxu0
    %v6841 = vadd.f32 0.0, %v6840
    %v6842 = vpop.f32.mrb[0].mxu0
    %v6843 = vpop.f32.mrb[0].mxu0
    %v6844 = vadd.f32 0.0, %v6843
    %v6845 = vpop.f32.mrb[0].mxu0
    %6846 = vmatprep.mubr.bf16.mxu0 0
    %6847 = vmatmul.mubr.bf16.gmra.mrb[0].mxu0 %v6331
    %v6848 = vpop.f32.mrb[0].mxu0
    %v6849 = vadd.f32 0.0, %v6848
    %v6850 = vpop.f32.mrb[0].mxu0
    %v6851 = vpop.f32.mrb[0].mxu0
    %v6852 = vadd.f32 0.0, %v6851
    %v6853 = vpop.f32.mrb[0].mxu0
    %6854 = vmatprep.mubr.bf16.mxu0 0
    %6855 = vmatmul.mubr.bf16.gmra.mrb[0].mxu0 %v6334
    %v6856 = vpop.f32.mrb[0].mxu0
    %v6857 = vadd.f32 0.0, %v6856
    %v6858 = vpop.f32.mrb[0].mxu0
    %v6859 = vpop.f32.mrb[0].mxu0
    %v6860 = vadd.f32 0.0, %v6859
    %v6861 = vpop.f32.mrb[0].mxu0
    %6862 = vmatprep.mubr.bf16.mxu0 0
    %6863 = vmatmul.mubr.bf16.gmra.mrb[0].mxu0 %v6337
    %v6864 = vpop.f32.mrb[0].mxu0
    %v6865 = vadd.f32 0.0, %v6864
    %v6866 = vpop.f32.mrb[0].mxu0
    %v6867 = vpop.f32.mrb[0].mxu0
    %v6868 = vadd.f32 0.0, %v6867
    %v6869 = vpop.f32.mrb[0].mxu0
    %6870 = vmatprep.mubr.bf16.mxu0 0
    %6871 = vmatmul.mubr.bf16.gmra.mrb[0].mxu0 %v6340
    %v6872 = vpop.f32.mrb[0].mxu0
    %v6873 = vadd.f32 0.0, %v6872
    %v6874 = vpop.f32.mrb[0].mxu0
    %v6875 = vpop.f32.mrb[0].mxu0
    %v6876 = vadd.f32 0.0, %v6875
    %v6877 = vpop.f32.mrb[0].mxu0
    %6878 = vmatprep.mubr.bf16.mxu0 0
    %6879 = vmatmul.mubr.bf16.gmra.mrb[0].mxu0 %v6343
    %v6880 = vpop.f32.mrb[0].mxu0
    %v6881 = vadd.f32 0.0, %v6880
    %v6882 = vpop.f32.mrb[0].mxu0
    %v6883 = vpop.f32.mrb[0].mxu0
    %v6884 = vadd.f32 0.0, %v6883
    %v6885 = vpop.f32.mrb[0].mxu0
    %6886 = vmatprep.mubr.bf16.mxu0 0
    %6887 = vmatmul.mubr.bf16.gmra.mrb[0].mxu0 %v6346
    %v6888 = vpop.f32.mrb[0].mxu0
    %v6889 = vadd.f32 0.0, %v6888
    %v6890 = vpop.f32.mrb[0].mxu0
    %v6891 = vpop.f32.mrb[0].mxu0
    %v6892 = vadd.f32 0.0, %v6891
    %v6893 = vpop.f32.mrb[0].mxu0
    %6894 = vmatprep.mubr.bf16.mxu0 0
    %6895 = vmatmul.mubr.bf16.gmra.mrb[0].mxu0 %v6349
    %v6896 = vpop.f32.mrb[0].mxu0
    %v6897 = vadd.f32 0.0, %v6896
    %v6898 = vpop.f32.mrb[0].mxu0
    %v6899 = vpop.f32.mrb[0].mxu0
    %v6900 = vadd.f32 0.0, %v6899
    %v6901 = vpop.f32.mrb[0].mxu0
    %6902 = vmatprep.mubr.bf16.mxu0 0
    %6903 = vmatmul.mubr.bf16.gmra.mrb[0].mxu0 %v6352
    %v6904 = vpop.f32.mrb[0].mxu0
    %v6905 = vadd.f32 0.0, %v6904
    %v6906 = vpop.f32.mrb[0].mxu0
    %v6907 = vpop.f32.mrb[0].mxu0
    %v6908 = vadd.f32 0.0, %v6907
    %v6909 = vpop.f32.mrb[0].mxu0
    %6910 = vmatprep.mubr.bf16.mxu0 0
    %6911 = vmatmul.mubr.bf16.gmra.mrb[0].mxu0 %v6355
    %v6912 = vpop.f32.mrb[0].mxu0
    %v6913 = vadd.f32 0.0, %v6912
    %v6914 = vpop.f32.mrb[0].mxu0
    %v6915 = vpop.f32.mrb[0].mxu0
    %v6916 = vadd.f32 0.0, %v6915
    %v6917 = vpop.f32.mrb[0].mxu0
    %6918 = vmatprep.mubr.bf16.mxu0 0
    %6919 = vmatmul.mubr.bf16.gmra.mrb[0].mxu0 %v6358
    %v6920 = vpop.f32.mrb[0].mxu0
    %v6921 = vadd.f32 0.0, %v6920
    %v6922 = vpop.f32.mrb[0].mxu0
    %v6923 = vpop.f32.mrb[0].mxu0
    %v6924 = vadd.f32 0.0, %v6923
    %v6925 = vpop.f32.mrb[0].mxu0
    %6926 = vmatprep.mubr.bf16.mxu0 0
    %6927 = vmatmul.mubr.bf16.gmra.mrb[0].mxu0 %v6361
    %v6928 = vpop.f32.mrb[0].mxu0
    %v6929 = vadd.f32 0.0, %v6928
    %v6930 = vpop.f32.mrb[0].mxu0
    %v6931 = vpop.f32.mrb[0].mxu0
    %v6932 = vadd.f32 0.0, %v6931
    %v6933 = vpop.f32.mrb[0].mxu0
    %6934 = vmatprep.mubr.bf16.mxu0 0
    %6935 = vmatmul.mubr.bf16.gmra.mrb[0].mxu0 %v6364
    %v6936 = vpop.f32.mrb[0].mxu0
    %v6937 = vadd.f32 0.0, %v6936
    %v6938 = vpop.f32.mrb[0].mxu0
    %v6939 = vpop.f32.mrb[0].mxu0
    %v6940 = vadd.f32 0.0, %v6939
    %v6941 = vpop.f32.mrb[0].mxu0
    %6942 = vmatprep.mubr.bf16.mxu0 0
    %6943 = vmatmul.mubr.bf16.gmra.mrb[0].mxu0 %v6367
    %v6944 = vpop.f32.mrb[0].mxu0
    %v6945 = vadd.f32 0.0, %v6944
    %v6946 = vpop.f32.mrb[0].mxu0
    %v6947 = vpop.f32.mrb[0].mxu0
    %v6948 = vadd.f32 0.0, %v6947
    %v6949 = vpop.f32.mrb[0].mxu0
    %6950 = vdwg.mxu0
    %v6951 = vld [vmem:[%s582] sm:$0xff]
    %v6952 = vld [vmem:[%s582 + $0x40] sm:$0xff]
    %v6953 = vld [vmem:[%s582 + $0x80] sm:$0xff]
    %v6954 = vld [vmem:[%s582 + $0xc0] sm:$0xff]
    %v6955 = vld [vmem:[%s582 + $0x100] sm:$0xff]
    %v6956 = vld [vmem:[%s582 + $0x140] sm:$0xff]
    %v6957 = vld [vmem:[%s582 + $0x180] sm:$0xff]
    %v6958 = vld [vmem:[%s582 + $0x1c0] sm:$0xff]
    %v6959 = vld [vmem:[%s582 + $0x200] sm:$0xff]
    %v6960 = vld [vmem:[%s582 + $0x240] sm:$0xff]
    %v6961 = vld [vmem:[%s582 + $0x280] sm:$0xff]
    %v6962 = vld [vmem:[%s582 + $0x2c0] sm:$0xff]
    %v6963 = vld [vmem:[%s582 + $0x300] sm:$0xff]
    %v6964 = vld [vmem:[%s582 + $0x340] sm:$0xff]
    %v6965 = vld [vmem:[%s582 + $0x380] sm:$0xff]
    %v6966 = vld [vmem:[%s582 + $0x3c0] sm:$0xff]
    %v6967 = vadd.f32 %v6825, %v6951
    %v6968 = vadd.f32 %v6828, %v6952
    %v6969 = vadd.f32 %v6833, %v6953
    %v6970 = vadd.f32 %v6836, %v6954
    %v6971 = vadd.f32 %v6841, %v6955
    %v6972 = vadd.f32 %v6844, %v6956
    %v6973 = vadd.f32 %v6849, %v6957
    %v6974 = vadd.f32 %v6852, %v6958
    %v6975 = vadd.f32 %v6857, %v6959
    %v6976 = vadd.f32 %v6860, %v6960
    %v6977 = vadd.f32 %v6865, %v6961
    %v6978 = vadd.f32 %v6868, %v6962
    %v6979 = vadd.f32 %v6873, %v6963
    %v6980 = vadd.f32 %v6876, %v6964
    %v6981 = vadd.f32 %v6881, %v6965
    %v6982 = vadd.f32 %v6884, %v6966
    %v6983 = vld [vmem:[%s1092 + $0x400] sm:$0xff]
    %v6984 = vld [vmem:[%s1092 + $0x440] sm:$0xff]
    %v6985 = vld [vmem:[%s1092 + $0x480] sm:$0xff]
    %v6986 = vld [vmem:[%s1092 + $0x4c0] sm:$0xff]
    %v6987 = vld [vmem:[%s1092 + $0x500] sm:$0xff]
    %v6988 = vld [vmem:[%s1092 + $0x540] sm:$0xff]
    %v6989 = vld [vmem:[%s1092 + $0x580] sm:$0xff]
    %v6990 = vld [vmem:[%s1092 + $0x5c0] sm:$0xff]
    %v6991 = vld [vmem:[%s1092 + $0x600] sm:$0xff]
    %v6992 = vld [vmem:[%s1092 + $0x640] sm:$0xff]
    %v6993 = vld [vmem:[%s1092 + $0x680] sm:$0xff]
    %v6994 = vld [vmem:[%s1092 + $0x6c0] sm:$0xff]
    %v6995 = vld [vmem:[%s1092 + $0x700] sm:$0xff]
    %v6996 = vld [vmem:[%s1092 + $0x740] sm:$0xff]
    %v6997 = vld [vmem:[%s1092 + $0x780] sm:$0xff]
    %v6998 = vld [vmem:[%s1092 + $0x7c0] sm:$0xff]
    %v6999 = vadd.f32 %v6889, %v6983
    %v7000 = vadd.f32 %v6892, %v6984
    %v7001 = vadd.f32 %v6897, %v6985
    %v7002 = vadd.f32 %v6900, %v6986
    %v7003 = vadd.f32 %v6905, %v6987
    %v7004 = vadd.f32 %v6908, %v6988
    %v7005 = vadd.f32 %v6913, %v6989
    %v7006 = vadd.f32 %v6916, %v6990
    %v7007 = vadd.f32 %v6921, %v6991
    %v7008 = vadd.f32 %v6924, %v6992
    %v7009 = vadd.f32 %v6929, %v6993
    %v7010 = vadd.f32 %v6932, %v6994
    %v7011 = vadd.f32 %v6937, %v6995
    %v7012 = vadd.f32 %v6940, %v6996
    %v7013 = vadd.f32 %v6945, %v6997
    %v7014 = vadd.f32 %v6948, %v6998
    %v7015 = vxor.u32 %v6967, 2147483648
    %v7016 = vxor.u32 %v6968, 2147483648
    %v7017 = vxor.u32 %v6969, 2147483648
    %v7018 = vxor.u32 %v6970, 2147483648
    %v7019 = vmul.f32 %v7015, 1.442695
    %v7020 = vpow.pop %v7019
    %v7021 = vmul.f32 %v7016, 1.442695
    %v7022 = vpow.pop %v7021
    %v7023 = vmul.f32 %v7017, 1.442695
    %v7024 = vpow.pop %v7023
    %v7025 = vmul.f32 %v7018, 1.442695
    %v7026 = vpow.pop %v7025
    %v7027 = vadd.f32 %v7020, 1.0
    %v7028 = vadd.f32 %v7022, 1.0
    %v7029 = vadd.f32 %v7024, 1.0
    %v7030 = vadd.f32 %v7026, 1.0
    %v7031 = vrcp.pop %v7027
    %v7032 = vmul.f32 1.0, %v7031
    %v7033 = vrcp.pop %v7028
    %v7034 = vmul.f32 1.0, %v7033
    %v7035 = vrcp.pop %v7029
    %v7036 = vmul.f32 1.0, %v7035
    %v7037 = vrcp.pop %v7030
    %v7038 = vmul.f32 1.0, %v7037
    %v7039 = vxor.u32 %v6971, 2147483648
    %v7040 = vxor.u32 %v6972, 2147483648
    %v7041 = vxor.u32 %v6973, 2147483648
    %v7042 = vxor.u32 %v6974, 2147483648
    %v7043 = vmul.f32 %v7039, 1.442695
    %v7044 = vpow.pop %v7043
    %v7045 = vmul.f32 %v7040, 1.442695
    %v7046 = vpow.pop %v7045
    %v7047 = vmul.f32 %v7041, 1.442695
    %v7048 = vpow.pop %v7047
    %v7049 = vmul.f32 %v7042, 1.442695
    %v7050 = vpow.pop %v7049
    %v7051 = vadd.f32 %v7044, 1.0
    %v7052 = vadd.f32 %v7046, 1.0
    %v7053 = vadd.f32 %v7048, 1.0
    %v7054 = vadd.f32 %v7050, 1.0
    %v7055 = vrcp.pop %v7051
    %v7056 = vmul.f32 1.0, %v7055
    %v7057 = vrcp.pop %v7052
    %v7058 = vmul.f32 1.0, %v7057
    %v7059 = vrcp.pop %v7053
    %v7060 = vmul.f32 1.0, %v7059
    %v7061 = vrcp.pop %v7054
    %v7062 = vmul.f32 1.0, %v7061
    %v7063 = vtanh.pop %v6975
    %v7064 = vtanh.pop %v6976
    %v7065 = vtanh.pop %v6977
    %v7066 = vtanh.pop %v6978
    %v7067 = vxor.u32 %v6979, 2147483648
    %v7068 = vxor.u32 %v6980, 2147483648
    %v7069 = vxor.u32 %v6981, 2147483648
    %v7070 = vxor.u32 %v6982, 2147483648
    %v7071 = vmul.f32 %v7067, 1.442695
    %v7072 = vpow.pop %v7071
    %v7073 = vmul.f32 %v7068, 1.442695
    %v7074 = vpow.pop %v7073
    %v7075 = vmul.f32 %v7069, 1.442695
    %v7076 = vpow.pop %v7075
    %v7077 = vmul.f32 %v7070, 1.442695
    %v7078 = vpow.pop %v7077
    %v7079 = vadd.f32 %v7072, 1.0
    %v7080 = vadd.f32 %v7074, 1.0
    %v7081 = vadd.f32 %v7076, 1.0
    %v7082 = vadd.f32 %v7078, 1.0
    %v7083 = vrcp.pop %v7079
    %v7084 = vmul.f32 1.0, %v7083
    %v7085 = vrcp.pop %v7080
    %v7086 = vmul.f32 1.0, %v7085
    %v7087 = vrcp.pop %v7081
    %v7088 = vmul.f32 1.0, %v7087
    %v7089 = vrcp.pop %v7082
    %v7090 = vmul.f32 1.0, %v7089
    %v7091 = vmul.f32 %v7056, %v6678
    %v7092 = vmul.f32 %v7058, %v6679
    %v7093 = vmul.f32 %v7060, %v6680
    %v7094 = vmul.f32 %v7062, %v6681
    %v7095 = vmul.f32 %v7032, %v7063
    %v7096 = vmul.f32 %v7034, %v7064
    %v7097 = vmul.f32 %v7036, %v7065
    %v7098 = vmul.f32 %v7038, %v7066
    %v7099 = vadd.f32 %v7091, %v7095
    %v7100 = vadd.f32 %v7092, %v7096
    %v7101 = vadd.f32 %v7093, %v7097
    %v7102 = vadd.f32 %v7094, %v7098
    %v7103 = vtanh.pop %v7099
    %v7104 = vtanh.pop %v7100
    %v7105 = vtanh.pop %v7101
    %v7106 = vtanh.pop %v7102
    %v7107 = vmul.f32 %v7084, %v7103
    %v7108 = vmul.f32 %v7086, %v7104
    %v7109 = vmul.f32 %v7088, %v7105
    %v7110 = vmul.f32 %v7090, %v7106
    %v7111 = vxor.u32 %v6999, 2147483648
    %v7112 = vxor.u32 %v7000, 2147483648
    %v7113 = vxor.u32 %v7001, 2147483648
    %v7114 = vxor.u32 %v7002, 2147483648
    %v7115 = vmul.f32 %v7111, 1.442695
    %v7116 = vpow.pop %v7115
    %v7117 = vmul.f32 %v7112, 1.442695
    %v7118 = vpow.pop %v7117
    %v7119 = vmul.f32 %v7113, 1.442695
    %v7120 = vpow.pop %v7119
    %v7121 = vmul.f32 %v7114, 1.442695
    %v7122 = vpow.pop %v7121
    %v7123 = vadd.f32 %v7116, 1.0
    %v7124 = vadd.f32 %v7118, 1.0
    %v7125 = vadd.f32 %v7120, 1.0
    %v7126 = vadd.f32 %v7122, 1.0
    %v7127 = vrcp.pop %v7123
    %v7128 = vmul.f32 1.0, %v7127
    %v7129 = vrcp.pop %v7124
    %v7130 = vmul.f32 1.0, %v7129
    %v7131 = vrcp.pop %v7125
    %v7132 = vmul.f32 1.0, %v7131
    %v7133 = vrcp.pop %v7126
    %v7134 = vmul.f32 1.0, %v7133
    %v7135 = vxor.u32 %v7003, 2147483648
    %v7136 = vxor.u32 %v7004, 2147483648
    %v7137 = vxor.u32 %v7005, 2147483648
    %v7138 = vxor.u32 %v7006, 2147483648
    %v7139 = vmul.f32 %v7135, 1.442695
    %v7140 = vpow.pop %v7139
    %v7141 = vmul.f32 %v7136, 1.442695
    %v7142 = vpow.pop %v7141
    %v7143 = vmul.f32 %v7137, 1.442695
    %v7144 = vpow.pop %v7143
    %v7145 = vmul.f32 %v7138, 1.442695
    %v7146 = vpow.pop %v7145
    %v7147 = vadd.f32 %v7140, 1.0
    %v7148 = vadd.f32 %v7142, 1.0
    %v7149 = vadd.f32 %v7144, 1.0
    %v7150 = vadd.f32 %v7146, 1.0
    %v7151 = vrcp.pop %v7147
    %v7152 = vmul.f32 1.0, %v7151
    %v7153 = vrcp.pop %v7148
    %v7154 = vmul.f32 1.0, %v7153
    %v7155 = vrcp.pop %v7149
    %v7156 = vmul.f32 1.0, %v7155
    %v7157 = vrcp.pop %v7150
    %v7158 = vmul.f32 1.0, %v7157
    %v7159 = vtanh.pop %v7007
    %v7160 = vtanh.pop %v7008
    %v7161 = vtanh.pop %v7009
    %v7162 = vtanh.pop %v7010
    %v7163 = vxor.u32 %v7011, 2147483648
    %v7164 = vxor.u32 %v7012, 2147483648
    %v7165 = vxor.u32 %v7013, 2147483648
    %v7166 = vxor.u32 %v7014, 2147483648
    %v7167 = vmul.f32 %v7163, 1.442695
    %v7168 = vpow.pop %v7167
    %v7169 = vmul.f32 %v7164, 1.442695
    %v7170 = vpow.pop %v7169
    %v7171 = vmul.f32 %v7165, 1.442695
    %v7172 = vpow.pop %v7171
    %v7173 = vmul.f32 %v7166, 1.442695
    %v7174 = vpow.pop %v7173
    %v7175 = vadd.f32 %v7168, 1.0
    %v7176 = vadd.f32 %v7170, 1.0
    %v7177 = vadd.f32 %v7172, 1.0
    %v7178 = vadd.f32 %v7174, 1.0
    %v7179 = vrcp.pop %v7175
    %v7180 = vmul.f32 1.0, %v7179
    %v7181 = vrcp.pop %v7176
    %v7182 = vmul.f32 1.0, %v7181
    %v7183 = vrcp.pop %v7177
    %v7184 = vmul.f32 1.0, %v7183
    %v7185 = vrcp.pop %v7178
    %v7186 = vmul.f32 1.0, %v7185
    %v7187 = vmul.f32 %v7152, %v6774
    %v7188 = vmul.f32 %v7154, %v6775
    %v7189 = vmul.f32 %v7156, %v6776
    %v7190 = vmul.f32 %v7158, %v6777
    %v7191 = vmul.f32 %v7128, %v7159
    %v7192 = vmul.f32 %v7130, %v7160
    %v7193 = vmul.f32 %v7132, %v7161
    %v7194 = vmul.f32 %v7134, %v7162
    %v7195 = vadd.f32 %v7187, %v7191
    %v7196 = vadd.f32 %v7188, %v7192
    %v7197 = vadd.f32 %v7189, %v7193
    %v7198 = vadd.f32 %v7190, %v7194
    %v7199 = vtanh.pop %v7195
    %v7200 = vtanh.pop %v7196
    %v7201 = vtanh.pop %v7197
    %v7202 = vtanh.pop %v7198
    %v7203 = vmul.f32 %v7180, %v7199
    %v7204 = vmul.f32 %v7182, %v7200
    %v7205 = vmul.f32 %v7184, %v7201
    %v7206 = vmul.f32 %v7186, %v7202
    %v7207 = vpack.c.bf16 %v7108, %v7107
    %v7208 = vpack.c.bf16 %v7110, %v7109
    %v7209 = vpack.c.bf16 %v7204, %v7203
    %v7210 = vpack.c.bf16 %v7206, %v7205
    %7211 = vmatprep.subr.bf16.mxu0 0
    %7212 = vmatpush1.bf16.msra.mxu0 %v7207
    %7213 = vmatprep.subr.bf16.mxu0 0
    %7214 = vmatpush1.bf16.msra.mxu0 %v7208
    %7215 = vmatprep.subr.bf16.mxu0 0
    %7216 = vmatpush1.bf16.msra.mxu0 %v7209
    %7217 = vmatprep.subr.bf16.mxu0 0
    %7218 = vmatpush1.bf16.msra.mxu0 %v7210
    %7219 = vmatprep.subr.bf16.mxu0 0
    %7220 = vmatpush1.bf16.msra.mxu0 0
    %7221 = vmatprep.subr.bf16.mxu0 0
    %7222 = vmatpush1.bf16.msra.mxu0 0
    %7223 = vmatprep.subr.bf16.mxu0 0
    %7224 = vmatpush1.bf16.msra.mxu0 0
    %7225 = vmatprep.subr.bf16.mxu0 0
    %7226 = vmatpush1.bf16.msra.mxu0 0
    %7227 = vmatprep.subr.bf16.mxu0 0
    %7228 = vmatpush1.bf16.msra.mxu0 0
    %7229 = vmatprep.subr.bf16.mxu0 0
    %7230 = vmatpush1.bf16.msra.mxu0 0
    %7231 = vmatprep.subr.bf16.mxu0 0
    %7232 = vmatpush1.bf16.msra.mxu0 0
    %7233 = vmatprep.subr.bf16.mxu0 0
    %7234 = vmatpush1.bf16.msra.mxu0 0
    %7235 = vmatprep.subr.bf16.mxu0 0
    %7236 = vmatpush1.bf16.msra.mxu0 0
    %7237 = vmatprep.subr.bf16.mxu0 0
    %7238 = vmatpush1.bf16.msra.mxu0 0
    %7239 = vmatprep.subr.bf16.mxu0 0
    %7240 = vmatpush1.bf16.msra.mxu0 0
    %7241 = vmatprep.subr.bf16.mxu0 0
    %7242 = vmatpush1.bf16.msra.mxu0 0
    %7243 = vmatprep.mubr.bf16.mxu0 0
    %7244 = vmatmul.mubr.bf16.gmra.mrb[0].mxu0 %v6322
    %v7245 = vpop.f32.mrb[0].mxu0
    %v7246 = vadd.f32 0.0, %v7245
    %v7247 = vpop.f32.mrb[0].mxu0
    %v7248 = vpop.f32.mrb[0].mxu0
    %v7249 = vadd.f32 0.0, %v7248
    %v7250 = vpop.f32.mrb[0].mxu0
    %7251 = vmatprep.mubr.bf16.mxu0 0
    %7252 = vmatmul.mubr.bf16.gmra.mrb[0].mxu0 %v6325
    %v7253 = vpop.f32.mrb[0].mxu0
    %v7254 = vadd.f32 0.0, %v7253
    %v7255 = vpop.f32.mrb[0].mxu0
    %v7256 = vpop.f32.mrb[0].mxu0
    %v7257 = vadd.f32 0.0, %v7256
    %v7258 = vpop.f32.mrb[0].mxu0
    %7259 = vmatprep.mubr.bf16.mxu0 0
    %7260 = vmatmul.mubr.bf16.gmra.mrb[0].mxu0 %v6328
    %v7261 = vpop.f32.mrb[0].mxu0
    %v7262 = vadd.f32 0.0, %v7261
    %v7263 = vpop.f32.mrb[0].mxu0
    %v7264 = vpop.f32.mrb[0].mxu0
    %v7265 = vadd.f32 0.0, %v7264
    %v7266 = vpop.f32.mrb[0].mxu0
    %7267 = vmatprep.mubr.bf16.mxu0 0
    %7268 = vmatmul.mubr.bf16.gmra.mrb[0].mxu0 %v6331
    %v7269 = vpop.f32.mrb[0].mxu0
    %v7270 = vadd.f32 0.0, %v7269
    %v7271 = vpop.f32.mrb[0].mxu0
    %v7272 = vpop.f32.mrb[0].mxu0
    %v7273 = vadd.f32 0.0, %v7272
    %v7274 = vpop.f32.mrb[0].mxu0
    %7275 = vmatprep.mubr.bf16.mxu0 0
    %7276 = vmatmul.mubr.bf16.gmra.mrb[0].mxu0 %v6334
    %v7277 = vpop.f32.mrb[0].mxu0
    %v7278 = vadd.f32 0.0, %v7277
    %v7279 = vpop.f32.mrb[0].mxu0
    %v7280 = vpop.f32.mrb[0].mxu0
    %v7281 = vadd.f32 0.0, %v7280
    %v7282 = vpop.f32.mrb[0].mxu0
    %7283 = vmatprep.mubr.bf16.mxu0 0
    %7284 = vmatmul.mubr.bf16.gmra.mrb[0].mxu0 %v6337
    %v7285 = vpop.f32.mrb[0].mxu0
    %v7286 = vadd.f32 0.0, %v7285
    %v7287 = vpop.f32.mrb[0].mxu0
    %v7288 = vpop.f32.mrb[0].mxu0
    %v7289 = vadd.f32 0.0, %v7288
    %v7290 = vpop.f32.mrb[0].mxu0
    %7291 = vmatprep.mubr.bf16.mxu0 0
    %7292 = vmatmul.mubr.bf16.gmra.mrb[0].mxu0 %v6340
    %v7293 = vpop.f32.mrb[0].mxu0
    %v7294 = vadd.f32 0.0, %v7293
    %v7295 = vpop.f32.mrb[0].mxu0
    %v7296 = vpop.f32.mrb[0].mxu0
    %v7297 = vadd.f32 0.0, %v7296
    %v7298 = vpop.f32.mrb[0].mxu0
    %7299 = vmatprep.mubr.bf16.mxu0 0
    %7300 = vmatmul.mubr.bf16.gmra.mrb[0].mxu0 %v6343
    %v7301 = vpop.f32.mrb[0].mxu0
    %v7302 = vadd.f32 0.0, %v7301
    %v7303 = vpop.f32.mrb[0].mxu0
    %v7304 = vpop.f32.mrb[0].mxu0
    %v7305 = vadd.f32 0.0, %v7304
    %v7306 = vpop.f32.mrb[0].mxu0
    %7307 = vmatprep.mubr.bf16.mxu0 0
    %7308 = vmatmul.mubr.bf16.gmra.mrb[0].mxu0 %v6346
    %v7309 = vpop.f32.mrb[0].mxu0
    %v7310 = vadd.f32 0.0, %v7309
    %v7311 = vpop.f32.mrb[0].mxu0
    %v7312 = vpop.f32.mrb[0].mxu0
    %v7313 = vadd.f32 0.0, %v7312
    %v7314 = vpop.f32.mrb[0].mxu0
    %7315 = vmatprep.mubr.bf16.mxu0 0
    %7316 = vmatmul.mubr.bf16.gmra.mrb[0].mxu0 %v6349
    %v7317 = vpop.f32.mrb[0].mxu0
    %v7318 = vadd.f32 0.0, %v7317
    %v7319 = vpop.f32.mrb[0].mxu0
    %v7320 = vpop.f32.mrb[0].mxu0
    %v7321 = vadd.f32 0.0, %v7320
    %v7322 = vpop.f32.mrb[0].mxu0
    %7323 = vmatprep.mubr.bf16.mxu0 0
    %7324 = vmatmul.mubr.bf16.gmra.mrb[0].mxu0 %v6352
    %v7325 = vpop.f32.mrb[0].mxu0
    %v7326 = vadd.f32 0.0, %v7325
    %v7327 = vpop.f32.mrb[0].mxu0
    %v7328 = vpop.f32.mrb[0].mxu0
    %v7329 = vadd.f32 0.0, %v7328
    %v7330 = vpop.f32.mrb[0].mxu0
    %7331 = vmatprep.mubr.bf16.mxu0 0
    %7332 = vmatmul.mubr.bf16.gmra.mrb[0].mxu0 %v6355
    %v7333 = vpop.f32.mrb[0].mxu0
    %v7334 = vadd.f32 0.0, %v7333
    %v7335 = vpop.f32.mrb[0].mxu0
    %v7336 = vpop.f32.mrb[0].mxu0
    %v7337 = vadd.f32 0.0, %v7336
    %v7338 = vpop.f32.mrb[0].mxu0
    %7339 = vmatprep.mubr.bf16.mxu0 0
    %7340 = vmatmul.mubr.bf16.gmra.mrb[0].mxu0 %v6358
    %v7341 = vpop.f32.mrb[0].mxu0
    %v7342 = vadd.f32 0.0, %v7341
    %v7343 = vpop.f32.mrb[0].mxu0
    %v7344 = vpop.f32.mrb[0].mxu0
    %v7345 = vadd.f32 0.0, %v7344
    %v7346 = vpop.f32.mrb[0].mxu0
    %7347 = vmatprep.mubr.bf16.mxu0 0
    %7348 = vmatmul.mubr.bf16.gmra.mrb[0].mxu0 %v6361
    %v7349 = vpop.f32.mrb[0].mxu0
    %v7350 = vadd.f32 0.0, %v7349
    %v7351 = vpop.f32.mrb[0].mxu0
    %v7352 = vpop.f32.mrb[0].mxu0
    %v7353 = vadd.f32 0.0, %v7352
    %v7354 = vpop.f32.mrb[0].mxu0
    %7355 = vmatprep.mubr.bf16.mxu0 0
    %7356 = vmatmul.mubr.bf16.gmra.mrb[0].mxu0 %v6364
    %v7357 = vpop.f32.mrb[0].mxu0
    %v7358 = vadd.f32 0.0, %v7357
    %v7359 = vpop.f32.mrb[0].mxu0
    %v7360 = vpop.f32.mrb[0].mxu0
    %v7361 = vadd.f32 0.0, %v7360
    %v7362 = vpop.f32.mrb[0].mxu0
    %7363 = vmatprep.mubr.bf16.mxu0 0
    %7364 = vmatmul.mubr.bf16.gmra.mrb[0].mxu0 %v6367
    %v7365 = vpop.f32.mrb[0].mxu0
    %v7366 = vadd.f32 0.0, %v7365
    %v7367 = vpop.f32.mrb[0].mxu0
    %v7368 = vpop.f32.mrb[0].mxu0
    %v7369 = vadd.f32 0.0, %v7368
    %v7370 = vpop.f32.mrb[0].mxu0
    %7371 = vdwg.mxu0
    %v7372 = vld [vmem:[%s684] sm:$0xff]
    %v7373 = vld [vmem:[%s684 + $0x40] sm:$0xff]
    %v7374 = vld [vmem:[%s684 + $0x80] sm:$0xff]
    %v7375 = vld [vmem:[%s684 + $0xc0] sm:$0xff]
    %v7376 = vld [vmem:[%s684 + $0x100] sm:$0xff]
    %v7377 = vld [vmem:[%s684 + $0x140] sm:$0xff]
    %v7378 = vld [vmem:[%s684 + $0x180] sm:$0xff]
    %v7379 = vld [vmem:[%s684 + $0x1c0] sm:$0xff]
    %v7380 = vld [vmem:[%s684 + $0x200] sm:$0xff]
    %v7381 = vld [vmem:[%s684 + $0x240] sm:$0xff]
    %v7382 = vld [vmem:[%s684 + $0x280] sm:$0xff]
    %v7383 = vld [vmem:[%s684 + $0x2c0] sm:$0xff]
    %v7384 = vld [vmem:[%s684 + $0x300] sm:$0xff]
    %v7385 = vld [vmem:[%s684 + $0x340] sm:$0xff]
    %v7386 = vld [vmem:[%s684 + $0x380] sm:$0xff]
    %v7387 = vld [vmem:[%s684 + $0x3c0] sm:$0xff]
    %v7388 = vadd.f32 %v7246, %v7372
    %v7389 = vadd.f32 %v7249, %v7373
    %v7390 = vadd.f32 %v7254, %v7374
    %v7391 = vadd.f32 %v7257, %v7375
    %v7392 = vadd.f32 %v7262, %v7376
    %v7393 = vadd.f32 %v7265, %v7377
    %v7394 = vadd.f32 %v7270, %v7378
    %v7395 = vadd.f32 %v7273, %v7379
    %v7396 = vadd.f32 %v7278, %v7380
    %v7397 = vadd.f32 %v7281, %v7381
    %v7398 = vadd.f32 %v7286, %v7382
    %v7399 = vadd.f32 %v7289, %v7383
    %v7400 = vadd.f32 %v7294, %v7384
    %v7401 = vadd.f32 %v7297, %v7385
    %v7402 = vadd.f32 %v7302, %v7386
    %v7403 = vadd.f32 %v7305, %v7387
    %v7404 = vld [vmem:[%s990 + $0x400] sm:$0xff]
    %v7405 = vld [vmem:[%s990 + $0x440] sm:$0xff]
    %v7406 = vld [vmem:[%s990 + $0x480] sm:$0xff]
    %v7407 = vld [vmem:[%s990 + $0x4c0] sm:$0xff]
    %v7408 = vld [vmem:[%s990 + $0x500] sm:$0xff]
    %v7409 = vld [vmem:[%s990 + $0x540] sm:$0xff]
    %v7410 = vld [vmem:[%s990 + $0x580] sm:$0xff]
    %v7411 = vld [vmem:[%s990 + $0x5c0] sm:$0xff]
    %v7412 = vld [vmem:[%s990 + $0x600] sm:$0xff]
    %v7413 = vld [vmem:[%s990 + $0x640] sm:$0xff]
    %v7414 = vld [vmem:[%s990 + $0x680] sm:$0xff]
    %v7415 = vld [vmem:[%s990 + $0x6c0] sm:$0xff]
    %v7416 = vld [vmem:[%s990 + $0x700] sm:$0xff]
    %v7417 = vld [vmem:[%s990 + $0x740] sm:$0xff]
    %v7418 = vld [vmem:[%s990 + $0x780] sm:$0xff]
    %v7419 = vld [vmem:[%s990 + $0x7c0] sm:$0xff]
    %v7420 = vadd.f32 %v7310, %v7404
    %v7421 = vadd.f32 %v7313, %v7405
    %v7422 = vadd.f32 %v7318, %v7406
    %v7423 = vadd.f32 %v7321, %v7407
    %v7424 = vadd.f32 %v7326, %v7408
    %v7425 = vadd.f32 %v7329, %v7409
    %v7426 = vadd.f32 %v7334, %v7410
    %v7427 = vadd.f32 %v7337, %v7411
    %v7428 = vadd.f32 %v7342, %v7412
    %v7429 = vadd.f32 %v7345, %v7413
    %v7430 = vadd.f32 %v7350, %v7414
    %v7431 = vadd.f32 %v7353, %v7415
    %v7432 = vadd.f32 %v7358, %v7416
    %v7433 = vadd.f32 %v7361, %v7417
    %v7434 = vadd.f32 %v7366, %v7418
    %v7435 = vadd.f32 %v7369, %v7419
    %v7436 = vxor.u32 %v7388, 2147483648
    %v7437 = vxor.u32 %v7389, 2147483648
    %v7438 = vxor.u32 %v7390, 2147483648
    %v7439 = vxor.u32 %v7391, 2147483648
    %v7440 = vmul.f32 %v7436, 1.442695
    %v7441 = vpow.pop %v7440
    %v7442 = vmul.f32 %v7437, 1.442695
    %v7443 = vpow.pop %v7442
    %v7444 = vmul.f32 %v7438, 1.442695
    %v7445 = vpow.pop %v7444
    %v7446 = vmul.f32 %v7439, 1.442695
    %v7447 = vpow.pop %v7446
    %v7448 = vadd.f32 %v7441, 1.0
    %v7449 = vadd.f32 %v7443, 1.0
    %v7450 = vadd.f32 %v7445, 1.0
    %v7451 = vadd.f32 %v7447, 1.0
    %v7452 = vrcp.pop %v7448
    %v7453 = vmul.f32 1.0, %v7452
    %v7454 = vrcp.pop %v7449
    %v7455 = vmul.f32 1.0, %v7454
    %v7456 = vrcp.pop %v7450
    %v7457 = vmul.f32 1.0, %v7456
    %v7458 = vrcp.pop %v7451
    %v7459 = vmul.f32 1.0, %v7458
    %v7460 = vxor.u32 %v7392, 2147483648
    %v7461 = vxor.u32 %v7393, 2147483648
    %v7462 = vxor.u32 %v7394, 2147483648
    %v7463 = vxor.u32 %v7395, 2147483648
    %v7464 = vmul.f32 %v7460, 1.442695
    %v7465 = vpow.pop %v7464
    %v7466 = vmul.f32 %v7461, 1.442695
    %v7467 = vpow.pop %v7466
    %v7468 = vmul.f32 %v7462, 1.442695
    %v7469 = vpow.pop %v7468
    %v7470 = vmul.f32 %v7463, 1.442695
    %v7471 = vpow.pop %v7470
    %v7472 = vadd.f32 %v7465, 1.0
    %v7473 = vadd.f32 %v7467, 1.0
    %v7474 = vadd.f32 %v7469, 1.0
    %v7475 = vadd.f32 %v7471, 1.0
    %v7476 = vrcp.pop %v7472
    %v7477 = vmul.f32 1.0, %v7476
    %v7478 = vrcp.pop %v7473
    %v7479 = vmul.f32 1.0, %v7478
    %v7480 = vrcp.pop %v7474
    %v7481 = vmul.f32 1.0, %v7480
    %v7482 = vrcp.pop %v7475
    %v7483 = vmul.f32 1.0, %v7482
    %v7484 = vtanh.pop %v7396
    %v7485 = vtanh.pop %v7397
    %v7486 = vtanh.pop %v7398
    %v7487 = vtanh.pop %v7399
    %v7488 = vxor.u32 %v7400, 2147483648
    %v7489 = vxor.u32 %v7401, 2147483648
    %v7490 = vxor.u32 %v7402, 2147483648
    %v7491 = vxor.u32 %v7403, 2147483648
    %v7492 = vmul.f32 %v7488, 1.442695
    %v7493 = vpow.pop %v7492
    %v7494 = vmul.f32 %v7489, 1.442695
    %v7495 = vpow.pop %v7494
    %v7496 = vmul.f32 %v7490, 1.442695
    %v7497 = vpow.pop %v7496
    %v7498 = vmul.f32 %v7491, 1.442695
    %v7499 = vpow.pop %v7498
    %v7500 = vadd.f32 %v7493, 1.0
    %v7501 = vadd.f32 %v7495, 1.0
    %v7502 = vadd.f32 %v7497, 1.0
    %v7503 = vadd.f32 %v7499, 1.0
    %v7504 = vrcp.pop %v7500
    %v7505 = vmul.f32 1.0, %v7504
    %v7506 = vrcp.pop %v7501
    %v7507 = vmul.f32 1.0, %v7506
    %v7508 = vrcp.pop %v7502
    %v7509 = vmul.f32 1.0, %v7508
    %v7510 = vrcp.pop %v7503
    %v7511 = vmul.f32 1.0, %v7510
    %v7512 = vmul.f32 %v7477, %v7099
    %v7513 = vmul.f32 %v7479, %v7100
    %v7514 = vmul.f32 %v7481, %v7101
    %v7515 = vmul.f32 %v7483, %v7102
    %v7516 = vmul.f32 %v7453, %v7484
    %v7517 = vmul.f32 %v7455, %v7485
    %v7518 = vmul.f32 %v7457, %v7486
    %v7519 = vmul.f32 %v7459, %v7487
    %v7520 = vadd.f32 %v7512, %v7516
    %v7521 = vadd.f32 %v7513, %v7517
    %v7522 = vadd.f32 %v7514, %v7518
    %v7523 = vadd.f32 %v7515, %v7519
    %v7524 = vtanh.pop %v7520
    %v7525 = vtanh.pop %v7521
    %v7526 = vtanh.pop %v7522
    %v7527 = vtanh.pop %v7523
    %v7528 = vmul.f32 %v7505, %v7524
    %v7529 = vmul.f32 %v7507, %v7525
    %v7530 = vmul.f32 %v7509, %v7526
    %v7531 = vmul.f32 %v7511, %v7527
    %v7532 = vxor.u32 %v7420, 2147483648
    %v7533 = vxor.u32 %v7421, 2147483648
    %v7534 = vxor.u32 %v7422, 2147483648
    %v7535 = vxor.u32 %v7423, 2147483648
    %v7536 = vmul.f32 %v7532, 1.442695
    %v7537 = vpow.pop %v7536
    %v7538 = vmul.f32 %v7533, 1.442695
    %v7539 = vpow.pop %v7538
    %v7540 = vmul.f32 %v7534, 1.442695
    %v7541 = vpow.pop %v7540
    %v7542 = vmul.f32 %v7535, 1.442695
    %v7543 = vpow.pop %v7542
    %v7544 = vadd.f32 %v7537, 1.0
    %v7545 = vadd.f32 %v7539, 1.0
    %v7546 = vadd.f32 %v7541, 1.0
    %v7547 = vadd.f32 %v7543, 1.0
    %v7548 = vrcp.pop %v7544
    %v7549 = vmul.f32 1.0, %v7548
    %v7550 = vrcp.pop %v7545
    %v7551 = vmul.f32 1.0, %v7550
    %v7552 = vrcp.pop %v7546
    %v7553 = vmul.f32 1.0, %v7552
    %v7554 = vrcp.pop %v7547
    %v7555 = vmul.f32 1.0, %v7554
    %v7556 = vxor.u32 %v7424, 2147483648
    %v7557 = vxor.u32 %v7425, 2147483648
    %v7558 = vxor.u32 %v7426, 2147483648
    %v7559 = vxor.u32 %v7427, 2147483648
    %v7560 = vmul.f32 %v7556, 1.442695
    %v7561 = vpow.pop %v7560
    %v7562 = vmul.f32 %v7557, 1.442695
    %v7563 = vpow.pop %v7562
    %v7564 = vmul.f32 %v7558, 1.442695
    %v7565 = vpow.pop %v7564
    %v7566 = vmul.f32 %v7559, 1.442695
    %v7567 = vpow.pop %v7566
    %v7568 = vadd.f32 %v7561, 1.0
    %v7569 = vadd.f32 %v7563, 1.0
    %v7570 = vadd.f32 %v7565, 1.0
    %v7571 = vadd.f32 %v7567, 1.0
    %v7572 = vrcp.pop %v7568
    %v7573 = vmul.f32 1.0, %v7572
    %v7574 = vrcp.pop %v7569
    %v7575 = vmul.f32 1.0, %v7574
    %v7576 = vrcp.pop %v7570
    %v7577 = vmul.f32 1.0, %v7576
    %v7578 = vrcp.pop %v7571
    %v7579 = vmul.f32 1.0, %v7578
    %v7580 = vtanh.pop %v7428
    %v7581 = vtanh.pop %v7429
    %v7582 = vtanh.pop %v7430
    %v7583 = vtanh.pop %v7431
    %v7584 = vxor.u32 %v7432, 2147483648
    %v7585 = vxor.u32 %v7433, 2147483648
    %v7586 = vxor.u32 %v7434, 2147483648
    %v7587 = vxor.u32 %v7435, 2147483648
    %v7588 = vmul.f32 %v7584, 1.442695
    %v7589 = vpow.pop %v7588
    %v7590 = vmul.f32 %v7585, 1.442695
    %v7591 = vpow.pop %v7590
    %v7592 = vmul.f32 %v7586, 1.442695
    %v7593 = vpow.pop %v7592
    %v7594 = vmul.f32 %v7587, 1.442695
    %v7595 = vpow.pop %v7594
    %v7596 = vadd.f32 %v7589, 1.0
    %v7597 = vadd.f32 %v7591, 1.0
    %v7598 = vadd.f32 %v7593, 1.0
    %v7599 = vadd.f32 %v7595, 1.0
    %v7600 = vrcp.pop %v7596
    %v7601 = vmul.f32 1.0, %v7600
    %v7602 = vrcp.pop %v7597
    %v7603 = vmul.f32 1.0, %v7602
    %v7604 = vrcp.pop %v7598
    %v7605 = vmul.f32 1.0, %v7604
    %v7606 = vrcp.pop %v7599
    %v7607 = vmul.f32 1.0, %v7606
    %v7608 = vmul.f32 %v7573, %v7195
    %v7609 = vmul.f32 %v7575, %v7196
    %v7610 = vmul.f32 %v7577, %v7197
    %v7611 = vmul.f32 %v7579, %v7198
    %v7612 = vmul.f32 %v7549, %v7580
    %v7613 = vmul.f32 %v7551, %v7581
    %v7614 = vmul.f32 %v7553, %v7582
    %v7615 = vmul.f32 %v7555, %v7583
    %v7616 = vadd.f32 %v7608, %v7612
    %v7617 = vadd.f32 %v7609, %v7613
    %v7618 = vadd.f32 %v7610, %v7614
    %v7619 = vadd.f32 %v7611, %v7615
    %v7620 = vtanh.pop %v7616
    %v7621 = vtanh.pop %v7617
    %v7622 = vtanh.pop %v7618
    %v7623 = vtanh.pop %v7619
    %v7624 = vmul.f32 %v7601, %v7620
    %v7625 = vmul.f32 %v7603, %v7621
    %v7626 = vmul.f32 %v7605, %v7622
    %v7627 = vmul.f32 %v7607, %v7623
    %v7628 = vpack.c.bf16 %v7529, %v7528
    %v7629 = vpack.c.bf16 %v7531, %v7530
    %v7630 = vpack.c.bf16 %v7625, %v7624
    %v7631 = vpack.c.bf16 %v7627, %v7626
    %7632 = vmatprep.subr.bf16.mxu0 0
    %7633 = vmatpush1.bf16.msra.mxu0 %v7628
    %7634 = vmatprep.subr.bf16.mxu0 0
    %7635 = vmatpush1.bf16.msra.mxu0 %v7629
    %7636 = vmatprep.subr.bf16.mxu0 0
    %7637 = vmatpush1.bf16.msra.mxu0 %v7630
    %7638 = vmatprep.subr.bf16.mxu0 0
    %7639 = vmatpush1.bf16.msra.mxu0 %v7631
    %7640 = vmatprep.subr.bf16.mxu0 0
    %7641 = vmatpush1.bf16.msra.mxu0 0
    %7642 = vmatprep.subr.bf16.mxu0 0
    %7643 = vmatpush1.bf16.msra.mxu0 0
    %7644 = vmatprep.subr.bf16.mxu0 0
    %7645 = vmatpush1.bf16.msra.mxu0 0
    %7646 = vmatprep.subr.bf16.mxu0 0
    %7647 = vmatpush1.bf16.msra.mxu0 0
    %7648 = vmatprep.subr.bf16.mxu0 0
    %7649 = vmatpush1.bf16.msra.mxu0 0
    %7650 = vmatprep.subr.bf16.mxu0 0
    %7651 = vmatpush1.bf16.msra.mxu0 0
    %7652 = vmatprep.subr.bf16.mxu0 0
    %7653 = vmatpush1.bf16.msra.mxu0 0
    %7654 = vmatprep.subr.bf16.mxu0 0
    %7655 = vmatpush1.bf16.msra.mxu0 0
    %7656 = vmatprep.subr.bf16.mxu0 0
    %7657 = vmatpush1.bf16.msra.mxu0 0
    %7658 = vmatprep.subr.bf16.mxu0 0
    %7659 = vmatpush1.bf16.msra.mxu0 0
    %7660 = vmatprep.subr.bf16.mxu0 0
    %7661 = vmatpush1.bf16.msra.mxu0 0
    %7662 = vmatprep.subr.bf16.mxu0 0
    %7663 = vmatpush1.bf16.msra.mxu0 0
    %7664 = vmatprep.mubr.bf16.mxu0 0
    %7665 = vmatmul.mubr.bf16.gmra.mrb[0].mxu0 %v6322
    %v7666 = vpop.f32.mrb[0].mxu0
    %v7667 = vadd.f32 0.0, %v7666
    %v7668 = vpop.f32.mrb[0].mxu0
    %v7669 = vpop.f32.mrb[0].mxu0
    %v7670 = vadd.f32 0.0, %v7669
    %v7671 = vpop.f32.mrb[0].mxu0
    %7672 = vmatprep.mubr.bf16.mxu0 0
    %7673 = vmatmul.mubr.bf16.gmra.mrb[0].mxu0 %v6325
    %v7674 = vpop.f32.mrb[0].mxu0
    %v7675 = vadd.f32 0.0, %v7674
    %v7676 = vpop.f32.mrb[0].mxu0
    %v7677 = vpop.f32.mrb[0].mxu0
    %v7678 = vadd.f32 0.0, %v7677
    %v7679 = vpop.f32.mrb[0].mxu0
    %7680 = vmatprep.mubr.bf16.mxu0 0
    %7681 = vmatmul.mubr.bf16.gmra.mrb[0].mxu0 %v6328
    %v7682 = vpop.f32.mrb[0].mxu0
    %v7683 = vadd.f32 0.0, %v7682
    %v7684 = vpop.f32.mrb[0].mxu0
    %v7685 = vpop.f32.mrb[0].mxu0
    %v7686 = vadd.f32 0.0, %v7685
    %v7687 = vpop.f32.mrb[0].mxu0
    %7688 = vmatprep.mubr.bf16.mxu0 0
    %7689 = vmatmul.mubr.bf16.gmra.mrb[0].mxu0 %v6331
    %v7690 = vpop.f32.mrb[0].mxu0
    %v7691 = vadd.f32 0.0, %v7690
    %v7692 = vpop.f32.mrb[0].mxu0
    %v7693 = vpop.f32.mrb[0].mxu0
    %v7694 = vadd.f32 0.0, %v7693
    %v7695 = vpop.f32.mrb[0].mxu0
    %7696 = vmatprep.mubr.bf16.mxu0 0
    %7697 = vmatmul.mubr.bf16.gmra.mrb[0].mxu0 %v6334
    %v7698 = vpop.f32.mrb[0].mxu0
    %v7699 = vadd.f32 0.0, %v7698
    %v7700 = vpop.f32.mrb[0].mxu0
    %v7701 = vpop.f32.mrb[0].mxu0
    %v7702 = vadd.f32 0.0, %v7701
    %v7703 = vpop.f32.mrb[0].mxu0
    %7704 = vmatprep.mubr.bf16.mxu0 0
    %7705 = vmatmul.mubr.bf16.gmra.mrb[0].mxu0 %v6337
    %v7706 = vpop.f32.mrb[0].mxu0
    %v7707 = vadd.f32 0.0, %v7706
    %v7708 = vpop.f32.mrb[0].mxu0
    %v7709 = vpop.f32.mrb[0].mxu0
    %v7710 = vadd.f32 0.0, %v7709
    %v7711 = vpop.f32.mrb[0].mxu0
    %7712 = vmatprep.mubr.bf16.mxu0 0
    %7713 = vmatmul.mubr.bf16.gmra.mrb[0].mxu0 %v6340
    %v7714 = vpop.f32.mrb[0].mxu0
    %v7715 = vadd.f32 0.0, %v7714
    %v7716 = vpop.f32.mrb[0].mxu0
    %v7717 = vpop.f32.mrb[0].mxu0
    %v7718 = vadd.f32 0.0, %v7717
    %v7719 = vpop.f32.mrb[0].mxu0
    %7720 = vmatprep.mubr.bf16.mxu0 0
    %7721 = vmatmul.mubr.bf16.gmra.mrb[0].mxu0 %v6343
    %v7722 = vpop.f32.mrb[0].mxu0
    %v7723 = vadd.f32 0.0, %v7722
    %v7724 = vpop.f32.mrb[0].mxu0
    %v7725 = vpop.f32.mrb[0].mxu0
    %v7726 = vadd.f32 0.0, %v7725
    %v7727 = vpop.f32.mrb[0].mxu0
    %7728 = vmatprep.mubr.bf16.mxu0 0
    %7729 = vmatmul.mubr.bf16.gmra.mrb[0].mxu0 %v6346
    %v7730 = vpop.f32.mrb[0].mxu0
    %v7731 = vadd.f32 0.0, %v7730
    %v7732 = vpop.f32.mrb[0].mxu0
    %v7733 = vpop.f32.mrb[0].mxu0
    %v7734 = vadd.f32 0.0, %v7733
    %v7735 = vpop.f32.mrb[0].mxu0
    %7736 = vmatprep.mubr.bf16.mxu0 0
    %7737 = vmatmul.mubr.bf16.gmra.mrb[0].mxu0 %v6349
    %v7738 = vpop.f32.mrb[0].mxu0
    %v7739 = vadd.f32 0.0, %v7738
    %v7740 = vpop.f32.mrb[0].mxu0
    %v7741 = vpop.f32.mrb[0].mxu0
    %v7742 = vadd.f32 0.0, %v7741
    %v7743 = vpop.f32.mrb[0].mxu0
    %7744 = vmatprep.mubr.bf16.mxu0 0
    %7745 = vmatmul.mubr.bf16.gmra.mrb[0].mxu0 %v6352
    %v7746 = vpop.f32.mrb[0].mxu0
    %v7747 = vadd.f32 0.0, %v7746
    %v7748 = vpop.f32.mrb[0].mxu0
    %v7749 = vpop.f32.mrb[0].mxu0
    %v7750 = vadd.f32 0.0, %v7749
    %v7751 = vpop.f32.mrb[0].mxu0
    %7752 = vmatprep.mubr.bf16.mxu0 0
    %7753 = vmatmul.mubr.bf16.gmra.mrb[0].mxu0 %v6355
    %v7754 = vpop.f32.mrb[0].mxu0
    %v7755 = vadd.f32 0.0, %v7754
    %v7756 = vpop.f32.mrb[0].mxu0
    %v7757 = vpop.f32.mrb[0].mxu0
    %v7758 = vadd.f32 0.0, %v7757
    %v7759 = vpop.f32.mrb[0].mxu0
    %7760 = vmatprep.mubr.bf16.mxu0 0
    %7761 = vmatmul.mubr.bf16.gmra.mrb[0].mxu0 %v6358
    %v7762 = vpop.f32.mrb[0].mxu0
    %v7763 = vadd.f32 0.0, %v7762
    %v7764 = vpop.f32.mrb[0].mxu0
    %v7765 = vpop.f32.mrb[0].mxu0
    %v7766 = vadd.f32 0.0, %v7765
    %v7767 = vpop.f32.mrb[0].mxu0
    %7768 = vmatprep.mubr.bf16.mxu0 0
    %7769 = vmatmul.mubr.bf16.gmra.mrb[0].mxu0 %v6361
    %v7770 = vpop.f32.mrb[0].mxu0
    %v7771 = vadd.f32 0.0, %v7770
    %v7772 = vpop.f32.mrb[0].mxu0
    %v7773 = vpop.f32.mrb[0].mxu0
    %v7774 = vadd.f32 0.0, %v7773
    %v7775 = vpop.f32.mrb[0].mxu0
    %7776 = vmatprep.mubr.bf16.mxu0 0
    %7777 = vmatmul.mubr.bf16.gmra.mrb[0].mxu0 %v6364
    %v7778 = vpop.f32.mrb[0].mxu0
    %v7779 = vadd.f32 0.0, %v7778
    %v7780 = vpop.f32.mrb[0].mxu0
    %v7781 = vpop.f32.mrb[0].mxu0
    %v7782 = vadd.f32 0.0, %v7781
    %v7783 = vpop.f32.mrb[0].mxu0
    %7784 = vmatprep.mubr.bf16.mxu0 0
    %7785 = vmatmul.mubr.bf16.gmra.mrb[0].mxu0 %v6367
    %v7786 = vpop.f32.mrb[0].mxu0
    %v7787 = vadd.f32 0.0, %v7786
    %v7788 = vpop.f32.mrb[0].mxu0
    %v7789 = vpop.f32.mrb[0].mxu0
    %v7790 = vadd.f32 0.0, %v7789
    %v7791 = vpop.f32.mrb[0].mxu0
    %7792 = vdwg.mxu0
    %v7793 = vld [vmem:[%s786] sm:$0xff]
    %v7794 = vld [vmem:[%s786 + $0x40] sm:$0xff]
    %v7795 = vld [vmem:[%s786 + $0x80] sm:$0xff]
    %v7796 = vld [vmem:[%s786 + $0xc0] sm:$0xff]
    %v7797 = vld [vmem:[%s786 + $0x100] sm:$0xff]
    %v7798 = vld [vmem:[%s786 + $0x140] sm:$0xff]
    %v7799 = vld [vmem:[%s786 + $0x180] sm:$0xff]
    %v7800 = vld [vmem:[%s786 + $0x1c0] sm:$0xff]
    %v7801 = vld [vmem:[%s786 + $0x200] sm:$0xff]
    %v7802 = vld [vmem:[%s786 + $0x240] sm:$0xff]
    %v7803 = vld [vmem:[%s786 + $0x280] sm:$0xff]
    %v7804 = vld [vmem:[%s786 + $0x2c0] sm:$0xff]
    %v7805 = vld [vmem:[%s786 + $0x300] sm:$0xff]
    %v7806 = vld [vmem:[%s786 + $0x340] sm:$0xff]
    %v7807 = vld [vmem:[%s786 + $0x380] sm:$0xff]
    %v7808 = vld [vmem:[%s786 + $0x3c0] sm:$0xff]
    %v7809 = vadd.f32 %v7667, %v7793
    %v7810 = vadd.f32 %v7670, %v7794
    %v7811 = vadd.f32 %v7675, %v7795
    %v7812 = vadd.f32 %v7678, %v7796
    %v7813 = vadd.f32 %v7683, %v7797
    %v7814 = vadd.f32 %v7686, %v7798
    %v7815 = vadd.f32 %v7691, %v7799
    %v7816 = vadd.f32 %v7694, %v7800
    %v7817 = vadd.f32 %v7699, %v7801
    %v7818 = vadd.f32 %v7702, %v7802
    %v7819 = vadd.f32 %v7707, %v7803
    %v7820 = vadd.f32 %v7710, %v7804
    %v7821 = vadd.f32 %v7715, %v7805
    %v7822 = vadd.f32 %v7718, %v7806
    %v7823 = vadd.f32 %v7723, %v7807
    %v7824 = vadd.f32 %v7726, %v7808
    %v7825 = vld [vmem:[%s888 + $0x400] sm:$0xff]
    %v7826 = vld [vmem:[%s888 + $0x440] sm:$0xff]
    %v7827 = vld [vmem:[%s888 + $0x480] sm:$0xff]
    %v7828 = vld [vmem:[%s888 + $0x4c0] sm:$0xff]
    %v7829 = vld [vmem:[%s888 + $0x500] sm:$0xff]
    %v7830 = vld [vmem:[%s888 + $0x540] sm:$0xff]
    %v7831 = vld [vmem:[%s888 + $0x580] sm:$0xff]
    %v7832 = vld [vmem:[%s888 + $0x5c0] sm:$0xff]
    %v7833 = vld [vmem:[%s888 + $0x600] sm:$0xff]
    %v7834 = vld [vmem:[%s888 + $0x640] sm:$0xff]
    %v7835 = vld [vmem:[%s888 + $0x680] sm:$0xff]
    %v7836 = vld [vmem:[%s888 + $0x6c0] sm:$0xff]
    %v7837 = vld [vmem:[%s888 + $0x700] sm:$0xff]
    %v7838 = vld [vmem:[%s888 + $0x740] sm:$0xff]
    %v7839 = vld [vmem:[%s888 + $0x780] sm:$0xff]
    %v7840 = vld [vmem:[%s888 + $0x7c0] sm:$0xff]
    %v7841 = vadd.f32 %v7731, %v7825
    %v7842 = vadd.f32 %v7734, %v7826
    %v7843 = vadd.f32 %v7739, %v7827
    %v7844 = vadd.f32 %v7742, %v7828
    %v7845 = vadd.f32 %v7747, %v7829
    %v7846 = vadd.f32 %v7750, %v7830
    %v7847 = vadd.f32 %v7755, %v7831
    %v7848 = vadd.f32 %v7758, %v7832
    %v7849 = vadd.f32 %v7763, %v7833
    %v7850 = vadd.f32 %v7766, %v7834
    %v7851 = vadd.f32 %v7771, %v7835
    %v7852 = vadd.f32 %v7774, %v7836
    %v7853 = vadd.f32 %v7779, %v7837
    %v7854 = vadd.f32 %v7782, %v7838
    %v7855 = vadd.f32 %v7787, %v7839
    %v7856 = vadd.f32 %v7790, %v7840
    %v7857 = vxor.u32 %v7809, 2147483648
    %v7858 = vxor.u32 %v7810, 2147483648
    %v7859 = vxor.u32 %v7811, 2147483648
    %v7860 = vxor.u32 %v7812, 2147483648
    %v7861 = vmul.f32 %v7857, 1.442695
    %v7862 = vpow.pop %v7861
    %v7863 = vmul.f32 %v7858, 1.442695
    %v7864 = vpow.pop %v7863
    %v7865 = vmul.f32 %v7859, 1.442695
    %v7866 = vpow.pop %v7865
    %v7867 = vmul.f32 %v7860, 1.442695
    %v7868 = vpow.pop %v7867
    %v7869 = vadd.f32 %v7862, 1.0
    %v7870 = vadd.f32 %v7864, 1.0
    %v7871 = vadd.f32 %v7866, 1.0
    %v7872 = vadd.f32 %v7868, 1.0
    %v7873 = vrcp.pop %v7869
    %v7874 = vmul.f32 1.0, %v7873
    %v7875 = vrcp.pop %v7870
    %v7876 = vmul.f32 1.0, %v7875
    %v7877 = vrcp.pop %v7871
    %v7878 = vmul.f32 1.0, %v7877
    %v7879 = vrcp.pop %v7872
    %v7880 = vmul.f32 1.0, %v7879
    %v7881 = vxor.u32 %v7813, 2147483648
    %v7882 = vxor.u32 %v7814, 2147483648
    %v7883 = vxor.u32 %v7815, 2147483648
    %v7884 = vxor.u32 %v7816, 2147483648
    %v7885 = vmul.f32 %v7881, 1.442695
    %v7886 = vpow.pop %v7885
    %v7887 = vmul.f32 %v7882, 1.442695
    %v7888 = vpow.pop %v7887
    %v7889 = vmul.f32 %v7883, 1.442695
    %v7890 = vpow.pop %v7889
    %v7891 = vmul.f32 %v7884, 1.442695
    %v7892 = vpow.pop %v7891
    %v7893 = vadd.f32 %v7886, 1.0
    %v7894 = vadd.f32 %v7888, 1.0
    %v7895 = vadd.f32 %v7890, 1.0
    %v7896 = vadd.f32 %v7892, 1.0
    %v7897 = vrcp.pop %v7893
    %v7898 = vmul.f32 1.0, %v7897
    %v7899 = vrcp.pop %v7894
    %v7900 = vmul.f32 1.0, %v7899
    %v7901 = vrcp.pop %v7895
    %v7902 = vmul.f32 1.0, %v7901
    %v7903 = vrcp.pop %v7896
    %v7904 = vmul.f32 1.0, %v7903
    %v7905 = vtanh.pop %v7817
    %v7906 = vtanh.pop %v7818
    %v7907 = vtanh.pop %v7819
    %v7908 = vtanh.pop %v7820
    %v7909 = vxor.u32 %v7821, 2147483648
    %v7910 = vxor.u32 %v7822, 2147483648
    %v7911 = vxor.u32 %v7823, 2147483648
    %v7912 = vxor.u32 %v7824, 2147483648
    %v7913 = vmul.f32 %v7909, 1.442695
    %v7914 = vpow.pop %v7913
    %v7915 = vmul.f32 %v7910, 1.442695
    %v7916 = vpow.pop %v7915
    %v7917 = vmul.f32 %v7911, 1.442695
    %v7918 = vpow.pop %v7917
    %v7919 = vmul.f32 %v7912, 1.442695
    %v7920 = vpow.pop %v7919
    %v7921 = vadd.f32 %v7914, 1.0
    %v7922 = vadd.f32 %v7916, 1.0
    %v7923 = vadd.f32 %v7918, 1.0
    %v7924 = vadd.f32 %v7920, 1.0
    %v7925 = vrcp.pop %v7921
    %v7926 = vmul.f32 1.0, %v7925
    %v7927 = vrcp.pop %v7922
    %v7928 = vmul.f32 1.0, %v7927
    %v7929 = vrcp.pop %v7923
    %v7930 = vmul.f32 1.0, %v7929
    %v7931 = vrcp.pop %v7924
    %v7932 = vmul.f32 1.0, %v7931
    %v7933 = vmul.f32 %v7898, %v7520
    %v7934 = vmul.f32 %v7900, %v7521
    %v7935 = vmul.f32 %v7902, %v7522
    %v7936 = vmul.f32 %v7904, %v7523
    %v7937 = vmul.f32 %v7874, %v7905
    %v7938 = vmul.f32 %v7876, %v7906
    %v7939 = vmul.f32 %v7878, %v7907
    %v7940 = vmul.f32 %v7880, %v7908
    %v7941 = vadd.f32 %v7933, %v7937
    %v7942 = vadd.f32 %v7934, %v7938
    %v7943 = vadd.f32 %v7935, %v7939
    %v7944 = vadd.f32 %v7936, %v7940
    %v7945 = vtanh.pop %v7941
    %v7946 = vtanh.pop %v7942
    %v7947 = vtanh.pop %v7943
    %v7948 = vtanh.pop %v7944
    %v7949 = vmul.f32 %v7926, %v7945
    %v7950 = vmul.f32 %v7928, %v7946
    %v7951 = vmul.f32 %v7930, %v7947
    %v7952 = vmul.f32 %v7932, %v7948
    %v7953 = vxor.u32 %v7841, 2147483648
    %v7954 = vxor.u32 %v7842, 2147483648
    %v7955 = vxor.u32 %v7843, 2147483648
    %v7956 = vxor.u32 %v7844, 2147483648
    %v7957 = vmul.f32 %v7953, 1.442695
    %v7958 = vpow.pop %v7957
    %v7959 = vmul.f32 %v7954, 1.442695
    %v7960 = vpow.pop %v7959
    %v7961 = vmul.f32 %v7955, 1.442695
    %v7962 = vpow.pop %v7961
    %v7963 = vmul.f32 %v7956, 1.442695
    %v7964 = vpow.pop %v7963
    %v7965 = vadd.f32 %v7958, 1.0
    %v7966 = vadd.f32 %v7960, 1.0
    %v7967 = vadd.f32 %v7962, 1.0
    %v7968 = vadd.f32 %v7964, 1.0
    %v7969 = vrcp.pop %v7965
    %v7970 = vmul.f32 1.0, %v7969
    %v7971 = vrcp.pop %v7966
    %v7972 = vmul.f32 1.0, %v7971
    %v7973 = vrcp.pop %v7967
    %v7974 = vmul.f32 1.0, %v7973
    %v7975 = vrcp.pop %v7968
    %v7976 = vmul.f32 1.0, %v7975
    %v7977 = vxor.u32 %v7845, 2147483648
    %v7978 = vxor.u32 %v7846, 2147483648
    %v7979 = vxor.u32 %v7847, 2147483648
    %v7980 = vxor.u32 %v7848, 2147483648
    %v7981 = vmul.f32 %v7977, 1.442695
    %v7982 = vpow.pop %v7981
    %v7983 = vmul.f32 %v7978, 1.442695
    %v7984 = vpow.pop %v7983
    %v7985 = vmul.f32 %v7979, 1.442695
    %v7986 = vpow.pop %v7985
    %v7987 = vmul.f32 %v7980, 1.442695
    %v7988 = vpow.pop %v7987
    %v7989 = vadd.f32 %v7982, 1.0
    %v7990 = vadd.f32 %v7984, 1.0
    %v7991 = vadd.f32 %v7986, 1.0
    %v7992 = vadd.f32 %v7988, 1.0
    %v7993 = vrcp.pop %v7989
    %v7994 = vmul.f32 1.0, %v7993
    %v7995 = vrcp.pop %v7990
    %v7996 = vmul.f32 1.0, %v7995
    %v7997 = vrcp.pop %v7991
    %v7998 = vmul.f32 1.0, %v7997
    %v7999 = vrcp.pop %v7992
    %v8000 = vmul.f32 1.0, %v7999
    %v8001 = vtanh.pop %v7849
    %v8002 = vtanh.pop %v7850
    %v8003 = vtanh.pop %v7851
    %v8004 = vtanh.pop %v7852
    %v8005 = vxor.u32 %v7853, 2147483648
    %v8006 = vxor.u32 %v7854, 2147483648
    %v8007 = vxor.u32 %v7855, 2147483648
    %v8008 = vxor.u32 %v7856, 2147483648
    %v8009 = vmul.f32 %v8005, 1.442695
    %v8010 = vpow.pop %v8009
    %v8011 = vmul.f32 %v8006, 1.442695
    %v8012 = vpow.pop %v8011
    %v8013 = vmul.f32 %v8007, 1.442695
    %v8014 = vpow.pop %v8013
    %v8015 = vmul.f32 %v8008, 1.442695
    %v8016 = vpow.pop %v8015
    %v8017 = vadd.f32 %v8010, 1.0
    %v8018 = vadd.f32 %v8012, 1.0
    %v8019 = vadd.f32 %v8014, 1.0
    %v8020 = vadd.f32 %v8016, 1.0
    %v8021 = vrcp.pop %v8017
    %v8022 = vmul.f32 1.0, %v8021
    %v8023 = vrcp.pop %v8018
    %v8024 = vmul.f32 1.0, %v8023
    %v8025 = vrcp.pop %v8019
    %v8026 = vmul.f32 1.0, %v8025
    %v8027 = vrcp.pop %v8020
    %v8028 = vmul.f32 1.0, %v8027
    %v8029 = vmul.f32 %v7994, %v7616
    %v8030 = vmul.f32 %v7996, %v7617
    %v8031 = vmul.f32 %v7998, %v7618
    %v8032 = vmul.f32 %v8000, %v7619
    %v8033 = vmul.f32 %v7970, %v8001
    %v8034 = vmul.f32 %v7972, %v8002
    %v8035 = vmul.f32 %v7974, %v8003
    %v8036 = vmul.f32 %v7976, %v8004
    %v8037 = vadd.f32 %v8029, %v8033
    %v8038 = vadd.f32 %v8030, %v8034
    %v8039 = vadd.f32 %v8031, %v8035
    %v8040 = vadd.f32 %v8032, %v8036
    %v8041 = vtanh.pop %v8037
    %v8042 = vtanh.pop %v8038
    %v8043 = vtanh.pop %v8039
    %v8044 = vtanh.pop %v8040
    %v8045 = vmul.f32 %v8022, %v8041
    %v8046 = vmul.f32 %v8024, %v8042
    %v8047 = vmul.f32 %v8026, %v8043
    %v8048 = vmul.f32 %v8028, %v8044
    %v8049 = vpack.c.bf16 %v7950, %v7949
    %v8050 = vpack.c.bf16 %v7952, %v7951
    %v8051 = vpack.c.bf16 %v8046, %v8045
    %v8052 = vpack.c.bf16 %v8048, %v8047
    %8053 = vmatprep.subr.bf16.mxu0 0
    %8054 = vmatpush1.bf16.msra.mxu0 %v8049
    %8055 = vmatprep.subr.bf16.mxu0 0
    %8056 = vmatpush1.bf16.msra.mxu0 %v8050
    %8057 = vmatprep.subr.bf16.mxu0 0
    %8058 = vmatpush1.bf16.msra.mxu0 %v8051
    %8059 = vmatprep.subr.bf16.mxu0 0
    %8060 = vmatpush1.bf16.msra.mxu0 %v8052
    %8061 = vmatprep.subr.bf16.mxu0 0
    %8062 = vmatpush1.bf16.msra.mxu0 0
    %8063 = vmatprep.subr.bf16.mxu0 0
    %8064 = vmatpush1.bf16.msra.mxu0 0
    %8065 = vmatprep.subr.bf16.mxu0 0
    %8066 = vmatpush1.bf16.msra.mxu0 0
    %8067 = vmatprep.subr.bf16.mxu0 0
    %8068 = vmatpush1.bf16.msra.mxu0 0
    %8069 = vmatprep.subr.bf16.mxu0 0
    %8070 = vmatpush1.bf16.msra.mxu0 0
    %8071 = vmatprep.subr.bf16.mxu0 0
    %8072 = vmatpush1.bf16.msra.mxu0 0
    %8073 = vmatprep.subr.bf16.mxu0 0
    %8074 = vmatpush1.bf16.msra.mxu0 0
    %8075 = vmatprep.subr.bf16.mxu0 0
    %8076 = vmatpush1.bf16.msra.mxu0 0
    %8077 = vmatprep.subr.bf16.mxu0 0
    %8078 = vmatpush1.bf16.msra.mxu0 0
    %8079 = vmatprep.subr.bf16.mxu0 0
    %8080 = vmatpush1.bf16.msra.mxu0 0
    %8081 = vmatprep.subr.bf16.mxu0 0
    %8082 = vmatpush1.bf16.msra.mxu0 0
    %8083 = vmatprep.subr.bf16.mxu0 0
    %8084 = vmatpush1.bf16.msra.mxu0 0
    %8085 = vmatprep.mubr.bf16.mxu0 0
    %8086 = vmatmul.mubr.bf16.gmra.mrb[0].mxu0 %v6322
    %v8087 = vpop.f32.mrb[0].mxu0
    %v8088 = vadd.f32 0.0, %v8087
    %v8089 = vpop.f32.mrb[0].mxu0
    %v8090 = vpop.f32.mrb[0].mxu0
    %v8091 = vadd.f32 0.0, %v8090
    %v8092 = vpop.f32.mrb[0].mxu0
    %8093 = vmatprep.mubr.bf16.mxu0 0
    %8094 = vmatmul.mubr.bf16.gmra.mrb[0].mxu0 %v6325
    %v8095 = vpop.f32.mrb[0].mxu0
    %v8096 = vadd.f32 0.0, %v8095
    %v8097 = vpop.f32.mrb[0].mxu0
    %v8098 = vpop.f32.mrb[0].mxu0
    %v8099 = vadd.f32 0.0, %v8098
    %v8100 = vpop.f32.mrb[0].mxu0
    %8101 = vmatprep.mubr.bf16.mxu0 0
    %8102 = vmatmul.mubr.bf16.gmra.mrb[0].mxu0 %v6328
    %v8103 = vpop.f32.mrb[0].mxu0
    %v8104 = vadd.f32 0.0, %v8103
    %v8105 = vpop.f32.mrb[0].mxu0
    %v8106 = vpop.f32.mrb[0].mxu0
    %v8107 = vadd.f32 0.0, %v8106
    %v8108 = vpop.f32.mrb[0].mxu0
    %8109 = vmatprep.mubr.bf16.mxu0 0
    %8110 = vmatmul.mubr.bf16.gmra.mrb[0].mxu0 %v6331
    %v8111 = vpop.f32.mrb[0].mxu0
    %v8112 = vadd.f32 0.0, %v8111
    %v8113 = vpop.f32.mrb[0].mxu0
    %v8114 = vpop.f32.mrb[0].mxu0
    %v8115 = vadd.f32 0.0, %v8114
    %v8116 = vpop.f32.mrb[0].mxu0
    %8117 = vmatprep.mubr.bf16.mxu0 0
    %8118 = vmatmul.mubr.bf16.gmra.mrb[0].mxu0 %v6334
    %v8119 = vpop.f32.mrb[0].mxu0
    %v8120 = vadd.f32 0.0, %v8119
    %v8121 = vpop.f32.mrb[0].mxu0
    %v8122 = vpop.f32.mrb[0].mxu0
    %v8123 = vadd.f32 0.0, %v8122
    %v8124 = vpop.f32.mrb[0].mxu0
    %8125 = vmatprep.mubr.bf16.mxu0 0
    %8126 = vmatmul.mubr.bf16.gmra.mrb[0].mxu0 %v6337
    %v8127 = vpop.f32.mrb[0].mxu0
    %v8128 = vadd.f32 0.0, %v8127
    %v8129 = vpop.f32.mrb[0].mxu0
    %v8130 = vpop.f32.mrb[0].mxu0
    %v8131 = vadd.f32 0.0, %v8130
    %v8132 = vpop.f32.mrb[0].mxu0
    %8133 = vmatprep.mubr.bf16.mxu0 0
    %8134 = vmatmul.mubr.bf16.gmra.mrb[0].mxu0 %v6340
    %v8135 = vpop.f32.mrb[0].mxu0
    %v8136 = vadd.f32 0.0, %v8135
    %v8137 = vpop.f32.mrb[0].mxu0
    %v8138 = vpop.f32.mrb[0].mxu0
    %v8139 = vadd.f32 0.0, %v8138
    %v8140 = vpop.f32.mrb[0].mxu0
    %8141 = vmatprep.mubr.bf16.mxu0 0
    %8142 = vmatmul.mubr.bf16.gmra.mrb[0].mxu0 %v6343
    %v8143 = vpop.f32.mrb[0].mxu0
    %v8144 = vadd.f32 0.0, %v8143
    %v8145 = vpop.f32.mrb[0].mxu0
    %v8146 = vpop.f32.mrb[0].mxu0
    %v8147 = vadd.f32 0.0, %v8146
    %v8148 = vpop.f32.mrb[0].mxu0
    %8149 = vmatprep.mubr.bf16.mxu0 0
    %8150 = vmatmul.mubr.bf16.gmra.mrb[0].mxu0 %v6346
    %v8151 = vpop.f32.mrb[0].mxu0
    %v8152 = vadd.f32 0.0, %v8151
    %v8153 = vpop.f32.mrb[0].mxu0
    %v8154 = vpop.f32.mrb[0].mxu0
    %v8155 = vadd.f32 0.0, %v8154
    %v8156 = vpop.f32.mrb[0].mxu0
    %8157 = vmatprep.mubr.bf16.mxu0 0
    %8158 = vmatmul.mubr.bf16.gmra.mrb[0].mxu0 %v6349
    %v8159 = vpop.f32.mrb[0].mxu0
    %v8160 = vadd.f32 0.0, %v8159
    %v8161 = vpop.f32.mrb[0].mxu0
    %v8162 = vpop.f32.mrb[0].mxu0
    %v8163 = vadd.f32 0.0, %v8162
    %v8164 = vpop.f32.mrb[0].mxu0
    %8165 = vmatprep.mubr.bf16.mxu0 0
    %8166 = vmatmul.mubr.bf16.gmra.mrb[0].mxu0 %v6352
    %v8167 = vpop.f32.mrb[0].mxu0
    %v8168 = vadd.f32 0.0, %v8167
    %v8169 = vpop.f32.mrb[0].mxu0
    %v8170 = vpop.f32.mrb[0].mxu0
    %v8171 = vadd.f32 0.0, %v8170
    %v8172 = vpop.f32.mrb[0].mxu0
    %8173 = vmatprep.mubr.bf16.mxu0 0
    %8174 = vmatmul.mubr.bf16.gmra.mrb[0].mxu0 %v6355
    %v8175 = vpop.f32.mrb[0].mxu0
    %v8176 = vadd.f32 0.0, %v8175
    %v8177 = vpop.f32.mrb[0].mxu0
    %v8178 = vpop.f32.mrb[0].mxu0
    %v8179 = vadd.f32 0.0, %v8178
    %v8180 = vpop.f32.mrb[0].mxu0
    %8181 = vmatprep.mubr.bf16.mxu0 0
    %8182 = vmatmul.mubr.bf16.gmra.mrb[0].mxu0 %v6358
    %v8183 = vpop.f32.mrb[0].mxu0
    %v8184 = vadd.f32 0.0, %v8183
    %v8185 = vpop.f32.mrb[0].mxu0
    %v8186 = vpop.f32.mrb[0].mxu0
    %v8187 = vadd.f32 0.0, %v8186
    %v8188 = vpop.f32.mrb[0].mxu0
    %8189 = vmatprep.mubr.bf16.mxu0 0
    %8190 = vmatmul.mubr.bf16.gmra.mrb[0].mxu0 %v6361
    %v8191 = vpop.f32.mrb[0].mxu0
    %v8192 = vadd.f32 0.0, %v8191
    %v8193 = vpop.f32.mrb[0].mxu0
    %v8194 = vpop.f32.mrb[0].mxu0
    %v8195 = vadd.f32 0.0, %v8194
    %v8196 = vpop.f32.mrb[0].mxu0
    %8197 = vmatprep.mubr.bf16.mxu0 0
    %8198 = vmatmul.mubr.bf16.gmra.mrb[0].mxu0 %v6364
    %v8199 = vpop.f32.mrb[0].mxu0
    %v8200 = vadd.f32 0.0, %v8199
    %v8201 = vpop.f32.mrb[0].mxu0
    %v8202 = vpop.f32.mrb[0].mxu0
    %v8203 = vadd.f32 0.0, %v8202
    %v8204 = vpop.f32.mrb[0].mxu0
    %8205 = vmatprep.mubr.bf16.mxu0 0
    %8206 = vmatmul.mubr.bf16.gmra.mrb[0].mxu0 %v6367
    %v8207 = vpop.f32.mrb[0].mxu0
    %v8208 = vadd.f32 0.0, %v8207
    %v8209 = vpop.f32.mrb[0].mxu0
    %v8210 = vpop.f32.mrb[0].mxu0
    %v8211 = vadd.f32 0.0, %v8210
    %v8212 = vpop.f32.mrb[0].mxu0
    %8213 = vdwg.mxu0
    %v8214 = vld [vmem:[%s888] sm:$0xff]
    %v8215 = vld [vmem:[%s888 + $0x40] sm:$0xff]
    %v8216 = vld [vmem:[%s888 + $0x80] sm:$0xff]
    %v8217 = vld [vmem:[%s888 + $0xc0] sm:$0xff]
    %v8218 = vld [vmem:[%s888 + $0x100] sm:$0xff]
    %v8219 = vld [vmem:[%s888 + $0x140] sm:$0xff]
    %v8220 = vld [vmem:[%s888 + $0x180] sm:$0xff]
    %v8221 = vld [vmem:[%s888 + $0x1c0] sm:$0xff]
    %v8222 = vld [vmem:[%s888 + $0x200] sm:$0xff]
    %v8223 = vld [vmem:[%s888 + $0x240] sm:$0xff]
    %v8224 = vld [vmem:[%s888 + $0x280] sm:$0xff]
    %v8225 = vld [vmem:[%s888 + $0x2c0] sm:$0xff]
    %v8226 = vld [vmem:[%s888 + $0x300] sm:$0xff]
    %v8227 = vld [vmem:[%s888 + $0x340] sm:$0xff]
    %v8228 = vld [vmem:[%s888 + $0x380] sm:$0xff]
    %v8229 = vld [vmem:[%s888 + $0x3c0] sm:$0xff]
    %v8230 = vadd.f32 %v8088, %v8214
    %v8231 = vadd.f32 %v8091, %v8215
    %v8232 = vadd.f32 %v8096, %v8216
    %v8233 = vadd.f32 %v8099, %v8217
    %v8234 = vadd.f32 %v8104, %v8218
    %v8235 = vadd.f32 %v8107, %v8219
    %v8236 = vadd.f32 %v8112, %v8220
    %v8237 = vadd.f32 %v8115, %v8221
    %v8238 = vadd.f32 %v8120, %v8222
    %v8239 = vadd.f32 %v8123, %v8223
    %v8240 = vadd.f32 %v8128, %v8224
    %v8241 = vadd.f32 %v8131, %v8225
    %v8242 = vadd.f32 %v8136, %v8226
    %v8243 = vadd.f32 %v8139, %v8227
    %v8244 = vadd.f32 %v8144, %v8228
    %v8245 = vadd.f32 %v8147, %v8229
    %v8246 = vld [vmem:[%s786 + $0x400] sm:$0xff]
    %v8247 = vld [vmem:[%s786 + $0x440] sm:$0xff]
    %v8248 = vld [vmem:[%s786 + $0x480] sm:$0xff]
    %v8249 = vld [vmem:[%s786 + $0x4c0] sm:$0xff]
    %v8250 = vld [vmem:[%s786 + $0x500] sm:$0xff]
    %v8251 = vld [vmem:[%s786 + $0x540] sm:$0xff]
    %v8252 = vld [vmem:[%s786 + $0x580] sm:$0xff]
    %v8253 = vld [vmem:[%s786 + $0x5c0] sm:$0xff]
    %v8254 = vld [vmem:[%s786 + $0x600] sm:$0xff]
    %v8255 = vld [vmem:[%s786 + $0x640] sm:$0xff]
    %v8256 = vld [vmem:[%s786 + $0x680] sm:$0xff]
    %v8257 = vld [vmem:[%s786 + $0x6c0] sm:$0xff]
    %v8258 = vld [vmem:[%s786 + $0x700] sm:$0xff]
    %v8259 = vld [vmem:[%s786 + $0x740] sm:$0xff]
    %v8260 = vld [vmem:[%s786 + $0x780] sm:$0xff]
    %v8261 = vld [vmem:[%s786 + $0x7c0] sm:$0xff]
    %v8262 = vadd.f32 %v8152, %v8246
    %v8263 = vadd.f32 %v8155, %v8247
    %v8264 = vadd.f32 %v8160, %v8248
    %v8265 = vadd.f32 %v8163, %v8249
    %v8266 = vadd.f32 %v8168, %v8250
    %v8267 = vadd.f32 %v8171, %v8251
    %v8268 = vadd.f32 %v8176, %v8252
    %v8269 = vadd.f32 %v8179, %v8253
    %v8270 = vadd.f32 %v8184, %v8254
    %v8271 = vadd.f32 %v8187, %v8255
    %v8272 = vadd.f32 %v8192, %v8256
    %v8273 = vadd.f32 %v8195, %v8257
    %v8274 = vadd.f32 %v8200, %v8258
    %v8275 = vadd.f32 %v8203, %v8259
    %v8276 = vadd.f32 %v8208, %v8260
    %v8277 = vadd.f32 %v8211, %v8261
    %v8278 = vxor.u32 %v8230, 2147483648
    %v8279 = vxor.u32 %v8231, 2147483648
    %v8280 = vxor.u32 %v8232, 2147483648
    %v8281 = vxor.u32 %v8233, 2147483648
    %v8282 = vmul.f32 %v8278, 1.442695
    %v8283 = vpow.pop %v8282
    %v8284 = vmul.f32 %v8279, 1.442695
    %v8285 = vpow.pop %v8284
    %v8286 = vmul.f32 %v8280, 1.442695
    %v8287 = vpow.pop %v8286
    %v8288 = vmul.f32 %v8281, 1.442695
    %v8289 = vpow.pop %v8288
    %v8290 = vadd.f32 %v8283, 1.0
    %v8291 = vadd.f32 %v8285, 1.0
    %v8292 = vadd.f32 %v8287, 1.0
    %v8293 = vadd.f32 %v8289, 1.0
    %v8294 = vrcp.pop %v8290
    %v8295 = vmul.f32 1.0, %v8294
    %v8296 = vrcp.pop %v8291
    %v8297 = vmul.f32 1.0, %v8296
    %v8298 = vrcp.pop %v8292
    %v8299 = vmul.f32 1.0, %v8298
    %v8300 = vrcp.pop %v8293
    %v8301 = vmul.f32 1.0, %v8300
    %v8302 = vxor.u32 %v8234, 2147483648
    %v8303 = vxor.u32 %v8235, 2147483648
    %v8304 = vxor.u32 %v8236, 2147483648
    %v8305 = vxor.u32 %v8237, 2147483648
    %v8306 = vmul.f32 %v8302, 1.442695
    %v8307 = vpow.pop %v8306
    %v8308 = vmul.f32 %v8303, 1.442695
    %v8309 = vpow.pop %v8308
    %v8310 = vmul.f32 %v8304, 1.442695
    %v8311 = vpow.pop %v8310
    %v8312 = vmul.f32 %v8305, 1.442695
    %v8313 = vpow.pop %v8312
    %v8314 = vadd.f32 %v8307, 1.0
    %v8315 = vadd.f32 %v8309, 1.0
    %v8316 = vadd.f32 %v8311, 1.0
    %v8317 = vadd.f32 %v8313, 1.0
    %v8318 = vrcp.pop %v8314
    %v8319 = vmul.f32 1.0, %v8318
    %v8320 = vrcp.pop %v8315
    %v8321 = vmul.f32 1.0, %v8320
    %v8322 = vrcp.pop %v8316
    %v8323 = vmul.f32 1.0, %v8322
    %v8324 = vrcp.pop %v8317
    %v8325 = vmul.f32 1.0, %v8324
    %v8326 = vtanh.pop %v8238
    %v8327 = vtanh.pop %v8239
    %v8328 = vtanh.pop %v8240
    %v8329 = vtanh.pop %v8241
    %v8330 = vxor.u32 %v8242, 2147483648
    %v8331 = vxor.u32 %v8243, 2147483648
    %v8332 = vxor.u32 %v8244, 2147483648
    %v8333 = vxor.u32 %v8245, 2147483648
    %v8334 = vmul.f32 %v8330, 1.442695
    %v8335 = vpow.pop %v8334
    %v8336 = vmul.f32 %v8331, 1.442695
    %v8337 = vpow.pop %v8336
    %v8338 = vmul.f32 %v8332, 1.442695
    %v8339 = vpow.pop %v8338
    %v8340 = vmul.f32 %v8333, 1.442695
    %v8341 = vpow.pop %v8340
    %v8342 = vadd.f32 %v8335, 1.0
    %v8343 = vadd.f32 %v8337, 1.0
    %v8344 = vadd.f32 %v8339, 1.0
    %v8345 = vadd.f32 %v8341, 1.0
    %v8346 = vrcp.pop %v8342
    %v8347 = vmul.f32 1.0, %v8346
    %v8348 = vrcp.pop %v8343
    %v8349 = vmul.f32 1.0, %v8348
    %v8350 = vrcp.pop %v8344
    %v8351 = vmul.f32 1.0, %v8350
    %v8352 = vrcp.pop %v8345
    %v8353 = vmul.f32 1.0, %v8352
    %v8354 = vmul.f32 %v8319, %v7941
    %v8355 = vmul.f32 %v8321, %v7942
    %v8356 = vmul.f32 %v8323, %v7943
    %v8357 = vmul.f32 %v8325, %v7944
    %v8358 = vmul.f32 %v8295, %v8326
    %v8359 = vmul.f32 %v8297, %v8327
    %v8360 = vmul.f32 %v8299, %v8328
    %v8361 = vmul.f32 %v8301, %v8329
    %v8362 = vadd.f32 %v8354, %v8358
    %v8363 = vadd.f32 %v8355, %v8359
    %v8364 = vadd.f32 %v8356, %v8360
    %v8365 = vadd.f32 %v8357, %v8361
    %v8366 = vtanh.pop %v8362
    %v8367 = vtanh.pop %v8363
    %v8368 = vtanh.pop %v8364
    %v8369 = vtanh.pop %v8365
    %v8370 = vmul.f32 %v8347, %v8366
    %v8371 = vmul.f32 %v8349, %v8367
    %v8372 = vmul.f32 %v8351, %v8368
    %v8373 = vmul.f32 %v8353, %v8369
    %v8374 = vxor.u32 %v8262, 2147483648
    %v8375 = vxor.u32 %v8263, 2147483648
    %v8376 = vxor.u32 %v8264, 2147483648
    %v8377 = vxor.u32 %v8265, 2147483648
    %v8378 = vmul.f32 %v8374, 1.442695
    %v8379 = vpow.pop %v8378
    %v8380 = vmul.f32 %v8375, 1.442695
    %v8381 = vpow.pop %v8380
    %v8382 = vmul.f32 %v8376, 1.442695
    %v8383 = vpow.pop %v8382
    %v8384 = vmul.f32 %v8377, 1.442695
    %v8385 = vpow.pop %v8384
    %v8386 = vadd.f32 %v8379, 1.0
    %v8387 = vadd.f32 %v8381, 1.0
    %v8388 = vadd.f32 %v8383, 1.0
    %v8389 = vadd.f32 %v8385, 1.0
    %v8390 = vrcp.pop %v8386
    %v8391 = vmul.f32 1.0, %v8390
    %v8392 = vrcp.pop %v8387
    %v8393 = vmul.f32 1.0, %v8392
    %v8394 = vrcp.pop %v8388
    %v8395 = vmul.f32 1.0, %v8394
    %v8396 = vrcp.pop %v8389
    %v8397 = vmul.f32 1.0, %v8396
    %v8398 = vxor.u32 %v8266, 2147483648
    %v8399 = vxor.u32 %v8267, 2147483648
    %v8400 = vxor.u32 %v8268, 2147483648
    %v8401 = vxor.u32 %v8269, 2147483648
    %v8402 = vmul.f32 %v8398, 1.442695
    %v8403 = vpow.pop %v8402
    %v8404 = vmul.f32 %v8399, 1.442695
    %v8405 = vpow.pop %v8404
    %v8406 = vmul.f32 %v8400, 1.442695
    %v8407 = vpow.pop %v8406
    %v8408 = vmul.f32 %v8401, 1.442695
    %v8409 = vpow.pop %v8408
    %v8410 = vadd.f32 %v8403, 1.0
    %v8411 = vadd.f32 %v8405, 1.0
    %v8412 = vadd.f32 %v8407, 1.0
    %v8413 = vadd.f32 %v8409, 1.0
    %v8414 = vrcp.pop %v8410
    %v8415 = vmul.f32 1.0, %v8414
    %v8416 = vrcp.pop %v8411
    %v8417 = vmul.f32 1.0, %v8416
    %v8418 = vrcp.pop %v8412
    %v8419 = vmul.f32 1.0, %v8418
    %v8420 = vrcp.pop %v8413
    %v8421 = vmul.f32 1.0, %v8420
    %v8422 = vtanh.pop %v8270
    %v8423 = vtanh.pop %v8271
    %v8424 = vtanh.pop %v8272
    %v8425 = vtanh.pop %v8273
    %v8426 = vxor.u32 %v8274, 2147483648
    %v8427 = vxor.u32 %v8275, 2147483648
    %v8428 = vxor.u32 %v8276, 2147483648
    %v8429 = vxor.u32 %v8277, 2147483648
    %v8430 = vmul.f32 %v8426, 1.442695
    %v8431 = vpow.pop %v8430
    %v8432 = vmul.f32 %v8427, 1.442695
    %v8433 = vpow.pop %v8432
    %v8434 = vmul.f32 %v8428, 1.442695
    %v8435 = vpow.pop %v8434
    %v8436 = vmul.f32 %v8429, 1.442695
    %v8437 = vpow.pop %v8436
    %v8438 = vadd.f32 %v8431, 1.0
    %v8439 = vadd.f32 %v8433, 1.0
    %v8440 = vadd.f32 %v8435, 1.0
    %v8441 = vadd.f32 %v8437, 1.0
    %v8442 = vrcp.pop %v8438
    %v8443 = vmul.f32 1.0, %v8442
    %v8444 = vrcp.pop %v8439
    %v8445 = vmul.f32 1.0, %v8444
    %v8446 = vrcp.pop %v8440
    %v8447 = vmul.f32 1.0, %v8446
    %v8448 = vrcp.pop %v8441
    %v8449 = vmul.f32 1.0, %v8448
    %v8450 = vmul.f32 %v8415, %v8037
    %v8451 = vmul.f32 %v8417, %v8038
    %v8452 = vmul.f32 %v8419, %v8039
    %v8453 = vmul.f32 %v8421, %v8040
    %v8454 = vmul.f32 %v8391, %v8422
    %v8455 = vmul.f32 %v8393, %v8423
    %v8456 = vmul.f32 %v8395, %v8424
    %v8457 = vmul.f32 %v8397, %v8425
    %v8458 = vadd.f32 %v8450, %v8454
    %v8459 = vadd.f32 %v8451, %v8455
    %v8460 = vadd.f32 %v8452, %v8456
    %v8461 = vadd.f32 %v8453, %v8457
    %v8462 = vtanh.pop %v8458
    %v8463 = vtanh.pop %v8459
    %v8464 = vtanh.pop %v8460
    %v8465 = vtanh.pop %v8461
    %v8466 = vmul.f32 %v8443, %v8462
    %v8467 = vmul.f32 %v8445, %v8463
    %v8468 = vmul.f32 %v8447, %v8464
    %v8469 = vmul.f32 %v8449, %v8465
    %v8470 = vpack.c.bf16 %v8371, %v8370
    %v8471 = vpack.c.bf16 %v8373, %v8372
    %v8472 = vpack.c.bf16 %v8467, %v8466
    %v8473 = vpack.c.bf16 %v8469, %v8468
    %8474 = vmatprep.subr.bf16.mxu0 0
    %8475 = vmatpush1.bf16.msra.mxu0 %v8470
    %8476 = vmatprep.subr.bf16.mxu0 0
    %8477 = vmatpush1.bf16.msra.mxu0 %v8471
    %8478 = vmatprep.subr.bf16.mxu0 0
    %8479 = vmatpush1.bf16.msra.mxu0 %v8472
    %8480 = vmatprep.subr.bf16.mxu0 0
    %8481 = vmatpush1.bf16.msra.mxu0 %v8473
    %8482 = vmatprep.subr.bf16.mxu0 0
    %8483 = vmatpush1.bf16.msra.mxu0 0
    %8484 = vmatprep.subr.bf16.mxu0 0
    %8485 = vmatpush1.bf16.msra.mxu0 0
    %8486 = vmatprep.subr.bf16.mxu0 0
    %8487 = vmatpush1.bf16.msra.mxu0 0
    %8488 = vmatprep.subr.bf16.mxu0 0
    %8489 = vmatpush1.bf16.msra.mxu0 0
    %8490 = vmatprep.subr.bf16.mxu0 0
    %8491 = vmatpush1.bf16.msra.mxu0 0
    %8492 = vmatprep.subr.bf16.mxu0 0
    %8493 = vmatpush1.bf16.msra.mxu0 0
    %8494 = vmatprep.subr.bf16.mxu0 0
    %8495 = vmatpush1.bf16.msra.mxu0 0
    %8496 = vmatprep.subr.bf16.mxu0 0
    %8497 = vmatpush1.bf16.msra.mxu0 0
    %8498 = vmatprep.subr.bf16.mxu0 0
    %8499 = vmatpush1.bf16.msra.mxu0 0
    %8500 = vmatprep.subr.bf16.mxu0 0
    %8501 = vmatpush1.bf16.msra.mxu0 0
    %8502 = vmatprep.subr.bf16.mxu0 0
    %8503 = vmatpush1.bf16.msra.mxu0 0
    %8504 = vmatprep.subr.bf16.mxu0 0
    %8505 = vmatpush1.bf16.msra.mxu0 0
    %8506 = vmatprep.mubr.bf16.mxu0 0
    %8507 = vmatmul.mubr.bf16.gmra.mrb[0].mxu0 %v6322
    %v8508 = vpop.f32.mrb[0].mxu0
    %v8509 = vadd.f32 0.0, %v8508
    %v8510 = vpop.f32.mrb[0].mxu0
    %v8511 = vpop.f32.mrb[0].mxu0
    %v8512 = vadd.f32 0.0, %v8511
    %v8513 = vpop.f32.mrb[0].mxu0
    %8514 = vmatprep.mubr.bf16.mxu0 0
    %8515 = vmatmul.mubr.bf16.gmra.mrb[0].mxu0 %v6325
    %v8516 = vpop.f32.mrb[0].mxu0
    %v8517 = vadd.f32 0.0, %v8516
    %v8518 = vpop.f32.mrb[0].mxu0
    %v8519 = vpop.f32.mrb[0].mxu0
    %v8520 = vadd.f32 0.0, %v8519
    %v8521 = vpop.f32.mrb[0].mxu0
    %8522 = vmatprep.mubr.bf16.mxu0 0
    %8523 = vmatmul.mubr.bf16.gmra.mrb[0].mxu0 %v6328
    %v8524 = vpop.f32.mrb[0].mxu0
    %v8525 = vadd.f32 0.0, %v8524
    %v8526 = vpop.f32.mrb[0].mxu0
    %v8527 = vpop.f32.mrb[0].mxu0
    %v8528 = vadd.f32 0.0, %v8527
    %v8529 = vpop.f32.mrb[0].mxu0
    %8530 = vmatprep.mubr.bf16.mxu0 0
    %8531 = vmatmul.mubr.bf16.gmra.mrb[0].mxu0 %v6331
    %v8532 = vpop.f32.mrb[0].mxu0
    %v8533 = vadd.f32 0.0, %v8532
    %v8534 = vpop.f32.mrb[0].mxu0
    %v8535 = vpop.f32.mrb[0].mxu0
    %v8536 = vadd.f32 0.0, %v8535
    %v8537 = vpop.f32.mrb[0].mxu0
    %8538 = vmatprep.mubr.bf16.mxu0 0
    %8539 = vmatmul.mubr.bf16.gmra.mrb[0].mxu0 %v6334
    %v8540 = vpop.f32.mrb[0].mxu0
    %v8541 = vadd.f32 0.0, %v8540
    %v8542 = vpop.f32.mrb[0].mxu0
    %v8543 = vpop.f32.mrb[0].mxu0
    %v8544 = vadd.f32 0.0, %v8543
    %v8545 = vpop.f32.mrb[0].mxu0
    %8546 = vmatprep.mubr.bf16.mxu0 0
    %8547 = vmatmul.mubr.bf16.gmra.mrb[0].mxu0 %v6337
    %v8548 = vpop.f32.mrb[0].mxu0
    %v8549 = vadd.f32 0.0, %v8548
    %v8550 = vpop.f32.mrb[0].mxu0
    %v8551 = vpop.f32.mrb[0].mxu0
    %v8552 = vadd.f32 0.0, %v8551
    %v8553 = vpop.f32.mrb[0].mxu0
    %8554 = vmatprep.mubr.bf16.mxu0 0
    %8555 = vmatmul.mubr.bf16.gmra.mrb[0].mxu0 %v6340
    %v8556 = vpop.f32.mrb[0].mxu0
    %v8557 = vadd.f32 0.0, %v8556
    %v8558 = vpop.f32.mrb[0].mxu0
    %v8559 = vpop.f32.mrb[0].mxu0
    %v8560 = vadd.f32 0.0, %v8559
    %v8561 = vpop.f32.mrb[0].mxu0
    %8562 = vmatprep.mubr.bf16.mxu0 0
    %8563 = vmatmul.mubr.bf16.gmra.mrb[0].mxu0 %v6343
    %v8564 = vpop.f32.mrb[0].mxu0
    %v8565 = vadd.f32 0.0, %v8564
    %v8566 = vpop.f32.mrb[0].mxu0
    %v8567 = vpop.f32.mrb[0].mxu0
    %v8568 = vadd.f32 0.0, %v8567
    %v8569 = vpop.f32.mrb[0].mxu0
    %8570 = vmatprep.mubr.bf16.mxu0 0
    %8571 = vmatmul.mubr.bf16.gmra.mrb[0].mxu0 %v6346
    %v8572 = vpop.f32.mrb[0].mxu0
    %v8573 = vadd.f32 0.0, %v8572
    %v8574 = vpop.f32.mrb[0].mxu0
    %v8575 = vpop.f32.mrb[0].mxu0
    %v8576 = vadd.f32 0.0, %v8575
    %v8577 = vpop.f32.mrb[0].mxu0
    %8578 = vmatprep.mubr.bf16.mxu0 0
    %8579 = vmatmul.mubr.bf16.gmra.mrb[0].mxu0 %v6349
    %v8580 = vpop.f32.mrb[0].mxu0
    %v8581 = vadd.f32 0.0, %v8580
    %v8582 = vpop.f32.mrb[0].mxu0
    %v8583 = vpop.f32.mrb[0].mxu0
    %v8584 = vadd.f32 0.0, %v8583
    %v8585 = vpop.f32.mrb[0].mxu0
    %8586 = vmatprep.mubr.bf16.mxu0 0
    %8587 = vmatmul.mubr.bf16.gmra.mrb[0].mxu0 %v6352
    %v8588 = vpop.f32.mrb[0].mxu0
    %v8589 = vadd.f32 0.0, %v8588
    %v8590 = vpop.f32.mrb[0].mxu0
    %v8591 = vpop.f32.mrb[0].mxu0
    %v8592 = vadd.f32 0.0, %v8591
    %v8593 = vpop.f32.mrb[0].mxu0
    %8594 = vmatprep.mubr.bf16.mxu0 0
    %8595 = vmatmul.mubr.bf16.gmra.mrb[0].mxu0 %v6355
    %v8596 = vpop.f32.mrb[0].mxu0
    %v8597 = vadd.f32 0.0, %v8596
    %v8598 = vpop.f32.mrb[0].mxu0
    %v8599 = vpop.f32.mrb[0].mxu0
    %v8600 = vadd.f32 0.0, %v8599
    %v8601 = vpop.f32.mrb[0].mxu0
    %8602 = vmatprep.mubr.bf16.mxu0 0
    %8603 = vmatmul.mubr.bf16.gmra.mrb[0].mxu0 %v6358
    %v8604 = vpop.f32.mrb[0].mxu0
    %v8605 = vadd.f32 0.0, %v8604
    %v8606 = vpop.f32.mrb[0].mxu0
    %v8607 = vpop.f32.mrb[0].mxu0
    %v8608 = vadd.f32 0.0, %v8607
    %v8609 = vpop.f32.mrb[0].mxu0
    %8610 = vmatprep.mubr.bf16.mxu0 0
    %8611 = vmatmul.mubr.bf16.gmra.mrb[0].mxu0 %v6361
    %v8612 = vpop.f32.mrb[0].mxu0
    %v8613 = vadd.f32 0.0, %v8612
    %v8614 = vpop.f32.mrb[0].mxu0
    %v8615 = vpop.f32.mrb[0].mxu0
    %v8616 = vadd.f32 0.0, %v8615
    %v8617 = vpop.f32.mrb[0].mxu0
    %8618 = vmatprep.mubr.bf16.mxu0 0
    %8619 = vmatmul.mubr.bf16.gmra.mrb[0].mxu0 %v6364
    %v8620 = vpop.f32.mrb[0].mxu0
    %v8621 = vadd.f32 0.0, %v8620
    %v8622 = vpop.f32.mrb[0].mxu0
    %v8623 = vpop.f32.mrb[0].mxu0
    %v8624 = vadd.f32 0.0, %v8623
    %v8625 = vpop.f32.mrb[0].mxu0
    %8626 = vmatprep.mubr.bf16.mxu0 0
    %8627 = vmatmul.mubr.bf16.gmra.mrb[0].mxu0 %v6367
    %v8628 = vpop.f32.mrb[0].mxu0
    %v8629 = vadd.f32 0.0, %v8628
    %v8630 = vpop.f32.mrb[0].mxu0
    %v8631 = vpop.f32.mrb[0].mxu0
    %v8632 = vadd.f32 0.0, %v8631
    %v8633 = vpop.f32.mrb[0].mxu0
    %8634 = vdwg.mxu0
    %v8635 = vld [vmem:[%s990] sm:$0xff]
    %v8636 = vld [vmem:[%s990 + $0x40] sm:$0xff]
    %v8637 = vld [vmem:[%s990 + $0x80] sm:$0xff]
    %v8638 = vld [vmem:[%s990 + $0xc0] sm:$0xff]
    %v8639 = vld [vmem:[%s990 + $0x100] sm:$0xff]
    %v8640 = vld [vmem:[%s990 + $0x140] sm:$0xff]
    %v8641 = vld [vmem:[%s990 + $0x180] sm:$0xff]
    %v8642 = vld [vmem:[%s990 + $0x1c0] sm:$0xff]
    %v8643 = vld [vmem:[%s990 + $0x200] sm:$0xff]
    %v8644 = vld [vmem:[%s990 + $0x240] sm:$0xff]
    %v8645 = vld [vmem:[%s990 + $0x280] sm:$0xff]
    %v8646 = vld [vmem:[%s990 + $0x2c0] sm:$0xff]
    %v8647 = vld [vmem:[%s990 + $0x300] sm:$0xff]
    %v8648 = vld [vmem:[%s990 + $0x340] sm:$0xff]
    %v8649 = vld [vmem:[%s990 + $0x380] sm:$0xff]
    %v8650 = vld [vmem:[%s990 + $0x3c0] sm:$0xff]
    %v8651 = vadd.f32 %v8509, %v8635
    %v8652 = vadd.f32 %v8512, %v8636
    %v8653 = vadd.f32 %v8517, %v8637
    %v8654 = vadd.f32 %v8520, %v8638
    %v8655 = vadd.f32 %v8525, %v8639
    %v8656 = vadd.f32 %v8528, %v8640
    %v8657 = vadd.f32 %v8533, %v8641
    %v8658 = vadd.f32 %v8536, %v8642
    %v8659 = vadd.f32 %v8541, %v8643
    %v8660 = vadd.f32 %v8544, %v8644
    %v8661 = vadd.f32 %v8549, %v8645
    %v8662 = vadd.f32 %v8552, %v8646
    %v8663 = vadd.f32 %v8557, %v8647
    %v8664 = vadd.f32 %v8560, %v8648
    %v8665 = vadd.f32 %v8565, %v8649
    %v8666 = vadd.f32 %v8568, %v8650
    %v8667 = vld [vmem:[%s684 + $0x400] sm:$0xff]
    %v8668 = vld [vmem:[%s684 + $0x440] sm:$0xff]
    %v8669 = vld [vmem:[%s684 + $0x480] sm:$0xff]
    %v8670 = vld [vmem:[%s684 + $0x4c0] sm:$0xff]
    %v8671 = vld [vmem:[%s684 + $0x500] sm:$0xff]
    %v8672 = vld [vmem:[%s684 + $0x540] sm:$0xff]
    %v8673 = vld [vmem:[%s684 + $0x580] sm:$0xff]
    %v8674 = vld [vmem:[%s684 + $0x5c0] sm:$0xff]
    %v8675 = vld [vmem:[%s684 + $0x600] sm:$0xff]
    %v8676 = vld [vmem:[%s684 + $0x640] sm:$0xff]
    %v8677 = vld [vmem:[%s684 + $0x680] sm:$0xff]
    %v8678 = vld [vmem:[%s684 + $0x6c0] sm:$0xff]
    %v8679 = vld [vmem:[%s684 + $0x700] sm:$0xff]
    %v8680 = vld [vmem:[%s684 + $0x740] sm:$0xff]
    %v8681 = vld [vmem:[%s684 + $0x780] sm:$0xff]
    %v8682 = vld [vmem:[%s684 + $0x7c0] sm:$0xff]
    %v8683 = vadd.f32 %v8573, %v8667
    %v8684 = vadd.f32 %v8576, %v8668
    %v8685 = vadd.f32 %v8581, %v8669
    %v8686 = vadd.f32 %v8584, %v8670
    %v8687 = vadd.f32 %v8589, %v8671
    %v8688 = vadd.f32 %v8592, %v8672
    %v8689 = vadd.f32 %v8597, %v8673
    %v8690 = vadd.f32 %v8600, %v8674
    %v8691 = vadd.f32 %v8605, %v8675
    %v8692 = vadd.f32 %v8608, %v8676
    %v8693 = vadd.f32 %v8613, %v8677
    %v8694 = vadd.f32 %v8616, %v8678
    %v8695 = vadd.f32 %v8621, %v8679
    %v8696 = vadd.f32 %v8624, %v8680
    %v8697 = vadd.f32 %v8629, %v8681
    %v8698 = vadd.f32 %v8632, %v8682
    %v8699 = vxor.u32 %v8651, 2147483648
    %v8700 = vxor.u32 %v8652, 2147483648
    %v8701 = vxor.u32 %v8653, 2147483648
    %v8702 = vxor.u32 %v8654, 2147483648
    %v8703 = vmul.f32 %v8699, 1.442695
    %v8704 = vpow.pop %v8703
    %v8705 = vmul.f32 %v8700, 1.442695
    %v8706 = vpow.pop %v8705
    %v8707 = vmul.f32 %v8701, 1.442695
    %v8708 = vpow.pop %v8707
    %v8709 = vmul.f32 %v8702, 1.442695
    %v8710 = vpow.pop %v8709
    %v8711 = vadd.f32 %v8704, 1.0
    %v8712 = vadd.f32 %v8706, 1.0
    %v8713 = vadd.f32 %v8708, 1.0
    %v8714 = vadd.f32 %v8710, 1.0
    %v8715 = vrcp.pop %v8711
    %v8716 = vmul.f32 1.0, %v8715
    %v8717 = vrcp.pop %v8712
    %v8718 = vmul.f32 1.0, %v8717
    %v8719 = vrcp.pop %v8713
    %v8720 = vmul.f32 1.0, %v8719
    %v8721 = vrcp.pop %v8714
    %v8722 = vmul.f32 1.0, %v8721
    %v8723 = vxor.u32 %v8655, 2147483648
    %v8724 = vxor.u32 %v8656, 2147483648
    %v8725 = vxor.u32 %v8657, 2147483648
    %v8726 = vxor.u32 %v8658, 2147483648
    %v8727 = vmul.f32 %v8723, 1.442695
    %v8728 = vpow.pop %v8727
    %v8729 = vmul.f32 %v8724, 1.442695
    %v8730 = vpow.pop %v8729
    %v8731 = vmul.f32 %v8725, 1.442695
    %v8732 = vpow.pop %v8731
    %v8733 = vmul.f32 %v8726, 1.442695
    %v8734 = vpow.pop %v8733
    %v8735 = vadd.f32 %v8728, 1.0
    %v8736 = vadd.f32 %v8730, 1.0
    %v8737 = vadd.f32 %v8732, 1.0
    %v8738 = vadd.f32 %v8734, 1.0
    %v8739 = vrcp.pop %v8735
    %v8740 = vmul.f32 1.0, %v8739
    %v8741 = vrcp.pop %v8736
    %v8742 = vmul.f32 1.0, %v8741
    %v8743 = vrcp.pop %v8737
    %v8744 = vmul.f32 1.0, %v8743
    %v8745 = vrcp.pop %v8738
    %v8746 = vmul.f32 1.0, %v8745
    %v8747 = vtanh.pop %v8659
    %v8748 = vtanh.pop %v8660
    %v8749 = vtanh.pop %v8661
    %v8750 = vtanh.pop %v8662
    %v8751 = vxor.u32 %v8663, 2147483648
    %v8752 = vxor.u32 %v8664, 2147483648
    %v8753 = vxor.u32 %v8665, 2147483648
    %v8754 = vxor.u32 %v8666, 2147483648
    %v8755 = vmul.f32 %v8751, 1.442695
    %v8756 = vpow.pop %v8755
    %v8757 = vmul.f32 %v8752, 1.442695
    %v8758 = vpow.pop %v8757
    %v8759 = vmul.f32 %v8753, 1.442695
    %v8760 = vpow.pop %v8759
    %v8761 = vmul.f32 %v8754, 1.442695
    %v8762 = vpow.pop %v8761
    %v8763 = vadd.f32 %v8756, 1.0
    %v8764 = vadd.f32 %v8758, 1.0
    %v8765 = vadd.f32 %v8760, 1.0
    %v8766 = vadd.f32 %v8762, 1.0
    %v8767 = vrcp.pop %v8763
    %v8768 = vmul.f32 1.0, %v8767
    %v8769 = vrcp.pop %v8764
    %v8770 = vmul.f32 1.0, %v8769
    %v8771 = vrcp.pop %v8765
    %v8772 = vmul.f32 1.0, %v8771
    %v8773 = vrcp.pop %v8766
    %v8774 = vmul.f32 1.0, %v8773
    %v8775 = vmul.f32 %v8740, %v8362
    %v8776 = vmul.f32 %v8742, %v8363
    %v8777 = vmul.f32 %v8744, %v8364
    %v8778 = vmul.f32 %v8746, %v8365
    %v8779 = vmul.f32 %v8716, %v8747
    %v8780 = vmul.f32 %v8718, %v8748
    %v8781 = vmul.f32 %v8720, %v8749
    %v8782 = vmul.f32 %v8722, %v8750
    %v8783 = vadd.f32 %v8775, %v8779
    %v8784 = vadd.f32 %v8776, %v8780
    %v8785 = vadd.f32 %v8777, %v8781
    %v8786 = vadd.f32 %v8778, %v8782
    %v8787 = vtanh.pop %v8783
    %v8788 = vtanh.pop %v8784
    %v8789 = vtanh.pop %v8785
    %v8790 = vtanh.pop %v8786
    %v8791 = vmul.f32 %v8768, %v8787
    %v8792 = vmul.f32 %v8770, %v8788
    %v8793 = vmul.f32 %v8772, %v8789
    %v8794 = vmul.f32 %v8774, %v8790
    %v8795 = vxor.u32 %v8683, 2147483648
    %v8796 = vxor.u32 %v8684, 2147483648
    %v8797 = vxor.u32 %v8685, 2147483648
    %v8798 = vxor.u32 %v8686, 2147483648
    %v8799 = vmul.f32 %v8795, 1.442695
    %v8800 = vpow.pop %v8799
    %v8801 = vmul.f32 %v8796, 1.442695
    %v8802 = vpow.pop %v8801
    %v8803 = vmul.f32 %v8797, 1.442695
    %v8804 = vpow.pop %v8803
    %v8805 = vmul.f32 %v8798, 1.442695
    %v8806 = vpow.pop %v8805
    %v8807 = vadd.f32 %v8800, 1.0
    %v8808 = vadd.f32 %v8802, 1.0
    %v8809 = vadd.f32 %v8804, 1.0
    %v8810 = vadd.f32 %v8806, 1.0
    %v8811 = vrcp.pop %v8807
    %v8812 = vmul.f32 1.0, %v8811
    %v8813 = vrcp.pop %v8808
    %v8814 = vmul.f32 1.0, %v8813
    %v8815 = vrcp.pop %v8809
    %v8816 = vmul.f32 1.0, %v8815
    %v8817 = vrcp.pop %v8810
    %v8818 = vmul.f32 1.0, %v8817
    %v8819 = vxor.u32 %v8687, 2147483648
    %v8820 = vxor.u32 %v8688, 2147483648
    %v8821 = vxor.u32 %v8689, 2147483648
    %v8822 = vxor.u32 %v8690, 2147483648
    %v8823 = vmul.f32 %v8819, 1.442695
    %v8824 = vpow.pop %v8823
    %v8825 = vmul.f32 %v8820, 1.442695
    %v8826 = vpow.pop %v8825
    %v8827 = vmul.f32 %v8821, 1.442695
    %v8828 = vpow.pop %v8827
    %v8829 = vmul.f32 %v8822, 1.442695
    %v8830 = vpow.pop %v8829
    %v8831 = vadd.f32 %v8824, 1.0
    %v8832 = vadd.f32 %v8826, 1.0
    %v8833 = vadd.f32 %v8828, 1.0
    %v8834 = vadd.f32 %v8830, 1.0
    %v8835 = vrcp.pop %v8831
    %v8836 = vmul.f32 1.0, %v8835
    %v8837 = vrcp.pop %v8832
    %v8838 = vmul.f32 1.0, %v8837
    %v8839 = vrcp.pop %v8833
    %v8840 = vmul.f32 1.0, %v8839
    %v8841 = vrcp.pop %v8834
    %v8842 = vmul.f32 1.0, %v8841
    %v8843 = vtanh.pop %v8691
    %v8844 = vtanh.pop %v8692
    %v8845 = vtanh.pop %v8693
    %v8846 = vtanh.pop %v8694
    %v8847 = vxor.u32 %v8695, 2147483648
    %v8848 = vxor.u32 %v8696, 2147483648
    %v8849 = vxor.u32 %v8697, 2147483648
    %v8850 = vxor.u32 %v8698, 2147483648
    %v8851 = vmul.f32 %v8847, 1.442695
    %v8852 = vpow.pop %v8851
    %v8853 = vmul.f32 %v8848, 1.442695
    %v8854 = vpow.pop %v8853
    %v8855 = vmul.f32 %v8849, 1.442695
    %v8856 = vpow.pop %v8855
    %v8857 = vmul.f32 %v8850, 1.442695
    %v8858 = vpow.pop %v8857
    %v8859 = vadd.f32 %v8852, 1.0
    %v8860 = vadd.f32 %v8854, 1.0
    %v8861 = vadd.f32 %v8856, 1.0
    %v8862 = vadd.f32 %v8858, 1.0
    %v8863 = vrcp.pop %v8859
    %v8864 = vmul.f32 1.0, %v8863
    %v8865 = vrcp.pop %v8860
    %v8866 = vmul.f32 1.0, %v8865
    %v8867 = vrcp.pop %v8861
    %v8868 = vmul.f32 1.0, %v8867
    %v8869 = vrcp.pop %v8862
    %v8870 = vmul.f32 1.0, %v8869
    %v8871 = vmul.f32 %v8836, %v8458
    %v8872 = vmul.f32 %v8838, %v8459
    %v8873 = vmul.f32 %v8840, %v8460
    %v8874 = vmul.f32 %v8842, %v8461
    %v8875 = vmul.f32 %v8812, %v8843
    %v8876 = vmul.f32 %v8814, %v8844
    %v8877 = vmul.f32 %v8816, %v8845
    %v8878 = vmul.f32 %v8818, %v8846
    %v8879 = vadd.f32 %v8871, %v8875
    %v8880 = vadd.f32 %v8872, %v8876
    %v8881 = vadd.f32 %v8873, %v8877
    %v8882 = vadd.f32 %v8874, %v8878
    %v8883 = vtanh.pop %v8879
    %v8884 = vtanh.pop %v8880
    %v8885 = vtanh.pop %v8881
    %v8886 = vtanh.pop %v8882
    %v8887 = vmul.f32 %v8864, %v8883
    %v8888 = vmul.f32 %v8866, %v8884
    %v8889 = vmul.f32 %v8868, %v8885
    %v8890 = vmul.f32 %v8870, %v8886
    %v8891 = vpack.c.bf16 %v8792, %v8791
    %v8892 = vpack.c.bf16 %v8794, %v8793
    %v8893 = vpack.c.bf16 %v8888, %v8887
    %v8894 = vpack.c.bf16 %v8890, %v8889
    %8895 = vmatprep.subr.bf16.mxu0 0
    %8896 = vmatpush1.bf16.msra.mxu0 %v8891
    %8897 = vmatprep.subr.bf16.mxu0 0
    %8898 = vmatpush1.bf16.msra.mxu0 %v8892
    %8899 = vmatprep.subr.bf16.mxu0 0
    %8900 = vmatpush1.bf16.msra.mxu0 %v8893
    %8901 = vmatprep.subr.bf16.mxu0 0
    %8902 = vmatpush1.bf16.msra.mxu0 %v8894
    %8903 = vmatprep.subr.bf16.mxu0 0
    %8904 = vmatpush1.bf16.msra.mxu0 0
    %8905 = vmatprep.subr.bf16.mxu0 0
    %8906 = vmatpush1.bf16.msra.mxu0 0
    %8907 = vmatprep.subr.bf16.mxu0 0
    %8908 = vmatpush1.bf16.msra.mxu0 0
    %8909 = vmatprep.subr.bf16.mxu0 0
    %8910 = vmatpush1.bf16.msra.mxu0 0
    %8911 = vmatprep.subr.bf16.mxu0 0
    %8912 = vmatpush1.bf16.msra.mxu0 0
    %8913 = vmatprep.subr.bf16.mxu0 0
    %8914 = vmatpush1.bf16.msra.mxu0 0
    %8915 = vmatprep.subr.bf16.mxu0 0
    %8916 = vmatpush1.bf16.msra.mxu0 0
    %8917 = vmatprep.subr.bf16.mxu0 0
    %8918 = vmatpush1.bf16.msra.mxu0 0
    %8919 = vmatprep.subr.bf16.mxu0 0
    %8920 = vmatpush1.bf16.msra.mxu0 0
    %8921 = vmatprep.subr.bf16.mxu0 0
    %8922 = vmatpush1.bf16.msra.mxu0 0
    %8923 = vmatprep.subr.bf16.mxu0 0
    %8924 = vmatpush1.bf16.msra.mxu0 0
    %8925 = vmatprep.subr.bf16.mxu0 0
    %8926 = vmatpush1.bf16.msra.mxu0 0
    %8927 = vmatprep.mubr.bf16.mxu0 0
    %8928 = vmatmul.mubr.bf16.gmra.mrb[0].mxu0 %v6322
    %v8929 = vpop.f32.mrb[0].mxu0
    %v8930 = vadd.f32 0.0, %v8929
    %v8931 = vpop.f32.mrb[0].mxu0
    %v8932 = vpop.f32.mrb[0].mxu0
    %v8933 = vadd.f32 0.0, %v8932
    %v8934 = vpop.f32.mrb[0].mxu0
    %8935 = vmatprep.mubr.bf16.mxu0 0
    %8936 = vmatmul.mubr.bf16.gmra.mrb[0].mxu0 %v6325
    %v8937 = vpop.f32.mrb[0].mxu0
    %v8938 = vadd.f32 0.0, %v8937
    %v8939 = vpop.f32.mrb[0].mxu0
    %v8940 = vpop.f32.mrb[0].mxu0
    %v8941 = vadd.f32 0.0, %v8940
    %v8942 = vpop.f32.mrb[0].mxu0
    %8943 = vmatprep.mubr.bf16.mxu0 0
    %8944 = vmatmul.mubr.bf16.gmra.mrb[0].mxu0 %v6328
    %v8945 = vpop.f32.mrb[0].mxu0
    %v8946 = vadd.f32 0.0, %v8945
    %v8947 = vpop.f32.mrb[0].mxu0
    %v8948 = vpop.f32.mrb[0].mxu0
    %v8949 = vadd.f32 0.0, %v8948
    %v8950 = vpop.f32.mrb[0].mxu0
    %8951 = vmatprep.mubr.bf16.mxu0 0
    %8952 = vmatmul.mubr.bf16.gmra.mrb[0].mxu0 %v6331
    %v8953 = vpop.f32.mrb[0].mxu0
    %v8954 = vadd.f32 0.0, %v8953
    %v8955 = vpop.f32.mrb[0].mxu0
    %v8956 = vpop.f32.mrb[0].mxu0
    %v8957 = vadd.f32 0.0, %v8956
    %v8958 = vpop.f32.mrb[0].mxu0
    %8959 = vmatprep.mubr.bf16.mxu0 0
    %8960 = vmatmul.mubr.bf16.gmra.mrb[0].mxu0 %v6334
    %v8961 = vpop.f32.mrb[0].mxu0
    %v8962 = vadd.f32 0.0, %v8961
    %v8963 = vpop.f32.mrb[0].mxu0
    %v8964 = vpop.f32.mrb[0].mxu0
    %v8965 = vadd.f32 0.0, %v8964
    %v8966 = vpop.f32.mrb[0].mxu0
    %8967 = vmatprep.mubr.bf16.mxu0 0
    %8968 = vmatmul.mubr.bf16.gmra.mrb[0].mxu0 %v6337
    %v8969 = vpop.f32.mrb[0].mxu0
    %v8970 = vadd.f32 0.0, %v8969
    %v8971 = vpop.f32.mrb[0].mxu0
    %v8972 = vpop.f32.mrb[0].mxu0
    %v8973 = vadd.f32 0.0, %v8972
    %v8974 = vpop.f32.mrb[0].mxu0
    %8975 = vmatprep.mubr.bf16.mxu0 0
    %8976 = vmatmul.mubr.bf16.gmra.mrb[0].mxu0 %v6340
    %v8977 = vpop.f32.mrb[0].mxu0
    %v8978 = vadd.f32 0.0, %v8977
    %v8979 = vpop.f32.mrb[0].mxu0
    %v8980 = vpop.f32.mrb[0].mxu0
    %v8981 = vadd.f32 0.0, %v8980
    %v8982 = vpop.f32.mrb[0].mxu0
    %8983 = vmatprep.mubr.bf16.mxu0 0
    %8984 = vmatmul.mubr.bf16.gmra.mrb[0].mxu0 %v6343
    %v8985 = vpop.f32.mrb[0].mxu0
    %v8986 = vadd.f32 0.0, %v8985
    %v8987 = vpop.f32.mrb[0].mxu0
    %v8988 = vpop.f32.mrb[0].mxu0
    %v8989 = vadd.f32 0.0, %v8988
    %v8990 = vpop.f32.mrb[0].mxu0
    %8991 = vmatprep.mubr.bf16.mxu0 0
    %8992 = vmatmul.mubr.bf16.gmra.mrb[0].mxu0 %v6346
    %v8993 = vpop.f32.mrb[0].mxu0
    %v8994 = vadd.f32 0.0, %v8993
    %v8995 = vpop.f32.mrb[0].mxu0
    %v8996 = vpop.f32.mrb[0].mxu0
    %v8997 = vadd.f32 0.0, %v8996
    %v8998 = vpop.f32.mrb[0].mxu0
    %8999 = vmatprep.mubr.bf16.mxu0 0
    %9000 = vmatmul.mubr.bf16.gmra.mrb[0].mxu0 %v6349
    %v9001 = vpop.f32.mrb[0].mxu0
    %v9002 = vadd.f32 0.0, %v9001
    %v9003 = vpop.f32.mrb[0].mxu0
    %v9004 = vpop.f32.mrb[0].mxu0
    %v9005 = vadd.f32 0.0, %v9004
    %v9006 = vpop.f32.mrb[0].mxu0
    %9007 = vmatprep.mubr.bf16.mxu0 0
    %9008 = vmatmul.mubr.bf16.gmra.mrb[0].mxu0 %v6352
    %v9009 = vpop.f32.mrb[0].mxu0
    %v9010 = vadd.f32 0.0, %v9009
    %v9011 = vpop.f32.mrb[0].mxu0
    %v9012 = vpop.f32.mrb[0].mxu0
    %v9013 = vadd.f32 0.0, %v9012
    %v9014 = vpop.f32.mrb[0].mxu0
    %9015 = vmatprep.mubr.bf16.mxu0 0
    %9016 = vmatmul.mubr.bf16.gmra.mrb[0].mxu0 %v6355
    %v9017 = vpop.f32.mrb[0].mxu0
    %v9018 = vadd.f32 0.0, %v9017
    %v9019 = vpop.f32.mrb[0].mxu0
    %v9020 = vpop.f32.mrb[0].mxu0
    %v9021 = vadd.f32 0.0, %v9020
    %v9022 = vpop.f32.mrb[0].mxu0
    %9023 = vmatprep.mubr.bf16.mxu0 0
    %9024 = vmatmul.mubr.bf16.gmra.mrb[0].mxu0 %v6358
    %v9025 = vpop.f32.mrb[0].mxu0
    %v9026 = vadd.f32 0.0, %v9025
    %v9027 = vpop.f32.mrb[0].mxu0
    %v9028 = vpop.f32.mrb[0].mxu0
    %v9029 = vadd.f32 0.0, %v9028
    %v9030 = vpop.f32.mrb[0].mxu0
    %9031 = vmatprep.mubr.bf16.mxu0 0
    %9032 = vmatmul.mubr.bf16.gmra.mrb[0].mxu0 %v6361
    %v9033 = vpop.f32.mrb[0].mxu0
    %v9034 = vadd.f32 0.0, %v9033
    %v9035 = vpop.f32.mrb[0].mxu0
    %v9036 = vpop.f32.mrb[0].mxu0
    %v9037 = vadd.f32 0.0, %v9036
    %v9038 = vpop.f32.mrb[0].mxu0
    %9039 = vmatprep.mubr.bf16.mxu0 0
    %9040 = vmatmul.mubr.bf16.gmra.mrb[0].mxu0 %v6364
    %v9041 = vpop.f32.mrb[0].mxu0
    %v9042 = vadd.f32 0.0, %v9041
    %v9043 = vpop.f32.mrb[0].mxu0
    %v9044 = vpop.f32.mrb[0].mxu0
    %v9045 = vadd.f32 0.0, %v9044
    %v9046 = vpop.f32.mrb[0].mxu0
    %9047 = vmatprep.mubr.bf16.mxu0 0
    %9048 = vmatmul.mubr.bf16.gmra.mrb[0].mxu0 %v6367
    %v9049 = vpop.f32.mrb[0].mxu0
    %v9050 = vadd.f32 0.0, %v9049
    %v9051 = vpop.f32.mrb[0].mxu0
    %v9052 = vpop.f32.mrb[0].mxu0
    %v9053 = vadd.f32 0.0, %v9052
    %v9054 = vpop.f32.mrb[0].mxu0
    %9055 = vdwg.mxu0
    %v9056 = vld [vmem:[%s1092] sm:$0xff]
    %v9057 = vld [vmem:[%s1092 + $0x40] sm:$0xff]
    %v9058 = vld [vmem:[%s1092 + $0x80] sm:$0xff]
    %v9059 = vld [vmem:[%s1092 + $0xc0] sm:$0xff]
    %v9060 = vld [vmem:[%s1092 + $0x100] sm:$0xff]
    %v9061 = vld [vmem:[%s1092 + $0x140] sm:$0xff]
    %v9062 = vld [vmem:[%s1092 + $0x180] sm:$0xff]
    %v9063 = vld [vmem:[%s1092 + $0x1c0] sm:$0xff]
    %v9064 = vld [vmem:[%s1092 + $0x200] sm:$0xff]
    %v9065 = vld [vmem:[%s1092 + $0x240] sm:$0xff]
    %v9066 = vld [vmem:[%s1092 + $0x280] sm:$0xff]
    %v9067 = vld [vmem:[%s1092 + $0x2c0] sm:$0xff]
    %v9068 = vld [vmem:[%s1092 + $0x300] sm:$0xff]
    %v9069 = vld [vmem:[%s1092 + $0x340] sm:$0xff]
    %v9070 = vld [vmem:[%s1092 + $0x380] sm:$0xff]
    %v9071 = vld [vmem:[%s1092 + $0x3c0] sm:$0xff]
    %v9072 = vadd.f32 %v8930, %v9056
    %v9073 = vadd.f32 %v8933, %v9057
    %v9074 = vadd.f32 %v8938, %v9058
    %v9075 = vadd.f32 %v8941, %v9059
    %v9076 = vadd.f32 %v8946, %v9060
    %v9077 = vadd.f32 %v8949, %v9061
    %v9078 = vadd.f32 %v8954, %v9062
    %v9079 = vadd.f32 %v8957, %v9063
    %v9080 = vadd.f32 %v8962, %v9064
    %v9081 = vadd.f32 %v8965, %v9065
    %v9082 = vadd.f32 %v8970, %v9066
    %v9083 = vadd.f32 %v8973, %v9067
    %v9084 = vadd.f32 %v8978, %v9068
    %v9085 = vadd.f32 %v8981, %v9069
    %v9086 = vadd.f32 %v8986, %v9070
    %v9087 = vadd.f32 %v8989, %v9071
    %v9088 = vld [vmem:[%s582 + $0x400] sm:$0xff]
    %v9089 = vld [vmem:[%s582 + $0x440] sm:$0xff]
    %v9090 = vld [vmem:[%s582 + $0x480] sm:$0xff]
    %v9091 = vld [vmem:[%s582 + $0x4c0] sm:$0xff]
    %v9092 = vld [vmem:[%s582 + $0x500] sm:$0xff]
    %v9093 = vld [vmem:[%s582 + $0x540] sm:$0xff]
    %v9094 = vld [vmem:[%s582 + $0x580] sm:$0xff]
    %v9095 = vld [vmem:[%s582 + $0x5c0] sm:$0xff]
    %v9096 = vld [vmem:[%s582 + $0x600] sm:$0xff]
    %v9097 = vld [vmem:[%s582 + $0x640] sm:$0xff]
    %v9098 = vld [vmem:[%s582 + $0x680] sm:$0xff]
    %v9099 = vld [vmem:[%s582 + $0x6c0] sm:$0xff]
    %v9100 = vld [vmem:[%s582 + $0x700] sm:$0xff]
    %v9101 = vld [vmem:[%s582 + $0x740] sm:$0xff]
    %v9102 = vld [vmem:[%s582 + $0x780] sm:$0xff]
    %v9103 = vld [vmem:[%s582 + $0x7c0] sm:$0xff]
    %v9104 = vadd.f32 %v8994, %v9088
    %v9105 = vadd.f32 %v8997, %v9089
    %v9106 = vadd.f32 %v9002, %v9090
    %v9107 = vadd.f32 %v9005, %v9091
    %v9108 = vadd.f32 %v9010, %v9092
    %v9109 = vadd.f32 %v9013, %v9093
    %v9110 = vadd.f32 %v9018, %v9094
    %v9111 = vadd.f32 %v9021, %v9095
    %v9112 = vadd.f32 %v9026, %v9096
    %v9113 = vadd.f32 %v9029, %v9097
    %v9114 = vadd.f32 %v9034, %v9098
    %v9115 = vadd.f32 %v9037, %v9099
    %v9116 = vadd.f32 %v9042, %v9100
    %v9117 = vadd.f32 %v9045, %v9101
    %v9118 = vadd.f32 %v9050, %v9102
    %v9119 = vadd.f32 %v9053, %v9103
    %v9120 = vxor.u32 %v9072, 2147483648
    %v9121 = vxor.u32 %v9073, 2147483648
    %v9122 = vxor.u32 %v9074, 2147483648
    %v9123 = vxor.u32 %v9075, 2147483648
    %v9124 = vmul.f32 %v9120, 1.442695
    %v9125 = vpow.pop %v9124
    %v9126 = vmul.f32 %v9121, 1.442695
    %v9127 = vpow.pop %v9126
    %v9128 = vmul.f32 %v9122, 1.442695
    %v9129 = vpow.pop %v9128
    %v9130 = vmul.f32 %v9123, 1.442695
    %v9131 = vpow.pop %v9130
    %v9132 = vadd.f32 %v9125, 1.0
    %v9133 = vadd.f32 %v9127, 1.0
    %v9134 = vadd.f32 %v9129, 1.0
    %v9135 = vadd.f32 %v9131, 1.0
    %v9136 = vrcp.pop %v9132
    %v9137 = vmul.f32 1.0, %v9136
    %v9138 = vrcp.pop %v9133
    %v9139 = vmul.f32 1.0, %v9138
    %v9140 = vrcp.pop %v9134
    %v9141 = vmul.f32 1.0, %v9140
    %v9142 = vrcp.pop %v9135
    %v9143 = vmul.f32 1.0, %v9142
    %v9144 = vxor.u32 %v9076, 2147483648
    %v9145 = vxor.u32 %v9077, 2147483648
    %v9146 = vxor.u32 %v9078, 2147483648
    %v9147 = vxor.u32 %v9079, 2147483648
    %v9148 = vmul.f32 %v9144, 1.442695
    %v9149 = vpow.pop %v9148
    %v9150 = vmul.f32 %v9145, 1.442695
    %v9151 = vpow.pop %v9150
    %v9152 = vmul.f32 %v9146, 1.442695
    %v9153 = vpow.pop %v9152
    %v9154 = vmul.f32 %v9147, 1.442695
    %v9155 = vpow.pop %v9154
    %v9156 = vadd.f32 %v9149, 1.0
    %v9157 = vadd.f32 %v9151, 1.0
    %v9158 = vadd.f32 %v9153, 1.0
    %v9159 = vadd.f32 %v9155, 1.0
    %v9160 = vrcp.pop %v9156
    %v9161 = vmul.f32 1.0, %v9160
    %v9162 = vrcp.pop %v9157
    %v9163 = vmul.f32 1.0, %v9162
    %v9164 = vrcp.pop %v9158
    %v9165 = vmul.f32 1.0, %v9164
    %v9166 = vrcp.pop %v9159
    %v9167 = vmul.f32 1.0, %v9166
    %v9168 = vtanh.pop %v9080
    %v9169 = vtanh.pop %v9081
    %v9170 = vtanh.pop %v9082
    %v9171 = vtanh.pop %v9083
    %v9172 = vxor.u32 %v9084, 2147483648
    %v9173 = vxor.u32 %v9085, 2147483648
    %v9174 = vxor.u32 %v9086, 2147483648
    %v9175 = vxor.u32 %v9087, 2147483648
    %v9176 = vmul.f32 %v9172, 1.442695
    %v9177 = vpow.pop %v9176
    %v9178 = vmul.f32 %v9173, 1.442695
    %v9179 = vpow.pop %v9178
    %v9180 = vmul.f32 %v9174, 1.442695
    %v9181 = vpow.pop %v9180
    %v9182 = vmul.f32 %v9175, 1.442695
    %v9183 = vpow.pop %v9182
    %v9184 = vadd.f32 %v9177, 1.0
    %v9185 = vadd.f32 %v9179, 1.0
    %v9186 = vadd.f32 %v9181, 1.0
    %v9187 = vadd.f32 %v9183, 1.0
    %v9188 = vrcp.pop %v9184
    %v9189 = vmul.f32 1.0, %v9188
    %v9190 = vrcp.pop %v9185
    %v9191 = vmul.f32 1.0, %v9190
    %v9192 = vrcp.pop %v9186
    %v9193 = vmul.f32 1.0, %v9192
    %v9194 = vrcp.pop %v9187
    %v9195 = vmul.f32 1.0, %v9194
    %v9196 = vmul.f32 %v9161, %v8783
    %v9197 = vmul.f32 %v9163, %v8784
    %v9198 = vmul.f32 %v9165, %v8785
    %v9199 = vmul.f32 %v9167, %v8786
    %v9200 = vmul.f32 %v9137, %v9168
    %v9201 = vmul.f32 %v9139, %v9169
    %v9202 = vmul.f32 %v9141, %v9170
    %v9203 = vmul.f32 %v9143, %v9171
    %v9204 = vadd.f32 %v9196, %v9200
    %v9205 = vadd.f32 %v9197, %v9201
    %v9206 = vadd.f32 %v9198, %v9202
    %v9207 = vadd.f32 %v9199, %v9203
    %v9208 = vtanh.pop %v9204
    %v9209 = vtanh.pop %v9205
    %v9210 = vtanh.pop %v9206
    %v9211 = vtanh.pop %v9207
    %v9212 = vmul.f32 %v9189, %v9208
    %v9213 = vmul.f32 %v9191, %v9209
    %v9214 = vmul.f32 %v9193, %v9210
    %v9215 = vmul.f32 %v9195, %v9211
    %v9216 = vxor.u32 %v9104, 2147483648
    %v9217 = vxor.u32 %v9105, 2147483648
    %v9218 = vxor.u32 %v9106, 2147483648
    %v9219 = vxor.u32 %v9107, 2147483648
    %v9220 = vmul.f32 %v9216, 1.442695
    %v9221 = vpow.pop %v9220
    %v9222 = vmul.f32 %v9217, 1.442695
    %v9223 = vpow.pop %v9222
    %v9224 = vmul.f32 %v9218, 1.442695
    %v9225 = vpow.pop %v9224
    %v9226 = vmul.f32 %v9219, 1.442695
    %v9227 = vpow.pop %v9226
    %v9228 = vadd.f32 %v9221, 1.0
    %v9229 = vadd.f32 %v9223, 1.0
    %v9230 = vadd.f32 %v9225, 1.0
    %v9231 = vadd.f32 %v9227, 1.0
    %v9232 = vrcp.pop %v9228
    %v9233 = vmul.f32 1.0, %v9232
    %v9234 = vrcp.pop %v9229
    %v9235 = vmul.f32 1.0, %v9234
    %v9236 = vrcp.pop %v9230
    %v9237 = vmul.f32 1.0, %v9236
    %v9238 = vrcp.pop %v9231
    %v9239 = vmul.f32 1.0, %v9238
    %v9240 = vxor.u32 %v9108, 2147483648
    %v9241 = vxor.u32 %v9109, 2147483648
    %v9242 = vxor.u32 %v9110, 2147483648
    %v9243 = vxor.u32 %v9111, 2147483648
    %v9244 = vmul.f32 %v9240, 1.442695
    %v9245 = vpow.pop %v9244
    %v9246 = vmul.f32 %v9241, 1.442695
    %v9247 = vpow.pop %v9246
    %v9248 = vmul.f32 %v9242, 1.442695
    %v9249 = vpow.pop %v9248
    %v9250 = vmul.f32 %v9243, 1.442695
    %v9251 = vpow.pop %v9250
    %v9252 = vadd.f32 %v9245, 1.0
    %v9253 = vadd.f32 %v9247, 1.0
    %v9254 = vadd.f32 %v9249, 1.0
    %v9255 = vadd.f32 %v9251, 1.0
    %v9256 = vrcp.pop %v9252
    %v9257 = vmul.f32 1.0, %v9256
    %v9258 = vrcp.pop %v9253
    %v9259 = vmul.f32 1.0, %v9258
    %v9260 = vrcp.pop %v9254
    %v9261 = vmul.f32 1.0, %v9260
    %v9262 = vrcp.pop %v9255
    %v9263 = vmul.f32 1.0, %v9262
    %v9264 = vtanh.pop %v9112
    %v9265 = vtanh.pop %v9113
    %v9266 = vtanh.pop %v9114
    %v9267 = vtanh.pop %v9115
    %v9268 = vxor.u32 %v9116, 2147483648
    %v9269 = vxor.u32 %v9117, 2147483648
    %v9270 = vxor.u32 %v9118, 2147483648
    %v9271 = vxor.u32 %v9119, 2147483648
    %v9272 = vmul.f32 %v9268, 1.442695
    %v9273 = vpow.pop %v9272
    %v9274 = vmul.f32 %v9269, 1.442695
    %v9275 = vpow.pop %v9274
    %v9276 = vmul.f32 %v9270, 1.442695
    %v9277 = vpow.pop %v9276
    %v9278 = vmul.f32 %v9271, 1.442695
    %v9279 = vpow.pop %v9278
    %v9280 = vadd.f32 %v9273, 1.0
    %v9281 = vadd.f32 %v9275, 1.0
    %v9282 = vadd.f32 %v9277, 1.0
    %v9283 = vadd.f32 %v9279, 1.0
    %v9284 = vrcp.pop %v9280
    %v9285 = vmul.f32 1.0, %v9284
    %v9286 = vrcp.pop %v9281
    %v9287 = vmul.f32 1.0, %v9286
    %v9288 = vrcp.pop %v9282
    %v9289 = vmul.f32 1.0, %v9288
    %v9290 = vrcp.pop %v9283
    %v9291 = vmul.f32 1.0, %v9290
    %v9292 = vmul.f32 %v9257, %v8879
    %v9293 = vmul.f32 %v9259, %v8880
    %v9294 = vmul.f32 %v9261, %v8881
    %v9295 = vmul.f32 %v9263, %v8882
    %v9296 = vmul.f32 %v9233, %v9264
    %v9297 = vmul.f32 %v9235, %v9265
    %v9298 = vmul.f32 %v9237, %v9266
    %v9299 = vmul.f32 %v9239, %v9267
    %v9300 = vadd.f32 %v9292, %v9296
    %v9301 = vadd.f32 %v9293, %v9297
    %v9302 = vadd.f32 %v9294, %v9298
    %v9303 = vadd.f32 %v9295, %v9299
    %v9304 = vtanh.pop %v9300
    %v9305 = vtanh.pop %v9301
    %v9306 = vtanh.pop %v9302
    %v9307 = vtanh.pop %v9303
    %v9308 = vmul.f32 %v9285, %v9304
    %v9309 = vmul.f32 %v9287, %v9305
    %v9310 = vmul.f32 %v9289, %v9306
    %v9311 = vmul.f32 %v9291, %v9307
    %v9312 = vpack.c.bf16 %v9213, %v9212
    %v9313 = vpack.c.bf16 %v9215, %v9214
    %v9314 = vpack.c.bf16 %v9309, %v9308
    %v9315 = vpack.c.bf16 %v9311, %v9310
    %9316 = vmatprep.subr.bf16.mxu0 0
    %9317 = vmatpush1.bf16.msra.mxu0 %v9312
    %9318 = vmatprep.subr.bf16.mxu0 0
    %9319 = vmatpush1.bf16.msra.mxu0 %v9313
    %9320 = vmatprep.subr.bf16.mxu0 0
    %9321 = vmatpush1.bf16.msra.mxu0 %v9314
    %9322 = vmatprep.subr.bf16.mxu0 0
    %9323 = vmatpush1.bf16.msra.mxu0 %v9315
    %9324 = vmatprep.subr.bf16.mxu0 0
    %9325 = vmatpush1.bf16.msra.mxu0 0
    %9326 = vmatprep.subr.bf16.mxu0 0
    %9327 = vmatpush1.bf16.msra.mxu0 0
    %9328 = vmatprep.subr.bf16.mxu0 0
    %9329 = vmatpush1.bf16.msra.mxu0 0
    %9330 = vmatprep.subr.bf16.mxu0 0
    %9331 = vmatpush1.bf16.msra.mxu0 0
    %9332 = vmatprep.subr.bf16.mxu0 0
    %9333 = vmatpush1.bf16.msra.mxu0 0
    %9334 = vmatprep.subr.bf16.mxu0 0
    %9335 = vmatpush1.bf16.msra.mxu0 0
    %9336 = vmatprep.subr.bf16.mxu0 0
    %9337 = vmatpush1.bf16.msra.mxu0 0
    %9338 = vmatprep.subr.bf16.mxu0 0
    %9339 = vmatpush1.bf16.msra.mxu0 0
    %9340 = vmatprep.subr.bf16.mxu0 0
    %9341 = vmatpush1.bf16.msra.mxu0 0
    %9342 = vmatprep.subr.bf16.mxu0 0
    %9343 = vmatpush1.bf16.msra.mxu0 0
    %9344 = vmatprep.subr.bf16.mxu0 0
    %9345 = vmatpush1.bf16.msra.mxu0 0
    %9346 = vmatprep.subr.bf16.mxu0 0
    %9347 = vmatpush1.bf16.msra.mxu0 0
    %9348 = vmatprep.mubr.bf16.mxu0 0
    %9349 = vmatmul.mubr.bf16.gmra.mrb[0].mxu0 %v6322
    %v9350 = vpop.f32.mrb[0].mxu0
    %v9351 = vadd.f32 0.0, %v9350
    %v9352 = vpop.f32.mrb[0].mxu0
    %v9353 = vpop.f32.mrb[0].mxu0
    %v9354 = vadd.f32 0.0, %v9353
    %v9355 = vpop.f32.mrb[0].mxu0
    %9356 = vmatprep.mubr.bf16.mxu0 0
    %9357 = vmatmul.mubr.bf16.gmra.mrb[0].mxu0 %v6325
    %v9358 = vpop.f32.mrb[0].mxu0
    %v9359 = vadd.f32 0.0, %v9358
    %v9360 = vpop.f32.mrb[0].mxu0
    %v9361 = vpop.f32.mrb[0].mxu0
    %v9362 = vadd.f32 0.0, %v9361
    %v9363 = vpop.f32.mrb[0].mxu0
    %9364 = vmatprep.mubr.bf16.mxu0 0
    %9365 = vmatmul.mubr.bf16.gmra.mrb[0].mxu0 %v6328
    %v9366 = vpop.f32.mrb[0].mxu0
    %v9367 = vadd.f32 0.0, %v9366
    %v9368 = vpop.f32.mrb[0].mxu0
    %v9369 = vpop.f32.mrb[0].mxu0
    %v9370 = vadd.f32 0.0, %v9369
    %v9371 = vpop.f32.mrb[0].mxu0
    %9372 = vmatprep.mubr.bf16.mxu0 0
    %9373 = vmatmul.mubr.bf16.gmra.mrb[0].mxu0 %v6331
    %v9374 = vpop.f32.mrb[0].mxu0
    %v9375 = vadd.f32 0.0, %v9374
    %v9376 = vpop.f32.mrb[0].mxu0
    %v9377 = vpop.f32.mrb[0].mxu0
    %v9378 = vadd.f32 0.0, %v9377
    %v9379 = vpop.f32.mrb[0].mxu0
    %9380 = vmatprep.mubr.bf16.mxu0 0
    %9381 = vmatmul.mubr.bf16.gmra.mrb[0].mxu0 %v6334
    %v9382 = vpop.f32.mrb[0].mxu0
    %v9383 = vadd.f32 0.0, %v9382
    %v9384 = vpop.f32.mrb[0].mxu0
    %v9385 = vpop.f32.mrb[0].mxu0
    %v9386 = vadd.f32 0.0, %v9385
    %v9387 = vpop.f32.mrb[0].mxu0
    %9388 = vmatprep.mubr.bf16.mxu0 0
    %9389 = vmatmul.mubr.bf16.gmra.mrb[0].mxu0 %v6337
    %v9390 = vpop.f32.mrb[0].mxu0
    %v9391 = vadd.f32 0.0, %v9390
    %v9392 = vpop.f32.mrb[0].mxu0
    %v9393 = vpop.f32.mrb[0].mxu0
    %v9394 = vadd.f32 0.0, %v9393
    %v9395 = vpop.f32.mrb[0].mxu0
    %9396 = vmatprep.mubr.bf16.mxu0 0
    %9397 = vmatmul.mubr.bf16.gmra.mrb[0].mxu0 %v6340
    %v9398 = vpop.f32.mrb[0].mxu0
    %v9399 = vadd.f32 0.0, %v9398
    %v9400 = vpop.f32.mrb[0].mxu0
    %v9401 = vpop.f32.mrb[0].mxu0
    %v9402 = vadd.f32 0.0, %v9401
    %v9403 = vpop.f32.mrb[0].mxu0
    %9404 = vmatprep.mubr.bf16.mxu0 0
    %9405 = vmatmul.mubr.bf16.gmra.mrb[0].mxu0 %v6343
    %v9406 = vpop.f32.mrb[0].mxu0
    %v9407 = vadd.f32 0.0, %v9406
    %v9408 = vpop.f32.mrb[0].mxu0
    %v9409 = vpop.f32.mrb[0].mxu0
    %v9410 = vadd.f32 0.0, %v9409
    %v9411 = vpop.f32.mrb[0].mxu0
    %9412 = vmatprep.mubr.bf16.mxu0 0
    %9413 = vmatmul.mubr.bf16.gmra.mrb[0].mxu0 %v6346
    %v9414 = vpop.f32.mrb[0].mxu0
    %v9415 = vadd.f32 0.0, %v9414
    %v9416 = vpop.f32.mrb[0].mxu0
    %v9417 = vpop.f32.mrb[0].mxu0
    %v9418 = vadd.f32 0.0, %v9417
    %v9419 = vpop.f32.mrb[0].mxu0
    %9420 = vmatprep.mubr.bf16.mxu0 0
    %9421 = vmatmul.mubr.bf16.gmra.mrb[0].mxu0 %v6349
    %v9422 = vpop.f32.mrb[0].mxu0
    %v9423 = vadd.f32 0.0, %v9422
    %v9424 = vpop.f32.mrb[0].mxu0
    %v9425 = vpop.f32.mrb[0].mxu0
    %v9426 = vadd.f32 0.0, %v9425
    %v9427 = vpop.f32.mrb[0].mxu0
    %9428 = vmatprep.mubr.bf16.mxu0 0
    %9429 = vmatmul.mubr.bf16.gmra.mrb[0].mxu0 %v6352
    %v9430 = vpop.f32.mrb[0].mxu0
    %v9431 = vadd.f32 0.0, %v9430
    %v9432 = vpop.f32.mrb[0].mxu0
    %v9433 = vpop.f32.mrb[0].mxu0
    %v9434 = vadd.f32 0.0, %v9433
    %v9435 = vpop.f32.mrb[0].mxu0
    %9436 = vmatprep.mubr.bf16.mxu0 0
    %9437 = vmatmul.mubr.bf16.gmra.mrb[0].mxu0 %v6355
    %v9438 = vpop.f32.mrb[0].mxu0
    %v9439 = vadd.f32 0.0, %v9438
    %v9440 = vpop.f32.mrb[0].mxu0
    %v9441 = vpop.f32.mrb[0].mxu0
    %v9442 = vadd.f32 0.0, %v9441
    %v9443 = vpop.f32.mrb[0].mxu0
    %9444 = vmatprep.mubr.bf16.mxu0 0
    %9445 = vmatmul.mubr.bf16.gmra.mrb[0].mxu0 %v6358
    %v9446 = vpop.f32.mrb[0].mxu0
    %v9447 = vadd.f32 0.0, %v9446
    %v9448 = vpop.f32.mrb[0].mxu0
    %v9449 = vpop.f32.mrb[0].mxu0
    %v9450 = vadd.f32 0.0, %v9449
    %v9451 = vpop.f32.mrb[0].mxu0
    %9452 = vmatprep.mubr.bf16.mxu0 0
    %9453 = vmatmul.mubr.bf16.gmra.mrb[0].mxu0 %v6361
    %v9454 = vpop.f32.mrb[0].mxu0
    %v9455 = vadd.f32 0.0, %v9454
    %v9456 = vpop.f32.mrb[0].mxu0
    %v9457 = vpop.f32.mrb[0].mxu0
    %v9458 = vadd.f32 0.0, %v9457
    %v9459 = vpop.f32.mrb[0].mxu0
    %9460 = vmatprep.mubr.bf16.mxu0 0
    %9461 = vmatmul.mubr.bf16.gmra.mrb[0].mxu0 %v6364
    %v9462 = vpop.f32.mrb[0].mxu0
    %v9463 = vadd.f32 0.0, %v9462
    %v9464 = vpop.f32.mrb[0].mxu0
    %v9465 = vpop.f32.mrb[0].mxu0
    %v9466 = vadd.f32 0.0, %v9465
    %v9467 = vpop.f32.mrb[0].mxu0
    %9468 = vmatprep.mubr.bf16.mxu0 0
    %9469 = vmatmul.mubr.bf16.gmra.mrb[0].mxu0 %v6367
    %v9470 = vpop.f32.mrb[0].mxu0
    %v9471 = vadd.f32 0.0, %v9470
    %v9472 = vpop.f32.mrb[0].mxu0
    %v9473 = vpop.f32.mrb[0].mxu0
    %v9474 = vadd.f32 0.0, %v9473
    %v9475 = vpop.f32.mrb[0].mxu0
    %9476 = vdwg.mxu0
    %v9477 = vld [vmem:[%s1194] sm:$0xff]
    %v9478 = vld [vmem:[%s1194 + $0x40] sm:$0xff]
    %v9479 = vld [vmem:[%s1194 + $0x80] sm:$0xff]
    %v9480 = vld [vmem:[%s1194 + $0xc0] sm:$0xff]
    %v9481 = vld [vmem:[%s1194 + $0x100] sm:$0xff]
    %v9482 = vld [vmem:[%s1194 + $0x140] sm:$0xff]
    %v9483 = vld [vmem:[%s1194 + $0x180] sm:$0xff]
    %v9484 = vld [vmem:[%s1194 + $0x1c0] sm:$0xff]
    %v9485 = vld [vmem:[%s1194 + $0x200] sm:$0xff]
    %v9486 = vld [vmem:[%s1194 + $0x240] sm:$0xff]
    %v9487 = vld [vmem:[%s1194 + $0x280] sm:$0xff]
    %v9488 = vld [vmem:[%s1194 + $0x2c0] sm:$0xff]
    %v9489 = vld [vmem:[%s1194 + $0x300] sm:$0xff]
    %v9490 = vld [vmem:[%s1194 + $0x340] sm:$0xff]
    %v9491 = vld [vmem:[%s1194 + $0x380] sm:$0xff]
    %v9492 = vld [vmem:[%s1194 + $0x3c0] sm:$0xff]
    %v9493 = vadd.f32 %v9351, %v9477
    %v9494 = vadd.f32 %v9354, %v9478
    %v9495 = vadd.f32 %v9359, %v9479
    %v9496 = vadd.f32 %v9362, %v9480
    %v9497 = vadd.f32 %v9367, %v9481
    %v9498 = vadd.f32 %v9370, %v9482
    %v9499 = vadd.f32 %v9375, %v9483
    %v9500 = vadd.f32 %v9378, %v9484
    %v9501 = vadd.f32 %v9383, %v9485
    %v9502 = vadd.f32 %v9386, %v9486
    %v9503 = vadd.f32 %v9391, %v9487
    %v9504 = vadd.f32 %v9394, %v9488
    %v9505 = vadd.f32 %v9399, %v9489
    %v9506 = vadd.f32 %v9402, %v9490
    %v9507 = vadd.f32 %v9407, %v9491
    %v9508 = vadd.f32 %v9410, %v9492
    %v9509 = vld [vmem:[#allocation2 + $0x400] sm:$0xff]
    %v9510 = vld [vmem:[#allocation2 + $0x440] sm:$0xff]
    %v9511 = vld [vmem:[#allocation2 + $0x480] sm:$0xff]
    %v9512 = vld [vmem:[#allocation2 + $0x4c0] sm:$0xff]
    %v9513 = vld [vmem:[#allocation2 + $0x500] sm:$0xff]
    %v9514 = vld [vmem:[#allocation2 + $0x540] sm:$0xff]
    %v9515 = vld [vmem:[#allocation2 + $0x580] sm:$0xff]
    %v9516 = vld [vmem:[#allocation2 + $0x5c0] sm:$0xff]
    %v9517 = vld [vmem:[#allocation2 + $0x600] sm:$0xff]
    %v9518 = vld [vmem:[#allocation2 + $0x640] sm:$0xff]
    %v9519 = vld [vmem:[#allocation2 + $0x680] sm:$0xff]
    %v9520 = vld [vmem:[#allocation2 + $0x6c0] sm:$0xff]
    %v9521 = vld [vmem:[#allocation2 + $0x700] sm:$0xff]
    %v9522 = vld [vmem:[#allocation2 + $0x740] sm:$0xff]
    %v9523 = vld [vmem:[#allocation2 + $0x780] sm:$0xff]
    %v9524 = vld [vmem:[#allocation2 + $0x7c0] sm:$0xff]
    %v9525 = vadd.f32 %v9415, %v9509
    %v9526 = vadd.f32 %v9418, %v9510
    %v9527 = vadd.f32 %v9423, %v9511
    %v9528 = vadd.f32 %v9426, %v9512
    %v9529 = vadd.f32 %v9431, %v9513
    %v9530 = vadd.f32 %v9434, %v9514
    %v9531 = vadd.f32 %v9439, %v9515
    %v9532 = vadd.f32 %v9442, %v9516
    %v9533 = vadd.f32 %v9447, %v9517
    %v9534 = vadd.f32 %v9450, %v9518
    %v9535 = vadd.f32 %v9455, %v9519
    %v9536 = vadd.f32 %v9458, %v9520
    %v9537 = vadd.f32 %v9463, %v9521
    %v9538 = vadd.f32 %v9466, %v9522
    %v9539 = vadd.f32 %v9471, %v9523
    %v9540 = vadd.f32 %v9474, %v9524
    %v9541 = vxor.u32 %v9493, 2147483648
    %v9542 = vxor.u32 %v9494, 2147483648
    %v9543 = vxor.u32 %v9495, 2147483648
    %v9544 = vxor.u32 %v9496, 2147483648
    %v9545 = vmul.f32 %v9541, 1.442695
    %v9546 = vpow.pop %v9545
    %v9547 = vmul.f32 %v9542, 1.442695
    %v9548 = vpow.pop %v9547
    %v9549 = vmul.f32 %v9543, 1.442695
    %v9550 = vpow.pop %v9549
    %v9551 = vmul.f32 %v9544, 1.442695
    %v9552 = vpow.pop %v9551
    %v9553 = vadd.f32 %v9546, 1.0
    %v9554 = vadd.f32 %v9548, 1.0
    %v9555 = vadd.f32 %v9550, 1.0
    %v9556 = vadd.f32 %v9552, 1.0
    %v9557 = vrcp.pop %v9553
    %v9558 = vmul.f32 1.0, %v9557
    %v9559 = vrcp.pop %v9554
    %v9560 = vmul.f32 1.0, %v9559
    %v9561 = vrcp.pop %v9555
    %v9562 = vmul.f32 1.0, %v9561
    %v9563 = vrcp.pop %v9556
    %v9564 = vmul.f32 1.0, %v9563
    %v9565 = vxor.u32 %v9497, 2147483648
    %v9566 = vxor.u32 %v9498, 2147483648
    %v9567 = vxor.u32 %v9499, 2147483648
    %v9568 = vxor.u32 %v9500, 2147483648
    %v9569 = vmul.f32 %v9565, 1.442695
    %v9570 = vpow.pop %v9569
    %v9571 = vmul.f32 %v9566, 1.442695
    %v9572 = vpow.pop %v9571
    %v9573 = vmul.f32 %v9567, 1.442695
    %v9574 = vpow.pop %v9573
    %v9575 = vmul.f32 %v9568, 1.442695
    %v9576 = vpow.pop %v9575
    %v9577 = vadd.f32 %v9570, 1.0
    %v9578 = vadd.f32 %v9572, 1.0
    %v9579 = vadd.f32 %v9574, 1.0
    %v9580 = vadd.f32 %v9576, 1.0
    %v9581 = vrcp.pop %v9577
    %v9582 = vmul.f32 1.0, %v9581
    %v9583 = vrcp.pop %v9578
    %v9584 = vmul.f32 1.0, %v9583
    %v9585 = vrcp.pop %v9579
    %v9586 = vmul.f32 1.0, %v9585
    %v9587 = vrcp.pop %v9580
    %v9588 = vmul.f32 1.0, %v9587
    %v9589 = vtanh.pop %v9501
    %v9590 = vtanh.pop %v9502
    %v9591 = vtanh.pop %v9503
    %v9592 = vtanh.pop %v9504
    %v9593 = vxor.u32 %v9505, 2147483648
    %v9594 = vxor.u32 %v9506, 2147483648
    %v9595 = vxor.u32 %v9507, 2147483648
    %v9596 = vxor.u32 %v9508, 2147483648
    %v9597 = vmul.f32 %v9593, 1.442695
    %v9598 = vpow.pop %v9597
    %v9599 = vmul.f32 %v9594, 1.442695
    %v9600 = vpow.pop %v9599
    %v9601 = vmul.f32 %v9595, 1.442695
    %v9602 = vpow.pop %v9601
    %v9603 = vmul.f32 %v9596, 1.442695
    %v9604 = vpow.pop %v9603
    %v9605 = vadd.f32 %v9598, 1.0
    %v9606 = vadd.f32 %v9600, 1.0
    %v9607 = vadd.f32 %v9602, 1.0
    %v9608 = vadd.f32 %v9604, 1.0
    %v9609 = vrcp.pop %v9605
    %v9610 = vmul.f32 1.0, %v9609
    %v9611 = vrcp.pop %v9606
    %v9612 = vmul.f32 1.0, %v9611
    %v9613 = vrcp.pop %v9607
    %v9614 = vmul.f32 1.0, %v9613
    %v9615 = vrcp.pop %v9608
    %v9616 = vmul.f32 1.0, %v9615
    %v9617 = vmul.f32 %v9582, %v9204
    %v9618 = vmul.f32 %v9584, %v9205
    %v9619 = vmul.f32 %v9586, %v9206
    %v9620 = vmul.f32 %v9588, %v9207
    %v9621 = vmul.f32 %v9558, %v9589
    %v9622 = vmul.f32 %v9560, %v9590
    %v9623 = vmul.f32 %v9562, %v9591
    %v9624 = vmul.f32 %v9564, %v9592
    %v9625 = vadd.f32 %v9617, %v9621
    %v9626 = vadd.f32 %v9618, %v9622
    %v9627 = vadd.f32 %v9619, %v9623
    %v9628 = vadd.f32 %v9620, %v9624
    %v9629 = vtanh.pop %v9625
    %v9630 = vtanh.pop %v9626
    %v9631 = vtanh.pop %v9627
    %v9632 = vtanh.pop %v9628
    %v9633 = vmul.f32 %v9610, %v9629
    %v9634 = vmul.f32 %v9612, %v9630
    %v9635 = vmul.f32 %v9614, %v9631
    %v9636 = vmul.f32 %v9616, %v9632
    %v9637 = vxor.u32 %v9525, 2147483648
    %v9638 = vxor.u32 %v9526, 2147483648
    %v9639 = vxor.u32 %v9527, 2147483648
    %v9640 = vxor.u32 %v9528, 2147483648
    %v9641 = vmul.f32 %v9637, 1.442695
    %v9642 = vpow.pop %v9641
    %v9643 = vmul.f32 %v9638, 1.442695
    %v9644 = vpow.pop %v9643
    %v9645 = vmul.f32 %v9639, 1.442695
    %v9646 = vpow.pop %v9645
    %v9647 = vmul.f32 %v9640, 1.442695
    %v9648 = vpow.pop %v9647
    %v9649 = vadd.f32 %v9642, 1.0
    %v9650 = vadd.f32 %v9644, 1.0
    %v9651 = vadd.f32 %v9646, 1.0
    %v9652 = vadd.f32 %v9648, 1.0
    %v9653 = vrcp.pop %v9649
    %v9654 = vmul.f32 1.0, %v9653
    %v9655 = vrcp.pop %v9650
    %v9656 = vmul.f32 1.0, %v9655
    %v9657 = vrcp.pop %v9651
    %v9658 = vmul.f32 1.0, %v9657
    %v9659 = vrcp.pop %v9652
    %v9660 = vmul.f32 1.0, %v9659
    %v9661 = vxor.u32 %v9529, 2147483648
    %v9662 = vxor.u32 %v9530, 2147483648
    %v9663 = vxor.u32 %v9531, 2147483648
    %v9664 = vxor.u32 %v9532, 2147483648
    %v9665 = vmul.f32 %v9661, 1.442695
    %v9666 = vpow.pop %v9665
    %v9667 = vmul.f32 %v9662, 1.442695
    %v9668 = vpow.pop %v9667
    %v9669 = vmul.f32 %v9663, 1.442695
    %v9670 = vpow.pop %v9669
    %v9671 = vmul.f32 %v9664, 1.442695
    %v9672 = vpow.pop %v9671
    %v9673 = vadd.f32 %v9666, 1.0
    %v9674 = vadd.f32 %v9668, 1.0
    %v9675 = vadd.f32 %v9670, 1.0
    %v9676 = vadd.f32 %v9672, 1.0
    %v9677 = vrcp.pop %v9673
    %v9678 = vmul.f32 1.0, %v9677
    %v9679 = vrcp.pop %v9674
    %v9680 = vmul.f32 1.0, %v9679
    %v9681 = vrcp.pop %v9675
    %v9682 = vmul.f32 1.0, %v9681
    %v9683 = vrcp.pop %v9676
    %v9684 = vmul.f32 1.0, %v9683
    %v9685 = vtanh.pop %v9533
    %v9686 = vtanh.pop %v9534
    %v9687 = vtanh.pop %v9535
    %v9688 = vtanh.pop %v9536
    %v9689 = vxor.u32 %v9537, 2147483648
    %v9690 = vxor.u32 %v9538, 2147483648
    %v9691 = vxor.u32 %v9539, 2147483648
    %v9692 = vxor.u32 %v9540, 2147483648
    %v9693 = vmul.f32 %v9689, 1.442695
    %v9694 = vpow.pop %v9693
    %v9695 = vmul.f32 %v9690, 1.442695
    %v9696 = vpow.pop %v9695
    %v9697 = vmul.f32 %v9691, 1.442695
    %v9698 = vpow.pop %v9697
    %v9699 = vmul.f32 %v9692, 1.442695
    %v9700 = vpow.pop %v9699
    %v9701 = vadd.f32 %v9694, 1.0
    %v9702 = vadd.f32 %v9696, 1.0
    %v9703 = vadd.f32 %v9698, 1.0
    %v9704 = vadd.f32 %v9700, 1.0
    %v9705 = vrcp.pop %v9701
    %v9706 = vmul.f32 1.0, %v9705
    %v9707 = vrcp.pop %v9702
    %v9708 = vmul.f32 1.0, %v9707
    %v9709 = vrcp.pop %v9703
    %v9710 = vmul.f32 1.0, %v9709
    %v9711 = vrcp.pop %v9704
    %v9712 = vmul.f32 1.0, %v9711
    %v9713 = vmul.f32 %v9678, %v9300
    %v9714 = vmul.f32 %v9680, %v9301
    %v9715 = vmul.f32 %v9682, %v9302
    %v9716 = vmul.f32 %v9684, %v9303
    %v9717 = vmul.f32 %v9654, %v9685
    %v9718 = vmul.f32 %v9656, %v9686
    %v9719 = vmul.f32 %v9658, %v9687
    %v9720 = vmul.f32 %v9660, %v9688
    %v9721 = vadd.f32 %v9713, %v9717
    %v9722 = vadd.f32 %v9714, %v9718
    %v9723 = vadd.f32 %v9715, %v9719
    %v9724 = vadd.f32 %v9716, %v9720
    %v9725 = vtanh.pop %v9721
    %v9726 = vtanh.pop %v9722
    %v9727 = vtanh.pop %v9723
    %v9728 = vtanh.pop %v9724
    %v9729 = vmul.f32 %v9706, %v9725
    %v9730 = vmul.f32 %v9708, %v9726
    %v9731 = vmul.f32 %v9710, %v9727
    %v9732 = vmul.f32 %v9712, %v9728
    %v9733 = vld [vmem:[%s5] sm:$0x3]
    %v9734 = vpack.c.bf16 %v9634, %v9633
    %v9735 = vpack.c.bf16 %v9636, %v9635
    %v9736 = vpack.c.bf16 %v9730, %v9729
    %v9737 = vpack.c.bf16 %v9732, %v9731
    %v9738 = vld [vmem:[%s6] sm:$0xf]
    %9740 = vset.pattern.permute.xlu0 0
    %9741 = vperm.xlu0 %9740, %v9738
    %v9742 = vpop.permute.xlu0 %9741
    %v9745 = vsel %vm1339, %v9733, 0
    %9747 = vmatprep.subr.bf16.mxu0 0
    %9748 = vmatpush1.bf16.msra.mxu0 %v9734
    %9749 = vmatprep.subr.bf16.mxu0 0
    %9750 = vmatpush1.bf16.msra.mxu0 %v9735
    %9751 = vmatprep.subr.bf16.mxu0 0
    %9752 = vmatpush1.bf16.msra.mxu0 %v9736
    %9753 = vmatprep.subr.bf16.mxu0 0
    %9754 = vmatpush1.bf16.msra.mxu0 %v9737
    %9755 = vmatprep.subr.bf16.mxu0 0
    %9756 = vmatpush1.bf16.msra.mxu0 0
    %9757 = vmatprep.subr.bf16.mxu0 0
    %9758 = vmatpush1.bf16.msra.mxu0 0
    %9759 = vmatprep.subr.bf16.mxu0 0
    %9760 = vmatpush1.bf16.msra.mxu0 0
    %9761 = vmatprep.subr.bf16.mxu0 0
    %9762 = vmatpush1.bf16.msra.mxu0 0
    %9763 = vmatprep.subr.bf16.mxu0 0
    %9764 = vmatpush1.bf16.msra.mxu0 0
    %9765 = vmatprep.subr.bf16.mxu0 0
    %9766 = vmatpush1.bf16.msra.mxu0 0
    %9767 = vmatprep.subr.bf16.mxu0 0
    %9768 = vmatpush1.bf16.msra.mxu0 0
    %9769 = vmatprep.subr.bf16.mxu0 0
    %9770 = vmatpush1.bf16.msra.mxu0 0
    %9771 = vmatprep.subr.bf16.mxu0 0
    %9772 = vmatpush1.bf16.msra.mxu0 0
    %9773 = vmatprep.subr.bf16.mxu0 0
    %9774 = vmatpush1.bf16.msra.mxu0 0
    %9775 = vmatprep.subr.bf16.mxu0 0
    %9776 = vmatpush1.bf16.msra.mxu0 0
    %9777 = vmatprep.subr.bf16.mxu0 0
    %9778 = vmatpush1.bf16.msra.mxu0 0
    %9779 = vmatprep.mubr.bf16.mxu0 0
    %9780 = vmatmul.mubr.bf16.gmra.mrb[0].mxu0 %v9745
    %v9781 = vpop.f32.mrb[0].mxu0
    %v9782 = vadd.f32 %v9742, %v9781
    %v9783 = vpop.f32.mrb[0].mxu0
    %v9784 = vpop.f32.mrb[0].mxu0
    %v9785 = vpop.f32.mrb[0].mxu0
    %9786 = vdwg.mxu0
    %9787 = vst [vmem:[#allocation4] sm:$0xf] %v9782
    // Predicated region
    $region30: #{tpu_custom_call.1} parent=1 // pred_check
      _
    $region31: #{tpu_custom_call.1} parent=1 // pred_check_branch
      %9789 = sbr.rel (0) target = $region33
    $region32: #{tpu_custom_call.1} parent=1 // pred_region
      %s9791 = ssub.s32 64, 64
      %9792 = vsyncadd [#allocation5], %s9791
      %s9794 = sshll.u32 [#allocation4], 4
      %s9795 = int_to_ptr.vmem [resolvable:$true] %s9794
      %9797 = dma.vmem_to_hbm [thread:$0]  %s9795, 64, %s7, [#allocation5]
    $region33: #{tpu_custom_call.1} parent=1 // pred_fallthru
      _
    // Predicated region
    $region34: #{tpu_custom_call.1} parent=1 // pred_check
      _
    $region35: #{tpu_custom_call.1} parent=1 // pred_check_branch
      %9799 = sbr.rel (0) target = $region37
    $region36: #{tpu_custom_call.1} parent=1 // pred_region
      %9800 = dma.done [#allocation5], 64
    $region37: #{tpu_custom_call.1} parent=1 // pred_fallthru
      _
    %9801 = vsyncpa [#allocation5], 1

</llo_original>
